<compile_context>
chip_gen: v5e
topology: v5e:2x2
jax: 0.10.0
libtpu: 0.0.40
codegen_flags: <defaults>
</compile_context>

<pallas_src>
import functools
import math

import numpy as np
import jax
import jax.numpy as jnp
from jax import lax
from jax.experimental import pallas as pl
from jax.experimental.pallas import tpu as pltpu


# ------------------------------------------------------------------ in-kernel helpers
def _softmax_lastdim(x):
    m = jnp.max(x, axis=-1, keepdims=True)
    e = jnp.exp(x - m)
    return e * pl.reciprocal(jnp.sum(e, axis=-1, keepdims=True), approx=True)


def _cross_att(q_bf, k_bf, wqk, bqk, wv_blk, wsc_blk, *, num_modes, feat_dim):
    """CrossAttFeatTrans (qk bias, no v bias, no FFN) + LearnedSoftAggregate.

    q_bf [N1, C] / k_bf [N2, C]: bf16, token-major (features on lanes).
    wqk  [C, M*C]  : lane-concat of Wq_m @ Wk_m^T / sqrt(D)   (scale folded in)
    bqk  [1, M*C]  : lane-concat of bq_m @ Wk_m^T / sqrt(D)   (f32)
    wv_blk [M*C, M*C]: block-diag(Wv_0..Wv_{M-1})  -> one matmul for all F_m
    wsc_blk [M*C, M] : column m holds w_score at rows m*C:(m+1)*C
    bk / bsc are dropped (softmax-invariant row/mode constants).
    """
    C, M = feat_dim, num_modes

    # A_m = Q_m @ Wk_m^T / sqrt(D), all modes lane-concatenated: one matmul.
    A = lax.dot_general(q_bf, wqk, (((1,), (0,)), ((), ())),
                        preferred_element_type=jnp.float32) + bqk          # [N1, M*C]

    gs = []
    for m in range(M):
        a_m = A[:, m * C:(m + 1) * C].astype(jnp.bfloat16)                 # [N1, C]
        s_m = lax.dot_general(a_m, k_bf, (((1,), (1,)), ((), ())),
                              preferred_element_type=jnp.float32)          # [N1, N2]
        p_m = _softmax_lastdim(s_m).astype(jnp.bfloat16)
        # F_m = P_m @ (k @ Wv_m) re-associated to (P_m @ k) @ Wv_m; only G here.
        gs.append(lax.dot_general(p_m, k_bf, (((1,), (0,)), ((), ())),
                                  preferred_element_type=jnp.float32))     # [N1, C]
    g_cat = jnp.concatenate(gs, axis=-1).astype(jnp.bfloat16)              # [N1, M*C]

    # All four F_m in one lane-dense matmul (block-diagonal Wv).
    f_cat = lax.dot_general(g_cat, wv_blk, (((1,), (0,)), ((), ())),
                            preferred_element_type=jnp.float32)            # [N1, M*C]
    # All four per-mode aggregation scores in one matmul.
    sc = lax.dot_general(f_cat.astype(jnp.bfloat16), wsc_blk,
                         (((1,), (0,)), ((), ())),
                         preferred_element_type=jnp.float32)               # [N1, M]

    # LearnedSoftAggregate: softmax across the M modes (f32 VPU/EUP math).
    smax = jnp.max(sc, axis=-1, keepdims=True)
    e = jnp.exp(sc - smax)
    denom = jnp.sum(e, axis=-1, keepdims=True)
    out = e[:, 0:1] * f_cat[:, 0:C]
    for m in range(1, M):
        out = out + e[:, m:(m + 1)] * f_cat[:, m * C:(m + 1) * C]
    return out * pl.reciprocal(denom, approx=True)                         # [N1, C] f32


def _polyformer_kernel(x_ref, attr_ref, poolT_ref, upM_ref, eye_ref,
                       wqk1_ref, bqk1_ref, wvblk1_ref, wscblk1_ref,
                       wqk2_ref, bqk2_ref, wvblk2_ref, wscblk2_ref,
                       out_ref, *, num_modes, feat_dim):
    attr_bf = attr_ref[0]            # [Na, C]  bf16
    poolT = poolT_ref[...]           # [U, HW]  bf16: AvgPool2d(2) + tokenization
    upM = upM_ref[...]               # [U, HW]  bf16: bilinear 2x + de-tokenization
    eye = eye_ref[...]               # [C, C]   bf16 identity (wrapper constant)
    wqk1, bqk1 = wqk1_ref[...], bqk1_ref[...]
    wvblk1, wscblk1 = wvblk1_ref[...], wscblk1_ref[...]
    wqk2, bqk2 = wqk2_ref[...], bqk2_ref[...]
    wvblk2, wscblk2 = wvblk2_ref[...], wscblk2_ref[...]

    # Static unroll over the batch elements in this block (1 on the multi-TC grid
    # path, B on the single-step path) -> independent chains for the scheduler.
    for b in range(x_ref.shape[0]):
        x = x_ref[b]                                                       # [C, HW] f32
        # pooled, token-major features vfeat[u, c] (contract over the HW lanes).
        vfeat = lax.dot_general(poolT, x.astype(jnp.bfloat16),
                                (((1,), (1,)), ((), ())),
                                preferred_element_type=jnp.float32)        # [U, C]
        vfeat_bf = vfeat.astype(jnp.bfloat16)

        new_attr = _cross_att(attr_bf, vfeat_bf, wqk1, bqk1, wvblk1, wscblk1,
                              num_modes=num_modes, feat_dim=feat_dim)      # [Na, C]
        out_tok = _cross_att(vfeat_bf, new_attr.astype(jnp.bfloat16),
                             wqk2, bqk2, wvblk2, wscblk2,
                             num_modes=num_modes, feat_dim=feat_dim)       # [U, C]

        # [U, C] -> [C, U] on the MXU ((1,1) contraction with a constant identity),
        # then bilinear 2x upsample + residual, lane-dense [C, HW] output store.
        outT = lax.dot_general(eye, out_tok.astype(jnp.bfloat16),
                               (((1,), (1,)), ((), ())),
                               preferred_element_type=jnp.float32)         # [C, U]
        up = lax.dot_general(outT.astype(jnp.bfloat16), upM,
                             (((1,), (0,)), ((), ())),
                             preferred_element_type=jnp.float32)           # [C, HW]
        out_ref[b] = (x + up).astype(out_ref.dtype)


# ----------------------------------------------------------------------------- wrapper
def _bilinear_1d_weights(n_out, n_in):
    # 1-D weights of F.interpolate(scale=2, mode='bilinear', align_corners=False).
    w = np.zeros((n_out, n_in), np.float32)
    for o in range(n_out):
        src = (o + 0.5) * n_in / n_out - 0.5
        f = int(np.floor(src))
        frac = src - f
        i0 = min(max(f, 0), n_in - 1)
        i1 = min(max(f + 1, 0), n_in - 1)
        w[o, i0] += 1.0 - frac
        w[o, i1] += frac
    return w


def _layout_matrices(H, W):
    """Constant matrices folding pool/upsample AND the module's exact token-order
    bookkeeping (vfeat token u = w2*H2 + h2, output token u' = h2*W2 + w2) into
    lane-dense matmuls.  All entries are multiples of 1/16 -> exact in bf16."""
    H2, W2 = H // 2, W // 2
    ph = np.zeros((H, H2), np.float32)
    pw = np.zeros((W, W2), np.float32)
    for h in range(H):
        ph[h, h // 2] = 0.5
    for w in range(W):
        pw[w, w // 2] = 0.5
    poolT = np.einsum('hi,wj->jihw', ph, pw).reshape(W2 * H2, H * W)
    uh = _bilinear_1d_weights(H, H2)
    uw = _bilinear_1d_weights(W, W2)
    upM = np.einsum('hi,wj->ijhw', uh, uw).reshape(H2 * W2, H * W)
    # TODO(synk): for large H,W (>=64) switch to separable 1-D pool/upsample factors;
    # these dense [U, HW] matrices grow quadratically and would pressure v7x VMEM.
    return (jnp.asarray(poolT, dtype=jnp.bfloat16),
            jnp.asarray(upM, dtype=jnp.bfloat16))


def _fold_cross_params(p, feat_dim, num_modes):
    """Fold scale / Wk / bq into Wqk, drop bk & bsc, block-diagonalize Wv & w_sc."""
    C, M = feat_dim, num_modes
    D = C // M
    scale = 1.0 / math.sqrt(D)
    wq, bq, wk, wv, wsc = p['wq'], p['bq'], p['wk'], p['wv'], p['wsc']
    wqk_blocks, bqk_blocks, wv_blocks, wsc_blocks = [], [], [], []
    for m in range(M):
        wq_m = wq[:, m * D:(m + 1) * D]              # [C, D]
        wk_m = wk[:, m * D:(m + 1) * D]              # [C, D]
        bq_m = bq[:, m * D:(m + 1) * D]              # [1, D]
        wqk_blocks.append(scale * (wq_m @ wk_m.T))   # [C, C]
        bqk_blocks.append(scale * (bq_m @ wk_m.T))   # [1, C]
        wv_blocks.append(wv[:, m * C:(m + 1) * C])   # [C, C]
        wsc_blocks.append(wsc.reshape(C, 1))         # [C, 1]
    # bk dropped: adds a per-query-row constant to the logits -> softmax-invariant.
    # bsc dropped: shared across modes -> mode-softmax invariant.
    wqk = jnp.concatenate(wqk_blocks, axis=1).astype(jnp.bfloat16)            # [C, M*C]
    bqk = jnp.concatenate(bqk_blocks, axis=1).astype(jnp.float32)             # [1, M*C]
    wv_blk = jax.scipy.linalg.block_diag(*wv_blocks).astype(jnp.bfloat16)     # [M*C, M*C]
    wsc_blk = jax.scipy.linalg.block_diag(*wsc_blocks).astype(jnp.bfloat16)   # [M*C, M]
    return wqk, bqk, wv_blk, wsc_blk


def _const_spec(a):
    return pl.BlockSpec(a.shape, lambda b, _nd=a.ndim: (0,) * _nd)


def _cost_estimate(B, C, HW, U, Na, M):
    MC = M * C

    def mm(m, k, n):
        return 2 * m * k * n

    def att(n1, n2):
        return (mm(n1, C, MC) + M * mm(n1, C, n2) + M * mm(n1, n2, C)
                + mm(n1, MC, MC) + mm(n1, MC, M))

    flops = B * (mm(U, HW, C) + att(Na, U) + att(U, Na)
                 + mm(C, C, U) + mm(C, U, HW) + 2 * C * HW)
    transcendentals = B * (2 * M * Na * U + M * (Na + U) + 2 * (Na + U))
    bytes_accessed = (B * C * HW * 4 * 2 + Na * C * 2 + 2 * U * HW * 2 + C * C * 2
                      + 2 * (C * MC * 2 + MC * 4 + MC * MC * 2 + MC * M * 2))
    return pl.CostEstimate(flops=int(flops), transcendentals=int(transcendentals),
                           bytes_accessed=int(bytes_accessed))


def polyformer_forward(in_feat, params, num_modes=4):
    """Polyformer (1 PolyformerLayer, chan_axis=1, poly_do_layernorm=False)."""
    B, C, H, W = in_feat.shape
    H2, W2 = H // 2, W // 2
    HW, U = H * W, H2 * W2
    Na = params['attractors'].shape[1]
    M = num_modes

    x_flat = in_feat.reshape(B, C, HW)              # free reshape (NCHW-contiguous)
    poolT, upM = _layout_matrices(H, W)
    eye = jnp.asarray(np.eye(C, dtype=np.float32), dtype=jnp.bfloat16)
    attr = params['attractors'].astype(jnp.bfloat16)
    p1 = _fold_cross_params(params['in_ator'], C, M)
    p2 = _fold_cross_params(params['ator_out'], C, M)

    # Chip-aware grid: per-batch "parallel" grid only where >1 TensorCore per Pallas
    # device exists (v4 / v5p / v7x); on single-TC v5e / v6e run the whole batch in
    # one grid step (batch unrolled in-kernel) to avoid per-step loop overhead.
    multi_tc = False
    try:
        kind = jax.devices()[0].device_kind.lower().replace(" ", "")
        multi_tc = any(t in kind for t in ("v7", "7x", "v4", "v5p"))
    except Exception:
        multi_tc = False

    if multi_tc and B > 1:
        grid = (B,)
        x_spec = pl.BlockSpec((1, C, HW), lambda b: (b, 0, 0))
        semantics = ("parallel",)
    else:
        grid = (1,)
        x_spec = pl.BlockSpec((B, C, HW), lambda b: (0, 0, 0))
        semantics = ("arbitrary",)

    consts = [attr, poolT, upM, eye, *p1, *p2]
    kernel = functools.partial(_polyformer_kernel, num_modes=M, feat_dim=C)

    y = pl.pallas_call(
        kernel,
        out_shape=jax.ShapeDtypeStruct((B, C, HW), jnp.float32),
        grid_spec=pltpu.PrefetchScalarGridSpec(
            num_scalar_prefetch=0, grid=grid,
            in_specs=[x_spec] + [_const_spec(a) for a in consts],
            out_specs=x_spec),
        compiler_params=pltpu.CompilerParams(dimension_semantics=semantics),
        cost_estimate=_cost_estimate(B, C, HW, U, Na, M),
    )(x_flat, *consts)
    return y.reshape(B, C, H, W)


# ----------------------------------------------------------------------------- params
def init_params(key, feat_dim, num_modes, num_attractors):
    ks = jax.random.split(key, 3)

    def cross_params(k):
        kk = jax.random.split(k, 4)
        wq = 0.02 * jax.random.normal(kk[0], (feat_dim, feat_dim), jnp.float32)
        bq = 0.02 * jax.random.normal(kk[1], (1, feat_dim), jnp.float32)
        wv = 0.02 * jax.random.normal(kk[2], (feat_dim, num_modes * feat_dim), jnp.float32)
        wsc = 0.02 * jax.random.normal(kk[3], (1, feat_dim), jnp.float32)
        bsc = jnp.zeros((1, 1), jnp.float32)
        # tie_qk_scheme='loose': key projection initialized as a copy of the query proj.
        return dict(wq=wq, bq=bq, wk=wq, bk=bq, wv=wv, wsc=wsc, bsc=bsc)

    return dict(
        attractors=jax.random.normal(ks[0], (1, num_attractors, feat_dim), jnp.float32),
        in_ator=cross_params(ks[1]),
        ator_out=cross_params(ks[2]),
    )


# ----------------------------------------------------------------------------- pure-JAX reference
def _cross_att_ref(query, key, p, num_modes):
    B, U1, C = query.shape
    U2 = key.shape[1]
    D = C // num_modes
    Q = query @ p['wq'] + p['bq']
    K = key @ p['wk'] + p['bk']
    V = key @ p['wv']
    Qh = Q.reshape(B, U1, num_modes, D).transpose(0, 2, 1, 3)
    Kh = K.reshape(B, U2, num_modes, D).transpose(0, 2, 1, 3)
    S = jnp.einsum('bmud,bmvd->bmuv', Qh, Kh) / math.sqrt(D)
    S = jnp.clip(S, -500.0, 500.0)
    P = jax.nn.softmax(S, axis=-1)
    Vh = V.reshape(B, U2, num_modes, C).transpose(0, 2, 1, 3)
    F = jnp.einsum('bmuv,bmvc->bmuc', P, Vh)
    sc = jnp.einsum('bmuc,c->bmu', F, p['wsc'][0]) + p['bsc'][0, 0]
    probs = jax.nn.softmax(sc, axis=1)
    return jnp.einsum('bmuc,bmu->buc', F, probs)


def _up2x_axis_ref(x, axis):
    n = x.shape[axis]
    x_prev = jnp.take(x, jnp.maximum(jnp.arange(n) - 1, 0), axis=axis)
    x_next = jnp.take(x, jnp.minimum(jnp.arange(n) + 1, n - 1), axis=axis)
    even = 0.75 * x + 0.25 * x_prev
    odd = 0.75 * x + 0.25 * x_next
    out = jnp.stack([even, odd], axis=axis + 1)
    new_shape = list(x.shape)
    new_shape[axis] = 2 * n
    return out.reshape(new_shape)


def polyformer_ref(in_feat, params, num_modes):
    B, C, H, W = in_feat.shape
    H2, W2 = H // 2, W // 2
    pooled = in_feat.reshape(B, C, H2, 2, W2, 2).mean(axis=(3, 5))
    vfeat = jnp.transpose(pooled, (0, 3, 2, 1)).reshape(B, W2 * H2, C)
    attractors = jnp.broadcast_to(params['attractors'], (B,) + params['attractors'].shape[1:])
    na = _cross_att_ref(attractors, vfeat, params['in_ator'], num_modes)
    vo = _cross_att_ref(vfeat, na, params['ator_out'], num_modes)
    out_half = jnp.transpose(vo, (0, 2, 1)).reshape(B, C, H2, W2)
    up = _up2x_axis_ref(_up2x_axis_ref(out_half, 2), 3)
    return in_feat + up


# ----------------------------------------------------------------------------- main
if __name__ == "__main__":
    key = jax.random.PRNGKey(0)
    B, C, H, W = 2, 32, 16, 16           # feat_dim = C = 32
    num_modes, num_attractors = 4, 256   # Polyformer defaults (args=None)

    k_in, k_par = jax.random.split(key)
    in_feat = jax.random.normal(k_in, (B, C, H, W), jnp.float32)
    params = init_params(k_par, C, num_modes, num_attractors)

    fwd = jax.jit(functools.partial(polyformer_forward, num_modes=num_modes))
    out = jax.block_until_ready(fwd(in_feat, params))

    ref = polyformer_ref(in_feat, params, num_modes)
    assert out.shape == in_feat.shape
    max_err = float(jnp.max(jnp.abs(out - ref)))
    assert max_err < 2e-3, f"mismatch vs reference, max abs err = {max_err}"
    print("KERNEL_OK")
</pallas_src>

<mosaic_0001>
module attributes {stable_mosaic.version = 11 : i64} {
  func.func @_polyformer_kernel(%arg0: i32, %arg1: memref<2x32x256xf32, #tpu.memory_space<vmem>>, %arg2: memref<1x256x32xbf16, #tpu.memory_space<vmem>>, %arg3: memref<64x256xbf16, #tpu.memory_space<vmem>>, %arg4: memref<64x256xbf16, #tpu.memory_space<vmem>>, %arg5: memref<32x32xbf16, #tpu.memory_space<vmem>>, %arg6: memref<32x128xbf16, #tpu.memory_space<vmem>>, %arg7: memref<1x128xf32, #tpu.memory_space<vmem>>, %arg8: memref<128x128xbf16, #tpu.memory_space<vmem>>, %arg9: memref<128x4xbf16, #tpu.memory_space<vmem>>, %arg10: memref<32x128xbf16, #tpu.memory_space<vmem>>, %arg11: memref<1x128xf32, #tpu.memory_space<vmem>>, %arg12: memref<128x128xbf16, #tpu.memory_space<vmem>>, %arg13: memref<128x4xbf16, #tpu.memory_space<vmem>>, %arg14: memref<2x32x256xf32, #tpu.memory_space<vmem>>) attributes {dimension_semantics = [#tpu.dimension_semantics<arbitrary>], iteration_bounds = array<i64: 1>, scalar_prefetch = 0 : i64, scratch_operands = 0 : i64, tpu.core_type = #tpu.core_type<tc>, window_params = [{pipeline_mode = #tpu.pipeline_mode<synchronous>, transform_indices = @transform_0, window_bounds = array<i64: 2, 32, 256>}, {pipeline_mode = #tpu.pipeline_mode<synchronous>, transform_indices = @transform_1, window_bounds = array<i64: 1, 256, 32>}, {pipeline_mode = #tpu.pipeline_mode<synchronous>, transform_indices = @transform_2, window_bounds = array<i64: 64, 256>}, {pipeline_mode = #tpu.pipeline_mode<synchronous>, transform_indices = @transform_3, window_bounds = array<i64: 64, 256>}, {pipeline_mode = #tpu.pipeline_mode<synchronous>, transform_indices = @transform_4, window_bounds = array<i64: 32, 32>}, {pipeline_mode = #tpu.pipeline_mode<synchronous>, transform_indices = @transform_5, window_bounds = array<i64: 32, 128>}, {pipeline_mode = #tpu.pipeline_mode<synchronous>, transform_indices = @transform_6, window_bounds = array<i64: 1, 128>}, {pipeline_mode = #tpu.pipeline_mode<synchronous>, transform_indices = @transform_7, window_bounds = array<i64: 128, 128>}, {pipeline_mode = #tpu.pipeline_mode<synchronous>, transform_indices = @transform_8, window_bounds = array<i64: 128, 4>}, {pipeline_mode = #tpu.pipeline_mode<synchronous>, transform_indices = @transform_9, window_bounds = array<i64: 32, 128>}, {pipeline_mode = #tpu.pipeline_mode<synchronous>, transform_indices = @transform_10, window_bounds = array<i64: 1, 128>}, {pipeline_mode = #tpu.pipeline_mode<synchronous>, transform_indices = @transform_11, window_bounds = array<i64: 128, 128>}, {pipeline_mode = #tpu.pipeline_mode<synchronous>, transform_indices = @transform_12, window_bounds = array<i64: 128, 4>}, {pipeline_mode = #tpu.pipeline_mode<synchronous>, transform_indices = @transform_13, window_bounds = array<i64: 2, 32, 256>}]} {
    %c0 = arith.constant 0 : index
    %c0_0 = arith.constant 0 : index
    %c0_1 = arith.constant 0 : index
    %0 = vector.load %arg2[%c0, %c0_0, %c0_1] : memref<1x256x32xbf16, #tpu.memory_space<vmem>>, vector<1x256x32xbf16>
    %1 = vector.shape_cast %0 : vector<1x256x32xbf16> to vector<256x32xbf16>
    %c0_2 = arith.constant 0 : index
    %c0_3 = arith.constant 0 : index
    %2 = vector.load %arg3[%c0_2, %c0_3] : memref<64x256xbf16, #tpu.memory_space<vmem>>, vector<64x256xbf16>
    %c0_4 = arith.constant 0 : index
    %c0_5 = arith.constant 0 : index
    %3 = vector.load %arg4[%c0_4, %c0_5] : memref<64x256xbf16, #tpu.memory_space<vmem>>, vector<64x256xbf16>
    %c0_6 = arith.constant 0 : index
    %c0_7 = arith.constant 0 : index
    %4 = vector.load %arg5[%c0_6, %c0_7] : memref<32x32xbf16, #tpu.memory_space<vmem>>, vector<32x32xbf16>
    %c0_8 = arith.constant 0 : index
    %c0_9 = arith.constant 0 : index
    %5 = vector.load %arg6[%c0_8, %c0_9] : memref<32x128xbf16, #tpu.memory_space<vmem>>, vector<32x128xbf16>
    %c0_10 = arith.constant 0 : index
    %c0_11 = arith.constant 0 : index
    %6 = vector.load %arg7[%c0_10, %c0_11] : memref<1x128xf32, #tpu.memory_space<vmem>>, vector<1x128xf32>
    %c0_12 = arith.constant 0 : index
    %c0_13 = arith.constant 0 : index
    %7 = vector.load %arg8[%c0_12, %c0_13] : memref<128x128xbf16, #tpu.memory_space<vmem>>, vector<128x128xbf16>
    %c0_14 = arith.constant 0 : index
    %c0_15 = arith.constant 0 : index
    %8 = vector.load %arg9[%c0_14, %c0_15] : memref<128x4xbf16, #tpu.memory_space<vmem>>, vector<128x4xbf16>
    %c0_16 = arith.constant 0 : index
    %c0_17 = arith.constant 0 : index
    %9 = vector.load %arg10[%c0_16, %c0_17] : memref<32x128xbf16, #tpu.memory_space<vmem>>, vector<32x128xbf16>
    %c0_18 = arith.constant 0 : index
    %c0_19 = arith.constant 0 : index
    %10 = vector.load %arg11[%c0_18, %c0_19] : memref<1x128xf32, #tpu.memory_space<vmem>>, vector<1x128xf32>
    %c0_20 = arith.constant 0 : index
    %c0_21 = arith.constant 0 : index
    %11 = vector.load %arg12[%c0_20, %c0_21] : memref<128x128xbf16, #tpu.memory_space<vmem>>, vector<128x128xbf16>
    %c0_22 = arith.constant 0 : index
    %c0_23 = arith.constant 0 : index
    %12 = vector.load %arg13[%c0_22, %c0_23] : memref<128x4xbf16, #tpu.memory_space<vmem>>, vector<128x4xbf16>
    %c0_24 = arith.constant 0 : index
    %c0_25 = arith.constant 0 : index
    %c0_26 = arith.constant 0 : index
    %13 = vector.load %arg1[%c0_24, %c0_25, %c0_26] : memref<2x32x256xf32, #tpu.memory_space<vmem>>, vector<1x32x256xf32>
    %14 = vector.shape_cast %13 : vector<1x32x256xf32> to vector<32x256xf32>
    %15 = arith.truncf %14 : vector<32x256xf32> to vector<32x256xbf16>
    %cst = arith.constant dense<0.000000e+00> : vector<64x32xf32>
    %16 = tpu.matmul %2, %15, %cst {dimension_numbers = #tpu.dot_dimension_numbers<[1], [1], [0], [0], [0, 0, 1, 0], [], []>} : vector<64x256xbf16>, vector<32x256xbf16>, vector<64x32xf32> -> vector<64x32xf32>
    %17 = arith.truncf %16 : vector<64x32xf32> to vector<64x32xbf16>
    %cst_27 = arith.constant dense<0.000000e+00> : vector<256x128xf32>
    %18 = tpu.matmul %1, %5, %cst_27 {dimension_numbers = #tpu.dot_dimension_numbers<[1], [0], [0], [1], [0, 0, 1, 1], [], []>} : vector<256x32xbf16>, vector<32x128xbf16>, vector<256x128xf32> -> vector<256x128xf32>
    %19 = vector.broadcast %6 : vector<1x128xf32> to vector<256x128xf32>
    %20 = arith.addf %18, %19 : vector<256x128xf32>
    %21 = vector.extract_strided_slice %20 {offsets = [0, 0], sizes = [256, 32], strides = [1, 1]} : vector<256x128xf32> to vector<256x32xf32>
    %22 = arith.truncf %21 : vector<256x32xf32> to vector<256x32xbf16>
    %cst_28 = arith.constant dense<0.000000e+00> : vector<256x64xf32>
    %23 = tpu.matmul %22, %17, %cst_28 {dimension_numbers = #tpu.dot_dimension_numbers<[1], [1], [0], [0], [0, 0, 1, 0], [], []>} : vector<256x32xbf16>, vector<64x32xbf16>, vector<256x64xf32> -> vector<256x64xf32>
    %cst_29 = arith.constant dense<0xFF800000> : vector<256xf32>
    %24 = vector.multi_reduction <maximumf>, %23, %cst_29 [1] : vector<256x64xf32> to vector<256xf32>
    %25 = vector.shape_cast %24 : vector<256xf32> to vector<256x1xf32>
    %26 = vector.broadcast %25 : vector<256x1xf32> to vector<256x64xf32>
    %27 = arith.subf %23, %26 : vector<256x64xf32>
    %28 = math.exp %27 : vector<256x64xf32>
    %cst_30 = arith.constant dense<0.000000e+00> : vector<256xf32>
    %29 = vector.multi_reduction <add>, %28, %cst_30 [1] : vector<256x64xf32> to vector<256xf32>
    %30 = vector.shape_cast %29 : vector<256xf32> to vector<256x1xf32>
    %31 = tpu.reciprocal %30 {approx = true} : vector<256x1xf32> -> vector<256x1xf32>
    %32 = vector.broadcast %31 : vector<256x1xf32> to vector<256x64xf32>
    %33 = arith.mulf %28, %32 : vector<256x64xf32>
    %34 = arith.truncf %33 : vector<256x64xf32> to vector<256x64xbf16>
    %cst_31 = arith.constant dense<0.000000e+00> : vector<256x32xf32>
    %35 = tpu.matmul %34, %17, %cst_31 {dimension_numbers = #tpu.dot_dimension_numbers<[1], [0], [0], [1], [0, 0, 1, 1], [], []>} : vector<256x64xbf16>, vector<64x32xbf16>, vector<256x32xf32> -> vector<256x32xf32>
    %36 = vector.extract_strided_slice %20 {offsets = [0, 32], sizes = [256, 32], strides = [1, 1]} : vector<256x128xf32> to vector<256x32xf32>
    %37 = arith.truncf %36 : vector<256x32xf32> to vector<256x32xbf16>
    %cst_32 = arith.constant dense<0.000000e+00> : vector<256x64xf32>
    %38 = tpu.matmul %37, %17, %cst_32 {dimension_numbers = #tpu.dot_dimension_numbers<[1], [1], [0], [0], [0, 0, 1, 0], [], []>} : vector<256x32xbf16>, vector<64x32xbf16>, vector<256x64xf32> -> vector<256x64xf32>
    %cst_33 = arith.constant dense<0xFF800000> : vector<256xf32>
    %39 = vector.multi_reduction <maximumf>, %38, %cst_33 [1] : vector<256x64xf32> to vector<256xf32>
    %40 = vector.shape_cast %39 : vector<256xf32> to vector<256x1xf32>
    %41 = vector.broadcast %40 : vector<256x1xf32> to vector<256x64xf32>
    %42 = arith.subf %38, %41 : vector<256x64xf32>
    %43 = math.exp %42 : vector<256x64xf32>
    %cst_34 = arith.constant dense<0.000000e+00> : vector<256xf32>
    %44 = vector.multi_reduction <add>, %43, %cst_34 [1] : vector<256x64xf32> to vector<256xf32>
    %45 = vector.shape_cast %44 : vector<256xf32> to vector<256x1xf32>
    %46 = tpu.reciprocal %45 {approx = true} : vector<256x1xf32> -> vector<256x1xf32>
    %47 = vector.broadcast %46 : vector<256x1xf32> to vector<256x64xf32>
    %48 = arith.mulf %43, %47 : vector<256x64xf32>
    %49 = arith.truncf %48 : vector<256x64xf32> to vector<256x64xbf16>
    %cst_35 = arith.constant dense<0.000000e+00> : vector<256x32xf32>
    %50 = tpu.matmul %49, %17, %cst_35 {dimension_numbers = #tpu.dot_dimension_numbers<[1], [0], [0], [1], [0, 0, 1, 1], [], []>} : vector<256x64xbf16>, vector<64x32xbf16>, vector<256x32xf32> -> vector<256x32xf32>
    %51 = vector.extract_strided_slice %20 {offsets = [0, 64], sizes = [256, 32], strides = [1, 1]} : vector<256x128xf32> to vector<256x32xf32>
    %52 = arith.truncf %51 : vector<256x32xf32> to vector<256x32xbf16>
    %cst_36 = arith.constant dense<0.000000e+00> : vector<256x64xf32>
    %53 = tpu.matmul %52, %17, %cst_36 {dimension_numbers = #tpu.dot_dimension_numbers<[1], [1], [0], [0], [0, 0, 1, 0], [], []>} : vector<256x32xbf16>, vector<64x32xbf16>, vector<256x64xf32> -> vector<256x64xf32>
    %cst_37 = arith.constant dense<0xFF800000> : vector<256xf32>
    %54 = vector.multi_reduction <maximumf>, %53, %cst_37 [1] : vector<256x64xf32> to vector<256xf32>
    %55 = vector.shape_cast %54 : vector<256xf32> to vector<256x1xf32>
    %56 = vector.broadcast %55 : vector<256x1xf32> to vector<256x64xf32>
    %57 = arith.subf %53, %56 : vector<256x64xf32>
    %58 = math.exp %57 : vector<256x64xf32>
    %cst_38 = arith.constant dense<0.000000e+00> : vector<256xf32>
    %59 = vector.multi_reduction <add>, %58, %cst_38 [1] : vector<256x64xf32> to vector<256xf32>
    %60 = vector.shape_cast %59 : vector<256xf32> to vector<256x1xf32>
    %61 = tpu.reciprocal %60 {approx = true} : vector<256x1xf32> -> vector<256x1xf32>
    %62 = vector.broadcast %61 : vector<256x1xf32> to vector<256x64xf32>
    %63 = arith.mulf %58, %62 : vector<256x64xf32>
    %64 = arith.truncf %63 : vector<256x64xf32> to vector<256x64xbf16>
    %cst_39 = arith.constant dense<0.000000e+00> : vector<256x32xf32>
    %65 = tpu.matmul %64, %17, %cst_39 {dimension_numbers = #tpu.dot_dimension_numbers<[1], [0], [0], [1], [0, 0, 1, 1], [], []>} : vector<256x64xbf16>, vector<64x32xbf16>, vector<256x32xf32> -> vector<256x32xf32>
    %66 = vector.extract_strided_slice %20 {offsets = [0, 96], sizes = [256, 32], strides = [1, 1]} : vector<256x128xf32> to vector<256x32xf32>
    %67 = arith.truncf %66 : vector<256x32xf32> to vector<256x32xbf16>
    %cst_40 = arith.constant dense<0.000000e+00> : vector<256x64xf32>
    %68 = tpu.matmul %67, %17, %cst_40 {dimension_numbers = #tpu.dot_dimension_numbers<[1], [1], [0], [0], [0, 0, 1, 0], [], []>} : vector<256x32xbf16>, vector<64x32xbf16>, vector<256x64xf32> -> vector<256x64xf32>
    %cst_41 = arith.constant dense<0xFF800000> : vector<256xf32>
    %69 = vector.multi_reduction <maximumf>, %68, %cst_41 [1] : vector<256x64xf32> to vector<256xf32>
    %70 = vector.shape_cast %69 : vector<256xf32> to vector<256x1xf32>
    %71 = vector.broadcast %70 : vector<256x1xf32> to vector<256x64xf32>
    %72 = arith.subf %68, %71 : vector<256x64xf32>
    %73 = math.exp %72 : vector<256x64xf32>
    %cst_42 = arith.constant dense<0.000000e+00> : vector<256xf32>
    %74 = vector.multi_reduction <add>, %73, %cst_42 [1] : vector<256x64xf32> to vector<256xf32>
    %75 = vector.shape_cast %74 : vector<256xf32> to vector<256x1xf32>
    %76 = tpu.reciprocal %75 {approx = true} : vector<256x1xf32> -> vector<256x1xf32>
    %77 = vector.broadcast %76 : vector<256x1xf32> to vector<256x64xf32>
    %78 = arith.mulf %73, %77 : vector<256x64xf32>
    %79 = arith.truncf %78 : vector<256x64xf32> to vector<256x64xbf16>
    %cst_43 = arith.constant dense<0.000000e+00> : vector<256x32xf32>
    %80 = tpu.matmul %79, %17, %cst_43 {dimension_numbers = #tpu.dot_dimension_numbers<[1], [0], [0], [1], [0, 0, 1, 1], [], []>} : vector<256x64xbf16>, vector<64x32xbf16>, vector<256x32xf32> -> vector<256x32xf32>
    %81 = tpu.concatenate %35, %50, %65, %80 in 1 : vector<256x32xf32>, vector<256x32xf32>, vector<256x32xf32>, vector<256x32xf32> -> vector<256x128xf32>
    %82 = arith.truncf %81 : vector<256x128xf32> to vector<256x128xbf16>
    %cst_44 = arith.constant dense<0.000000e+00> : vector<256x128xf32>
    %83 = tpu.matmul %82, %7, %cst_44 {dimension_numbers = #tpu.dot_dimension_numbers<[1], [0], [0], [1], [0, 0, 1, 1], [], []>} : vector<256x128xbf16>, vector<128x128xbf16>, vector<256x128xf32> -> vector<256x128xf32>
    %84 = arith.truncf %83 : vector<256x128xf32> to vector<256x128xbf16>
    %cst_45 = arith.constant dense<0.000000e+00> : vector<256x4xf32>
    %85 = tpu.matmul %84, %8, %cst_45 {dimension_numbers = #tpu.dot_dimension_numbers<[1], [0], [0], [1], [0, 0, 1, 1], [], []>} : vector<256x128xbf16>, vector<128x4xbf16>, vector<256x4xf32> -> vector<256x4xf32>
    %cst_46 = arith.constant dense<0xFF800000> : vector<256xf32>
    %86 = vector.multi_reduction <maximumf>, %85, %cst_46 [1] : vector<256x4xf32> to vector<256xf32>
    %87 = vector.shape_cast %86 : vector<256xf32> to vector<256x1xf32>
    %88 = vector.broadcast %87 : vector<256x1xf32> to vector<256x4xf32>
    %89 = arith.subf %85, %88 : vector<256x4xf32>
    %90 = math.exp %89 : vector<256x4xf32>
    %cst_47 = arith.constant dense<0.000000e+00> : vector<256xf32>
    %91 = vector.multi_reduction <add>, %90, %cst_47 [1] : vector<256x4xf32> to vector<256xf32>
    %92 = vector.shape_cast %91 : vector<256xf32> to vector<256x1xf32>
    %93 = vector.extract_strided_slice %90 {offsets = [0, 0], sizes = [256, 1], strides = [1, 1]} : vector<256x4xf32> to vector<256x1xf32>
    %94 = vector.extract_strided_slice %83 {offsets = [0, 0], sizes = [256, 32], strides = [1, 1]} : vector<256x128xf32> to vector<256x32xf32>
    %95 = vector.broadcast %93 : vector<256x1xf32> to vector<256x32xf32>
    %96 = arith.mulf %95, %94 : vector<256x32xf32>
    %97 = vector.extract_strided_slice %90 {offsets = [0, 1], sizes = [256, 1], strides = [1, 1]} : vector<256x4xf32> to vector<256x1xf32>
    %98 = vector.extract_strided_slice %83 {offsets = [0, 32], sizes = [256, 32], strides = [1, 1]} : vector<256x128xf32> to vector<256x32xf32>
    %99 = vector.broadcast %97 : vector<256x1xf32> to vector<256x32xf32>
    %100 = arith.mulf %99, %98 : vector<256x32xf32>
    %101 = arith.addf %96, %100 : vector<256x32xf32>
    %102 = vector.extract_strided_slice %90 {offsets = [0, 2], sizes = [256, 1], strides = [1, 1]} : vector<256x4xf32> to vector<256x1xf32>
    %103 = vector.extract_strided_slice %83 {offsets = [0, 64], sizes = [256, 32], strides = [1, 1]} : vector<256x128xf32> to vector<256x32xf32>
    %104 = vector.broadcast %102 : vector<256x1xf32> to vector<256x32xf32>
    %105 = arith.mulf %104, %103 : vector<256x32xf32>
    %106 = arith.addf %101, %105 : vector<256x32xf32>
    %107 = vector.extract_strided_slice %90 {offsets = [0, 3], sizes = [256, 1], strides = [1, 1]} : vector<256x4xf32> to vector<256x1xf32>
    %108 = vector.extract_strided_slice %83 {offsets = [0, 96], sizes = [256, 32], strides = [1, 1]} : vector<256x128xf32> to vector<256x32xf32>
    %109 = vector.broadcast %107 : vector<256x1xf32> to vector<256x32xf32>
    %110 = arith.mulf %109, %108 : vector<256x32xf32>
    %111 = arith.addf %106, %110 : vector<256x32xf32>
    %112 = tpu.reciprocal %92 {approx = true} : vector<256x1xf32> -> vector<256x1xf32>
    %113 = vector.broadcast %112 : vector<256x1xf32> to vector<256x32xf32>
    %114 = arith.mulf %111, %113 : vector<256x32xf32>
    %115 = arith.truncf %114 : vector<256x32xf32> to vector<256x32xbf16>
    %cst_48 = arith.constant dense<0.000000e+00> : vector<64x128xf32>
    %116 = tpu.matmul %17, %9, %cst_48 {dimension_numbers = #tpu.dot_dimension_numbers<[1], [0], [0], [1], [0, 0, 1, 1], [], []>} : vector<64x32xbf16>, vector<32x128xbf16>, vector<64x128xf32> -> vector<64x128xf32>
    %117 = vector.broadcast %10 : vector<1x128xf32> to vector<64x128xf32>
    %118 = arith.addf %116, %117 : vector<64x128xf32>
    %119 = vector.extract_strided_slice %118 {offsets = [0, 0], sizes = [64, 32], strides = [1, 1]} : vector<64x128xf32> to vector<64x32xf32>
    %120 = arith.truncf %119 : vector<64x32xf32> to vector<64x32xbf16>
    %cst_49 = arith.constant dense<0.000000e+00> : vector<64x256xf32>
    %121 = tpu.matmul %120, %115, %cst_49 {dimension_numbers = #tpu.dot_dimension_numbers<[1], [1], [0], [0], [0, 0, 1, 0], [], []>} : vector<64x32xbf16>, vector<256x32xbf16>, vector<64x256xf32> -> vector<64x256xf32>
    %cst_50 = arith.constant dense<0xFF800000> : vector<64xf32>
    %122 = vector.multi_reduction <maximumf>, %121, %cst_50 [1] : vector<64x256xf32> to vector<64xf32>
    %123 = vector.shape_cast %122 : vector<64xf32> to vector<64x1xf32>
    %124 = vector.broadcast %123 : vector<64x1xf32> to vector<64x256xf32>
    %125 = arith.subf %121, %124 : vector<64x256xf32>
    %126 = math.exp %125 : vector<64x256xf32>
    %cst_51 = arith.constant dense<0.000000e+00> : vector<64xf32>
    %127 = vector.multi_reduction <add>, %126, %cst_51 [1] : vector<64x256xf32> to vector<64xf32>
    %128 = vector.shape_cast %127 : vector<64xf32> to vector<64x1xf32>
    %129 = tpu.reciprocal %128 {approx = true} : vector<64x1xf32> -> vector<64x1xf32>
    %130 = vector.broadcast %129 : vector<64x1xf32> to vector<64x256xf32>
    %131 = arith.mulf %126, %130 : vector<64x256xf32>
    %132 = arith.truncf %131 : vector<64x256xf32> to vector<64x256xbf16>
    %cst_52 = arith.constant dense<0.000000e+00> : vector<64x32xf32>
    %133 = tpu.matmul %132, %115, %cst_52 {dimension_numbers = #tpu.dot_dimension_numbers<[1], [0], [0], [1], [0, 0, 1, 1], [], []>} : vector<64x256xbf16>, vector<256x32xbf16>, vector<64x32xf32> -> vector<64x32xf32>
    %134 = vector.extract_strided_slice %118 {offsets = [0, 32], sizes = [64, 32], strides = [1, 1]} : vector<64x128xf32> to vector<64x32xf32>
    %135 = arith.truncf %134 : vector<64x32xf32> to vector<64x32xbf16>
    %cst_53 = arith.constant dense<0.000000e+00> : vector<64x256xf32>
    %136 = tpu.matmul %135, %115, %cst_53 {dimension_numbers = #tpu.dot_dimension_numbers<[1], [1], [0], [0], [0, 0, 1, 0], [], []>} : vector<64x32xbf16>, vector<256x32xbf16>, vector<64x256xf32> -> vector<64x256xf32>
    %cst_54 = arith.constant dense<0xFF800000> : vector<64xf32>
    %137 = vector.multi_reduction <maximumf>, %136, %cst_54 [1] : vector<64x256xf32> to vector<64xf32>
    %138 = vector.shape_cast %137 : vector<64xf32> to vector<64x1xf32>
    %139 = vector.broadcast %138 : vector<64x1xf32> to vector<64x256xf32>
    %140 = arith.subf %136, %139 : vector<64x256xf32>
    %141 = math.exp %140 : vector<64x256xf32>
    %cst_55 = arith.constant dense<0.000000e+00> : vector<64xf32>
    %142 = vector.multi_reduction <add>, %141, %cst_55 [1] : vector<64x256xf32> to vector<64xf32>
    %143 = vector.shape_cast %142 : vector<64xf32> to vector<64x1xf32>
    %144 = tpu.reciprocal %143 {approx = true} : vector<64x1xf32> -> vector<64x1xf32>
    %145 = vector.broadcast %144 : vector<64x1xf32> to vector<64x256xf32>
    %146 = arith.mulf %141, %145 : vector<64x256xf32>
    %147 = arith.truncf %146 : vector<64x256xf32> to vector<64x256xbf16>
    %cst_56 = arith.constant dense<0.000000e+00> : vector<64x32xf32>
    %148 = tpu.matmul %147, %115, %cst_56 {dimension_numbers = #tpu.dot_dimension_numbers<[1], [0], [0], [1], [0, 0, 1, 1], [], []>} : vector<64x256xbf16>, vector<256x32xbf16>, vector<64x32xf32> -> vector<64x32xf32>
    %149 = vector.extract_strided_slice %118 {offsets = [0, 64], sizes = [64, 32], strides = [1, 1]} : vector<64x128xf32> to vector<64x32xf32>
    %150 = arith.truncf %149 : vector<64x32xf32> to vector<64x32xbf16>
    %cst_57 = arith.constant dense<0.000000e+00> : vector<64x256xf32>
    %151 = tpu.matmul %150, %115, %cst_57 {dimension_numbers = #tpu.dot_dimension_numbers<[1], [1], [0], [0], [0, 0, 1, 0], [], []>} : vector<64x32xbf16>, vector<256x32xbf16>, vector<64x256xf32> -> vector<64x256xf32>
    %cst_58 = arith.constant dense<0xFF800000> : vector<64xf32>
    %152 = vector.multi_reduction <maximumf>, %151, %cst_58 [1] : vector<64x256xf32> to vector<64xf32>
    %153 = vector.shape_cast %152 : vector<64xf32> to vector<64x1xf32>
    %154 = vector.broadcast %153 : vector<64x1xf32> to vector<64x256xf32>
    %155 = arith.subf %151, %154 : vector<64x256xf32>
    %156 = math.exp %155 : vector<64x256xf32>
    %cst_59 = arith.constant dense<0.000000e+00> : vector<64xf32>
    %157 = vector.multi_reduction <add>, %156, %cst_59 [1] : vector<64x256xf32> to vector<64xf32>
    %158 = vector.shape_cast %157 : vector<64xf32> to vector<64x1xf32>
    %159 = tpu.reciprocal %158 {approx = true} : vector<64x1xf32> -> vector<64x1xf32>
    %160 = vector.broadcast %159 : vector<64x1xf32> to vector<64x256xf32>
    %161 = arith.mulf %156, %160 : vector<64x256xf32>
    %162 = arith.truncf %161 : vector<64x256xf32> to vector<64x256xbf16>
    %cst_60 = arith.constant dense<0.000000e+00> : vector<64x32xf32>
    %163 = tpu.matmul %162, %115, %cst_60 {dimension_numbers = #tpu.dot_dimension_numbers<[1], [0], [0], [1], [0, 0, 1, 1], [], []>} : vector<64x256xbf16>, vector<256x32xbf16>, vector<64x32xf32> -> vector<64x32xf32>
    %164 = vector.extract_strided_slice %118 {offsets = [0, 96], sizes = [64, 32], strides = [1, 1]} : vector<64x128xf32> to vector<64x32xf32>
    %165 = arith.truncf %164 : vector<64x32xf32> to vector<64x32xbf16>
    %cst_61 = arith.constant dense<0.000000e+00> : vector<64x256xf32>
    %166 = tpu.matmul %165, %115, %cst_61 {dimension_numbers = #tpu.dot_dimension_numbers<[1], [1], [0], [0], [0, 0, 1, 0], [], []>} : vector<64x32xbf16>, vector<256x32xbf16>, vector<64x256xf32> -> vector<64x256xf32>
    %cst_62 = arith.constant dense<0xFF800000> : vector<64xf32>
    %167 = vector.multi_reduction <maximumf>, %166, %cst_62 [1] : vector<64x256xf32> to vector<64xf32>
    %168 = vector.shape_cast %167 : vector<64xf32> to vector<64x1xf32>
    %169 = vector.broadcast %168 : vector<64x1xf32> to vector<64x256xf32>
    %170 = arith.subf %166, %169 : vector<64x256xf32>
    %171 = math.exp %170 : vector<64x256xf32>
    %cst_63 = arith.constant dense<0.000000e+00> : vector<64xf32>
    %172 = vector.multi_reduction <add>, %171, %cst_63 [1] : vector<64x256xf32> to vector<64xf32>
    %173 = vector.shape_cast %172 : vector<64xf32> to vector<64x1xf32>
    %174 = tpu.reciprocal %173 {approx = true} : vector<64x1xf32> -> vector<64x1xf32>
    %175 = vector.broadcast %174 : vector<64x1xf32> to vector<64x256xf32>
    %176 = arith.mulf %171, %175 : vector<64x256xf32>
    %177 = arith.truncf %176 : vector<64x256xf32> to vector<64x256xbf16>
    %cst_64 = arith.constant dense<0.000000e+00> : vector<64x32xf32>
    %178 = tpu.matmul %177, %115, %cst_64 {dimension_numbers = #tpu.dot_dimension_numbers<[1], [0], [0], [1], [0, 0, 1, 1], [], []>} : vector<64x256xbf16>, vector<256x32xbf16>, vector<64x32xf32> -> vector<64x32xf32>
    %179 = tpu.concatenate %133, %148, %163, %178 in 1 : vector<64x32xf32>, vector<64x32xf32>, vector<64x32xf32>, vector<64x32xf32> -> vector<64x128xf32>
    %180 = arith.truncf %179 : vector<64x128xf32> to vector<64x128xbf16>
    %cst_65 = arith.constant dense<0.000000e+00> : vector<64x128xf32>
    %181 = tpu.matmul %180, %11, %cst_65 {dimension_numbers = #tpu.dot_dimension_numbers<[1], [0], [0], [1], [0, 0, 1, 1], [], []>} : vector<64x128xbf16>, vector<128x128xbf16>, vector<64x128xf32> -> vector<64x128xf32>
    %182 = arith.truncf %181 : vector<64x128xf32> to vector<64x128xbf16>
    %cst_66 = arith.constant dense<0.000000e+00> : vector<64x4xf32>
    %183 = tpu.matmul %182, %12, %cst_66 {dimension_numbers = #tpu.dot_dimension_numbers<[1], [0], [0], [1], [0, 0, 1, 1], [], []>} : vector<64x128xbf16>, vector<128x4xbf16>, vector<64x4xf32> -> vector<64x4xf32>
    %cst_67 = arith.constant dense<0xFF800000> : vector<64xf32>
    %184 = vector.multi_reduction <maximumf>, %183, %cst_67 [1] : vector<64x4xf32> to vector<64xf32>
    %185 = vector.shape_cast %184 : vector<64xf32> to vector<64x1xf32>
    %186 = vector.broadcast %185 : vector<64x1xf32> to vector<64x4xf32>
    %187 = arith.subf %183, %186 : vector<64x4xf32>
    %188 = math.exp %187 : vector<64x4xf32>
    %cst_68 = arith.constant dense<0.000000e+00> : vector<64xf32>
    %189 = vector.multi_reduction <add>, %188, %cst_68 [1] : vector<64x4xf32> to vector<64xf32>
    %190 = vector.shape_cast %189 : vector<64xf32> to vector<64x1xf32>
    %191 = vector.extract_strided_slice %188 {offsets = [0, 0], sizes = [64, 1], strides = [1, 1]} : vector<64x4xf32> to vector<64x1xf32>
    %192 = vector.extract_strided_slice %181 {offsets = [0, 0], sizes = [64, 32], strides = [1, 1]} : vector<64x128xf32> to vector<64x32xf32>
    %193 = vector.broadcast %191 : vector<64x1xf32> to vector<64x32xf32>
    %194 = arith.mulf %193, %192 : vector<64x32xf32>
    %195 = vector.extract_strided_slice %188 {offsets = [0, 1], sizes = [64, 1], strides = [1, 1]} : vector<64x4xf32> to vector<64x1xf32>
    %196 = vector.extract_strided_slice %181 {offsets = [0, 32], sizes = [64, 32], strides = [1, 1]} : vector<64x128xf32> to vector<64x32xf32>
    %197 = vector.broadcast %195 : vector<64x1xf32> to vector<64x32xf32>
    %198 = arith.mulf %197, %196 : vector<64x32xf32>
    %199 = arith.addf %194, %198 : vector<64x32xf32>
    %200 = vector.extract_strided_slice %188 {offsets = [0, 2], sizes = [64, 1], strides = [1, 1]} : vector<64x4xf32> to vector<64x1xf32>
    %201 = vector.extract_strided_slice %181 {offsets = [0, 64], sizes = [64, 32], strides = [1, 1]} : vector<64x128xf32> to vector<64x32xf32>
    %202 = vector.broadcast %200 : vector<64x1xf32> to vector<64x32xf32>
    %203 = arith.mulf %202, %201 : vector<64x32xf32>
    %204 = arith.addf %199, %203 : vector<64x32xf32>
    %205 = vector.extract_strided_slice %188 {offsets = [0, 3], sizes = [64, 1], strides = [1, 1]} : vector<64x4xf32> to vector<64x1xf32>
    %206 = vector.extract_strided_slice %181 {offsets = [0, 96], sizes = [64, 32], strides = [1, 1]} : vector<64x128xf32> to vector<64x32xf32>
    %207 = vector.broadcast %205 : vector<64x1xf32> to vector<64x32xf32>
    %208 = arith.mulf %207, %206 : vector<64x32xf32>
    %209 = arith.addf %204, %208 : vector<64x32xf32>
    %210 = tpu.reciprocal %190 {approx = true} : vector<64x1xf32> -> vector<64x1xf32>
    %211 = vector.broadcast %210 : vector<64x1xf32> to vector<64x32xf32>
    %212 = arith.mulf %209, %211 : vector<64x32xf32>
    %213 = arith.truncf %212 : vector<64x32xf32> to vector<64x32xbf16>
    %cst_69 = arith.constant dense<0.000000e+00> : vector<32x64xf32>
    %214 = tpu.matmul %4, %213, %cst_69 {dimension_numbers = #tpu.dot_dimension_numbers<[1], [1], [0], [0], [0, 0, 1, 0], [], []>} : vector<32x32xbf16>, vector<64x32xbf16>, vector<32x64xf32> -> vector<32x64xf32>
    %215 = arith.truncf %214 : vector<32x64xf32> to vector<32x64xbf16>
    %cst_70 = arith.constant dense<0.000000e+00> : vector<32x256xf32>
    %216 = tpu.matmul %215, %3, %cst_70 {dimension_numbers = #tpu.dot_dimension_numbers<[1], [0], [0], [1], [0, 0, 1, 1], [], []>} : vector<32x64xbf16>, vector<64x256xbf16>, vector<32x256xf32> -> vector<32x256xf32>
    %217 = arith.addf %14, %216 : vector<32x256xf32>
    %c0_71 = arith.constant 0 : index
    %c0_72 = arith.constant 0 : index
    %c0_73 = arith.constant 0 : index
    %218 = vector.load %arg14[%c0_71, %c0_72, %c0_73] : memref<2x32x256xf32, #tpu.memory_space<vmem>>, vector<1x32x256xf32>
    %219 = vector.shape_cast %218 : vector<1x32x256xf32> to vector<32x256xf32>
    %220 = vector.shape_cast %217 : vector<32x256xf32> to vector<1x32x256xf32>
    tpu.vector_store %arg14[%c0_71, %c0_72, %c0_73], %220 {strides = array<i32>} : memref<2x32x256xf32, #tpu.memory_space<vmem>>, vector<1x32x256xf32>,
    %c1 = arith.constant 1 : index
    %c0_74 = arith.constant 0 : index
    %c0_75 = arith.constant 0 : index
    %221 = vector.load %arg1[%c1, %c0_74, %c0_75] : memref<2x32x256xf32, #tpu.memory_space<vmem>>, vector<1x32x256xf32>
    %222 = vector.shape_cast %221 : vector<1x32x256xf32> to vector<32x256xf32>
    %223 = arith.truncf %222 : vector<32x256xf32> to vector<32x256xbf16>
    %cst_76 = arith.constant dense<0.000000e+00> : vector<64x32xf32>
    %224 = tpu.matmul %2, %223, %cst_76 {dimension_numbers = #tpu.dot_dimension_numbers<[1], [1], [0], [0], [0, 0, 1, 0], [], []>} : vector<64x256xbf16>, vector<32x256xbf16>, vector<64x32xf32> -> vector<64x32xf32>
    %225 = arith.truncf %224 : vector<64x32xf32> to vector<64x32xbf16>
    %cst_77 = arith.constant dense<0.000000e+00> : vector<256x128xf32>
    %226 = tpu.matmul %1, %5, %cst_77 {dimension_numbers = #tpu.dot_dimension_numbers<[1], [0], [0], [1], [0, 0, 1, 1], [], []>} : vector<256x32xbf16>, vector<32x128xbf16>, vector<256x128xf32> -> vector<256x128xf32>
    %227 = vector.broadcast %6 : vector<1x128xf32> to vector<256x128xf32>
    %228 = arith.addf %226, %227 : vector<256x128xf32>
    %229 = vector.extract_strided_slice %228 {offsets = [0, 0], sizes = [256, 32], strides = [1, 1]} : vector<256x128xf32> to vector<256x32xf32>
    %230 = arith.truncf %229 : vector<256x32xf32> to vector<256x32xbf16>
    %cst_78 = arith.constant dense<0.000000e+00> : vector<256x64xf32>
    %231 = tpu.matmul %230, %225, %cst_78 {dimension_numbers = #tpu.dot_dimension_numbers<[1], [1], [0], [0], [0, 0, 1, 0], [], []>} : vector<256x32xbf16>, vector<64x32xbf16>, vector<256x64xf32> -> vector<256x64xf32>
    %cst_79 = arith.constant dense<0xFF800000> : vector<256xf32>
    %232 = vector.multi_reduction <maximumf>, %231, %cst_79 [1] : vector<256x64xf32> to vector<256xf32>
    %233 = vector.shape_cast %232 : vector<256xf32> to vector<256x1xf32>
    %234 = vector.broadcast %233 : vector<256x1xf32> to vector<256x64xf32>
    %235 = arith.subf %231, %234 : vector<256x64xf32>
    %236 = math.exp %235 : vector<256x64xf32>
    %cst_80 = arith.constant dense<0.000000e+00> : vector<256xf32>
    %237 = vector.multi_reduction <add>, %236, %cst_80 [1] : vector<256x64xf32> to vector<256xf32>
    %238 = vector.shape_cast %237 : vector<256xf32> to vector<256x1xf32>
    %239 = tpu.reciprocal %238 {approx = true} : vector<256x1xf32> -> vector<256x1xf32>
    %240 = vector.broadcast %239 : vector<256x1xf32> to vector<256x64xf32>
    %241 = arith.mulf %236, %240 : vector<256x64xf32>
    %242 = arith.truncf %241 : vector<256x64xf32> to vector<256x64xbf16>
    %cst_81 = arith.constant dense<0.000000e+00> : vector<256x32xf32>
    %243 = tpu.matmul %242, %225, %cst_81 {dimension_numbers = #tpu.dot_dimension_numbers<[1], [0], [0], [1], [0, 0, 1, 1], [], []>} : vector<256x64xbf16>, vector<64x32xbf16>, vector<256x32xf32> -> vector<256x32xf32>
    %244 = vector.extract_strided_slice %228 {offsets = [0, 32], sizes = [256, 32], strides = [1, 1]} : vector<256x128xf32> to vector<256x32xf32>
    %245 = arith.truncf %244 : vector<256x32xf32> to vector<256x32xbf16>
    %cst_82 = arith.constant dense<0.000000e+00> : vector<256x64xf32>
    %246 = tpu.matmul %245, %225, %cst_82 {dimension_numbers = #tpu.dot_dimension_numbers<[1], [1], [0], [0], [0, 0, 1, 0], [], []>} : vector<256x32xbf16>, vector<64x32xbf16>, vector<256x64xf32> -> vector<256x64xf32>
    %cst_83 = arith.constant dense<0xFF800000> : vector<256xf32>
    %247 = vector.multi_reduction <maximumf>, %246, %cst_83 [1] : vector<256x64xf32> to vector<256xf32>
    %248 = vector.shape_cast %247 : vector<256xf32> to vector<256x1xf32>
    %249 = vector.broadcast %248 : vector<256x1xf32> to vector<256x64xf32>
    %250 = arith.subf %246, %249 : vector<256x64xf32>
    %251 = math.exp %250 : vector<256x64xf32>
    %cst_84 = arith.constant dense<0.000000e+00> : vector<256xf32>
    %252 = vector.multi_reduction <add>, %251, %cst_84 [1] : vector<256x64xf32> to vector<256xf32>
    %253 = vector.shape_cast %252 : vector<256xf32> to vector<256x1xf32>
    %254 = tpu.reciprocal %253 {approx = true} : vector<256x1xf32> -> vector<256x1xf32>
    %255 = vector.broadcast %254 : vector<256x1xf32> to vector<256x64xf32>
    %256 = arith.mulf %251, %255 : vector<256x64xf32>
    %257 = arith.truncf %256 : vector<256x64xf32> to vector<256x64xbf16>
    %cst_85 = arith.constant dense<0.000000e+00> : vector<256x32xf32>
    %258 = tpu.matmul %257, %225, %cst_85 {dimension_numbers = #tpu.dot_dimension_numbers<[1], [0], [0], [1], [0, 0, 1, 1], [], []>} : vector<256x64xbf16>, vector<64x32xbf16>, vector<256x32xf32> -> vector<256x32xf32>
    %259 = vector.extract_strided_slice %228 {offsets = [0, 64], sizes = [256, 32], strides = [1, 1]} : vector<256x128xf32> to vector<256x32xf32>
    %260 = arith.truncf %259 : vector<256x32xf32> to vector<256x32xbf16>
    %cst_86 = arith.constant dense<0.000000e+00> : vector<256x64xf32>
    %261 = tpu.matmul %260, %225, %cst_86 {dimension_numbers = #tpu.dot_dimension_numbers<[1], [1], [0], [0], [0, 0, 1, 0], [], []>} : vector<256x32xbf16>, vector<64x32xbf16>, vector<256x64xf32> -> vector<256x64xf32>
    %cst_87 = arith.constant dense<0xFF800000> : vector<256xf32>
    %262 = vector.multi_reduction <maximumf>, %261, %cst_87 [1] : vector<256x64xf32> to vector<256xf32>
    %263 = vector.shape_cast %262 : vector<256xf32> to vector<256x1xf32>
    %264 = vector.broadcast %263 : vector<256x1xf32> to vector<256x64xf32>
    %265 = arith.subf %261, %264 : vector<256x64xf32>
    %266 = math.exp %265 : vector<256x64xf32>
    %cst_88 = arith.constant dense<0.000000e+00> : vector<256xf32>
    %267 = vector.multi_reduction <add>, %266, %cst_88 [1] : vector<256x64xf32> to vector<256xf32>
    %268 = vector.shape_cast %267 : vector<256xf32> to vector<256x1xf32>
    %269 = tpu.reciprocal %268 {approx = true} : vector<256x1xf32> -> vector<256x1xf32>
    %270 = vector.broadcast %269 : vector<256x1xf32> to vector<256x64xf32>
    %271 = arith.mulf %266, %270 : vector<256x64xf32>
    %272 = arith.truncf %271 : vector<256x64xf32> to vector<256x64xbf16>
    %cst_89 = arith.constant dense<0.000000e+00> : vector<256x32xf32>
    %273 = tpu.matmul %272, %225, %cst_89 {dimension_numbers = #tpu.dot_dimension_numbers<[1], [0], [0], [1], [0, 0, 1, 1], [], []>} : vector<256x64xbf16>, vector<64x32xbf16>, vector<256x32xf32> -> vector<256x32xf32>
    %274 = vector.extract_strided_slice %228 {offsets = [0, 96], sizes = [256, 32], strides = [1, 1]} : vector<256x128xf32> to vector<256x32xf32>
    %275 = arith.truncf %274 : vector<256x32xf32> to vector<256x32xbf16>
    %cst_90 = arith.constant dense<0.000000e+00> : vector<256x64xf32>
    %276 = tpu.matmul %275, %225, %cst_90 {dimension_numbers = #tpu.dot_dimension_numbers<[1], [1], [0], [0], [0, 0, 1, 0], [], []>} : vector<256x32xbf16>, vector<64x32xbf16>, vector<256x64xf32> -> vector<256x64xf32>
    %cst_91 = arith.constant dense<0xFF800000> : vector<256xf32>
    %277 = vector.multi_reduction <maximumf>, %276, %cst_91 [1] : vector<256x64xf32> to vector<256xf32>
    %278 = vector.shape_cast %277 : vector<256xf32> to vector<256x1xf32>
    %279 = vector.broadcast %278 : vector<256x1xf32> to vector<256x64xf32>
    %280 = arith.subf %276, %279 : vector<256x64xf32>
    %281 = math.exp %280 : vector<256x64xf32>
    %cst_92 = arith.constant dense<0.000000e+00> : vector<256xf32>
    %282 = vector.multi_reduction <add>, %281, %cst_92 [1] : vector<256x64xf32> to vector<256xf32>
    %283 = vector.shape_cast %282 : vector<256xf32> to vector<256x1xf32>
    %284 = tpu.reciprocal %283 {approx = true} : vector<256x1xf32> -> vector<256x1xf32>
    %285 = vector.broadcast %284 : vector<256x1xf32> to vector<256x64xf32>
    %286 = arith.mulf %281, %285 : vector<256x64xf32>
    %287 = arith.truncf %286 : vector<256x64xf32> to vector<256x64xbf16>
    %cst_93 = arith.constant dense<0.000000e+00> : vector<256x32xf32>
    %288 = tpu.matmul %287, %225, %cst_93 {dimension_numbers = #tpu.dot_dimension_numbers<[1], [0], [0], [1], [0, 0, 1, 1], [], []>} : vector<256x64xbf16>, vector<64x32xbf16>, vector<256x32xf32> -> vector<256x32xf32>
    %289 = tpu.concatenate %243, %258, %273, %288 in 1 : vector<256x32xf32>, vector<256x32xf32>, vector<256x32xf32>, vector<256x32xf32> -> vector<256x128xf32>
    %290 = arith.truncf %289 : vector<256x128xf32> to vector<256x128xbf16>
    %cst_94 = arith.constant dense<0.000000e+00> : vector<256x128xf32>
    %291 = tpu.matmul %290, %7, %cst_94 {dimension_numbers = #tpu.dot_dimension_numbers<[1], [0], [0], [1], [0, 0, 1, 1], [], []>} : vector<256x128xbf16>, vector<128x128xbf16>, vector<256x128xf32> -> vector<256x128xf32>
    %292 = arith.truncf %291 : vector<256x128xf32> to vector<256x128xbf16>
    %cst_95 = arith.constant dense<0.000000e+00> : vector<256x4xf32>
    %293 = tpu.matmul %292, %8, %cst_95 {dimension_numbers = #tpu.dot_dimension_numbers<[1], [0], [0], [1], [0, 0, 1, 1], [], []>} : vector<256x128xbf16>, vector<128x4xbf16>, vector<256x4xf32> -> vector<256x4xf32>
    %cst_96 = arith.constant dense<0xFF800000> : vector<256xf32>
    %294 = vector.multi_reduction <maximumf>, %293, %cst_96 [1] : vector<256x4xf32> to vector<256xf32>
    %295 = vector.shape_cast %294 : vector<256xf32> to vector<256x1xf32>
    %296 = vector.broadcast %295 : vector<256x1xf32> to vector<256x4xf32>
    %297 = arith.subf %293, %296 : vector<256x4xf32>
    %298 = math.exp %297 : vector<256x4xf32>
    %cst_97 = arith.constant dense<0.000000e+00> : vector<256xf32>
    %299 = vector.multi_reduction <add>, %298, %cst_97 [1] : vector<256x4xf32> to vector<256xf32>
    %300 = vector.shape_cast %299 : vector<256xf32> to vector<256x1xf32>
    %301 = vector.extract_strided_slice %298 {offsets = [0, 0], sizes = [256, 1], strides = [1, 1]} : vector<256x4xf32> to vector<256x1xf32>
    %302 = vector.extract_strided_slice %291 {offsets = [0, 0], sizes = [256, 32], strides = [1, 1]} : vector<256x128xf32> to vector<256x32xf32>
    %303 = vector.broadcast %301 : vector<256x1xf32> to vector<256x32xf32>
    %304 = arith.mulf %303, %302 : vector<256x32xf32>
    %305 = vector.extract_strided_slice %298 {offsets = [0, 1], sizes = [256, 1], strides = [1, 1]} : vector<256x4xf32> to vector<256x1xf32>
    %306 = vector.extract_strided_slice %291 {offsets = [0, 32], sizes = [256, 32], strides = [1, 1]} : vector<256x128xf32> to vector<256x32xf32>
    %307 = vector.broadcast %305 : vector<256x1xf32> to vector<256x32xf32>
    %308 = arith.mulf %307, %306 : vector<256x32xf32>
    %309 = arith.addf %304, %308 : vector<256x32xf32>
    %310 = vector.extract_strided_slice %298 {offsets = [0, 2], sizes = [256, 1], strides = [1, 1]} : vector<256x4xf32> to vector<256x1xf32>
    %311 = vector.extract_strided_slice %291 {offsets = [0, 64], sizes = [256, 32], strides = [1, 1]} : vector<256x128xf32> to vector<256x32xf32>
    %312 = vector.broadcast %310 : vector<256x1xf32> to vector<256x32xf32>
    %313 = arith.mulf %312, %311 : vector<256x32xf32>
    %314 = arith.addf %309, %313 : vector<256x32xf32>
    %315 = vector.extract_strided_slice %298 {offsets = [0, 3], sizes = [256, 1], strides = [1, 1]} : vector<256x4xf32> to vector<256x1xf32>
    %316 = vector.extract_strided_slice %291 {offsets = [0, 96], sizes = [256, 32], strides = [1, 1]} : vector<256x128xf32> to vector<256x32xf32>
    %317 = vector.broadcast %315 : vector<256x1xf32> to vector<256x32xf32>
    %318 = arith.mulf %317, %316 : vector<256x32xf32>
    %319 = arith.addf %314, %318 : vector<256x32xf32>
    %320 = tpu.reciprocal %300 {approx = true} : vector<256x1xf32> -> vector<256x1xf32>
    %321 = vector.broadcast %320 : vector<256x1xf32> to vector<256x32xf32>
    %322 = arith.mulf %319, %321 : vector<256x32xf32>
    %323 = arith.truncf %322 : vector<256x32xf32> to vector<256x32xbf16>
    %cst_98 = arith.constant dense<0.000000e+00> : vector<64x128xf32>
    %324 = tpu.matmul %225, %9, %cst_98 {dimension_numbers = #tpu.dot_dimension_numbers<[1], [0], [0], [1], [0, 0, 1, 1], [], []>} : vector<64x32xbf16>, vector<32x128xbf16>, vector<64x128xf32> -> vector<64x128xf32>
    %325 = vector.broadcast %10 : vector<1x128xf32> to vector<64x128xf32>
    %326 = arith.addf %324, %325 : vector<64x128xf32>
    %327 = vector.extract_strided_slice %326 {offsets = [0, 0], sizes = [64, 32], strides = [1, 1]} : vector<64x128xf32> to vector<64x32xf32>
    %328 = arith.truncf %327 : vector<64x32xf32> to vector<64x32xbf16>
    %cst_99 = arith.constant dense<0.000000e+00> : vector<64x256xf32>
    %329 = tpu.matmul %328, %323, %cst_99 {dimension_numbers = #tpu.dot_dimension_numbers<[1], [1], [0], [0], [0, 0, 1, 0], [], []>} : vector<64x32xbf16>, vector<256x32xbf16>, vector<64x256xf32> -> vector<64x256xf32>
    %cst_100 = arith.constant dense<0xFF800000> : vector<64xf32>
    %330 = vector.multi_reduction <maximumf>, %329, %cst_100 [1] : vector<64x256xf32> to vector<64xf32>
    %331 = vector.shape_cast %330 : vector<64xf32> to vector<64x1xf32>
    %332 = vector.broadcast %331 : vector<64x1xf32> to vector<64x256xf32>
    %333 = arith.subf %329, %332 : vector<64x256xf32>
    %334 = math.exp %333 : vector<64x256xf32>
    %cst_101 = arith.constant dense<0.000000e+00> : vector<64xf32>
    %335 = vector.multi_reduction <add>, %334, %cst_101 [1] : vector<64x256xf32> to vector<64xf32>
    %336 = vector.shape_cast %335 : vector<64xf32> to vector<64x1xf32>
    %337 = tpu.reciprocal %336 {approx = true} : vector<64x1xf32> -> vector<64x1xf32>
    %338 = vector.broadcast %337 : vector<64x1xf32> to vector<64x256xf32>
    %339 = arith.mulf %334, %338 : vector<64x256xf32>
    %340 = arith.truncf %339 : vector<64x256xf32> to vector<64x256xbf16>
    %cst_102 = arith.constant dense<0.000000e+00> : vector<64x32xf32>
    %341 = tpu.matmul %340, %323, %cst_102 {dimension_numbers = #tpu.dot_dimension_numbers<[1], [0], [0], [1], [0, 0, 1, 1], [], []>} : vector<64x256xbf16>, vector<256x32xbf16>, vector<64x32xf32> -> vector<64x32xf32>
    %342 = vector.extract_strided_slice %326 {offsets = [0, 32], sizes = [64, 32], strides = [1, 1]} : vector<64x128xf32> to vector<64x32xf32>
    %343 = arith.truncf %342 : vector<64x32xf32> to vector<64x32xbf16>
    %cst_103 = arith.constant dense<0.000000e+00> : vector<64x256xf32>
    %344 = tpu.matmul %343, %323, %cst_103 {dimension_numbers = #tpu.dot_dimension_numbers<[1], [1], [0], [0], [0, 0, 1, 0], [], []>} : vector<64x32xbf16>, vector<256x32xbf16>, vector<64x256xf32> -> vector<64x256xf32>
    %cst_104 = arith.constant dense<0xFF800000> : vector<64xf32>
    %345 = vector.multi_reduction <maximumf>, %344, %cst_104 [1] : vector<64x256xf32> to vector<64xf32>
    %346 = vector.shape_cast %345 : vector<64xf32> to vector<64x1xf32>
    %347 = vector.broadcast %346 : vector<64x1xf32> to vector<64x256xf32>
    %348 = arith.subf %344, %347 : vector<64x256xf32>
    %349 = math.exp %348 : vector<64x256xf32>
    %cst_105 = arith.constant dense<0.000000e+00> : vector<64xf32>
    %350 = vector.multi_reduction <add>, %349, %cst_105 [1] : vector<64x256xf32> to vector<64xf32>
    %351 = vector.shape_cast %350 : vector<64xf32> to vector<64x1xf32>
    %352 = tpu.reciprocal %351 {approx = true} : vector<64x1xf32> -> vector<64x1xf32>
    %353 = vector.broadcast %352 : vector<64x1xf32> to vector<64x256xf32>
    %354 = arith.mulf %349, %353 : vector<64x256xf32>
    %355 = arith.truncf %354 : vector<64x256xf32> to vector<64x256xbf16>
    %cst_106 = arith.constant dense<0.000000e+00> : vector<64x32xf32>
    %356 = tpu.matmul %355, %323, %cst_106 {dimension_numbers = #tpu.dot_dimension_numbers<[1], [0], [0], [1], [0, 0, 1, 1], [], []>} : vector<64x256xbf16>, vector<256x32xbf16>, vector<64x32xf32> -> vector<64x32xf32>
    %357 = vector.extract_strided_slice %326 {offsets = [0, 64], sizes = [64, 32], strides = [1, 1]} : vector<64x128xf32> to vector<64x32xf32>
    %358 = arith.truncf %357 : vector<64x32xf32> to vector<64x32xbf16>
    %cst_107 = arith.constant dense<0.000000e+00> : vector<64x256xf32>
    %359 = tpu.matmul %358, %323, %cst_107 {dimension_numbers = #tpu.dot_dimension_numbers<[1], [1], [0], [0], [0, 0, 1, 0], [], []>} : vector<64x32xbf16>, vector<256x32xbf16>, vector<64x256xf32> -> vector<64x256xf32>
    %cst_108 = arith.constant dense<0xFF800000> : vector<64xf32>
    %360 = vector.multi_reduction <maximumf>, %359, %cst_108 [1] : vector<64x256xf32> to vector<64xf32>
    %361 = vector.shape_cast %360 : vector<64xf32> to vector<64x1xf32>
    %362 = vector.broadcast %361 : vector<64x1xf32> to vector<64x256xf32>
    %363 = arith.subf %359, %362 : vector<64x256xf32>
    %364 = math.exp %363 : vector<64x256xf32>
    %cst_109 = arith.constant dense<0.000000e+00> : vector<64xf32>
    %365 = vector.multi_reduction <add>, %364, %cst_109 [1] : vector<64x256xf32> to vector<64xf32>
    %366 = vector.shape_cast %365 : vector<64xf32> to vector<64x1xf32>
    %367 = tpu.reciprocal %366 {approx = true} : vector<64x1xf32> -> vector<64x1xf32>
    %368 = vector.broadcast %367 : vector<64x1xf32> to vector<64x256xf32>
    %369 = arith.mulf %364, %368 : vector<64x256xf32>
    %370 = arith.truncf %369 : vector<64x256xf32> to vector<64x256xbf16>
    %cst_110 = arith.constant dense<0.000000e+00> : vector<64x32xf32>
    %371 = tpu.matmul %370, %323, %cst_110 {dimension_numbers = #tpu.dot_dimension_numbers<[1], [0], [0], [1], [0, 0, 1, 1], [], []>} : vector<64x256xbf16>, vector<256x32xbf16>, vector<64x32xf32> -> vector<64x32xf32>
    %372 = vector.extract_strided_slice %326 {offsets = [0, 96], sizes = [64, 32], strides = [1, 1]} : vector<64x128xf32> to vector<64x32xf32>
    %373 = arith.truncf %372 : vector<64x32xf32> to vector<64x32xbf16>
    %cst_111 = arith.constant dense<0.000000e+00> : vector<64x256xf32>
    %374 = tpu.matmul %373, %323, %cst_111 {dimension_numbers = #tpu.dot_dimension_numbers<[1], [1], [0], [0], [0, 0, 1, 0], [], []>} : vector<64x32xbf16>, vector<256x32xbf16>, vector<64x256xf32> -> vector<64x256xf32>
    %cst_112 = arith.constant dense<0xFF800000> : vector<64xf32>
    %375 = vector.multi_reduction <maximumf>, %374, %cst_112 [1] : vector<64x256xf32> to vector<64xf32>
    %376 = vector.shape_cast %375 : vector<64xf32> to vector<64x1xf32>
    %377 = vector.broadcast %376 : vector<64x1xf32> to vector<64x256xf32>
    %378 = arith.subf %374, %377 : vector<64x256xf32>
    %379 = math.exp %378 : vector<64x256xf32>
    %cst_113 = arith.constant dense<0.000000e+00> : vector<64xf32>
    %380 = vector.multi_reduction <add>, %379, %cst_113 [1] : vector<64x256xf32> to vector<64xf32>
    %381 = vector.shape_cast %380 : vector<64xf32> to vector<64x1xf32>
    %382 = tpu.reciprocal %381 {approx = true} : vector<64x1xf32> -> vector<64x1xf32>
    %383 = vector.broadcast %382 : vector<64x1xf32> to vector<64x256xf32>
    %384 = arith.mulf %379, %383 : vector<64x256xf32>
    %385 = arith.truncf %384 : vector<64x256xf32> to vector<64x256xbf16>
    %cst_114 = arith.constant dense<0.000000e+00> : vector<64x32xf32>
    %386 = tpu.matmul %385, %323, %cst_114 {dimension_numbers = #tpu.dot_dimension_numbers<[1], [0], [0], [1], [0, 0, 1, 1], [], []>} : vector<64x256xbf16>, vector<256x32xbf16>, vector<64x32xf32> -> vector<64x32xf32>
    %387 = tpu.concatenate %341, %356, %371, %386 in 1 : vector<64x32xf32>, vector<64x32xf32>, vector<64x32xf32>, vector<64x32xf32> -> vector<64x128xf32>
    %388 = arith.truncf %387 : vector<64x128xf32> to vector<64x128xbf16>
    %cst_115 = arith.constant dense<0.000000e+00> : vector<64x128xf32>
    %389 = tpu.matmul %388, %11, %cst_115 {dimension_numbers = #tpu.dot_dimension_numbers<[1], [0], [0], [1], [0, 0, 1, 1], [], []>} : vector<64x128xbf16>, vector<128x128xbf16>, vector<64x128xf32> -> vector<64x128xf32>
    %390 = arith.truncf %389 : vector<64x128xf32> to vector<64x128xbf16>
    %cst_116 = arith.constant dense<0.000000e+00> : vector<64x4xf32>
    %391 = tpu.matmul %390, %12, %cst_116 {dimension_numbers = #tpu.dot_dimension_numbers<[1], [0], [0], [1], [0, 0, 1, 1], [], []>} : vector<64x128xbf16>, vector<128x4xbf16>, vector<64x4xf32> -> vector<64x4xf32>
    %cst_117 = arith.constant dense<0xFF800000> : vector<64xf32>
    %392 = vector.multi_reduction <maximumf>, %391, %cst_117 [1] : vector<64x4xf32> to vector<64xf32>
    %393 = vector.shape_cast %392 : vector<64xf32> to vector<64x1xf32>
    %394 = vector.broadcast %393 : vector<64x1xf32> to vector<64x4xf32>
    %395 = arith.subf %391, %394 : vector<64x4xf32>
    %396 = math.exp %395 : vector<64x4xf32>
    %cst_118 = arith.constant dense<0.000000e+00> : vector<64xf32>
    %397 = vector.multi_reduction <add>, %396, %cst_118 [1] : vector<64x4xf32> to vector<64xf32>
    %398 = vector.shape_cast %397 : vector<64xf32> to vector<64x1xf32>
    %399 = vector.extract_strided_slice %396 {offsets = [0, 0], sizes = [64, 1], strides = [1, 1]} : vector<64x4xf32> to vector<64x1xf32>
    %400 = vector.extract_strided_slice %389 {offsets = [0, 0], sizes = [64, 32], strides = [1, 1]} : vector<64x128xf32> to vector<64x32xf32>
    %401 = vector.broadcast %399 : vector<64x1xf32> to vector<64x32xf32>
    %402 = arith.mulf %401, %400 : vector<64x32xf32>
    %403 = vector.extract_strided_slice %396 {offsets = [0, 1], sizes = [64, 1], strides = [1, 1]} : vector<64x4xf32> to vector<64x1xf32>
    %404 = vector.extract_strided_slice %389 {offsets = [0, 32], sizes = [64, 32], strides = [1, 1]} : vector<64x128xf32> to vector<64x32xf32>
    %405 = vector.broadcast %403 : vector<64x1xf32> to vector<64x32xf32>
    %406 = arith.mulf %405, %404 : vector<64x32xf32>
    %407 = arith.addf %402, %406 : vector<64x32xf32>
    %408 = vector.extract_strided_slice %396 {offsets = [0, 2], sizes = [64, 1], strides = [1, 1]} : vector<64x4xf32> to vector<64x1xf32>
    %409 = vector.extract_strided_slice %389 {offsets = [0, 64], sizes = [64, 32], strides = [1, 1]} : vector<64x128xf32> to vector<64x32xf32>
    %410 = vector.broadcast %408 : vector<64x1xf32> to vector<64x32xf32>
    %411 = arith.mulf %410, %409 : vector<64x32xf32>
    %412 = arith.addf %407, %411 : vector<64x32xf32>
    %413 = vector.extract_strided_slice %396 {offsets = [0, 3], sizes = [64, 1], strides = [1, 1]} : vector<64x4xf32> to vector<64x1xf32>
    %414 = vector.extract_strided_slice %389 {offsets = [0, 96], sizes = [64, 32], strides = [1, 1]} : vector<64x128xf32> to vector<64x32xf32>
    %415 = vector.broadcast %413 : vector<64x1xf32> to vector<64x32xf32>
    %416 = arith.mulf %415, %414 : vector<64x32xf32>
    %417 = arith.addf %412, %416 : vector<64x32xf32>
    %418 = tpu.reciprocal %398 {approx = true} : vector<64x1xf32> -> vector<64x1xf32>
    %419 = vector.broadcast %418 : vector<64x1xf32> to vector<64x32xf32>
    %420 = arith.mulf %417, %419 : vector<64x32xf32>
    %421 = arith.truncf %420 : vector<64x32xf32> to vector<64x32xbf16>
    %cst_119 = arith.constant dense<0.000000e+00> : vector<32x64xf32>
    %422 = tpu.matmul %4, %421, %cst_119 {dimension_numbers = #tpu.dot_dimension_numbers<[1], [1], [0], [0], [0, 0, 1, 0], [], []>} : vector<32x32xbf16>, vector<64x32xbf16>, vector<32x64xf32> -> vector<32x64xf32>
    %423 = arith.truncf %422 : vector<32x64xf32> to vector<32x64xbf16>
    %cst_120 = arith.constant dense<0.000000e+00> : vector<32x256xf32>
    %424 = tpu.matmul %423, %3, %cst_120 {dimension_numbers = #tpu.dot_dimension_numbers<[1], [0], [0], [1], [0, 0, 1, 1], [], []>} : vector<32x64xbf16>, vector<64x256xbf16>, vector<32x256xf32> -> vector<32x256xf32>
    %425 = arith.addf %222, %424 : vector<32x256xf32>
    %c1_121 = arith.constant 1 : index
    %c0_122 = arith.constant 0 : index
    %c0_123 = arith.constant 0 : index
    %426 = vector.load %arg14[%c1_121, %c0_122, %c0_123] : memref<2x32x256xf32, #tpu.memory_space<vmem>>, vector<1x32x256xf32>
    %427 = vector.shape_cast %426 : vector<1x32x256xf32> to vector<32x256xf32>
    %428 = vector.shape_cast %425 : vector<32x256xf32> to vector<1x32x256xf32>
    tpu.vector_store %arg14[%c1_121, %c0_122, %c0_123], %428 {strides = array<i32>} : memref<2x32x256xf32, #tpu.memory_space<vmem>>, vector<1x32x256xf32>,
    return
  }
  func.func @transform_0(%arg0: i32) -> (i32, i32, i32) {
    %c0_i32 = arith.constant 0 : i32
    %c0_i32_0 = arith.constant 0 : i32
    %c0_i32_1 = arith.constant 0 : i32
    %c0_i32_2 = arith.constant 0 : i32
    return %c0_i32, %c0_i32_0, %c0_i32_1 : i32, i32, i32
  }
  func.func @transform_1(%arg0: i32) -> (i32, i32, i32) {
    %c0_i32 = arith.constant 0 : i32
    %c0_i32_0 = arith.constant 0 : i32
    %c0_i32_1 = arith.constant 0 : i32
    %c0_i32_2 = arith.constant 0 : i32
    return %c0_i32, %c0_i32_0, %c0_i32_1 : i32, i32, i32
  }
  func.func @transform_2(%arg0: i32) -> (i32, i32) {
    %c0_i32 = arith.constant 0 : i32
    %c0_i32_0 = arith.constant 0 : i32
    %c0_i32_1 = arith.constant 0 : i32
    return %c0_i32, %c0_i32_0 : i32, i32
  }
  func.func @transform_3(%arg0: i32) -> (i32, i32) {
    %c0_i32 = arith.constant 0 : i32
    %c0_i32_0 = arith.constant 0 : i32
    %c0_i32_1 = arith.constant 0 : i32
    return %c0_i32, %c0_i32_0 : i32, i32
  }
  func.func @transform_4(%arg0: i32) -> (i32, i32) {
    %c0_i32 = arith.constant 0 : i32
    %c0_i32_0 = arith.constant 0 : i32
    %c0_i32_1 = arith.constant 0 : i32
    return %c0_i32, %c0_i32_0 : i32, i32
  }
  func.func @transform_5(%arg0: i32) -> (i32, i32) {
    %c0_i32 = arith.constant 0 : i32
    %c0_i32_0 = arith.constant 0 : i32
    %c0_i32_1 = arith.constant 0 : i32
    return %c0_i32, %c0_i32_0 : i32, i32
  }
  func.func @transform_6(%arg0: i32) -> (i32, i32) {
    %c0_i32 = arith.constant 0 : i32
    %c0_i32_0 = arith.constant 0 : i32
    %c0_i32_1 = arith.constant 0 : i32
    return %c0_i32, %c0_i32_0 : i32, i32
  }
  func.func @transform_7(%arg0: i32) -> (i32, i32) {
    %c0_i32 = arith.constant 0 : i32
    %c0_i32_0 = arith.constant 0 : i32
    %c0_i32_1 = arith.constant 0 : i32
    return %c0_i32, %c0_i32_0 : i32, i32
  }
  func.func @transform_8(%arg0: i32) -> (i32, i32) {
    %c0_i32 = arith.constant 0 : i32
    %c0_i32_0 = arith.constant 0 : i32
    %c0_i32_1 = arith.constant 0 : i32
    return %c0_i32, %c0_i32_0 : i32, i32
  }
  func.func @transform_9(%arg0: i32) -> (i32, i32) {
    %c0_i32 = arith.constant 0 : i32
    %c0_i32_0 = arith.constant 0 : i32
    %c0_i32_1 = arith.constant 0 : i32
    return %c0_i32, %c0_i32_0 : i32, i32
  }
  func.func @transform_10(%arg0: i32) -> (i32, i32) {
    %c0_i32 = arith.constant 0 : i32
    %c0_i32_0 = arith.constant 0 : i32
    %c0_i32_1 = arith.constant 0 : i32
    return %c0_i32, %c0_i32_0 : i32, i32
  }
  func.func @transform_11(%arg0: i32) -> (i32, i32) {
    %c0_i32 = arith.constant 0 : i32
    %c0_i32_0 = arith.constant 0 : i32
    %c0_i32_1 = arith.constant 0 : i32
    return %c0_i32, %c0_i32_0 : i32, i32
  }
  func.func @transform_12(%arg0: i32) -> (i32, i32) {
    %c0_i32 = arith.constant 0 : i32
    %c0_i32_0 = arith.constant 0 : i32
    %c0_i32_1 = arith.constant 0 : i32
    return %c0_i32, %c0_i32_0 : i32, i32
  }
  func.func @transform_13(%arg0: i32) -> (i32, i32, i32) {
    %c0_i32 = arith.constant 0 : i32
    %c0_i32_0 = arith.constant 0 : i32
    %c0_i32_1 = arith.constant 0 : i32
    %c0_i32_2 = arith.constant 0 : i32
    return %c0_i32, %c0_i32_0, %c0_i32_1 : i32, i32, i32
  }
}

</mosaic_0001>

<llo_original>
// kernel: polyformer_forward.1
$region0: #{polyformer_forward.1}
  #allocation0 [shape = 'u32[]', space=smem, size = 0x4, offset = 0x4, fixed_abs, tag = 'smem constant byte address 0x4 - core index']
  #allocation1 [shape = 'u32[72,128]{1,0:T(1,128)}', space=vmem, size = 0x9000, scoped, tag = 'internal scratch']
  %s0 = inlined_call_operand.vmem [shape: f32[2,32,256], index: 0, kind: input, shape index: {}]
  %s1 = inlined_call_operand.vmem [shape: bf16[1,256,32], index: 1, kind: input, shape index: {}]
  %s2 = inlined_call_operand.vmem [shape: bf16[64,256], index: 2, kind: input, shape index: {}]
  %s3 = inlined_call_operand.vmem [shape: bf16[64,256], index: 3, kind: input, shape index: {}]
  %s4 = inlined_call_operand.vmem [shape: bf16[32,32], index: 4, kind: input, shape index: {}]
  %s5 = inlined_call_operand.vmem [shape: bf16[32,128], index: 5, kind: input, shape index: {}]
  %s6 = inlined_call_operand.vmem [shape: f32[1,128], index: 6, kind: input, shape index: {}]
  %s7 = inlined_call_operand.vmem [shape: bf16[128,128], index: 7, kind: input, shape index: {}]
  %s8 = inlined_call_operand.vmem [shape: bf16[128,4], index: 8, kind: input, shape index: {}]
  %s9 = inlined_call_operand.vmem [shape: bf16[32,128], index: 9, kind: input, shape index: {}]
  %s10 = inlined_call_operand.vmem [shape: f32[1,128], index: 10, kind: input, shape index: {}]
  %s11 = inlined_call_operand.vmem [shape: bf16[128,128], index: 11, kind: input, shape index: {}]
  %s12 = inlined_call_operand.vmem [shape: bf16[128,4], index: 12, kind: input, shape index: {}]
  %s13 = inlined_call_operand.vmem [shape: f32[2,32,256], index: 13, kind: output, shape index: {}]
  %s14 = sld [smem:[#allocation0]]
  $region62: #{polyformer_forward.1} parent=0
    _
  %s16 = ssub.s32 1, %s14
  %s17 = scalar_select 0, %s16, %s14
  // Predicated region
  $region2: #{polyformer_forward.1} parent=0 // pred_check
    _
  $region3: #{polyformer_forward.1} parent=0 // pred_check_branch
    %19 = sbr.rel (0) target = $region5
  $region4: #{polyformer_forward.1} parent=0 // pred_region
    _
  $region5: #{polyformer_forward.1} parent=0 // pred_fallthru
    _
  // Predicated region
  $region6: #{polyformer_forward.1} parent=0 // pred_check
    _
  $region7: #{polyformer_forward.1} parent=0 // pred_check_branch
    %21 = sbr.rel (0) target = $region9
  $region8: #{polyformer_forward.1} parent=0 // pred_region
    _
  $region9: #{polyformer_forward.1} parent=0 // pred_fallthru
    _
  // Predicated region
  $region10: #{polyformer_forward.1} parent=0 // pred_check
    _
  $region11: #{polyformer_forward.1} parent=0 // pred_check_branch
    %23 = sbr.rel (0) target = $region13
  $region12: #{polyformer_forward.1} parent=0 // pred_region
    _
  $region13: #{polyformer_forward.1} parent=0 // pred_fallthru
    _
  // Predicated region
  $region14: #{polyformer_forward.1} parent=0 // pred_check
    _
  $region15: #{polyformer_forward.1} parent=0 // pred_check_branch
    %25 = sbr.rel (0) target = $region17
  $region16: #{polyformer_forward.1} parent=0 // pred_region
    _
  $region17: #{polyformer_forward.1} parent=0 // pred_fallthru
    _
  // Predicated region
  $region18: #{polyformer_forward.1} parent=0 // pred_check
    _
  $region19: #{polyformer_forward.1} parent=0 // pred_check_branch
    %27 = sbr.rel (0) target = $region21
  $region20: #{polyformer_forward.1} parent=0 // pred_region
    _
  $region21: #{polyformer_forward.1} parent=0 // pred_fallthru
    _
  // Predicated region
  $region22: #{polyformer_forward.1} parent=0 // pred_check
    _
  $region23: #{polyformer_forward.1} parent=0 // pred_check_branch
    %29 = sbr.rel (0) target = $region25
  $region24: #{polyformer_forward.1} parent=0 // pred_region
    _
  $region25: #{polyformer_forward.1} parent=0 // pred_fallthru
    _
  // Predicated region
  $region26: #{polyformer_forward.1} parent=0 // pred_check
    _
  $region27: #{polyformer_forward.1} parent=0 // pred_check_branch
    %31 = sbr.rel (0) target = $region29
  $region28: #{polyformer_forward.1} parent=0 // pred_region
    _
  $region29: #{polyformer_forward.1} parent=0 // pred_fallthru
    _
  // Predicated region
  $region30: #{polyformer_forward.1} parent=0 // pred_check
    _
  $region31: #{polyformer_forward.1} parent=0 // pred_check_branch
    %33 = sbr.rel (0) target = $region33
  $region32: #{polyformer_forward.1} parent=0 // pred_region
    _
  $region33: #{polyformer_forward.1} parent=0 // pred_fallthru
    _
  // Predicated region
  $region34: #{polyformer_forward.1} parent=0 // pred_check
    _
  $region35: #{polyformer_forward.1} parent=0 // pred_check_branch
    %35 = sbr.rel (0) target = $region37
  $region36: #{polyformer_forward.1} parent=0 // pred_region
    _
  $region37: #{polyformer_forward.1} parent=0 // pred_fallthru
    _
  // Predicated region
  $region38: #{polyformer_forward.1} parent=0 // pred_check
    _
  $region39: #{polyformer_forward.1} parent=0 // pred_check_branch
    %37 = sbr.rel (0) target = $region41
  $region40: #{polyformer_forward.1} parent=0 // pred_region
    _
  $region41: #{polyformer_forward.1} parent=0 // pred_fallthru
    _
  // Predicated region
  $region42: #{polyformer_forward.1} parent=0 // pred_check
    _
  $region43: #{polyformer_forward.1} parent=0 // pred_check_branch
    %39 = sbr.rel (0) target = $region45
  $region44: #{polyformer_forward.1} parent=0 // pred_region
    _
  $region45: #{polyformer_forward.1} parent=0 // pred_fallthru
    _
  // Predicated region
  $region46: #{polyformer_forward.1} parent=0 // pred_check
    _
  $region47: #{polyformer_forward.1} parent=0 // pred_check_branch
    %41 = sbr.rel (0) target = $region49
  $region48: #{polyformer_forward.1} parent=0 // pred_region
    _
  $region49: #{polyformer_forward.1} parent=0 // pred_fallthru
    _
  // Predicated region
  $region50: #{polyformer_forward.1} parent=0 // pred_check
    _
  $region51: #{polyformer_forward.1} parent=0 // pred_check_branch
    %43 = sbr.rel (0) target = $region53
  $region52: #{polyformer_forward.1} parent=0 // pred_region
    _
  $region53: #{polyformer_forward.1} parent=0 // pred_fallthru
    _
  %v45 = vld [vmem:[%s1] sm:$0xf]
  %v46 = vld [vmem:[%s1 + $0x4] sm:$0xf]
  %v47 = vld [vmem:[%s1 + $0x8] sm:$0xf]
  %v48 = vld [vmem:[%s1 + $0xc] sm:$0xf]
  %v49 = vld [vmem:[%s1 + $0x10] sm:$0xf]
  %v50 = vld [vmem:[%s1 + $0x14] sm:$0xf]
  %v51 = vld [vmem:[%s1 + $0x18] sm:$0xf]
  %v52 = vld [vmem:[%s1 + $0x1c] sm:$0xf]
  %v53 = vld [vmem:[%s1 + $0x20] sm:$0xf]
  %v54 = vld [vmem:[%s1 + $0x24] sm:$0xf]
  %v55 = vld [vmem:[%s1 + $0x28] sm:$0xf]
  %v56 = vld [vmem:[%s1 + $0x2c] sm:$0xf]
  %v57 = vld [vmem:[%s1 + $0x30] sm:$0xf]
  %v58 = vld [vmem:[%s1 + $0x34] sm:$0xf]
  %v59 = vld [vmem:[%s1 + $0x38] sm:$0xf]
  %v60 = vld [vmem:[%s1 + $0x3c] sm:$0xf]
  %v61 = vld [vmem:[%s1 + $0x40] sm:$0xf]
  %v62 = vld [vmem:[%s1 + $0x44] sm:$0xf]
  %v63 = vld [vmem:[%s1 + $0x48] sm:$0xf]
  %v64 = vld [vmem:[%s1 + $0x4c] sm:$0xf]
  %v65 = vld [vmem:[%s1 + $0x50] sm:$0xf]
  %v66 = vld [vmem:[%s1 + $0x54] sm:$0xf]
  %v67 = vld [vmem:[%s1 + $0x58] sm:$0xf]
  %v68 = vld [vmem:[%s1 + $0x5c] sm:$0xf]
  %v69 = vld [vmem:[%s1 + $0x60] sm:$0xf]
  %v70 = vld [vmem:[%s1 + $0x64] sm:$0xf]
  %v71 = vld [vmem:[%s1 + $0x68] sm:$0xf]
  %v72 = vld [vmem:[%s1 + $0x6c] sm:$0xf]
  %v73 = vld [vmem:[%s1 + $0x70] sm:$0xf]
  %v74 = vld [vmem:[%s1 + $0x74] sm:$0xf]
  %v75 = vld [vmem:[%s1 + $0x78] sm:$0xf]
  %v76 = vld [vmem:[%s1 + $0x7c] sm:$0xf]
  %v77 = vld [vmem:[%s2] sm:$0xff]
  %v78 = vld [vmem:[%s2 + $0x8] sm:$0xff]
  %v79 = vld [vmem:[%s2 + $0x10] sm:$0xff]
  %v80 = vld [vmem:[%s2 + $0x18] sm:$0xff]
  %v81 = vld [vmem:[%s2 + $0x20] sm:$0xff]
  %v82 = vld [vmem:[%s2 + $0x28] sm:$0xff]
  %v83 = vld [vmem:[%s2 + $0x30] sm:$0xff]
  %v84 = vld [vmem:[%s2 + $0x38] sm:$0xff]
  %v85 = vld [vmem:[%s3] sm:$0xff]
  %v86 = vld [vmem:[%s3 + $0x8] sm:$0xff]
  %v87 = vld [vmem:[%s3 + $0x10] sm:$0xff]
  %v88 = vld [vmem:[%s3 + $0x18] sm:$0xff]
  %v89 = vld [vmem:[%s3 + $0x20] sm:$0xff]
  %v90 = vld [vmem:[%s3 + $0x28] sm:$0xff]
  %v91 = vld [vmem:[%s3 + $0x30] sm:$0xff]
  %v92 = vld [vmem:[%s3 + $0x38] sm:$0xff]
  %v93 = vld [vmem:[%s4] sm:$0xf]
  %v94 = vld [vmem:[%s4 + $0x4] sm:$0xf]
  %v95 = vld [vmem:[%s4 + $0x8] sm:$0xf]
  %v96 = vld [vmem:[%s4 + $0xc] sm:$0xf]
  %v97 = vld [vmem:[%s5] sm:$0xf]
  %v98 = vld [vmem:[%s5 + $0x4] sm:$0xf]
  %v99 = vld [vmem:[%s5 + $0x8] sm:$0xf]
  %v100 = vld [vmem:[%s5 + $0xc] sm:$0xf]
  %v101 = vld [vmem:[%s6] sm:$0x1]
  %v102 = vld [vmem:[%s7] sm:$0xf]
  %v103 = vld [vmem:[%s7 + $0x4] sm:$0xf]
  %v104 = vld [vmem:[%s7 + $0x8] sm:$0xf]
  %v105 = vld [vmem:[%s7 + $0xc] sm:$0xf]
  %v106 = vld [vmem:[%s7 + $0x10] sm:$0xf]
  %v107 = vld [vmem:[%s7 + $0x14] sm:$0xf]
  %v108 = vld [vmem:[%s7 + $0x18] sm:$0xf]
  %v109 = vld [vmem:[%s7 + $0x1c] sm:$0xf]
  %v110 = vld [vmem:[%s7 + $0x20] sm:$0xf]
  %v111 = vld [vmem:[%s7 + $0x24] sm:$0xf]
  %v112 = vld [vmem:[%s7 + $0x28] sm:$0xf]
  %v113 = vld [vmem:[%s7 + $0x2c] sm:$0xf]
  %v114 = vld [vmem:[%s7 + $0x30] sm:$0xf]
  %v115 = vld [vmem:[%s7 + $0x34] sm:$0xf]
  %v116 = vld [vmem:[%s7 + $0x38] sm:$0xf]
  %v117 = vld [vmem:[%s7 + $0x3c] sm:$0xf]
  %v118 = vld [vmem:[%s8] sm:$0xf]
  %v119 = vld [vmem:[%s8 + $0x4] sm:$0xf]
  %v120 = vld [vmem:[%s8 + $0x8] sm:$0xf]
  %v121 = vld [vmem:[%s8 + $0xc] sm:$0xf]
  %v122 = vld [vmem:[%s8 + $0x10] sm:$0xf]
  %v123 = vld [vmem:[%s8 + $0x14] sm:$0xf]
  %v124 = vld [vmem:[%s8 + $0x18] sm:$0xf]
  %v125 = vld [vmem:[%s8 + $0x1c] sm:$0xf]
  %v126 = vld [vmem:[%s8 + $0x20] sm:$0xf]
  %v127 = vld [vmem:[%s8 + $0x24] sm:$0xf]
  %v128 = vld [vmem:[%s8 + $0x28] sm:$0xf]
  %v129 = vld [vmem:[%s8 + $0x2c] sm:$0xf]
  %v130 = vld [vmem:[%s8 + $0x30] sm:$0xf]
  %v131 = vld [vmem:[%s8 + $0x34] sm:$0xf]
  %v132 = vld [vmem:[%s8 + $0x38] sm:$0xf]
  %v133 = vld [vmem:[%s8 + $0x3c] sm:$0xf]
  %v134 = vld [vmem:[%s9] sm:$0xf]
  %v135 = vld [vmem:[%s9 + $0x4] sm:$0xf]
  %v136 = vld [vmem:[%s9 + $0x8] sm:$0xf]
  %v137 = vld [vmem:[%s9 + $0xc] sm:$0xf]
  %v138 = vld [vmem:[%s10] sm:$0x1]
  %v139 = vld [vmem:[%s11] sm:$0xf]
  %v140 = vld [vmem:[%s11 + $0x4] sm:$0xf]
  %v141 = vld [vmem:[%s11 + $0x8] sm:$0xf]
  %v142 = vld [vmem:[%s11 + $0xc] sm:$0xf]
  %v143 = vld [vmem:[%s11 + $0x10] sm:$0xf]
  %v144 = vld [vmem:[%s11 + $0x14] sm:$0xf]
  %v145 = vld [vmem:[%s11 + $0x18] sm:$0xf]
  %v146 = vld [vmem:[%s11 + $0x1c] sm:$0xf]
  %v147 = vld [vmem:[%s11 + $0x20] sm:$0xf]
  %v148 = vld [vmem:[%s11 + $0x24] sm:$0xf]
  %v149 = vld [vmem:[%s11 + $0x28] sm:$0xf]
  %v150 = vld [vmem:[%s11 + $0x2c] sm:$0xf]
  %v151 = vld [vmem:[%s11 + $0x30] sm:$0xf]
  %v152 = vld [vmem:[%s11 + $0x34] sm:$0xf]
  %v153 = vld [vmem:[%s11 + $0x38] sm:$0xf]
  %v154 = vld [vmem:[%s11 + $0x3c] sm:$0xf]
  %v155 = vld [vmem:[%s12] sm:$0xf]
  %v156 = vld [vmem:[%s12 + $0x4] sm:$0xf]
  %v157 = vld [vmem:[%s12 + $0x8] sm:$0xf]
  %v158 = vld [vmem:[%s12 + $0xc] sm:$0xf]
  %v159 = vld [vmem:[%s12 + $0x10] sm:$0xf]
  %v160 = vld [vmem:[%s12 + $0x14] sm:$0xf]
  %v161 = vld [vmem:[%s12 + $0x18] sm:$0xf]
  %v162 = vld [vmem:[%s12 + $0x1c] sm:$0xf]
  %v163 = vld [vmem:[%s12 + $0x20] sm:$0xf]
  %v164 = vld [vmem:[%s12 + $0x24] sm:$0xf]
  %v165 = vld [vmem:[%s12 + $0x28] sm:$0xf]
  %v166 = vld [vmem:[%s12 + $0x2c] sm:$0xf]
  %v167 = vld [vmem:[%s12 + $0x30] sm:$0xf]
  %v168 = vld [vmem:[%s12 + $0x34] sm:$0xf]
  %v169 = vld [vmem:[%s12 + $0x38] sm:$0xf]
  %v170 = vld [vmem:[%s12 + $0x3c] sm:$0xf]
  %v171 = vld [vmem:[%s0] sm:$0xff]
  %v172 = vld [vmem:[%s0 + $0x8] sm:$0xff]
  %v173 = vld [vmem:[%s0 + $0x10] sm:$0xff]
  %v174 = vld [vmem:[%s0 + $0x18] sm:$0xff]
  %v175 = vld [vmem:[%s0 + $0x20] sm:$0xff]
  %v176 = vld [vmem:[%s0 + $0x28] sm:$0xff]
  %v177 = vld [vmem:[%s0 + $0x30] sm:$0xff]
  %v178 = vld [vmem:[%s0 + $0x38] sm:$0xff]
  %v179 = vpack.c.bf16 %v173, %v171
  %v180 = vpack.c.bf16 %v174, %v172
  %v181 = vpack.c.bf16 %v177, %v175
  %v182 = vpack.c.bf16 %v178, %v176
  %v191 = vunpack.c.l.b16 %v77
  %v192 = vunpack.c.h.b16 %v77
  %v193 = vunpack.c.l.b16 %v78
  %v194 = vunpack.c.h.b16 %v78
  %v195 = vunpack.c.l.b16 %v79
  %v196 = vunpack.c.h.b16 %v79
  %v197 = vunpack.c.l.b16 %v80
  %v198 = vunpack.c.h.b16 %v80
  %v199 = vunpack.c.l.b16 %v81
  %v200 = vunpack.c.h.b16 %v81
  %v201 = vunpack.c.l.b16 %v82
  %v202 = vunpack.c.h.b16 %v82
  %v203 = vunpack.c.l.b16 %v83
  %v204 = vunpack.c.h.b16 %v83
  %v205 = vunpack.c.l.b16 %v84
  %v206 = vunpack.c.h.b16 %v84
  %v207 = vpack.c.b16 %v193, %v191
  %v208 = vpack.c.b16 %v194, %v192
  %v209 = vpack.c.b16 %v197, %v195
  %v210 = vpack.c.b16 %v198, %v196
  %v211 = vpack.c.b16 %v201, %v199
  %v212 = vpack.c.b16 %v202, %v200
  %v213 = vpack.c.b16 %v205, %v203
  %v214 = vpack.c.b16 %v206, %v204
  %223 = vmatpush.bf16.xpose.msra.mxu0 0
  %224 = vmatpush.bf16.xpose.msra.mxu0 0
  %225 = vmatpush.bf16.xpose.msra.mxu0 0
  %226 = vmatpush.bf16.xpose.msra.mxu0 0
  %227 = vmatpush.bf16.xpose.msra.mxu0 0
  %228 = vmatpush.bf16.xpose.msra.mxu0 0
  %229 = vmatpush.bf16.xpose.msra.mxu0 %v181
  %230 = vmatpush.bf16.xpose.msra.mxu0 %v179
  %231 = vmatmul.bf16.gmra.mxu0 %v207
  %v232 = vpop.f32.mrf.mxu0
  %v233 = vadd.f32 0.0, %v232
  %v234 = vpop.f32.mrf.mxu0
  %v235 = vadd.f32 0.0, %v234
  %236 = vmatmul.bf16.gmra.mxu0 %v209
  %v237 = vpop.f32.mrf.mxu0
  %v238 = vadd.f32 0.0, %v237
  %v239 = vpop.f32.mrf.mxu0
  %v240 = vadd.f32 0.0, %v239
  %241 = vmatmul.bf16.gmra.mxu0 %v211
  %v242 = vpop.f32.mrf.mxu0
  %v243 = vadd.f32 0.0, %v242
  %v244 = vpop.f32.mrf.mxu0
  %v245 = vadd.f32 0.0, %v244
  %246 = vmatmul.bf16.gmra.mxu0 %v213
  %v247 = vpop.f32.mrf.mxu0
  %v248 = vadd.f32 0.0, %v247
  %v249 = vpop.f32.mrf.mxu0
  %v250 = vadd.f32 0.0, %v249
  %251 = vdwg.mxu0
  %252 = vmatpush.bf16.xpose.msra.mxu0 0
  %253 = vmatpush.bf16.xpose.msra.mxu0 0
  %254 = vmatpush.bf16.xpose.msra.mxu0 0
  %255 = vmatpush.bf16.xpose.msra.mxu0 0
  %256 = vmatpush.bf16.xpose.msra.mxu0 0
  %257 = vmatpush.bf16.xpose.msra.mxu0 0
  %258 = vmatpush.bf16.xpose.msra.mxu0 %v182
  %259 = vmatpush.bf16.xpose.msra.mxu0 %v180
  %260 = vmatmul.bf16.gmra.mxu0 %v208
  %v261 = vpop.f32.mrf.mxu0
  %v262 = vadd.f32 %v233, %v261
  %v263 = vpop.f32.mrf.mxu0
  %v264 = vadd.f32 %v235, %v263
  %265 = vmatmul.bf16.gmra.mxu0 %v210
  %v266 = vpop.f32.mrf.mxu0
  %v267 = vadd.f32 %v238, %v266
  %v268 = vpop.f32.mrf.mxu0
  %v269 = vadd.f32 %v240, %v268
  %270 = vmatmul.bf16.gmra.mxu0 %v212
  %v271 = vpop.f32.mrf.mxu0
  %v272 = vadd.f32 %v243, %v271
  %v273 = vpop.f32.mrf.mxu0
  %v274 = vadd.f32 %v245, %v273
  %275 = vmatmul.bf16.gmra.mxu0 %v214
  %v276 = vpop.f32.mrf.mxu0
  %v277 = vadd.f32 %v248, %v276
  %v278 = vpop.f32.mrf.mxu0
  %v279 = vadd.f32 %v250, %v278
  %280 = vdwg.mxu0
  %v281 = vpack.c.bf16 %v264, %v262
  %v282 = vpack.c.bf16 %v269, %v267
  %v283 = vpack.c.bf16 %v274, %v272
  %v284 = vpack.c.bf16 %v279, %v277
  %v286 = vperm.slane %v101, 0
  %v320 = vunpack.c.l.b16 %v45
  %v321 = vunpack.c.l.b16 %v46
  %v322 = vunpack.c.l.b16 %v47
  %v323 = vunpack.c.l.b16 %v48
  %v324 = vunpack.c.l.b16 %v49
  %v325 = vunpack.c.l.b16 %v50
  %v326 = vunpack.c.l.b16 %v51
  %v327 = vunpack.c.l.b16 %v52
  %v328 = vunpack.c.l.b16 %v53
  %v329 = vunpack.c.l.b16 %v54
  %v330 = vunpack.c.l.b16 %v55
  %v331 = vunpack.c.l.b16 %v56
  %v332 = vunpack.c.l.b16 %v57
  %v333 = vunpack.c.l.b16 %v58
  %v334 = vunpack.c.l.b16 %v59
  %v335 = vunpack.c.l.b16 %v60
  %v336 = vunpack.c.l.b16 %v61
  %v337 = vunpack.c.l.b16 %v62
  %v338 = vunpack.c.l.b16 %v63
  %v339 = vunpack.c.l.b16 %v64
  %v340 = vunpack.c.l.b16 %v65
  %v341 = vunpack.c.l.b16 %v66
  %v342 = vunpack.c.l.b16 %v67
  %v343 = vunpack.c.l.b16 %v68
  %v344 = vunpack.c.l.b16 %v69
  %v345 = vunpack.c.l.b16 %v70
  %v346 = vunpack.c.l.b16 %v71
  %v347 = vunpack.c.l.b16 %v72
  %v348 = vunpack.c.l.b16 %v73
  %v349 = vunpack.c.l.b16 %v74
  %v350 = vunpack.c.l.b16 %v75
  %v351 = vunpack.c.l.b16 %v76
  %v352 = vpack.c.b16 %v321, %v320
  %v353 = vpack.c.b16 %v323, %v322
  %v354 = vpack.c.b16 %v325, %v324
  %v355 = vpack.c.b16 %v327, %v326
  %v356 = vpack.c.b16 %v329, %v328
  %v357 = vpack.c.b16 %v331, %v330
  %v358 = vpack.c.b16 %v333, %v332
  %v359 = vpack.c.b16 %v335, %v334
  %v360 = vpack.c.b16 %v337, %v336
  %v361 = vpack.c.b16 %v339, %v338
  %v362 = vpack.c.b16 %v341, %v340
  %v363 = vpack.c.b16 %v343, %v342
  %v364 = vpack.c.b16 %v345, %v344
  %v365 = vpack.c.b16 %v347, %v346
  %v366 = vpack.c.b16 %v349, %v348
  %v367 = vpack.c.b16 %v351, %v350
  %v372 = vunpack.c.l.b16 %v97
  %v373 = vunpack.c.l.b16 %v98
  %v374 = vunpack.c.l.b16 %v99
  %v375 = vunpack.c.l.b16 %v100
  %v376 = vpack.c.b16 %v373, %v372
  %v377 = vpack.c.b16 %v375, %v374
  %vm380 = vcmask 261120
  %v382 = vsel %vm380, %v352, 0
  %v385 = vsel %vm380, %v353, 0
  %v388 = vsel %vm380, %v354, 0
  %v391 = vsel %vm380, %v355, 0
  %v394 = vsel %vm380, %v356, 0
  %v397 = vsel %vm380, %v357, 0
  %v400 = vsel %vm380, %v358, 0
  %v403 = vsel %vm380, %v359, 0
  %v406 = vsel %vm380, %v360, 0
  %v409 = vsel %vm380, %v361, 0
  %v412 = vsel %vm380, %v362, 0
  %v415 = vsel %vm380, %v363, 0
  %v418 = vsel %vm380, %v364, 0
  %v421 = vsel %vm380, %v365, 0
  %v424 = vsel %vm380, %v366, 0
  %v427 = vsel %vm380, %v367, 0
  %429 = vmatpush.bf16.msra.mxu0 0
  %430 = vmatpush.bf16.msra.mxu0 0
  %431 = vmatpush.bf16.msra.mxu0 0
  %432 = vmatpush.bf16.msra.mxu0 0
  %433 = vmatpush.bf16.msra.mxu0 0
  %434 = vmatpush.bf16.msra.mxu0 0
  %435 = vmatpush.bf16.msra.mxu0 %v377
  %436 = vmatpush.bf16.msra.mxu0 %v376
  %437 = vmatmul.bf16.gmra.mxu0 %v382
  %v438 = vpop.f32.mrf.mxu0
  %v439 = vadd.f32 %v286, %v438
  %v440 = vpop.f32.mrf.mxu0
  %v441 = vadd.f32 %v286, %v440
  %442 = vmatmul.bf16.gmra.mxu0 %v385
  %v443 = vpop.f32.mrf.mxu0
  %v444 = vadd.f32 %v286, %v443
  %v445 = vpop.f32.mrf.mxu0
  %v446 = vadd.f32 %v286, %v445
  %447 = vmatmul.bf16.gmra.mxu0 %v388
  %v448 = vpop.f32.mrf.mxu0
  %v449 = vadd.f32 %v286, %v448
  %v450 = vpop.f32.mrf.mxu0
  %v451 = vadd.f32 %v286, %v450
  %452 = vmatmul.bf16.gmra.mxu0 %v391
  %v453 = vpop.f32.mrf.mxu0
  %v454 = vadd.f32 %v286, %v453
  %v455 = vpop.f32.mrf.mxu0
  %v456 = vadd.f32 %v286, %v455
  %457 = vmatmul.bf16.gmra.mxu0 %v394
  %v458 = vpop.f32.mrf.mxu0
  %v459 = vadd.f32 %v286, %v458
  %v460 = vpop.f32.mrf.mxu0
  %v461 = vadd.f32 %v286, %v460
  %462 = vmatmul.bf16.gmra.mxu0 %v397
  %v463 = vpop.f32.mrf.mxu0
  %v464 = vadd.f32 %v286, %v463
  %v465 = vpop.f32.mrf.mxu0
  %v466 = vadd.f32 %v286, %v465
  %467 = vmatmul.bf16.gmra.mxu0 %v400
  %v468 = vpop.f32.mrf.mxu0
  %v469 = vadd.f32 %v286, %v468
  %v470 = vpop.f32.mrf.mxu0
  %v471 = vadd.f32 %v286, %v470
  %472 = vmatmul.bf16.gmra.mxu0 %v403
  %v473 = vpop.f32.mrf.mxu0
  %v474 = vadd.f32 %v286, %v473
  %v475 = vpop.f32.mrf.mxu0
  %v476 = vadd.f32 %v286, %v475
  %477 = vmatmul.bf16.gmra.mxu0 %v406
  %v478 = vpop.f32.mrf.mxu0
  %v479 = vadd.f32 %v286, %v478
  %v480 = vpop.f32.mrf.mxu0
  %v481 = vadd.f32 %v286, %v480
  %482 = vmatmul.bf16.gmra.mxu0 %v409
  %v483 = vpop.f32.mrf.mxu0
  %v484 = vadd.f32 %v286, %v483
  %v485 = vpop.f32.mrf.mxu0
  %v486 = vadd.f32 %v286, %v485
  %487 = vmatmul.bf16.gmra.mxu0 %v412
  %v488 = vpop.f32.mrf.mxu0
  %v489 = vadd.f32 %v286, %v488
  %v490 = vpop.f32.mrf.mxu0
  %v491 = vadd.f32 %v286, %v490
  %492 = vmatmul.bf16.gmra.mxu0 %v415
  %v493 = vpop.f32.mrf.mxu0
  %v494 = vadd.f32 %v286, %v493
  %v495 = vpop.f32.mrf.mxu0
  %v496 = vadd.f32 %v286, %v495
  %497 = vmatmul.bf16.gmra.mxu0 %v418
  %v498 = vpop.f32.mrf.mxu0
  %v499 = vadd.f32 %v286, %v498
  %v500 = vpop.f32.mrf.mxu0
  %v501 = vadd.f32 %v286, %v500
  %502 = vmatmul.bf16.gmra.mxu0 %v421
  %v503 = vpop.f32.mrf.mxu0
  %v504 = vadd.f32 %v286, %v503
  %v505 = vpop.f32.mrf.mxu0
  %v506 = vadd.f32 %v286, %v505
  %507 = vmatmul.bf16.gmra.mxu0 %v424
  %v508 = vpop.f32.mrf.mxu0
  %v509 = vadd.f32 %v286, %v508
  %v510 = vpop.f32.mrf.mxu0
  %v511 = vadd.f32 %v286, %v510
  %512 = vmatmul.bf16.gmra.mxu0 %v427
  %v513 = vpop.f32.mrf.mxu0
  %v514 = vadd.f32 %v286, %v513
  %v515 = vpop.f32.mrf.mxu0
  %v516 = vadd.f32 %v286, %v515
  %517 = vdwg.mxu0
  %v518 = vpack.c.bf16 %v441, %v439
  %v519 = vpack.c.bf16 %v446, %v444
  %v520 = vpack.c.bf16 %v451, %v449
  %v521 = vpack.c.bf16 %v456, %v454
  %v522 = vpack.c.bf16 %v461, %v459
  %v523 = vpack.c.bf16 %v466, %v464
  %v524 = vpack.c.bf16 %v471, %v469
  %v525 = vpack.c.bf16 %v476, %v474
  %v526 = vpack.c.bf16 %v481, %v479
  %v527 = vpack.c.bf16 %v486, %v484
  %v528 = vpack.c.bf16 %v491, %v489
  %v529 = vpack.c.bf16 %v496, %v494
  %v530 = vpack.c.bf16 %v501, %v499
  %v531 = vpack.c.bf16 %v506, %v504
  %v532 = vpack.c.bf16 %v511, %v509
  %v533 = vpack.c.bf16 %v516, %v514
  %v535 = vsel %vm380, %v518, 0
  %v538 = vsel %vm380, %v519, 0
  %v541 = vsel %vm380, %v520, 0
  %v544 = vsel %vm380, %v521, 0
  %v547 = vsel %vm380, %v522, 0
  %v550 = vsel %vm380, %v523, 0
  %v553 = vsel %vm380, %v524, 0
  %v556 = vsel %vm380, %v525, 0
  %v559 = vsel %vm380, %v526, 0
  %v562 = vsel %vm380, %v527, 0
  %v565 = vsel %vm380, %v528, 0
  %v568 = vsel %vm380, %v529, 0
  %v571 = vsel %vm380, %v530, 0
  %v574 = vsel %vm380, %v531, 0
  %v577 = vsel %vm380, %v532, 0
  %v580 = vsel %vm380, %v533, 0
  %v583 = vsel %vm380, %v281, 0
  %v586 = vsel %vm380, %v282, 0
  %v589 = vsel %vm380, %v283, 0
  %v592 = vsel %vm380, %v284, 0
  %594 = vmatpush.bf16.xpose.msra.mxu0 0
  %595 = vmatpush.bf16.xpose.msra.mxu0 0
  %596 = vmatpush.bf16.xpose.msra.mxu0 0
  %597 = vmatpush.bf16.xpose.msra.mxu0 0
  %598 = vmatpush.bf16.xpose.msra.mxu0 %v592
  %599 = vmatpush.bf16.xpose.msra.mxu0 %v589
  %600 = vmatpush.bf16.xpose.msra.mxu0 %v586
  %601 = vmatpush.bf16.xpose.msra.mxu0 %v583
  %602 = vmatmul.bf16.gmra.mxu0 %v535
  %v603 = vpop.f32.mrf.mxu0
  %v604 = vadd.f32 0.0, %v603
  %v605 = vpop.f32.mrf.mxu0
  %v606 = vadd.f32 0.0, %v605
  %607 = vmatmul.bf16.gmra.mxu0 %v538
  %v608 = vpop.f32.mrf.mxu0
  %v609 = vadd.f32 0.0, %v608
  %v610 = vpop.f32.mrf.mxu0
  %v611 = vadd.f32 0.0, %v610
  %612 = vmatmul.bf16.gmra.mxu0 %v541
  %v613 = vpop.f32.mrf.mxu0
  %v614 = vadd.f32 0.0, %v613
  %v615 = vpop.f32.mrf.mxu0
  %v616 = vadd.f32 0.0, %v615
  %617 = vmatmul.bf16.gmra.mxu0 %v544
  %v618 = vpop.f32.mrf.mxu0
  %v619 = vadd.f32 0.0, %v618
  %v620 = vpop.f32.mrf.mxu0
  %v621 = vadd.f32 0.0, %v620
  %622 = vmatmul.bf16.gmra.mxu0 %v547
  %v623 = vpop.f32.mrf.mxu0
  %v624 = vadd.f32 0.0, %v623
  %v625 = vpop.f32.mrf.mxu0
  %v626 = vadd.f32 0.0, %v625
  %627 = vmatmul.bf16.gmra.mxu0 %v550
  %v628 = vpop.f32.mrf.mxu0
  %v629 = vadd.f32 0.0, %v628
  %v630 = vpop.f32.mrf.mxu0
  %v631 = vadd.f32 0.0, %v630
  %632 = vmatmul.bf16.gmra.mxu0 %v553
  %v633 = vpop.f32.mrf.mxu0
  %v634 = vadd.f32 0.0, %v633
  %v635 = vpop.f32.mrf.mxu0
  %v636 = vadd.f32 0.0, %v635
  %637 = vmatmul.bf16.gmra.mxu0 %v556
  %v638 = vpop.f32.mrf.mxu0
  %v639 = vadd.f32 0.0, %v638
  %v640 = vpop.f32.mrf.mxu0
  %v641 = vadd.f32 0.0, %v640
  %642 = vmatmul.bf16.gmra.mxu0 %v559
  %v643 = vpop.f32.mrf.mxu0
  %v644 = vadd.f32 0.0, %v643
  %v645 = vpop.f32.mrf.mxu0
  %v646 = vadd.f32 0.0, %v645
  %647 = vmatmul.bf16.gmra.mxu0 %v562
  %v648 = vpop.f32.mrf.mxu0
  %v649 = vadd.f32 0.0, %v648
  %v650 = vpop.f32.mrf.mxu0
  %v651 = vadd.f32 0.0, %v650
  %652 = vmatmul.bf16.gmra.mxu0 %v565
  %v653 = vpop.f32.mrf.mxu0
  %v654 = vadd.f32 0.0, %v653
  %v655 = vpop.f32.mrf.mxu0
  %v656 = vadd.f32 0.0, %v655
  %657 = vmatmul.bf16.gmra.mxu0 %v568
  %v658 = vpop.f32.mrf.mxu0
  %v659 = vadd.f32 0.0, %v658
  %v660 = vpop.f32.mrf.mxu0
  %v661 = vadd.f32 0.0, %v660
  %662 = vmatmul.bf16.gmra.mxu0 %v571
  %v663 = vpop.f32.mrf.mxu0
  %v664 = vadd.f32 0.0, %v663
  %v665 = vpop.f32.mrf.mxu0
  %v666 = vadd.f32 0.0, %v665
  %667 = vmatmul.bf16.gmra.mxu0 %v574
  %v668 = vpop.f32.mrf.mxu0
  %v669 = vadd.f32 0.0, %v668
  %v670 = vpop.f32.mrf.mxu0
  %v671 = vadd.f32 0.0, %v670
  %672 = vmatmul.bf16.gmra.mxu0 %v577
  %v673 = vpop.f32.mrf.mxu0
  %v674 = vadd.f32 0.0, %v673
  %v675 = vpop.f32.mrf.mxu0
  %v676 = vadd.f32 0.0, %v675
  %677 = vmatmul.bf16.gmra.mxu0 %v580
  %v678 = vpop.f32.mrf.mxu0
  %v679 = vadd.f32 0.0, %v678
  %v680 = vpop.f32.mrf.mxu0
  %v681 = vadd.f32 0.0, %v680
  %682 = vdwg.mxu0
  %vm683 = vcmask 523264
  %v684 = vsel %vm683, %v604, -inf
  %685 = vmax.xlane.f32.xlu0 %v684
  %v686 = vpop.xlane.xlu0 %685
  %v687 = vsel %vm683, %v606, -inf
  %688 = vmax.xlane.f32.xlu0 %v687
  %v689 = vpop.xlane.xlu0 %688
  %v690 = vsel %vm683, %v609, -inf
  %691 = vmax.xlane.f32.xlu0 %v690
  %v692 = vpop.xlane.xlu0 %691
  %v693 = vsel %vm683, %v611, -inf
  %694 = vmax.xlane.f32.xlu0 %v693
  %v695 = vpop.xlane.xlu0 %694
  %v696 = vsel %vm683, %v614, -inf
  %697 = vmax.xlane.f32.xlu0 %v696
  %v698 = vpop.xlane.xlu0 %697
  %v699 = vsel %vm683, %v616, -inf
  %700 = vmax.xlane.f32.xlu0 %v699
  %v701 = vpop.xlane.xlu0 %700
  %v702 = vsel %vm683, %v619, -inf
  %703 = vmax.xlane.f32.xlu0 %v702
  %v704 = vpop.xlane.xlu0 %703
  %v705 = vsel %vm683, %v621, -inf
  %706 = vmax.xlane.f32.xlu0 %v705
  %v707 = vpop.xlane.xlu0 %706
  %v708 = vsel %vm683, %v624, -inf
  %709 = vmax.xlane.f32.xlu0 %v708
  %v710 = vpop.xlane.xlu0 %709
  %v711 = vsel %vm683, %v626, -inf
  %712 = vmax.xlane.f32.xlu0 %v711
  %v713 = vpop.xlane.xlu0 %712
  %v714 = vsel %vm683, %v629, -inf
  %715 = vmax.xlane.f32.xlu0 %v714
  %v716 = vpop.xlane.xlu0 %715
  %v717 = vsel %vm683, %v631, -inf
  %718 = vmax.xlane.f32.xlu0 %v717
  %v719 = vpop.xlane.xlu0 %718
  %v720 = vsel %vm683, %v634, -inf
  %721 = vmax.xlane.f32.xlu0 %v720
  %v722 = vpop.xlane.xlu0 %721
  %v723 = vsel %vm683, %v636, -inf
  %724 = vmax.xlane.f32.xlu0 %v723
  %v725 = vpop.xlane.xlu0 %724
  %v726 = vsel %vm683, %v639, -inf
  %727 = vmax.xlane.f32.xlu0 %v726
  %v728 = vpop.xlane.xlu0 %727
  %v729 = vsel %vm683, %v641, -inf
  %730 = vmax.xlane.f32.xlu0 %v729
  %v731 = vpop.xlane.xlu0 %730
  %v732 = vsel %vm683, %v644, -inf
  %733 = vmax.xlane.f32.xlu0 %v732
  %v734 = vpop.xlane.xlu0 %733
  %v735 = vsel %vm683, %v646, -inf
  %736 = vmax.xlane.f32.xlu0 %v735
  %v737 = vpop.xlane.xlu0 %736
  %v738 = vsel %vm683, %v649, -inf
  %739 = vmax.xlane.f32.xlu0 %v738
  %v740 = vpop.xlane.xlu0 %739
  %v741 = vsel %vm683, %v651, -inf
  %742 = vmax.xlane.f32.xlu0 %v741
  %v743 = vpop.xlane.xlu0 %742
  %v744 = vsel %vm683, %v654, -inf
  %745 = vmax.xlane.f32.xlu0 %v744
  %v746 = vpop.xlane.xlu0 %745
  %v747 = vsel %vm683, %v656, -inf
  %748 = vmax.xlane.f32.xlu0 %v747
  %v749 = vpop.xlane.xlu0 %748
  %v750 = vsel %vm683, %v659, -inf
  %751 = vmax.xlane.f32.xlu0 %v750
  %v752 = vpop.xlane.xlu0 %751
  %v753 = vsel %vm683, %v661, -inf
  %754 = vmax.xlane.f32.xlu0 %v753
  %v755 = vpop.xlane.xlu0 %754
  %v756 = vsel %vm683, %v664, -inf
  %757 = vmax.xlane.f32.xlu0 %v756
  %v758 = vpop.xlane.xlu0 %757
  %v759 = vsel %vm683, %v666, -inf
  %760 = vmax.xlane.f32.xlu0 %v759
  %v761 = vpop.xlane.xlu0 %760
  %v762 = vsel %vm683, %v669, -inf
  %763 = vmax.xlane.f32.xlu0 %v762
  %v764 = vpop.xlane.xlu0 %763
  %v765 = vsel %vm683, %v671, -inf
  %766 = vmax.xlane.f32.xlu0 %v765
  %v767 = vpop.xlane.xlu0 %766
  %v768 = vsel %vm683, %v674, -inf
  %769 = vmax.xlane.f32.xlu0 %v768
  %v770 = vpop.xlane.xlu0 %769
  %v771 = vsel %vm683, %v676, -inf
  %772 = vmax.xlane.f32.xlu0 %v771
  %v773 = vpop.xlane.xlu0 %772
  %v774 = vsel %vm683, %v679, -inf
  %775 = vmax.xlane.f32.xlu0 %v774
  %v776 = vpop.xlane.xlu0 %775
  %v777 = vsel %vm683, %v681, -inf
  %778 = vmax.xlane.f32.xlu0 %v777
  %v779 = vpop.xlane.xlu0 %778
  %v780 = vsub.f32 %v604, %v686
  %v781 = vsub.f32 %v606, %v689
  %v782 = vsub.f32 %v609, %v692
  %v783 = vsub.f32 %v611, %v695
  %v784 = vsub.f32 %v614, %v698
  %v785 = vsub.f32 %v616, %v701
  %v786 = vsub.f32 %v619, %v704
  %v787 = vsub.f32 %v621, %v707
  %v788 = vsub.f32 %v624, %v710
  %v789 = vsub.f32 %v626, %v713
  %v790 = vsub.f32 %v629, %v716
  %v791 = vsub.f32 %v631, %v719
  %v792 = vsub.f32 %v634, %v722
  %v793 = vsub.f32 %v636, %v725
  %v794 = vsub.f32 %v639, %v728
  %v795 = vsub.f32 %v641, %v731
  %v796 = vsub.f32 %v644, %v734
  %v797 = vsub.f32 %v646, %v737
  %v798 = vsub.f32 %v649, %v740
  %v799 = vsub.f32 %v651, %v743
  %v800 = vsub.f32 %v654, %v746
  %v801 = vsub.f32 %v656, %v749
  %v802 = vsub.f32 %v659, %v752
  %v803 = vsub.f32 %v661, %v755
  %v804 = vsub.f32 %v664, %v758
  %v805 = vsub.f32 %v666, %v761
  %v806 = vsub.f32 %v669, %v764
  %v807 = vsub.f32 %v671, %v767
  %v808 = vsub.f32 %v674, %v770
  %v809 = vsub.f32 %v676, %v773
  %v810 = vsub.f32 %v679, %v776
  %v811 = vsub.f32 %v681, %v779
  %v812 = vmul.f32 %v780, 1.442695
  %v813 = vpow.pop %v812
  %v814 = vmul.f32 %v781, 1.442695
  %v815 = vpow.pop %v814
  %v816 = vmul.f32 %v782, 1.442695
  %v817 = vpow.pop %v816
  %v818 = vmul.f32 %v783, 1.442695
  %v819 = vpow.pop %v818
  %v820 = vmul.f32 %v784, 1.442695
  %v821 = vpow.pop %v820
  %v822 = vmul.f32 %v785, 1.442695
  %v823 = vpow.pop %v822
  %v824 = vmul.f32 %v786, 1.442695
  %v825 = vpow.pop %v824
  %v826 = vmul.f32 %v787, 1.442695
  %v827 = vpow.pop %v826
  %v828 = vmul.f32 %v788, 1.442695
  %v829 = vpow.pop %v828
  %v830 = vmul.f32 %v789, 1.442695
  %v831 = vpow.pop %v830
  %v832 = vmul.f32 %v790, 1.442695
  %v833 = vpow.pop %v832
  %v834 = vmul.f32 %v791, 1.442695
  %v835 = vpow.pop %v834
  %v836 = vmul.f32 %v792, 1.442695
  %v837 = vpow.pop %v836
  %v838 = vmul.f32 %v793, 1.442695
  %v839 = vpow.pop %v838
  %v840 = vmul.f32 %v794, 1.442695
  %v841 = vpow.pop %v840
  %v842 = vmul.f32 %v795, 1.442695
  %v843 = vpow.pop %v842
  %v844 = vmul.f32 %v796, 1.442695
  %v845 = vpow.pop %v844
  %v846 = vmul.f32 %v797, 1.442695
  %v847 = vpow.pop %v846
  %v848 = vmul.f32 %v798, 1.442695
  %v849 = vpow.pop %v848
  %v850 = vmul.f32 %v799, 1.442695
  %v851 = vpow.pop %v850
  %v852 = vmul.f32 %v800, 1.442695
  %v853 = vpow.pop %v852
  %v854 = vmul.f32 %v801, 1.442695
  %v855 = vpow.pop %v854
  %v856 = vmul.f32 %v802, 1.442695
  %v857 = vpow.pop %v856
  %v858 = vmul.f32 %v803, 1.442695
  %v859 = vpow.pop %v858
  %v860 = vmul.f32 %v804, 1.442695
  %v861 = vpow.pop %v860
  %v862 = vmul.f32 %v805, 1.442695
  %v863 = vpow.pop %v862
  %v864 = vmul.f32 %v806, 1.442695
  %v865 = vpow.pop %v864
  %v866 = vmul.f32 %v807, 1.442695
  %v867 = vpow.pop %v866
  %v868 = vmul.f32 %v808, 1.442695
  %v869 = vpow.pop %v868
  %v870 = vmul.f32 %v809, 1.442695
  %v871 = vpow.pop %v870
  %v872 = vmul.f32 %v810, 1.442695
  %v873 = vpow.pop %v872
  %v874 = vmul.f32 %v811, 1.442695
  %v875 = vpow.pop %v874
  %v876 = vsel %vm683, %v813, 0.0
  %877 = vadd.xlane.f32.xlu0 %v876
  %v878 = vpop.xlane.xlu0 %877
  %v879 = vsel %vm683, %v815, 0.0
  %880 = vadd.xlane.f32.xlu0 %v879
  %v881 = vpop.xlane.xlu0 %880
  %v882 = vsel %vm683, %v817, 0.0
  %883 = vadd.xlane.f32.xlu0 %v882
  %v884 = vpop.xlane.xlu0 %883
  %v885 = vsel %vm683, %v819, 0.0
  %886 = vadd.xlane.f32.xlu0 %v885
  %v887 = vpop.xlane.xlu0 %886
  %v888 = vsel %vm683, %v821, 0.0
  %889 = vadd.xlane.f32.xlu0 %v888
  %v890 = vpop.xlane.xlu0 %889
  %v891 = vsel %vm683, %v823, 0.0
  %892 = vadd.xlane.f32.xlu0 %v891
  %v893 = vpop.xlane.xlu0 %892
  %v894 = vsel %vm683, %v825, 0.0
  %895 = vadd.xlane.f32.xlu0 %v894
  %v896 = vpop.xlane.xlu0 %895
  %v897 = vsel %vm683, %v827, 0.0
  %898 = vadd.xlane.f32.xlu0 %v897
  %v899 = vpop.xlane.xlu0 %898
  %v900 = vsel %vm683, %v829, 0.0
  %901 = vadd.xlane.f32.xlu0 %v900
  %v902 = vpop.xlane.xlu0 %901
  %v903 = vsel %vm683, %v831, 0.0
  %904 = vadd.xlane.f32.xlu0 %v903
  %v905 = vpop.xlane.xlu0 %904
  %v906 = vsel %vm683, %v833, 0.0
  %907 = vadd.xlane.f32.xlu0 %v906
  %v908 = vpop.xlane.xlu0 %907
  %v909 = vsel %vm683, %v835, 0.0
  %910 = vadd.xlane.f32.xlu0 %v909
  %v911 = vpop.xlane.xlu0 %910
  %v912 = vsel %vm683, %v837, 0.0
  %913 = vadd.xlane.f32.xlu0 %v912
  %v914 = vpop.xlane.xlu0 %913
  %v915 = vsel %vm683, %v839, 0.0
  %916 = vadd.xlane.f32.xlu0 %v915
  %v917 = vpop.xlane.xlu0 %916
  %v918 = vsel %vm683, %v841, 0.0
  %919 = vadd.xlane.f32.xlu0 %v918
  %v920 = vpop.xlane.xlu0 %919
  %v921 = vsel %vm683, %v843, 0.0
  %922 = vadd.xlane.f32.xlu0 %v921
  %v923 = vpop.xlane.xlu0 %922
  %v924 = vsel %vm683, %v845, 0.0
  %925 = vadd.xlane.f32.xlu0 %v924
  %v926 = vpop.xlane.xlu0 %925
  %v927 = vsel %vm683, %v847, 0.0
  %928 = vadd.xlane.f32.xlu0 %v927
  %v929 = vpop.xlane.xlu0 %928
  %v930 = vsel %vm683, %v849, 0.0
  %931 = vadd.xlane.f32.xlu0 %v930
  %v932 = vpop.xlane.xlu0 %931
  %v933 = vsel %vm683, %v851, 0.0
  %934 = vadd.xlane.f32.xlu0 %v933
  %v935 = vpop.xlane.xlu0 %934
  %v936 = vsel %vm683, %v853, 0.0
  %937 = vadd.xlane.f32.xlu0 %v936
  %v938 = vpop.xlane.xlu0 %937
  %v939 = vsel %vm683, %v855, 0.0
  %940 = vadd.xlane.f32.xlu0 %v939
  %v941 = vpop.xlane.xlu0 %940
  %v942 = vsel %vm683, %v857, 0.0
  %943 = vadd.xlane.f32.xlu0 %v942
  %v944 = vpop.xlane.xlu0 %943
  %v945 = vsel %vm683, %v859, 0.0
  %946 = vadd.xlane.f32.xlu0 %v945
  %v947 = vpop.xlane.xlu0 %946
  %v948 = vsel %vm683, %v861, 0.0
  %949 = vadd.xlane.f32.xlu0 %v948
  %v950 = vpop.xlane.xlu0 %949
  %v951 = vsel %vm683, %v863, 0.0
  %952 = vadd.xlane.f32.xlu0 %v951
  %v953 = vpop.xlane.xlu0 %952
  %v954 = vsel %vm683, %v865, 0.0
  %955 = vadd.xlane.f32.xlu0 %v954
  %v956 = vpop.xlane.xlu0 %955
  %v957 = vsel %vm683, %v867, 0.0
  %958 = vadd.xlane.f32.xlu0 %v957
  %v959 = vpop.xlane.xlu0 %958
  %v960 = vsel %vm683, %v869, 0.0
  %961 = vadd.xlane.f32.xlu0 %v960
  %v962 = vpop.xlane.xlu0 %961
  %v963 = vsel %vm683, %v871, 0.0
  %964 = vadd.xlane.f32.xlu0 %v963
  %v965 = vpop.xlane.xlu0 %964
  %v966 = vsel %vm683, %v873, 0.0
  %967 = vadd.xlane.f32.xlu0 %v966
  %v968 = vpop.xlane.xlu0 %967
  %v969 = vsel %vm683, %v875, 0.0
  %970 = vadd.xlane.f32.xlu0 %v969
  %v971 = vpop.xlane.xlu0 %970
  %v972 = vrcp.pop %v878
  %v973 = vrcp.pop %v881
  %v974 = vrcp.pop %v884
  %v975 = vrcp.pop %v887
  %v976 = vrcp.pop %v890
  %v977 = vrcp.pop %v893
  %v978 = vrcp.pop %v896
  %v979 = vrcp.pop %v899
  %v980 = vrcp.pop %v902
  %v981 = vrcp.pop %v905
  %v982 = vrcp.pop %v908
  %v983 = vrcp.pop %v911
  %v984 = vrcp.pop %v914
  %v985 = vrcp.pop %v917
  %v986 = vrcp.pop %v920
  %v987 = vrcp.pop %v923
  %v988 = vrcp.pop %v926
  %v989 = vrcp.pop %v929
  %v990 = vrcp.pop %v932
  %v991 = vrcp.pop %v935
  %v992 = vrcp.pop %v938
  %v993 = vrcp.pop %v941
  %v994 = vrcp.pop %v944
  %v995 = vrcp.pop %v947
  %v996 = vrcp.pop %v950
  %v997 = vrcp.pop %v953
  %v998 = vrcp.pop %v956
  %v999 = vrcp.pop %v959
  %v1000 = vrcp.pop %v962
  %v1001 = vrcp.pop %v965
  %v1002 = vrcp.pop %v968
  %v1003 = vrcp.pop %v971
  %v1004 = vmul.f32 %v813, %v972
  %v1005 = vmul.f32 %v815, %v973
  %v1006 = vmul.f32 %v817, %v974
  %v1007 = vmul.f32 %v819, %v975
  %v1008 = vmul.f32 %v821, %v976
  %v1009 = vmul.f32 %v823, %v977
  %v1010 = vmul.f32 %v825, %v978
  %v1011 = vmul.f32 %v827, %v979
  %v1012 = vmul.f32 %v829, %v980
  %v1013 = vmul.f32 %v831, %v981
  %v1014 = vmul.f32 %v833, %v982
  %v1015 = vmul.f32 %v835, %v983
  %v1016 = vmul.f32 %v837, %v984
  %v1017 = vmul.f32 %v839, %v985
  %v1018 = vmul.f32 %v841, %v986
  %v1019 = vmul.f32 %v843, %v987
  %v1020 = vmul.f32 %v845, %v988
  %v1021 = vmul.f32 %v847, %v989
  %v1022 = vmul.f32 %v849, %v990
  %v1023 = vmul.f32 %v851, %v991
  %v1024 = vmul.f32 %v853, %v992
  %v1025 = vmul.f32 %v855, %v993
  %v1026 = vmul.f32 %v857, %v994
  %v1027 = vmul.f32 %v859, %v995
  %v1028 = vmul.f32 %v861, %v996
  %v1029 = vmul.f32 %v863, %v997
  %v1030 = vmul.f32 %v865, %v998
  %v1031 = vmul.f32 %v867, %v999
  %v1032 = vmul.f32 %v869, %v1000
  %v1033 = vmul.f32 %v871, %v1001
  %v1034 = vmul.f32 %v873, %v1002
  %v1035 = vmul.f32 %v875, %v1003
  %v1036 = vpack.c.bf16 %v1005, %v1004
  %v1037 = vpack.c.bf16 %v1007, %v1006
  %v1038 = vpack.c.bf16 %v1009, %v1008
  %v1039 = vpack.c.bf16 %v1011, %v1010
  %v1040 = vpack.c.bf16 %v1013, %v1012
  %v1041 = vpack.c.bf16 %v1015, %v1014
  %v1042 = vpack.c.bf16 %v1017, %v1016
  %v1043 = vpack.c.bf16 %v1019, %v1018
  %v1044 = vpack.c.bf16 %v1021, %v1020
  %v1045 = vpack.c.bf16 %v1023, %v1022
  %v1046 = vpack.c.bf16 %v1025, %v1024
  %v1047 = vpack.c.bf16 %v1027, %v1026
  %v1048 = vpack.c.bf16 %v1029, %v1028
  %v1049 = vpack.c.bf16 %v1031, %v1030
  %v1050 = vpack.c.bf16 %v1033, %v1032
  %v1051 = vpack.c.bf16 %v1035, %v1034
  %v1053 = vsel %vm683, %v1036, 0
  %v1056 = vsel %vm683, %v1037, 0
  %v1059 = vsel %vm683, %v1038, 0
  %v1062 = vsel %vm683, %v1039, 0
  %v1065 = vsel %vm683, %v1040, 0
  %v1068 = vsel %vm683, %v1041, 0
  %v1071 = vsel %vm683, %v1042, 0
  %v1074 = vsel %vm683, %v1043, 0
  %v1077 = vsel %vm683, %v1044, 0
  %v1080 = vsel %vm683, %v1045, 0
  %v1083 = vsel %vm683, %v1046, 0
  %v1086 = vsel %vm683, %v1047, 0
  %v1089 = vsel %vm683, %v1048, 0
  %v1092 = vsel %vm683, %v1049, 0
  %v1095 = vsel %vm683, %v1050, 0
  %v1098 = vsel %vm683, %v1051, 0
  %1100 = vmatpush.bf16.msra.mxu0 0
  %1101 = vmatpush.bf16.msra.mxu0 0
  %1102 = vmatpush.bf16.msra.mxu0 0
  %1103 = vmatpush.bf16.msra.mxu0 0
  %1104 = vmatpush.bf16.msra.mxu0 %v284
  %1105 = vmatpush.bf16.msra.mxu0 %v283
  %1106 = vmatpush.bf16.msra.mxu0 %v282
  %1107 = vmatpush.bf16.msra.mxu0 %v281
  %1108 = vmatmul.bf16.gmra.mxu0 %v1053
  %v1109 = vpop.f32.mrf.mxu0
  %v1110 = vadd.f32 0.0, %v1109
  %v1111 = vpop.f32.mrf.mxu0
  %v1112 = vadd.f32 0.0, %v1111
  %1113 = vmatmul.bf16.gmra.mxu0 %v1056
  %v1114 = vpop.f32.mrf.mxu0
  %v1115 = vadd.f32 0.0, %v1114
  %v1116 = vpop.f32.mrf.mxu0
  %v1117 = vadd.f32 0.0, %v1116
  %1118 = vmatmul.bf16.gmra.mxu0 %v1059
  %v1119 = vpop.f32.mrf.mxu0
  %v1120 = vadd.f32 0.0, %v1119
  %v1121 = vpop.f32.mrf.mxu0
  %v1122 = vadd.f32 0.0, %v1121
  %1123 = vmatmul.bf16.gmra.mxu0 %v1062
  %v1124 = vpop.f32.mrf.mxu0
  %v1125 = vadd.f32 0.0, %v1124
  %v1126 = vpop.f32.mrf.mxu0
  %v1127 = vadd.f32 0.0, %v1126
  %1128 = vmatmul.bf16.gmra.mxu0 %v1065
  %v1129 = vpop.f32.mrf.mxu0
  %v1130 = vadd.f32 0.0, %v1129
  %v1131 = vpop.f32.mrf.mxu0
  %v1132 = vadd.f32 0.0, %v1131
  %1133 = vmatmul.bf16.gmra.mxu0 %v1068
  %v1134 = vpop.f32.mrf.mxu0
  %v1135 = vadd.f32 0.0, %v1134
  %v1136 = vpop.f32.mrf.mxu0
  %v1137 = vadd.f32 0.0, %v1136
  %1138 = vmatmul.bf16.gmra.mxu0 %v1071
  %v1139 = vpop.f32.mrf.mxu0
  %v1140 = vadd.f32 0.0, %v1139
  %v1141 = vpop.f32.mrf.mxu0
  %v1142 = vadd.f32 0.0, %v1141
  %1143 = vmatmul.bf16.gmra.mxu0 %v1074
  %v1144 = vpop.f32.mrf.mxu0
  %v1145 = vadd.f32 0.0, %v1144
  %v1146 = vpop.f32.mrf.mxu0
  %v1147 = vadd.f32 0.0, %v1146
  %1148 = vmatmul.bf16.gmra.mxu0 %v1077
  %v1149 = vpop.f32.mrf.mxu0
  %v1150 = vadd.f32 0.0, %v1149
  %v1151 = vpop.f32.mrf.mxu0
  %v1152 = vadd.f32 0.0, %v1151
  %1153 = vmatmul.bf16.gmra.mxu0 %v1080
  %v1154 = vpop.f32.mrf.mxu0
  %v1155 = vadd.f32 0.0, %v1154
  %v1156 = vpop.f32.mrf.mxu0
  %v1157 = vadd.f32 0.0, %v1156
  %1158 = vmatmul.bf16.gmra.mxu0 %v1083
  %v1159 = vpop.f32.mrf.mxu0
  %v1160 = vadd.f32 0.0, %v1159
  %v1161 = vpop.f32.mrf.mxu0
  %v1162 = vadd.f32 0.0, %v1161
  %1163 = vmatmul.bf16.gmra.mxu0 %v1086
  %v1164 = vpop.f32.mrf.mxu0
  %v1165 = vadd.f32 0.0, %v1164
  %v1166 = vpop.f32.mrf.mxu0
  %v1167 = vadd.f32 0.0, %v1166
  %1168 = vmatmul.bf16.gmra.mxu0 %v1089
  %v1169 = vpop.f32.mrf.mxu0
  %v1170 = vadd.f32 0.0, %v1169
  %v1171 = vpop.f32.mrf.mxu0
  %v1172 = vadd.f32 0.0, %v1171
  %1173 = vmatmul.bf16.gmra.mxu0 %v1092
  %v1174 = vpop.f32.mrf.mxu0
  %v1175 = vadd.f32 0.0, %v1174
  %v1176 = vpop.f32.mrf.mxu0
  %v1177 = vadd.f32 0.0, %v1176
  %1178 = vmatmul.bf16.gmra.mxu0 %v1095
  %v1179 = vpop.f32.mrf.mxu0
  %v1180 = vadd.f32 0.0, %v1179
  %v1181 = vpop.f32.mrf.mxu0
  %v1182 = vadd.f32 0.0, %v1181
  %1183 = vmatmul.bf16.gmra.mxu0 %v1098
  %v1184 = vpop.f32.mrf.mxu0
  %v1185 = vadd.f32 0.0, %v1184
  %v1186 = vpop.f32.mrf.mxu0
  %v1187 = vadd.f32 0.0, %v1186
  %1188 = vdwg.mxu0
  %1205 = vrot.lane.b32.xlu0 %v518, 96
  %v1206 = vpop.permute.xlu0 %1205
  %1207 = vrot.lane.b32.xlu0 %v519, 96
  %v1208 = vpop.permute.xlu0 %1207
  %1209 = vrot.lane.b32.xlu0 %v520, 96
  %v1210 = vpop.permute.xlu0 %1209
  %1211 = vrot.lane.b32.xlu0 %v521, 96
  %v1212 = vpop.permute.xlu0 %1211
  %1213 = vrot.lane.b32.xlu0 %v522, 96
  %v1214 = vpop.permute.xlu0 %1213
  %1215 = vrot.lane.b32.xlu0 %v523, 96
  %v1216 = vpop.permute.xlu0 %1215
  %1217 = vrot.lane.b32.xlu0 %v524, 96
  %v1218 = vpop.permute.xlu0 %1217
  %1219 = vrot.lane.b32.xlu0 %v525, 96
  %v1220 = vpop.permute.xlu0 %1219
  %1221 = vrot.lane.b32.xlu0 %v526, 96
  %v1222 = vpop.permute.xlu0 %1221
  %1223 = vrot.lane.b32.xlu0 %v527, 96
  %v1224 = vpop.permute.xlu0 %1223
  %1225 = vrot.lane.b32.xlu0 %v528, 96
  %v1226 = vpop.permute.xlu0 %1225
  %1227 = vrot.lane.b32.xlu0 %v529, 96
  %v1228 = vpop.permute.xlu0 %1227
  %1229 = vrot.lane.b32.xlu0 %v530, 96
  %v1230 = vpop.permute.xlu0 %1229
  %1231 = vrot.lane.b32.xlu0 %v531, 96
  %v1232 = vpop.permute.xlu0 %1231
  %1233 = vrot.lane.b32.xlu0 %v532, 96
  %v1234 = vpop.permute.xlu0 %1233
  %1235 = vrot.lane.b32.xlu0 %v533, 96
  %v1236 = vpop.permute.xlu0 %1235
  %v1238 = vsel %vm380, %v1206, 0
  %v1241 = vsel %vm380, %v1208, 0
  %v1244 = vsel %vm380, %v1210, 0
  %v1247 = vsel %vm380, %v1212, 0
  %v1250 = vsel %vm380, %v1214, 0
  %v1253 = vsel %vm380, %v1216, 0
  %v1256 = vsel %vm380, %v1218, 0
  %v1259 = vsel %vm380, %v1220, 0
  %v1262 = vsel %vm380, %v1222, 0
  %v1265 = vsel %vm380, %v1224, 0
  %v1268 = vsel %vm380, %v1226, 0
  %v1271 = vsel %vm380, %v1228, 0
  %v1274 = vsel %vm380, %v1230, 0
  %v1277 = vsel %vm380, %v1232, 0
  %v1280 = vsel %vm380, %v1234, 0
  %v1283 = vsel %vm380, %v1236, 0
  %1285 = vmatpush.bf16.xpose.msra.mxu0 0
  %1286 = vmatpush.bf16.xpose.msra.mxu0 0
  %1287 = vmatpush.bf16.xpose.msra.mxu0 0
  %1288 = vmatpush.bf16.xpose.msra.mxu0 0
  %1289 = vmatpush.bf16.xpose.msra.mxu0 %v592
  %1290 = vmatpush.bf16.xpose.msra.mxu0 %v589
  %1291 = vmatpush.bf16.xpose.msra.mxu0 %v586
  %1292 = vmatpush.bf16.xpose.msra.mxu0 %v583
  %1293 = vmatmul.bf16.gmra.mxu0 %v1238
  %v1294 = vpop.f32.mrf.mxu0
  %v1295 = vadd.f32 0.0, %v1294
  %v1296 = vpop.f32.mrf.mxu0
  %v1297 = vadd.f32 0.0, %v1296
  %1298 = vmatmul.bf16.gmra.mxu0 %v1241
  %v1299 = vpop.f32.mrf.mxu0
  %v1300 = vadd.f32 0.0, %v1299
  %v1301 = vpop.f32.mrf.mxu0
  %v1302 = vadd.f32 0.0, %v1301
  %1303 = vmatmul.bf16.gmra.mxu0 %v1244
  %v1304 = vpop.f32.mrf.mxu0
  %v1305 = vadd.f32 0.0, %v1304
  %v1306 = vpop.f32.mrf.mxu0
  %v1307 = vadd.f32 0.0, %v1306
  %1308 = vmatmul.bf16.gmra.mxu0 %v1247
  %v1309 = vpop.f32.mrf.mxu0
  %v1310 = vadd.f32 0.0, %v1309
  %v1311 = vpop.f32.mrf.mxu0
  %v1312 = vadd.f32 0.0, %v1311
  %1313 = vmatmul.bf16.gmra.mxu0 %v1250
  %v1314 = vpop.f32.mrf.mxu0
  %v1315 = vadd.f32 0.0, %v1314
  %v1316 = vpop.f32.mrf.mxu0
  %v1317 = vadd.f32 0.0, %v1316
  %1318 = vmatmul.bf16.gmra.mxu0 %v1253
  %v1319 = vpop.f32.mrf.mxu0
  %v1320 = vadd.f32 0.0, %v1319
  %v1321 = vpop.f32.mrf.mxu0
  %v1322 = vadd.f32 0.0, %v1321
  %1323 = vmatmul.bf16.gmra.mxu0 %v1256
  %v1324 = vpop.f32.mrf.mxu0
  %v1325 = vadd.f32 0.0, %v1324
  %v1326 = vpop.f32.mrf.mxu0
  %v1327 = vadd.f32 0.0, %v1326
  %1328 = vmatmul.bf16.gmra.mxu0 %v1259
  %v1329 = vpop.f32.mrf.mxu0
  %v1330 = vadd.f32 0.0, %v1329
  %v1331 = vpop.f32.mrf.mxu0
  %v1332 = vadd.f32 0.0, %v1331
  %1333 = vmatmul.bf16.gmra.mxu0 %v1262
  %v1334 = vpop.f32.mrf.mxu0
  %v1335 = vadd.f32 0.0, %v1334
  %v1336 = vpop.f32.mrf.mxu0
  %v1337 = vadd.f32 0.0, %v1336
  %1338 = vmatmul.bf16.gmra.mxu0 %v1265
  %v1339 = vpop.f32.mrf.mxu0
  %v1340 = vadd.f32 0.0, %v1339
  %v1341 = vpop.f32.mrf.mxu0
  %v1342 = vadd.f32 0.0, %v1341
  %1343 = vmatmul.bf16.gmra.mxu0 %v1268
  %v1344 = vpop.f32.mrf.mxu0
  %v1345 = vadd.f32 0.0, %v1344
  %v1346 = vpop.f32.mrf.mxu0
  %v1347 = vadd.f32 0.0, %v1346
  %1348 = vmatmul.bf16.gmra.mxu0 %v1271
  %v1349 = vpop.f32.mrf.mxu0
  %v1350 = vadd.f32 0.0, %v1349
  %v1351 = vpop.f32.mrf.mxu0
  %v1352 = vadd.f32 0.0, %v1351
  %1353 = vmatmul.bf16.gmra.mxu0 %v1274
  %v1354 = vpop.f32.mrf.mxu0
  %v1355 = vadd.f32 0.0, %v1354
  %v1356 = vpop.f32.mrf.mxu0
  %v1357 = vadd.f32 0.0, %v1356
  %1358 = vmatmul.bf16.gmra.mxu0 %v1277
  %v1359 = vpop.f32.mrf.mxu0
  %v1360 = vadd.f32 0.0, %v1359
  %v1361 = vpop.f32.mrf.mxu0
  %v1362 = vadd.f32 0.0, %v1361
  %1363 = vmatmul.bf16.gmra.mxu0 %v1280
  %v1364 = vpop.f32.mrf.mxu0
  %v1365 = vadd.f32 0.0, %v1364
  %v1366 = vpop.f32.mrf.mxu0
  %v1367 = vadd.f32 0.0, %v1366
  %1368 = vmatmul.bf16.gmra.mxu0 %v1283
  %v1369 = vpop.f32.mrf.mxu0
  %v1370 = vadd.f32 0.0, %v1369
  %v1371 = vpop.f32.mrf.mxu0
  %v1372 = vadd.f32 0.0, %v1371
  %1373 = vdwg.mxu0
  %v1374 = vsel %vm683, %v1295, -inf
  %1375 = vmax.xlane.f32.xlu0 %v1374
  %v1376 = vpop.xlane.xlu0 %1375
  %v1377 = vsel %vm683, %v1297, -inf
  %1378 = vmax.xlane.f32.xlu0 %v1377
  %v1379 = vpop.xlane.xlu0 %1378
  %v1380 = vsel %vm683, %v1300, -inf
  %1381 = vmax.xlane.f32.xlu0 %v1380
  %v1382 = vpop.xlane.xlu0 %1381
  %v1383 = vsel %vm683, %v1302, -inf
  %1384 = vmax.xlane.f32.xlu0 %v1383
  %v1385 = vpop.xlane.xlu0 %1384
  %v1386 = vsel %vm683, %v1305, -inf
  %1387 = vmax.xlane.f32.xlu0 %v1386
  %v1388 = vpop.xlane.xlu0 %1387
  %v1389 = vsel %vm683, %v1307, -inf
  %1390 = vmax.xlane.f32.xlu0 %v1389
  %v1391 = vpop.xlane.xlu0 %1390
  %v1392 = vsel %vm683, %v1310, -inf
  %1393 = vmax.xlane.f32.xlu0 %v1392
  %v1394 = vpop.xlane.xlu0 %1393
  %v1395 = vsel %vm683, %v1312, -inf
  %1396 = vmax.xlane.f32.xlu0 %v1395
  %v1397 = vpop.xlane.xlu0 %1396
  %v1398 = vsel %vm683, %v1315, -inf
  %1399 = vmax.xlane.f32.xlu0 %v1398
  %v1400 = vpop.xlane.xlu0 %1399
  %v1401 = vsel %vm683, %v1317, -inf
  %1402 = vmax.xlane.f32.xlu0 %v1401
  %v1403 = vpop.xlane.xlu0 %1402
  %v1404 = vsel %vm683, %v1320, -inf
  %1405 = vmax.xlane.f32.xlu0 %v1404
  %v1406 = vpop.xlane.xlu0 %1405
  %v1407 = vsel %vm683, %v1322, -inf
  %1408 = vmax.xlane.f32.xlu0 %v1407
  %v1409 = vpop.xlane.xlu0 %1408
  %v1410 = vsel %vm683, %v1325, -inf
  %1411 = vmax.xlane.f32.xlu0 %v1410
  %v1412 = vpop.xlane.xlu0 %1411
  %v1413 = vsel %vm683, %v1327, -inf
  %1414 = vmax.xlane.f32.xlu0 %v1413
  %v1415 = vpop.xlane.xlu0 %1414
  %v1416 = vsel %vm683, %v1330, -inf
  %1417 = vmax.xlane.f32.xlu0 %v1416
  %v1418 = vpop.xlane.xlu0 %1417
  %v1419 = vsel %vm683, %v1332, -inf
  %1420 = vmax.xlane.f32.xlu0 %v1419
  %v1421 = vpop.xlane.xlu0 %1420
  %v1422 = vsel %vm683, %v1335, -inf
  %1423 = vmax.xlane.f32.xlu0 %v1422
  %v1424 = vpop.xlane.xlu0 %1423
  %v1425 = vsel %vm683, %v1337, -inf
  %1426 = vmax.xlane.f32.xlu0 %v1425
  %v1427 = vpop.xlane.xlu0 %1426
  %v1428 = vsel %vm683, %v1340, -inf
  %1429 = vmax.xlane.f32.xlu0 %v1428
  %v1430 = vpop.xlane.xlu0 %1429
  %v1431 = vsel %vm683, %v1342, -inf
  %1432 = vmax.xlane.f32.xlu0 %v1431
  %v1433 = vpop.xlane.xlu0 %1432
  %v1434 = vsel %vm683, %v1345, -inf
  %1435 = vmax.xlane.f32.xlu0 %v1434
  %v1436 = vpop.xlane.xlu0 %1435
  %v1437 = vsel %vm683, %v1347, -inf
  %1438 = vmax.xlane.f32.xlu0 %v1437
  %v1439 = vpop.xlane.xlu0 %1438
  %v1440 = vsel %vm683, %v1350, -inf
  %1441 = vmax.xlane.f32.xlu0 %v1440
  %v1442 = vpop.xlane.xlu0 %1441
  %v1443 = vsel %vm683, %v1352, -inf
  %1444 = vmax.xlane.f32.xlu0 %v1443
  %v1445 = vpop.xlane.xlu0 %1444
  %v1446 = vsel %vm683, %v1355, -inf
  %1447 = vmax.xlane.f32.xlu0 %v1446
  %v1448 = vpop.xlane.xlu0 %1447
  %v1449 = vsel %vm683, %v1357, -inf
  %1450 = vmax.xlane.f32.xlu0 %v1449
  %v1451 = vpop.xlane.xlu0 %1450
  %v1452 = vsel %vm683, %v1360, -inf
  %1453 = vmax.xlane.f32.xlu0 %v1452
  %v1454 = vpop.xlane.xlu0 %1453
  %v1455 = vsel %vm683, %v1362, -inf
  %1456 = vmax.xlane.f32.xlu0 %v1455
  %v1457 = vpop.xlane.xlu0 %1456
  %v1458 = vsel %vm683, %v1365, -inf
  %1459 = vmax.xlane.f32.xlu0 %v1458
  %v1460 = vpop.xlane.xlu0 %1459
  %v1461 = vsel %vm683, %v1367, -inf
  %1462 = vmax.xlane.f32.xlu0 %v1461
  %v1463 = vpop.xlane.xlu0 %1462
  %v1464 = vsel %vm683, %v1370, -inf
  %1465 = vmax.xlane.f32.xlu0 %v1464
  %v1466 = vpop.xlane.xlu0 %1465
  %v1467 = vsel %vm683, %v1372, -inf
  %1468 = vmax.xlane.f32.xlu0 %v1467
  %v1469 = vpop.xlane.xlu0 %1468
  %v1470 = vsub.f32 %v1295, %v1376
  %v1471 = vsub.f32 %v1297, %v1379
  %v1472 = vsub.f32 %v1300, %v1382
  %v1473 = vsub.f32 %v1302, %v1385
  %v1474 = vsub.f32 %v1305, %v1388
  %v1475 = vsub.f32 %v1307, %v1391
  %v1476 = vsub.f32 %v1310, %v1394
  %v1477 = vsub.f32 %v1312, %v1397
  %v1478 = vsub.f32 %v1315, %v1400
  %v1479 = vsub.f32 %v1317, %v1403
  %v1480 = vsub.f32 %v1320, %v1406
  %v1481 = vsub.f32 %v1322, %v1409
  %v1482 = vsub.f32 %v1325, %v1412
  %v1483 = vsub.f32 %v1327, %v1415
  %v1484 = vsub.f32 %v1330, %v1418
  %v1485 = vsub.f32 %v1332, %v1421
  %v1486 = vsub.f32 %v1335, %v1424
  %v1487 = vsub.f32 %v1337, %v1427
  %v1488 = vsub.f32 %v1340, %v1430
  %v1489 = vsub.f32 %v1342, %v1433
  %v1490 = vsub.f32 %v1345, %v1436
  %v1491 = vsub.f32 %v1347, %v1439
  %v1492 = vsub.f32 %v1350, %v1442
  %v1493 = vsub.f32 %v1352, %v1445
  %v1494 = vsub.f32 %v1355, %v1448
  %v1495 = vsub.f32 %v1357, %v1451
  %v1496 = vsub.f32 %v1360, %v1454
  %v1497 = vsub.f32 %v1362, %v1457
  %v1498 = vsub.f32 %v1365, %v1460
  %v1499 = vsub.f32 %v1367, %v1463
  %v1500 = vsub.f32 %v1370, %v1466
  %v1501 = vsub.f32 %v1372, %v1469
  %v1502 = vmul.f32 %v1470, 1.442695
  %v1503 = vpow.pop %v1502
  %v1504 = vmul.f32 %v1471, 1.442695
  %v1505 = vpow.pop %v1504
  %v1506 = vmul.f32 %v1472, 1.442695
  %v1507 = vpow.pop %v1506
  %v1508 = vmul.f32 %v1473, 1.442695
  %v1509 = vpow.pop %v1508
  %v1510 = vmul.f32 %v1474, 1.442695
  %v1511 = vpow.pop %v1510
  %v1512 = vmul.f32 %v1475, 1.442695
  %v1513 = vpow.pop %v1512
  %v1514 = vmul.f32 %v1476, 1.442695
  %v1515 = vpow.pop %v1514
  %v1516 = vmul.f32 %v1477, 1.442695
  %v1517 = vpow.pop %v1516
  %v1518 = vmul.f32 %v1478, 1.442695
  %v1519 = vpow.pop %v1518
  %v1520 = vmul.f32 %v1479, 1.442695
  %v1521 = vpow.pop %v1520
  %v1522 = vmul.f32 %v1480, 1.442695
  %v1523 = vpow.pop %v1522
  %v1524 = vmul.f32 %v1481, 1.442695
  %v1525 = vpow.pop %v1524
  %v1526 = vmul.f32 %v1482, 1.442695
  %v1527 = vpow.pop %v1526
  %v1528 = vmul.f32 %v1483, 1.442695
  %v1529 = vpow.pop %v1528
  %v1530 = vmul.f32 %v1484, 1.442695
  %v1531 = vpow.pop %v1530
  %v1532 = vmul.f32 %v1485, 1.442695
  %v1533 = vpow.pop %v1532
  %v1534 = vmul.f32 %v1486, 1.442695
  %v1535 = vpow.pop %v1534
  %v1536 = vmul.f32 %v1487, 1.442695
  %v1537 = vpow.pop %v1536
  %v1538 = vmul.f32 %v1488, 1.442695
  %v1539 = vpow.pop %v1538
  %v1540 = vmul.f32 %v1489, 1.442695
  %v1541 = vpow.pop %v1540
  %v1542 = vmul.f32 %v1490, 1.442695
  %v1543 = vpow.pop %v1542
  %v1544 = vmul.f32 %v1491, 1.442695
  %v1545 = vpow.pop %v1544
  %v1546 = vmul.f32 %v1492, 1.442695
  %v1547 = vpow.pop %v1546
  %v1548 = vmul.f32 %v1493, 1.442695
  %v1549 = vpow.pop %v1548
  %v1550 = vmul.f32 %v1494, 1.442695
  %v1551 = vpow.pop %v1550
  %v1552 = vmul.f32 %v1495, 1.442695
  %v1553 = vpow.pop %v1552
  %v1554 = vmul.f32 %v1496, 1.442695
  %v1555 = vpow.pop %v1554
  %v1556 = vmul.f32 %v1497, 1.442695
  %v1557 = vpow.pop %v1556
  %v1558 = vmul.f32 %v1498, 1.442695
  %v1559 = vpow.pop %v1558
  %v1560 = vmul.f32 %v1499, 1.442695
  %v1561 = vpow.pop %v1560
  %v1562 = vmul.f32 %v1500, 1.442695
  %v1563 = vpow.pop %v1562
  %v1564 = vmul.f32 %v1501, 1.442695
  %v1565 = vpow.pop %v1564
  %v1566 = vsel %vm683, %v1503, 0.0
  %1567 = vadd.xlane.f32.xlu0 %v1566
  %v1568 = vpop.xlane.xlu0 %1567
  %v1569 = vsel %vm683, %v1505, 0.0
  %1570 = vadd.xlane.f32.xlu0 %v1569
  %v1571 = vpop.xlane.xlu0 %1570
  %v1572 = vsel %vm683, %v1507, 0.0
  %1573 = vadd.xlane.f32.xlu0 %v1572
  %v1574 = vpop.xlane.xlu0 %1573
  %v1575 = vsel %vm683, %v1509, 0.0
  %1576 = vadd.xlane.f32.xlu0 %v1575
  %v1577 = vpop.xlane.xlu0 %1576
  %v1578 = vsel %vm683, %v1511, 0.0
  %1579 = vadd.xlane.f32.xlu0 %v1578
  %v1580 = vpop.xlane.xlu0 %1579
  %v1581 = vsel %vm683, %v1513, 0.0
  %1582 = vadd.xlane.f32.xlu0 %v1581
  %v1583 = vpop.xlane.xlu0 %1582
  %v1584 = vsel %vm683, %v1515, 0.0
  %1585 = vadd.xlane.f32.xlu0 %v1584
  %v1586 = vpop.xlane.xlu0 %1585
  %v1587 = vsel %vm683, %v1517, 0.0
  %1588 = vadd.xlane.f32.xlu0 %v1587
  %v1589 = vpop.xlane.xlu0 %1588
  %v1590 = vsel %vm683, %v1519, 0.0
  %1591 = vadd.xlane.f32.xlu0 %v1590
  %v1592 = vpop.xlane.xlu0 %1591
  %v1593 = vsel %vm683, %v1521, 0.0
  %1594 = vadd.xlane.f32.xlu0 %v1593
  %v1595 = vpop.xlane.xlu0 %1594
  %v1596 = vsel %vm683, %v1523, 0.0
  %1597 = vadd.xlane.f32.xlu0 %v1596
  %v1598 = vpop.xlane.xlu0 %1597
  %v1599 = vsel %vm683, %v1525, 0.0
  %1600 = vadd.xlane.f32.xlu0 %v1599
  %v1601 = vpop.xlane.xlu0 %1600
  %v1602 = vsel %vm683, %v1527, 0.0
  %1603 = vadd.xlane.f32.xlu0 %v1602
  %v1604 = vpop.xlane.xlu0 %1603
  %v1605 = vsel %vm683, %v1529, 0.0
  %1606 = vadd.xlane.f32.xlu0 %v1605
  %v1607 = vpop.xlane.xlu0 %1606
  %v1608 = vsel %vm683, %v1531, 0.0
  %1609 = vadd.xlane.f32.xlu0 %v1608
  %v1610 = vpop.xlane.xlu0 %1609
  %v1611 = vsel %vm683, %v1533, 0.0
  %1612 = vadd.xlane.f32.xlu0 %v1611
  %v1613 = vpop.xlane.xlu0 %1612
  %v1614 = vsel %vm683, %v1535, 0.0
  %1615 = vadd.xlane.f32.xlu0 %v1614
  %v1616 = vpop.xlane.xlu0 %1615
  %v1617 = vsel %vm683, %v1537, 0.0
  %1618 = vadd.xlane.f32.xlu0 %v1617
  %v1619 = vpop.xlane.xlu0 %1618
  %v1620 = vsel %vm683, %v1539, 0.0
  %1621 = vadd.xlane.f32.xlu0 %v1620
  %v1622 = vpop.xlane.xlu0 %1621
  %v1623 = vsel %vm683, %v1541, 0.0
  %1624 = vadd.xlane.f32.xlu0 %v1623
  %v1625 = vpop.xlane.xlu0 %1624
  %v1626 = vsel %vm683, %v1543, 0.0
  %1627 = vadd.xlane.f32.xlu0 %v1626
  %v1628 = vpop.xlane.xlu0 %1627
  %v1629 = vsel %vm683, %v1545, 0.0
  %1630 = vadd.xlane.f32.xlu0 %v1629
  %v1631 = vpop.xlane.xlu0 %1630
  %v1632 = vsel %vm683, %v1547, 0.0
  %1633 = vadd.xlane.f32.xlu0 %v1632
  %v1634 = vpop.xlane.xlu0 %1633
  %v1635 = vsel %vm683, %v1549, 0.0
  %1636 = vadd.xlane.f32.xlu0 %v1635
  %v1637 = vpop.xlane.xlu0 %1636
  %v1638 = vsel %vm683, %v1551, 0.0
  %1639 = vadd.xlane.f32.xlu0 %v1638
  %v1640 = vpop.xlane.xlu0 %1639
  %v1641 = vsel %vm683, %v1553, 0.0
  %1642 = vadd.xlane.f32.xlu0 %v1641
  %v1643 = vpop.xlane.xlu0 %1642
  %v1644 = vsel %vm683, %v1555, 0.0
  %1645 = vadd.xlane.f32.xlu0 %v1644
  %v1646 = vpop.xlane.xlu0 %1645
  %v1647 = vsel %vm683, %v1557, 0.0
  %1648 = vadd.xlane.f32.xlu0 %v1647
  %v1649 = vpop.xlane.xlu0 %1648
  %v1650 = vsel %vm683, %v1559, 0.0
  %1651 = vadd.xlane.f32.xlu0 %v1650
  %v1652 = vpop.xlane.xlu0 %1651
  %v1653 = vsel %vm683, %v1561, 0.0
  %1654 = vadd.xlane.f32.xlu0 %v1653
  %v1655 = vpop.xlane.xlu0 %1654
  %v1656 = vsel %vm683, %v1563, 0.0
  %1657 = vadd.xlane.f32.xlu0 %v1656
  %v1658 = vpop.xlane.xlu0 %1657
  %v1659 = vsel %vm683, %v1565, 0.0
  %1660 = vadd.xlane.f32.xlu0 %v1659
  %v1661 = vpop.xlane.xlu0 %1660
  %v1662 = vrcp.pop %v1568
  %v1663 = vrcp.pop %v1571
  %v1664 = vrcp.pop %v1574
  %v1665 = vrcp.pop %v1577
  %v1666 = vrcp.pop %v1580
  %v1667 = vrcp.pop %v1583
  %v1668 = vrcp.pop %v1586
  %v1669 = vrcp.pop %v1589
  %v1670 = vrcp.pop %v1592
  %v1671 = vrcp.pop %v1595
  %v1672 = vrcp.pop %v1598
  %v1673 = vrcp.pop %v1601
  %v1674 = vrcp.pop %v1604
  %v1675 = vrcp.pop %v1607
  %v1676 = vrcp.pop %v1610
  %v1677 = vrcp.pop %v1613
  %v1678 = vrcp.pop %v1616
  %v1679 = vrcp.pop %v1619
  %v1680 = vrcp.pop %v1622
  %v1681 = vrcp.pop %v1625
  %v1682 = vrcp.pop %v1628
  %v1683 = vrcp.pop %v1631
  %v1684 = vrcp.pop %v1634
  %v1685 = vrcp.pop %v1637
  %v1686 = vrcp.pop %v1640
  %v1687 = vrcp.pop %v1643
  %v1688 = vrcp.pop %v1646
  %v1689 = vrcp.pop %v1649
  %v1690 = vrcp.pop %v1652
  %v1691 = vrcp.pop %v1655
  %v1692 = vrcp.pop %v1658
  %v1693 = vrcp.pop %v1661
  %v1694 = vmul.f32 %v1503, %v1662
  %v1695 = vmul.f32 %v1505, %v1663
  %v1696 = vmul.f32 %v1507, %v1664
  %v1697 = vmul.f32 %v1509, %v1665
  %v1698 = vmul.f32 %v1511, %v1666
  %v1699 = vmul.f32 %v1513, %v1667
  %v1700 = vmul.f32 %v1515, %v1668
  %v1701 = vmul.f32 %v1517, %v1669
  %v1702 = vmul.f32 %v1519, %v1670
  %v1703 = vmul.f32 %v1521, %v1671
  %v1704 = vmul.f32 %v1523, %v1672
  %v1705 = vmul.f32 %v1525, %v1673
  %v1706 = vmul.f32 %v1527, %v1674
  %v1707 = vmul.f32 %v1529, %v1675
  %v1708 = vmul.f32 %v1531, %v1676
  %v1709 = vmul.f32 %v1533, %v1677
  %v1710 = vmul.f32 %v1535, %v1678
  %v1711 = vmul.f32 %v1537, %v1679
  %v1712 = vmul.f32 %v1539, %v1680
  %v1713 = vmul.f32 %v1541, %v1681
  %v1714 = vmul.f32 %v1543, %v1682
  %v1715 = vmul.f32 %v1545, %v1683
  %v1716 = vmul.f32 %v1547, %v1684
  %v1717 = vmul.f32 %v1549, %v1685
  %v1718 = vmul.f32 %v1551, %v1686
  %v1719 = vmul.f32 %v1553, %v1687
  %v1720 = vmul.f32 %v1555, %v1688
  %v1721 = vmul.f32 %v1557, %v1689
  %v1722 = vmul.f32 %v1559, %v1690
  %v1723 = vmul.f32 %v1561, %v1691
  %v1724 = vmul.f32 %v1563, %v1692
  %v1725 = vmul.f32 %v1565, %v1693
  %v1726 = vpack.c.bf16 %v1695, %v1694
  %v1727 = vpack.c.bf16 %v1697, %v1696
  %v1728 = vpack.c.bf16 %v1699, %v1698
  %v1729 = vpack.c.bf16 %v1701, %v1700
  %v1730 = vpack.c.bf16 %v1703, %v1702
  %v1731 = vpack.c.bf16 %v1705, %v1704
  %v1732 = vpack.c.bf16 %v1707, %v1706
  %v1733 = vpack.c.bf16 %v1709, %v1708
  %v1734 = vpack.c.bf16 %v1711, %v1710
  %v1735 = vpack.c.bf16 %v1713, %v1712
  %v1736 = vpack.c.bf16 %v1715, %v1714
  %v1737 = vpack.c.bf16 %v1717, %v1716
  %v1738 = vpack.c.bf16 %v1719, %v1718
  %v1739 = vpack.c.bf16 %v1721, %v1720
  %v1740 = vpack.c.bf16 %v1723, %v1722
  %v1741 = vpack.c.bf16 %v1725, %v1724
  %v1743 = vsel %vm683, %v1726, 0
  %v1746 = vsel %vm683, %v1727, 0
  %v1749 = vsel %vm683, %v1728, 0
  %v1752 = vsel %vm683, %v1729, 0
  %v1755 = vsel %vm683, %v1730, 0
  %v1758 = vsel %vm683, %v1731, 0
  %v1761 = vsel %vm683, %v1732, 0
  %v1764 = vsel %vm683, %v1733, 0
  %v1767 = vsel %vm683, %v1734, 0
  %v1770 = vsel %vm683, %v1735, 0
  %v1773 = vsel %vm683, %v1736, 0
  %v1776 = vsel %vm683, %v1737, 0
  %v1779 = vsel %vm683, %v1738, 0
  %v1782 = vsel %vm683, %v1739, 0
  %v1785 = vsel %vm683, %v1740, 0
  %v1788 = vsel %vm683, %v1741, 0
  %1790 = vmatpush.bf16.msra.mxu0 0
  %1791 = vmatpush.bf16.msra.mxu0 0
  %1792 = vmatpush.bf16.msra.mxu0 0
  %1793 = vmatpush.bf16.msra.mxu0 0
  %1794 = vmatpush.bf16.msra.mxu0 %v284
  %1795 = vmatpush.bf16.msra.mxu0 %v283
  %1796 = vmatpush.bf16.msra.mxu0 %v282
  %1797 = vmatpush.bf16.msra.mxu0 %v281
  %1798 = vmatmul.bf16.gmra.mxu0 %v1743
  %v1799 = vpop.f32.mrf.mxu0
  %v1800 = vadd.f32 0.0, %v1799
  %v1801 = vpop.f32.mrf.mxu0
  %v1802 = vadd.f32 0.0, %v1801
  %1803 = vmatmul.bf16.gmra.mxu0 %v1746
  %v1804 = vpop.f32.mrf.mxu0
  %v1805 = vadd.f32 0.0, %v1804
  %v1806 = vpop.f32.mrf.mxu0
  %v1807 = vadd.f32 0.0, %v1806
  %1808 = vmatmul.bf16.gmra.mxu0 %v1749
  %v1809 = vpop.f32.mrf.mxu0
  %v1810 = vadd.f32 0.0, %v1809
  %v1811 = vpop.f32.mrf.mxu0
  %v1812 = vadd.f32 0.0, %v1811
  %1813 = vmatmul.bf16.gmra.mxu0 %v1752
  %v1814 = vpop.f32.mrf.mxu0
  %v1815 = vadd.f32 0.0, %v1814
  %v1816 = vpop.f32.mrf.mxu0
  %v1817 = vadd.f32 0.0, %v1816
  %1818 = vmatmul.bf16.gmra.mxu0 %v1755
  %v1819 = vpop.f32.mrf.mxu0
  %v1820 = vadd.f32 0.0, %v1819
  %v1821 = vpop.f32.mrf.mxu0
  %v1822 = vadd.f32 0.0, %v1821
  %1823 = vmatmul.bf16.gmra.mxu0 %v1758
  %v1824 = vpop.f32.mrf.mxu0
  %v1825 = vadd.f32 0.0, %v1824
  %v1826 = vpop.f32.mrf.mxu0
  %v1827 = vadd.f32 0.0, %v1826
  %1828 = vmatmul.bf16.gmra.mxu0 %v1761
  %v1829 = vpop.f32.mrf.mxu0
  %v1830 = vadd.f32 0.0, %v1829
  %v1831 = vpop.f32.mrf.mxu0
  %v1832 = vadd.f32 0.0, %v1831
  %1833 = vmatmul.bf16.gmra.mxu0 %v1764
  %v1834 = vpop.f32.mrf.mxu0
  %v1835 = vadd.f32 0.0, %v1834
  %v1836 = vpop.f32.mrf.mxu0
  %v1837 = vadd.f32 0.0, %v1836
  %1838 = vmatmul.bf16.gmra.mxu0 %v1767
  %v1839 = vpop.f32.mrf.mxu0
  %v1840 = vadd.f32 0.0, %v1839
  %v1841 = vpop.f32.mrf.mxu0
  %v1842 = vadd.f32 0.0, %v1841
  %1843 = vmatmul.bf16.gmra.mxu0 %v1770
  %v1844 = vpop.f32.mrf.mxu0
  %v1845 = vadd.f32 0.0, %v1844
  %v1846 = vpop.f32.mrf.mxu0
  %v1847 = vadd.f32 0.0, %v1846
  %1848 = vmatmul.bf16.gmra.mxu0 %v1773
  %v1849 = vpop.f32.mrf.mxu0
  %v1850 = vadd.f32 0.0, %v1849
  %v1851 = vpop.f32.mrf.mxu0
  %v1852 = vadd.f32 0.0, %v1851
  %1853 = vmatmul.bf16.gmra.mxu0 %v1776
  %v1854 = vpop.f32.mrf.mxu0
  %v1855 = vadd.f32 0.0, %v1854
  %v1856 = vpop.f32.mrf.mxu0
  %v1857 = vadd.f32 0.0, %v1856
  %1858 = vmatmul.bf16.gmra.mxu0 %v1779
  %v1859 = vpop.f32.mrf.mxu0
  %v1860 = vadd.f32 0.0, %v1859
  %v1861 = vpop.f32.mrf.mxu0
  %v1862 = vadd.f32 0.0, %v1861
  %1863 = vmatmul.bf16.gmra.mxu0 %v1782
  %v1864 = vpop.f32.mrf.mxu0
  %v1865 = vadd.f32 0.0, %v1864
  %v1866 = vpop.f32.mrf.mxu0
  %v1867 = vadd.f32 0.0, %v1866
  %1868 = vmatmul.bf16.gmra.mxu0 %v1785
  %v1869 = vpop.f32.mrf.mxu0
  %v1870 = vadd.f32 0.0, %v1869
  %v1871 = vpop.f32.mrf.mxu0
  %v1872 = vadd.f32 0.0, %v1871
  %1873 = vmatmul.bf16.gmra.mxu0 %v1788
  %v1874 = vpop.f32.mrf.mxu0
  %v1875 = vadd.f32 0.0, %v1874
  %v1876 = vpop.f32.mrf.mxu0
  %v1877 = vadd.f32 0.0, %v1876
  %1878 = vdwg.mxu0
  %1879 = vrot.lane.b32.xlu0 %v518, 64
  %v1880 = vpop.permute.xlu0 %1879
  %1881 = vrot.lane.b32.xlu0 %v519, 64
  %v1882 = vpop.permute.xlu0 %1881
  %1883 = vrot.lane.b32.xlu0 %v520, 64
  %v1884 = vpop.permute.xlu0 %1883
  %1885 = vrot.lane.b32.xlu0 %v521, 64
  %v1886 = vpop.permute.xlu0 %1885
  %1887 = vrot.lane.b32.xlu0 %v522, 64
  %v1888 = vpop.permute.xlu0 %1887
  %1889 = vrot.lane.b32.xlu0 %v523, 64
  %v1890 = vpop.permute.xlu0 %1889
  %1891 = vrot.lane.b32.xlu0 %v524, 64
  %v1892 = vpop.permute.xlu0 %1891
  %1893 = vrot.lane.b32.xlu0 %v525, 64
  %v1894 = vpop.permute.xlu0 %1893
  %1895 = vrot.lane.b32.xlu0 %v526, 64
  %v1896 = vpop.permute.xlu0 %1895
  %1897 = vrot.lane.b32.xlu0 %v527, 64
  %v1898 = vpop.permute.xlu0 %1897
  %1899 = vrot.lane.b32.xlu0 %v528, 64
  %v1900 = vpop.permute.xlu0 %1899
  %1901 = vrot.lane.b32.xlu0 %v529, 64
  %v1902 = vpop.permute.xlu0 %1901
  %1903 = vrot.lane.b32.xlu0 %v530, 64
  %v1904 = vpop.permute.xlu0 %1903
  %1905 = vrot.lane.b32.xlu0 %v531, 64
  %v1906 = vpop.permute.xlu0 %1905
  %1907 = vrot.lane.b32.xlu0 %v532, 64
  %v1908 = vpop.permute.xlu0 %1907
  %1909 = vrot.lane.b32.xlu0 %v533, 64
  %v1910 = vpop.permute.xlu0 %1909
  %v1912 = vsel %vm380, %v1880, 0
  %v1915 = vsel %vm380, %v1882, 0
  %v1918 = vsel %vm380, %v1884, 0
  %v1921 = vsel %vm380, %v1886, 0
  %v1924 = vsel %vm380, %v1888, 0
  %v1927 = vsel %vm380, %v1890, 0
  %v1930 = vsel %vm380, %v1892, 0
  %v1933 = vsel %vm380, %v1894, 0
  %v1936 = vsel %vm380, %v1896, 0
  %v1939 = vsel %vm380, %v1898, 0
  %v1942 = vsel %vm380, %v1900, 0
  %v1945 = vsel %vm380, %v1902, 0
  %v1948 = vsel %vm380, %v1904, 0
  %v1951 = vsel %vm380, %v1906, 0
  %v1954 = vsel %vm380, %v1908, 0
  %v1957 = vsel %vm380, %v1910, 0
  %1959 = vmatpush.bf16.xpose.msra.mxu0 0
  %1960 = vmatpush.bf16.xpose.msra.mxu0 0
  %1961 = vmatpush.bf16.xpose.msra.mxu0 0
  %1962 = vmatpush.bf16.xpose.msra.mxu0 0
  %1963 = vmatpush.bf16.xpose.msra.mxu0 %v592
  %1964 = vmatpush.bf16.xpose.msra.mxu0 %v589
  %1965 = vmatpush.bf16.xpose.msra.mxu0 %v586
  %1966 = vmatpush.bf16.xpose.msra.mxu0 %v583
  %1967 = vmatmul.bf16.gmra.mxu0 %v1912
  %v1968 = vpop.f32.mrf.mxu0
  %v1969 = vadd.f32 0.0, %v1968
  %v1970 = vpop.f32.mrf.mxu0
  %v1971 = vadd.f32 0.0, %v1970
  %1972 = vmatmul.bf16.gmra.mxu0 %v1915
  %v1973 = vpop.f32.mrf.mxu0
  %v1974 = vadd.f32 0.0, %v1973
  %v1975 = vpop.f32.mrf.mxu0
  %v1976 = vadd.f32 0.0, %v1975
  %1977 = vmatmul.bf16.gmra.mxu0 %v1918
  %v1978 = vpop.f32.mrf.mxu0
  %v1979 = vadd.f32 0.0, %v1978
  %v1980 = vpop.f32.mrf.mxu0
  %v1981 = vadd.f32 0.0, %v1980
  %1982 = vmatmul.bf16.gmra.mxu0 %v1921
  %v1983 = vpop.f32.mrf.mxu0
  %v1984 = vadd.f32 0.0, %v1983
  %v1985 = vpop.f32.mrf.mxu0
  %v1986 = vadd.f32 0.0, %v1985
  %1987 = vmatmul.bf16.gmra.mxu0 %v1924
  %v1988 = vpop.f32.mrf.mxu0
  %v1989 = vadd.f32 0.0, %v1988
  %v1990 = vpop.f32.mrf.mxu0
  %v1991 = vadd.f32 0.0, %v1990
  %1992 = vmatmul.bf16.gmra.mxu0 %v1927
  %v1993 = vpop.f32.mrf.mxu0
  %v1994 = vadd.f32 0.0, %v1993
  %v1995 = vpop.f32.mrf.mxu0
  %v1996 = vadd.f32 0.0, %v1995
  %1997 = vmatmul.bf16.gmra.mxu0 %v1930
  %v1998 = vpop.f32.mrf.mxu0
  %v1999 = vadd.f32 0.0, %v1998
  %v2000 = vpop.f32.mrf.mxu0
  %v2001 = vadd.f32 0.0, %v2000
  %2002 = vmatmul.bf16.gmra.mxu0 %v1933
  %v2003 = vpop.f32.mrf.mxu0
  %v2004 = vadd.f32 0.0, %v2003
  %v2005 = vpop.f32.mrf.mxu0
  %v2006 = vadd.f32 0.0, %v2005
  %2007 = vmatmul.bf16.gmra.mxu0 %v1936
  %v2008 = vpop.f32.mrf.mxu0
  %v2009 = vadd.f32 0.0, %v2008
  %v2010 = vpop.f32.mrf.mxu0
  %v2011 = vadd.f32 0.0, %v2010
  %2012 = vmatmul.bf16.gmra.mxu0 %v1939
  %v2013 = vpop.f32.mrf.mxu0
  %v2014 = vadd.f32 0.0, %v2013
  %v2015 = vpop.f32.mrf.mxu0
  %v2016 = vadd.f32 0.0, %v2015
  %2017 = vmatmul.bf16.gmra.mxu0 %v1942
  %v2018 = vpop.f32.mrf.mxu0
  %v2019 = vadd.f32 0.0, %v2018
  %v2020 = vpop.f32.mrf.mxu0
  %v2021 = vadd.f32 0.0, %v2020
  %2022 = vmatmul.bf16.gmra.mxu0 %v1945
  %v2023 = vpop.f32.mrf.mxu0
  %v2024 = vadd.f32 0.0, %v2023
  %v2025 = vpop.f32.mrf.mxu0
  %v2026 = vadd.f32 0.0, %v2025
  %2027 = vmatmul.bf16.gmra.mxu0 %v1948
  %v2028 = vpop.f32.mrf.mxu0
  %v2029 = vadd.f32 0.0, %v2028
  %v2030 = vpop.f32.mrf.mxu0
  %v2031 = vadd.f32 0.0, %v2030
  %2032 = vmatmul.bf16.gmra.mxu0 %v1951
  %v2033 = vpop.f32.mrf.mxu0
  %v2034 = vadd.f32 0.0, %v2033
  %v2035 = vpop.f32.mrf.mxu0
  %v2036 = vadd.f32 0.0, %v2035
  %2037 = vmatmul.bf16.gmra.mxu0 %v1954
  %v2038 = vpop.f32.mrf.mxu0
  %v2039 = vadd.f32 0.0, %v2038
  %v2040 = vpop.f32.mrf.mxu0
  %v2041 = vadd.f32 0.0, %v2040
  %2042 = vmatmul.bf16.gmra.mxu0 %v1957
  %v2043 = vpop.f32.mrf.mxu0
  %v2044 = vadd.f32 0.0, %v2043
  %v2045 = vpop.f32.mrf.mxu0
  %v2046 = vadd.f32 0.0, %v2045
  %2047 = vdwg.mxu0
  %v2048 = vsel %vm683, %v1969, -inf
  %2049 = vmax.xlane.f32.xlu0 %v2048
  %v2050 = vpop.xlane.xlu0 %2049
  %v2051 = vsel %vm683, %v1971, -inf
  %2052 = vmax.xlane.f32.xlu0 %v2051
  %v2053 = vpop.xlane.xlu0 %2052
  %v2054 = vsel %vm683, %v1974, -inf
  %2055 = vmax.xlane.f32.xlu0 %v2054
  %v2056 = vpop.xlane.xlu0 %2055
  %v2057 = vsel %vm683, %v1976, -inf
  %2058 = vmax.xlane.f32.xlu0 %v2057
  %v2059 = vpop.xlane.xlu0 %2058
  %v2060 = vsel %vm683, %v1979, -inf
  %2061 = vmax.xlane.f32.xlu0 %v2060
  %v2062 = vpop.xlane.xlu0 %2061
  %v2063 = vsel %vm683, %v1981, -inf
  %2064 = vmax.xlane.f32.xlu0 %v2063
  %v2065 = vpop.xlane.xlu0 %2064
  %v2066 = vsel %vm683, %v1984, -inf
  %2067 = vmax.xlane.f32.xlu0 %v2066
  %v2068 = vpop.xlane.xlu0 %2067
  %v2069 = vsel %vm683, %v1986, -inf
  %2070 = vmax.xlane.f32.xlu0 %v2069
  %v2071 = vpop.xlane.xlu0 %2070
  %v2072 = vsel %vm683, %v1989, -inf
  %2073 = vmax.xlane.f32.xlu0 %v2072
  %v2074 = vpop.xlane.xlu0 %2073
  %v2075 = vsel %vm683, %v1991, -inf
  %2076 = vmax.xlane.f32.xlu0 %v2075
  %v2077 = vpop.xlane.xlu0 %2076
  %v2078 = vsel %vm683, %v1994, -inf
  %2079 = vmax.xlane.f32.xlu0 %v2078
  %v2080 = vpop.xlane.xlu0 %2079
  %v2081 = vsel %vm683, %v1996, -inf
  %2082 = vmax.xlane.f32.xlu0 %v2081
  %v2083 = vpop.xlane.xlu0 %2082
  %v2084 = vsel %vm683, %v1999, -inf
  %2085 = vmax.xlane.f32.xlu0 %v2084
  %v2086 = vpop.xlane.xlu0 %2085
  %v2087 = vsel %vm683, %v2001, -inf
  %2088 = vmax.xlane.f32.xlu0 %v2087
  %v2089 = vpop.xlane.xlu0 %2088
  %v2090 = vsel %vm683, %v2004, -inf
  %2091 = vmax.xlane.f32.xlu0 %v2090
  %v2092 = vpop.xlane.xlu0 %2091
  %v2093 = vsel %vm683, %v2006, -inf
  %2094 = vmax.xlane.f32.xlu0 %v2093
  %v2095 = vpop.xlane.xlu0 %2094
  %v2096 = vsel %vm683, %v2009, -inf
  %2097 = vmax.xlane.f32.xlu0 %v2096
  %v2098 = vpop.xlane.xlu0 %2097
  %v2099 = vsel %vm683, %v2011, -inf
  %2100 = vmax.xlane.f32.xlu0 %v2099
  %v2101 = vpop.xlane.xlu0 %2100
  %v2102 = vsel %vm683, %v2014, -inf
  %2103 = vmax.xlane.f32.xlu0 %v2102
  %v2104 = vpop.xlane.xlu0 %2103
  %v2105 = vsel %vm683, %v2016, -inf
  %2106 = vmax.xlane.f32.xlu0 %v2105
  %v2107 = vpop.xlane.xlu0 %2106
  %v2108 = vsel %vm683, %v2019, -inf
  %2109 = vmax.xlane.f32.xlu0 %v2108
  %v2110 = vpop.xlane.xlu0 %2109
  %v2111 = vsel %vm683, %v2021, -inf
  %2112 = vmax.xlane.f32.xlu0 %v2111
  %v2113 = vpop.xlane.xlu0 %2112
  %v2114 = vsel %vm683, %v2024, -inf
  %2115 = vmax.xlane.f32.xlu0 %v2114
  %v2116 = vpop.xlane.xlu0 %2115
  %v2117 = vsel %vm683, %v2026, -inf
  %2118 = vmax.xlane.f32.xlu0 %v2117
  %v2119 = vpop.xlane.xlu0 %2118
  %v2120 = vsel %vm683, %v2029, -inf
  %2121 = vmax.xlane.f32.xlu0 %v2120
  %v2122 = vpop.xlane.xlu0 %2121
  %v2123 = vsel %vm683, %v2031, -inf
  %2124 = vmax.xlane.f32.xlu0 %v2123
  %v2125 = vpop.xlane.xlu0 %2124
  %v2126 = vsel %vm683, %v2034, -inf
  %2127 = vmax.xlane.f32.xlu0 %v2126
  %v2128 = vpop.xlane.xlu0 %2127
  %v2129 = vsel %vm683, %v2036, -inf
  %2130 = vmax.xlane.f32.xlu0 %v2129
  %v2131 = vpop.xlane.xlu0 %2130
  %v2132 = vsel %vm683, %v2039, -inf
  %2133 = vmax.xlane.f32.xlu0 %v2132
  %v2134 = vpop.xlane.xlu0 %2133
  %v2135 = vsel %vm683, %v2041, -inf
  %2136 = vmax.xlane.f32.xlu0 %v2135
  %v2137 = vpop.xlane.xlu0 %2136
  %v2138 = vsel %vm683, %v2044, -inf
  %2139 = vmax.xlane.f32.xlu0 %v2138
  %v2140 = vpop.xlane.xlu0 %2139
  %v2141 = vsel %vm683, %v2046, -inf
  %2142 = vmax.xlane.f32.xlu0 %v2141
  %v2143 = vpop.xlane.xlu0 %2142
  %v2144 = vsub.f32 %v1969, %v2050
  %v2145 = vsub.f32 %v1971, %v2053
  %v2146 = vsub.f32 %v1974, %v2056
  %v2147 = vsub.f32 %v1976, %v2059
  %v2148 = vsub.f32 %v1979, %v2062
  %v2149 = vsub.f32 %v1981, %v2065
  %v2150 = vsub.f32 %v1984, %v2068
  %v2151 = vsub.f32 %v1986, %v2071
  %v2152 = vsub.f32 %v1989, %v2074
  %v2153 = vsub.f32 %v1991, %v2077
  %v2154 = vsub.f32 %v1994, %v2080
  %v2155 = vsub.f32 %v1996, %v2083
  %v2156 = vsub.f32 %v1999, %v2086
  %v2157 = vsub.f32 %v2001, %v2089
  %v2158 = vsub.f32 %v2004, %v2092
  %v2159 = vsub.f32 %v2006, %v2095
  %v2160 = vsub.f32 %v2009, %v2098
  %v2161 = vsub.f32 %v2011, %v2101
  %v2162 = vsub.f32 %v2014, %v2104
  %v2163 = vsub.f32 %v2016, %v2107
  %v2164 = vsub.f32 %v2019, %v2110
  %v2165 = vsub.f32 %v2021, %v2113
  %v2166 = vsub.f32 %v2024, %v2116
  %v2167 = vsub.f32 %v2026, %v2119
  %v2168 = vsub.f32 %v2029, %v2122
  %v2169 = vsub.f32 %v2031, %v2125
  %v2170 = vsub.f32 %v2034, %v2128
  %v2171 = vsub.f32 %v2036, %v2131
  %v2172 = vsub.f32 %v2039, %v2134
  %v2173 = vsub.f32 %v2041, %v2137
  %v2174 = vsub.f32 %v2044, %v2140
  %v2175 = vsub.f32 %v2046, %v2143
  %v2176 = vmul.f32 %v2144, 1.442695
  %v2177 = vpow.pop %v2176
  %v2178 = vmul.f32 %v2145, 1.442695
  %v2179 = vpow.pop %v2178
  %v2180 = vmul.f32 %v2146, 1.442695
  %v2181 = vpow.pop %v2180
  %v2182 = vmul.f32 %v2147, 1.442695
  %v2183 = vpow.pop %v2182
  %v2184 = vmul.f32 %v2148, 1.442695
  %v2185 = vpow.pop %v2184
  %v2186 = vmul.f32 %v2149, 1.442695
  %v2187 = vpow.pop %v2186
  %v2188 = vmul.f32 %v2150, 1.442695
  %v2189 = vpow.pop %v2188
  %v2190 = vmul.f32 %v2151, 1.442695
  %v2191 = vpow.pop %v2190
  %v2192 = vmul.f32 %v2152, 1.442695
  %v2193 = vpow.pop %v2192
  %v2194 = vmul.f32 %v2153, 1.442695
  %v2195 = vpow.pop %v2194
  %v2196 = vmul.f32 %v2154, 1.442695
  %v2197 = vpow.pop %v2196
  %v2198 = vmul.f32 %v2155, 1.442695
  %v2199 = vpow.pop %v2198
  %v2200 = vmul.f32 %v2156, 1.442695
  %v2201 = vpow.pop %v2200
  %v2202 = vmul.f32 %v2157, 1.442695
  %v2203 = vpow.pop %v2202
  %v2204 = vmul.f32 %v2158, 1.442695
  %v2205 = vpow.pop %v2204
  %v2206 = vmul.f32 %v2159, 1.442695
  %v2207 = vpow.pop %v2206
  %v2208 = vmul.f32 %v2160, 1.442695
  %v2209 = vpow.pop %v2208
  %v2210 = vmul.f32 %v2161, 1.442695
  %v2211 = vpow.pop %v2210
  %v2212 = vmul.f32 %v2162, 1.442695
  %v2213 = vpow.pop %v2212
  %v2214 = vmul.f32 %v2163, 1.442695
  %v2215 = vpow.pop %v2214
  %v2216 = vmul.f32 %v2164, 1.442695
  %v2217 = vpow.pop %v2216
  %v2218 = vmul.f32 %v2165, 1.442695
  %v2219 = vpow.pop %v2218
  %v2220 = vmul.f32 %v2166, 1.442695
  %v2221 = vpow.pop %v2220
  %v2222 = vmul.f32 %v2167, 1.442695
  %v2223 = vpow.pop %v2222
  %v2224 = vmul.f32 %v2168, 1.442695
  %v2225 = vpow.pop %v2224
  %v2226 = vmul.f32 %v2169, 1.442695
  %v2227 = vpow.pop %v2226
  %v2228 = vmul.f32 %v2170, 1.442695
  %v2229 = vpow.pop %v2228
  %v2230 = vmul.f32 %v2171, 1.442695
  %v2231 = vpow.pop %v2230
  %v2232 = vmul.f32 %v2172, 1.442695
  %v2233 = vpow.pop %v2232
  %v2234 = vmul.f32 %v2173, 1.442695
  %v2235 = vpow.pop %v2234
  %v2236 = vmul.f32 %v2174, 1.442695
  %v2237 = vpow.pop %v2236
  %v2238 = vmul.f32 %v2175, 1.442695
  %v2239 = vpow.pop %v2238
  %v2240 = vsel %vm683, %v2177, 0.0
  %2241 = vadd.xlane.f32.xlu0 %v2240
  %v2242 = vpop.xlane.xlu0 %2241
  %v2243 = vsel %vm683, %v2179, 0.0
  %2244 = vadd.xlane.f32.xlu0 %v2243
  %v2245 = vpop.xlane.xlu0 %2244
  %v2246 = vsel %vm683, %v2181, 0.0
  %2247 = vadd.xlane.f32.xlu0 %v2246
  %v2248 = vpop.xlane.xlu0 %2247
  %v2249 = vsel %vm683, %v2183, 0.0
  %2250 = vadd.xlane.f32.xlu0 %v2249
  %v2251 = vpop.xlane.xlu0 %2250
  %v2252 = vsel %vm683, %v2185, 0.0
  %2253 = vadd.xlane.f32.xlu0 %v2252
  %v2254 = vpop.xlane.xlu0 %2253
  %v2255 = vsel %vm683, %v2187, 0.0
  %2256 = vadd.xlane.f32.xlu0 %v2255
  %v2257 = vpop.xlane.xlu0 %2256
  %v2258 = vsel %vm683, %v2189, 0.0
  %2259 = vadd.xlane.f32.xlu0 %v2258
  %v2260 = vpop.xlane.xlu0 %2259
  %v2261 = vsel %vm683, %v2191, 0.0
  %2262 = vadd.xlane.f32.xlu0 %v2261
  %v2263 = vpop.xlane.xlu0 %2262
  %v2264 = vsel %vm683, %v2193, 0.0
  %2265 = vadd.xlane.f32.xlu0 %v2264
  %v2266 = vpop.xlane.xlu0 %2265
  %v2267 = vsel %vm683, %v2195, 0.0
  %2268 = vadd.xlane.f32.xlu0 %v2267
  %v2269 = vpop.xlane.xlu0 %2268
  %v2270 = vsel %vm683, %v2197, 0.0
  %2271 = vadd.xlane.f32.xlu0 %v2270
  %v2272 = vpop.xlane.xlu0 %2271
  %v2273 = vsel %vm683, %v2199, 0.0
  %2274 = vadd.xlane.f32.xlu0 %v2273
  %v2275 = vpop.xlane.xlu0 %2274
  %v2276 = vsel %vm683, %v2201, 0.0
  %2277 = vadd.xlane.f32.xlu0 %v2276
  %v2278 = vpop.xlane.xlu0 %2277
  %v2279 = vsel %vm683, %v2203, 0.0
  %2280 = vadd.xlane.f32.xlu0 %v2279
  %v2281 = vpop.xlane.xlu0 %2280
  %v2282 = vsel %vm683, %v2205, 0.0
  %2283 = vadd.xlane.f32.xlu0 %v2282
  %v2284 = vpop.xlane.xlu0 %2283
  %v2285 = vsel %vm683, %v2207, 0.0
  %2286 = vadd.xlane.f32.xlu0 %v2285
  %v2287 = vpop.xlane.xlu0 %2286
  %v2288 = vsel %vm683, %v2209, 0.0
  %2289 = vadd.xlane.f32.xlu0 %v2288
  %v2290 = vpop.xlane.xlu0 %2289
  %v2291 = vsel %vm683, %v2211, 0.0
  %2292 = vadd.xlane.f32.xlu0 %v2291
  %v2293 = vpop.xlane.xlu0 %2292
  %v2294 = vsel %vm683, %v2213, 0.0
  %2295 = vadd.xlane.f32.xlu0 %v2294
  %v2296 = vpop.xlane.xlu0 %2295
  %v2297 = vsel %vm683, %v2215, 0.0
  %2298 = vadd.xlane.f32.xlu0 %v2297
  %v2299 = vpop.xlane.xlu0 %2298
  %v2300 = vsel %vm683, %v2217, 0.0
  %2301 = vadd.xlane.f32.xlu0 %v2300
  %v2302 = vpop.xlane.xlu0 %2301
  %v2303 = vsel %vm683, %v2219, 0.0
  %2304 = vadd.xlane.f32.xlu0 %v2303
  %v2305 = vpop.xlane.xlu0 %2304
  %v2306 = vsel %vm683, %v2221, 0.0
  %2307 = vadd.xlane.f32.xlu0 %v2306
  %v2308 = vpop.xlane.xlu0 %2307
  %v2309 = vsel %vm683, %v2223, 0.0
  %2310 = vadd.xlane.f32.xlu0 %v2309
  %v2311 = vpop.xlane.xlu0 %2310
  %v2312 = vsel %vm683, %v2225, 0.0
  %2313 = vadd.xlane.f32.xlu0 %v2312
  %v2314 = vpop.xlane.xlu0 %2313
  %v2315 = vsel %vm683, %v2227, 0.0
  %2316 = vadd.xlane.f32.xlu0 %v2315
  %v2317 = vpop.xlane.xlu0 %2316
  %v2318 = vsel %vm683, %v2229, 0.0
  %2319 = vadd.xlane.f32.xlu0 %v2318
  %v2320 = vpop.xlane.xlu0 %2319
  %v2321 = vsel %vm683, %v2231, 0.0
  %2322 = vadd.xlane.f32.xlu0 %v2321
  %v2323 = vpop.xlane.xlu0 %2322
  %v2324 = vsel %vm683, %v2233, 0.0
  %2325 = vadd.xlane.f32.xlu0 %v2324
  %v2326 = vpop.xlane.xlu0 %2325
  %v2327 = vsel %vm683, %v2235, 0.0
  %2328 = vadd.xlane.f32.xlu0 %v2327
  %v2329 = vpop.xlane.xlu0 %2328
  %v2330 = vsel %vm683, %v2237, 0.0
  %2331 = vadd.xlane.f32.xlu0 %v2330
  %v2332 = vpop.xlane.xlu0 %2331
  %v2333 = vsel %vm683, %v2239, 0.0
  %2334 = vadd.xlane.f32.xlu0 %v2333
  %v2335 = vpop.xlane.xlu0 %2334
  %v2336 = vrcp.pop %v2242
  %v2337 = vrcp.pop %v2245
  %v2338 = vrcp.pop %v2248
  %v2339 = vrcp.pop %v2251
  %v2340 = vrcp.pop %v2254
  %v2341 = vrcp.pop %v2257
  %v2342 = vrcp.pop %v2260
  %v2343 = vrcp.pop %v2263
  %v2344 = vrcp.pop %v2266
  %v2345 = vrcp.pop %v2269
  %v2346 = vrcp.pop %v2272
  %v2347 = vrcp.pop %v2275
  %v2348 = vrcp.pop %v2278
  %v2349 = vrcp.pop %v2281
  %v2350 = vrcp.pop %v2284
  %v2351 = vrcp.pop %v2287
  %v2352 = vrcp.pop %v2290
  %v2353 = vrcp.pop %v2293
  %v2354 = vrcp.pop %v2296
  %v2355 = vrcp.pop %v2299
  %v2356 = vrcp.pop %v2302
  %v2357 = vrcp.pop %v2305
  %v2358 = vrcp.pop %v2308
  %v2359 = vrcp.pop %v2311
  %v2360 = vrcp.pop %v2314
  %v2361 = vrcp.pop %v2317
  %v2362 = vrcp.pop %v2320
  %v2363 = vrcp.pop %v2323
  %v2364 = vrcp.pop %v2326
  %v2365 = vrcp.pop %v2329
  %v2366 = vrcp.pop %v2332
  %v2367 = vrcp.pop %v2335
  %v2368 = vmul.f32 %v2177, %v2336
  %v2369 = vmul.f32 %v2179, %v2337
  %v2370 = vmul.f32 %v2181, %v2338
  %v2371 = vmul.f32 %v2183, %v2339
  %v2372 = vmul.f32 %v2185, %v2340
  %v2373 = vmul.f32 %v2187, %v2341
  %v2374 = vmul.f32 %v2189, %v2342
  %v2375 = vmul.f32 %v2191, %v2343
  %v2376 = vmul.f32 %v2193, %v2344
  %v2377 = vmul.f32 %v2195, %v2345
  %v2378 = vmul.f32 %v2197, %v2346
  %v2379 = vmul.f32 %v2199, %v2347
  %v2380 = vmul.f32 %v2201, %v2348
  %v2381 = vmul.f32 %v2203, %v2349
  %v2382 = vmul.f32 %v2205, %v2350
  %v2383 = vmul.f32 %v2207, %v2351
  %v2384 = vmul.f32 %v2209, %v2352
  %v2385 = vmul.f32 %v2211, %v2353
  %v2386 = vmul.f32 %v2213, %v2354
  %v2387 = vmul.f32 %v2215, %v2355
  %v2388 = vmul.f32 %v2217, %v2356
  %v2389 = vmul.f32 %v2219, %v2357
  %v2390 = vmul.f32 %v2221, %v2358
  %v2391 = vmul.f32 %v2223, %v2359
  %v2392 = vmul.f32 %v2225, %v2360
  %v2393 = vmul.f32 %v2227, %v2361
  %v2394 = vmul.f32 %v2229, %v2362
  %v2395 = vmul.f32 %v2231, %v2363
  %v2396 = vmul.f32 %v2233, %v2364
  %v2397 = vmul.f32 %v2235, %v2365
  %v2398 = vmul.f32 %v2237, %v2366
  %v2399 = vmul.f32 %v2239, %v2367
  %v2400 = vpack.c.bf16 %v2369, %v2368
  %v2401 = vpack.c.bf16 %v2371, %v2370
  %v2402 = vpack.c.bf16 %v2373, %v2372
  %v2403 = vpack.c.bf16 %v2375, %v2374
  %v2404 = vpack.c.bf16 %v2377, %v2376
  %v2405 = vpack.c.bf16 %v2379, %v2378
  %v2406 = vpack.c.bf16 %v2381, %v2380
  %v2407 = vpack.c.bf16 %v2383, %v2382
  %v2408 = vpack.c.bf16 %v2385, %v2384
  %v2409 = vpack.c.bf16 %v2387, %v2386
  %v2410 = vpack.c.bf16 %v2389, %v2388
  %v2411 = vpack.c.bf16 %v2391, %v2390
  %v2412 = vpack.c.bf16 %v2393, %v2392
  %v2413 = vpack.c.bf16 %v2395, %v2394
  %v2414 = vpack.c.bf16 %v2397, %v2396
  %v2415 = vpack.c.bf16 %v2399, %v2398
  %v2417 = vsel %vm683, %v2400, 0
  %v2420 = vsel %vm683, %v2401, 0
  %v2423 = vsel %vm683, %v2402, 0
  %v2426 = vsel %vm683, %v2403, 0
  %v2429 = vsel %vm683, %v2404, 0
  %v2432 = vsel %vm683, %v2405, 0
  %v2435 = vsel %vm683, %v2406, 0
  %v2438 = vsel %vm683, %v2407, 0
  %v2441 = vsel %vm683, %v2408, 0
  %v2444 = vsel %vm683, %v2409, 0
  %v2447 = vsel %vm683, %v2410, 0
  %v2450 = vsel %vm683, %v2411, 0
  %v2453 = vsel %vm683, %v2412, 0
  %v2456 = vsel %vm683, %v2413, 0
  %v2459 = vsel %vm683, %v2414, 0
  %v2462 = vsel %vm683, %v2415, 0
  %2464 = vmatpush.bf16.msra.mxu0 0
  %2465 = vmatpush.bf16.msra.mxu0 0
  %2466 = vmatpush.bf16.msra.mxu0 0
  %2467 = vmatpush.bf16.msra.mxu0 0
  %2468 = vmatpush.bf16.msra.mxu0 %v284
  %2469 = vmatpush.bf16.msra.mxu0 %v283
  %2470 = vmatpush.bf16.msra.mxu0 %v282
  %2471 = vmatpush.bf16.msra.mxu0 %v281
  %2472 = vmatmul.bf16.gmra.mxu0 %v2417
  %v2473 = vpop.f32.mrf.mxu0
  %v2474 = vadd.f32 0.0, %v2473
  %v2475 = vpop.f32.mrf.mxu0
  %v2476 = vadd.f32 0.0, %v2475
  %2477 = vmatmul.bf16.gmra.mxu0 %v2420
  %v2478 = vpop.f32.mrf.mxu0
  %v2479 = vadd.f32 0.0, %v2478
  %v2480 = vpop.f32.mrf.mxu0
  %v2481 = vadd.f32 0.0, %v2480
  %2482 = vmatmul.bf16.gmra.mxu0 %v2423
  %v2483 = vpop.f32.mrf.mxu0
  %v2484 = vadd.f32 0.0, %v2483
  %v2485 = vpop.f32.mrf.mxu0
  %v2486 = vadd.f32 0.0, %v2485
  %2487 = vmatmul.bf16.gmra.mxu0 %v2426
  %v2488 = vpop.f32.mrf.mxu0
  %v2489 = vadd.f32 0.0, %v2488
  %v2490 = vpop.f32.mrf.mxu0
  %v2491 = vadd.f32 0.0, %v2490
  %2492 = vmatmul.bf16.gmra.mxu0 %v2429
  %v2493 = vpop.f32.mrf.mxu0
  %v2494 = vadd.f32 0.0, %v2493
  %v2495 = vpop.f32.mrf.mxu0
  %v2496 = vadd.f32 0.0, %v2495
  %2497 = vmatmul.bf16.gmra.mxu0 %v2432
  %v2498 = vpop.f32.mrf.mxu0
  %v2499 = vadd.f32 0.0, %v2498
  %v2500 = vpop.f32.mrf.mxu0
  %v2501 = vadd.f32 0.0, %v2500
  %2502 = vmatmul.bf16.gmra.mxu0 %v2435
  %v2503 = vpop.f32.mrf.mxu0
  %v2504 = vadd.f32 0.0, %v2503
  %v2505 = vpop.f32.mrf.mxu0
  %v2506 = vadd.f32 0.0, %v2505
  %2507 = vmatmul.bf16.gmra.mxu0 %v2438
  %v2508 = vpop.f32.mrf.mxu0
  %v2509 = vadd.f32 0.0, %v2508
  %v2510 = vpop.f32.mrf.mxu0
  %v2511 = vadd.f32 0.0, %v2510
  %2512 = vmatmul.bf16.gmra.mxu0 %v2441
  %v2513 = vpop.f32.mrf.mxu0
  %v2514 = vadd.f32 0.0, %v2513
  %v2515 = vpop.f32.mrf.mxu0
  %v2516 = vadd.f32 0.0, %v2515
  %2517 = vmatmul.bf16.gmra.mxu0 %v2444
  %v2518 = vpop.f32.mrf.mxu0
  %v2519 = vadd.f32 0.0, %v2518
  %v2520 = vpop.f32.mrf.mxu0
  %v2521 = vadd.f32 0.0, %v2520
  %2522 = vmatmul.bf16.gmra.mxu0 %v2447
  %v2523 = vpop.f32.mrf.mxu0
  %v2524 = vadd.f32 0.0, %v2523
  %v2525 = vpop.f32.mrf.mxu0
  %v2526 = vadd.f32 0.0, %v2525
  %2527 = vmatmul.bf16.gmra.mxu0 %v2450
  %v2528 = vpop.f32.mrf.mxu0
  %v2529 = vadd.f32 0.0, %v2528
  %v2530 = vpop.f32.mrf.mxu0
  %v2531 = vadd.f32 0.0, %v2530
  %2532 = vmatmul.bf16.gmra.mxu0 %v2453
  %v2533 = vpop.f32.mrf.mxu0
  %v2534 = vadd.f32 0.0, %v2533
  %v2535 = vpop.f32.mrf.mxu0
  %v2536 = vadd.f32 0.0, %v2535
  %2537 = vmatmul.bf16.gmra.mxu0 %v2456
  %v2538 = vpop.f32.mrf.mxu0
  %v2539 = vadd.f32 0.0, %v2538
  %v2540 = vpop.f32.mrf.mxu0
  %v2541 = vadd.f32 0.0, %v2540
  %2542 = vmatmul.bf16.gmra.mxu0 %v2459
  %v2543 = vpop.f32.mrf.mxu0
  %v2544 = vadd.f32 0.0, %v2543
  %v2545 = vpop.f32.mrf.mxu0
  %v2546 = vadd.f32 0.0, %v2545
  %2547 = vmatmul.bf16.gmra.mxu0 %v2462
  %v2548 = vpop.f32.mrf.mxu0
  %v2549 = vadd.f32 0.0, %v2548
  %v2550 = vpop.f32.mrf.mxu0
  %v2551 = vadd.f32 0.0, %v2550
  %2552 = vdwg.mxu0
  %2553 = vrot.lane.b32.xlu0 %v518, 32
  %v2554 = vpop.permute.xlu0 %2553
  %2555 = vrot.lane.b32.xlu0 %v519, 32
  %v2556 = vpop.permute.xlu0 %2555
  %2557 = vrot.lane.b32.xlu0 %v520, 32
  %v2558 = vpop.permute.xlu0 %2557
  %2559 = vrot.lane.b32.xlu0 %v521, 32
  %v2560 = vpop.permute.xlu0 %2559
  %2561 = vrot.lane.b32.xlu0 %v522, 32
  %v2562 = vpop.permute.xlu0 %2561
  %2563 = vrot.lane.b32.xlu0 %v523, 32
  %v2564 = vpop.permute.xlu0 %2563
  %2565 = vrot.lane.b32.xlu0 %v524, 32
  %v2566 = vpop.permute.xlu0 %2565
  %2567 = vrot.lane.b32.xlu0 %v525, 32
  %v2568 = vpop.permute.xlu0 %2567
  %2569 = vrot.lane.b32.xlu0 %v526, 32
  %v2570 = vpop.permute.xlu0 %2569
  %2571 = vrot.lane.b32.xlu0 %v527, 32
  %v2572 = vpop.permute.xlu0 %2571
  %2573 = vrot.lane.b32.xlu0 %v528, 32
  %v2574 = vpop.permute.xlu0 %2573
  %2575 = vrot.lane.b32.xlu0 %v529, 32
  %v2576 = vpop.permute.xlu0 %2575
  %2577 = vrot.lane.b32.xlu0 %v530, 32
  %v2578 = vpop.permute.xlu0 %2577
  %2579 = vrot.lane.b32.xlu0 %v531, 32
  %v2580 = vpop.permute.xlu0 %2579
  %2581 = vrot.lane.b32.xlu0 %v532, 32
  %v2582 = vpop.permute.xlu0 %2581
  %2583 = vrot.lane.b32.xlu0 %v533, 32
  %v2584 = vpop.permute.xlu0 %2583
  %v2586 = vsel %vm380, %v2554, 0
  %v2589 = vsel %vm380, %v2556, 0
  %v2592 = vsel %vm380, %v2558, 0
  %v2595 = vsel %vm380, %v2560, 0
  %v2598 = vsel %vm380, %v2562, 0
  %v2601 = vsel %vm380, %v2564, 0
  %v2604 = vsel %vm380, %v2566, 0
  %v2607 = vsel %vm380, %v2568, 0
  %v2610 = vsel %vm380, %v2570, 0
  %v2613 = vsel %vm380, %v2572, 0
  %v2616 = vsel %vm380, %v2574, 0
  %v2619 = vsel %vm380, %v2576, 0
  %v2622 = vsel %vm380, %v2578, 0
  %v2625 = vsel %vm380, %v2580, 0
  %v2628 = vsel %vm380, %v2582, 0
  %v2631 = vsel %vm380, %v2584, 0
  %2633 = vmatpush.bf16.xpose.msra.mxu0 0
  %2634 = vmatpush.bf16.xpose.msra.mxu0 0
  %2635 = vmatpush.bf16.xpose.msra.mxu0 0
  %2636 = vmatpush.bf16.xpose.msra.mxu0 0
  %2637 = vmatpush.bf16.xpose.msra.mxu0 %v592
  %2638 = vmatpush.bf16.xpose.msra.mxu0 %v589
  %2639 = vmatpush.bf16.xpose.msra.mxu0 %v586
  %2640 = vmatpush.bf16.xpose.msra.mxu0 %v583
  %2641 = vmatmul.bf16.gmra.mxu0 %v2586
  %v2642 = vpop.f32.mrf.mxu0
  %v2643 = vadd.f32 0.0, %v2642
  %v2644 = vpop.f32.mrf.mxu0
  %v2645 = vadd.f32 0.0, %v2644
  %2646 = vmatmul.bf16.gmra.mxu0 %v2589
  %v2647 = vpop.f32.mrf.mxu0
  %v2648 = vadd.f32 0.0, %v2647
  %v2649 = vpop.f32.mrf.mxu0
  %v2650 = vadd.f32 0.0, %v2649
  %2651 = vmatmul.bf16.gmra.mxu0 %v2592
  %v2652 = vpop.f32.mrf.mxu0
  %v2653 = vadd.f32 0.0, %v2652
  %v2654 = vpop.f32.mrf.mxu0
  %v2655 = vadd.f32 0.0, %v2654
  %2656 = vmatmul.bf16.gmra.mxu0 %v2595
  %v2657 = vpop.f32.mrf.mxu0
  %v2658 = vadd.f32 0.0, %v2657
  %v2659 = vpop.f32.mrf.mxu0
  %v2660 = vadd.f32 0.0, %v2659
  %2661 = vmatmul.bf16.gmra.mxu0 %v2598
  %v2662 = vpop.f32.mrf.mxu0
  %v2663 = vadd.f32 0.0, %v2662
  %v2664 = vpop.f32.mrf.mxu0
  %v2665 = vadd.f32 0.0, %v2664
  %2666 = vmatmul.bf16.gmra.mxu0 %v2601
  %v2667 = vpop.f32.mrf.mxu0
  %v2668 = vadd.f32 0.0, %v2667
  %v2669 = vpop.f32.mrf.mxu0
  %v2670 = vadd.f32 0.0, %v2669
  %2671 = vmatmul.bf16.gmra.mxu0 %v2604
  %v2672 = vpop.f32.mrf.mxu0
  %v2673 = vadd.f32 0.0, %v2672
  %v2674 = vpop.f32.mrf.mxu0
  %v2675 = vadd.f32 0.0, %v2674
  %2676 = vmatmul.bf16.gmra.mxu0 %v2607
  %v2677 = vpop.f32.mrf.mxu0
  %v2678 = vadd.f32 0.0, %v2677
  %v2679 = vpop.f32.mrf.mxu0
  %v2680 = vadd.f32 0.0, %v2679
  %2681 = vmatmul.bf16.gmra.mxu0 %v2610
  %v2682 = vpop.f32.mrf.mxu0
  %v2683 = vadd.f32 0.0, %v2682
  %v2684 = vpop.f32.mrf.mxu0
  %v2685 = vadd.f32 0.0, %v2684
  %2686 = vmatmul.bf16.gmra.mxu0 %v2613
  %v2687 = vpop.f32.mrf.mxu0
  %v2688 = vadd.f32 0.0, %v2687
  %v2689 = vpop.f32.mrf.mxu0
  %v2690 = vadd.f32 0.0, %v2689
  %2691 = vmatmul.bf16.gmra.mxu0 %v2616
  %v2692 = vpop.f32.mrf.mxu0
  %v2693 = vadd.f32 0.0, %v2692
  %v2694 = vpop.f32.mrf.mxu0
  %v2695 = vadd.f32 0.0, %v2694
  %2696 = vmatmul.bf16.gmra.mxu0 %v2619
  %v2697 = vpop.f32.mrf.mxu0
  %v2698 = vadd.f32 0.0, %v2697
  %v2699 = vpop.f32.mrf.mxu0
  %v2700 = vadd.f32 0.0, %v2699
  %2701 = vmatmul.bf16.gmra.mxu0 %v2622
  %v2702 = vpop.f32.mrf.mxu0
  %v2703 = vadd.f32 0.0, %v2702
  %v2704 = vpop.f32.mrf.mxu0
  %v2705 = vadd.f32 0.0, %v2704
  %2706 = vmatmul.bf16.gmra.mxu0 %v2625
  %v2707 = vpop.f32.mrf.mxu0
  %v2708 = vadd.f32 0.0, %v2707
  %v2709 = vpop.f32.mrf.mxu0
  %v2710 = vadd.f32 0.0, %v2709
  %2711 = vmatmul.bf16.gmra.mxu0 %v2628
  %v2712 = vpop.f32.mrf.mxu0
  %v2713 = vadd.f32 0.0, %v2712
  %v2714 = vpop.f32.mrf.mxu0
  %v2715 = vadd.f32 0.0, %v2714
  %2716 = vmatmul.bf16.gmra.mxu0 %v2631
  %v2717 = vpop.f32.mrf.mxu0
  %v2718 = vadd.f32 0.0, %v2717
  %v2719 = vpop.f32.mrf.mxu0
  %v2720 = vadd.f32 0.0, %v2719
  %2721 = vdwg.mxu0
  %v2722 = vsel %vm683, %v2643, -inf
  %2723 = vmax.xlane.f32.xlu0 %v2722
  %v2724 = vpop.xlane.xlu0 %2723
  %v2725 = vsel %vm683, %v2645, -inf
  %2726 = vmax.xlane.f32.xlu0 %v2725
  %v2727 = vpop.xlane.xlu0 %2726
  %v2728 = vsel %vm683, %v2648, -inf
  %2729 = vmax.xlane.f32.xlu0 %v2728
  %v2730 = vpop.xlane.xlu0 %2729
  %v2731 = vsel %vm683, %v2650, -inf
  %2732 = vmax.xlane.f32.xlu0 %v2731
  %v2733 = vpop.xlane.xlu0 %2732
  %v2734 = vsel %vm683, %v2653, -inf
  %2735 = vmax.xlane.f32.xlu0 %v2734
  %v2736 = vpop.xlane.xlu0 %2735
  %v2737 = vsel %vm683, %v2655, -inf
  %2738 = vmax.xlane.f32.xlu0 %v2737
  %v2739 = vpop.xlane.xlu0 %2738
  %v2740 = vsel %vm683, %v2658, -inf
  %2741 = vmax.xlane.f32.xlu0 %v2740
  %v2742 = vpop.xlane.xlu0 %2741
  %v2743 = vsel %vm683, %v2660, -inf
  %2744 = vmax.xlane.f32.xlu0 %v2743
  %v2745 = vpop.xlane.xlu0 %2744
  %v2746 = vsel %vm683, %v2663, -inf
  %2747 = vmax.xlane.f32.xlu0 %v2746
  %v2748 = vpop.xlane.xlu0 %2747
  %v2749 = vsel %vm683, %v2665, -inf
  %2750 = vmax.xlane.f32.xlu0 %v2749
  %v2751 = vpop.xlane.xlu0 %2750
  %v2752 = vsel %vm683, %v2668, -inf
  %2753 = vmax.xlane.f32.xlu0 %v2752
  %v2754 = vpop.xlane.xlu0 %2753
  %v2755 = vsel %vm683, %v2670, -inf
  %2756 = vmax.xlane.f32.xlu0 %v2755
  %v2757 = vpop.xlane.xlu0 %2756
  %v2758 = vsel %vm683, %v2673, -inf
  %2759 = vmax.xlane.f32.xlu0 %v2758
  %v2760 = vpop.xlane.xlu0 %2759
  %v2761 = vsel %vm683, %v2675, -inf
  %2762 = vmax.xlane.f32.xlu0 %v2761
  %v2763 = vpop.xlane.xlu0 %2762
  %v2764 = vsel %vm683, %v2678, -inf
  %2765 = vmax.xlane.f32.xlu0 %v2764
  %v2766 = vpop.xlane.xlu0 %2765
  %v2767 = vsel %vm683, %v2680, -inf
  %2768 = vmax.xlane.f32.xlu0 %v2767
  %v2769 = vpop.xlane.xlu0 %2768
  %v2770 = vsel %vm683, %v2683, -inf
  %2771 = vmax.xlane.f32.xlu0 %v2770
  %v2772 = vpop.xlane.xlu0 %2771
  %v2773 = vsel %vm683, %v2685, -inf
  %2774 = vmax.xlane.f32.xlu0 %v2773
  %v2775 = vpop.xlane.xlu0 %2774
  %v2776 = vsel %vm683, %v2688, -inf
  %2777 = vmax.xlane.f32.xlu0 %v2776
  %v2778 = vpop.xlane.xlu0 %2777
  %v2779 = vsel %vm683, %v2690, -inf
  %2780 = vmax.xlane.f32.xlu0 %v2779
  %v2781 = vpop.xlane.xlu0 %2780
  %v2782 = vsel %vm683, %v2693, -inf
  %2783 = vmax.xlane.f32.xlu0 %v2782
  %v2784 = vpop.xlane.xlu0 %2783
  %v2785 = vsel %vm683, %v2695, -inf
  %2786 = vmax.xlane.f32.xlu0 %v2785
  %v2787 = vpop.xlane.xlu0 %2786
  %v2788 = vsel %vm683, %v2698, -inf
  %2789 = vmax.xlane.f32.xlu0 %v2788
  %v2790 = vpop.xlane.xlu0 %2789
  %v2791 = vsel %vm683, %v2700, -inf
  %2792 = vmax.xlane.f32.xlu0 %v2791
  %v2793 = vpop.xlane.xlu0 %2792
  %v2794 = vsel %vm683, %v2703, -inf
  %2795 = vmax.xlane.f32.xlu0 %v2794
  %v2796 = vpop.xlane.xlu0 %2795
  %v2797 = vsel %vm683, %v2705, -inf
  %2798 = vmax.xlane.f32.xlu0 %v2797
  %v2799 = vpop.xlane.xlu0 %2798
  %v2800 = vsel %vm683, %v2708, -inf
  %2801 = vmax.xlane.f32.xlu0 %v2800
  %v2802 = vpop.xlane.xlu0 %2801
  %v2803 = vsel %vm683, %v2710, -inf
  %2804 = vmax.xlane.f32.xlu0 %v2803
  %v2805 = vpop.xlane.xlu0 %2804
  %v2806 = vsel %vm683, %v2713, -inf
  %2807 = vmax.xlane.f32.xlu0 %v2806
  %v2808 = vpop.xlane.xlu0 %2807
  %v2809 = vsel %vm683, %v2715, -inf
  %2810 = vmax.xlane.f32.xlu0 %v2809
  %v2811 = vpop.xlane.xlu0 %2810
  %v2812 = vsel %vm683, %v2718, -inf
  %2813 = vmax.xlane.f32.xlu0 %v2812
  %v2814 = vpop.xlane.xlu0 %2813
  %v2815 = vsel %vm683, %v2720, -inf
  %2816 = vmax.xlane.f32.xlu0 %v2815
  %v2817 = vpop.xlane.xlu0 %2816
  %v2818 = vsub.f32 %v2643, %v2724
  %v2819 = vsub.f32 %v2645, %v2727
  %v2820 = vsub.f32 %v2648, %v2730
  %v2821 = vsub.f32 %v2650, %v2733
  %v2822 = vsub.f32 %v2653, %v2736
  %v2823 = vsub.f32 %v2655, %v2739
  %v2824 = vsub.f32 %v2658, %v2742
  %v2825 = vsub.f32 %v2660, %v2745
  %v2826 = vsub.f32 %v2663, %v2748
  %v2827 = vsub.f32 %v2665, %v2751
  %v2828 = vsub.f32 %v2668, %v2754
  %v2829 = vsub.f32 %v2670, %v2757
  %v2830 = vsub.f32 %v2673, %v2760
  %v2831 = vsub.f32 %v2675, %v2763
  %v2832 = vsub.f32 %v2678, %v2766
  %v2833 = vsub.f32 %v2680, %v2769
  %v2834 = vsub.f32 %v2683, %v2772
  %v2835 = vsub.f32 %v2685, %v2775
  %v2836 = vsub.f32 %v2688, %v2778
  %v2837 = vsub.f32 %v2690, %v2781
  %v2838 = vsub.f32 %v2693, %v2784
  %v2839 = vsub.f32 %v2695, %v2787
  %v2840 = vsub.f32 %v2698, %v2790
  %v2841 = vsub.f32 %v2700, %v2793
  %v2842 = vsub.f32 %v2703, %v2796
  %v2843 = vsub.f32 %v2705, %v2799
  %v2844 = vsub.f32 %v2708, %v2802
  %v2845 = vsub.f32 %v2710, %v2805
  %v2846 = vsub.f32 %v2713, %v2808
  %v2847 = vsub.f32 %v2715, %v2811
  %v2848 = vsub.f32 %v2718, %v2814
  %v2849 = vsub.f32 %v2720, %v2817
  %v2850 = vmul.f32 %v2818, 1.442695
  %v2851 = vpow.pop %v2850
  %v2852 = vmul.f32 %v2819, 1.442695
  %v2853 = vpow.pop %v2852
  %v2854 = vmul.f32 %v2820, 1.442695
  %v2855 = vpow.pop %v2854
  %v2856 = vmul.f32 %v2821, 1.442695
  %v2857 = vpow.pop %v2856
  %v2858 = vmul.f32 %v2822, 1.442695
  %v2859 = vpow.pop %v2858
  %v2860 = vmul.f32 %v2823, 1.442695
  %v2861 = vpow.pop %v2860
  %v2862 = vmul.f32 %v2824, 1.442695
  %v2863 = vpow.pop %v2862
  %v2864 = vmul.f32 %v2825, 1.442695
  %v2865 = vpow.pop %v2864
  %v2866 = vmul.f32 %v2826, 1.442695
  %v2867 = vpow.pop %v2866
  %v2868 = vmul.f32 %v2827, 1.442695
  %v2869 = vpow.pop %v2868
  %v2870 = vmul.f32 %v2828, 1.442695
  %v2871 = vpow.pop %v2870
  %v2872 = vmul.f32 %v2829, 1.442695
  %v2873 = vpow.pop %v2872
  %v2874 = vmul.f32 %v2830, 1.442695
  %v2875 = vpow.pop %v2874
  %v2876 = vmul.f32 %v2831, 1.442695
  %v2877 = vpow.pop %v2876
  %v2878 = vmul.f32 %v2832, 1.442695
  %v2879 = vpow.pop %v2878
  %v2880 = vmul.f32 %v2833, 1.442695
  %v2881 = vpow.pop %v2880
  %v2882 = vmul.f32 %v2834, 1.442695
  %v2883 = vpow.pop %v2882
  %v2884 = vmul.f32 %v2835, 1.442695
  %v2885 = vpow.pop %v2884
  %v2886 = vmul.f32 %v2836, 1.442695
  %v2887 = vpow.pop %v2886
  %v2888 = vmul.f32 %v2837, 1.442695
  %v2889 = vpow.pop %v2888
  %v2890 = vmul.f32 %v2838, 1.442695
  %v2891 = vpow.pop %v2890
  %v2892 = vmul.f32 %v2839, 1.442695
  %v2893 = vpow.pop %v2892
  %v2894 = vmul.f32 %v2840, 1.442695
  %v2895 = vpow.pop %v2894
  %v2896 = vmul.f32 %v2841, 1.442695
  %v2897 = vpow.pop %v2896
  %v2898 = vmul.f32 %v2842, 1.442695
  %v2899 = vpow.pop %v2898
  %v2900 = vmul.f32 %v2843, 1.442695
  %v2901 = vpow.pop %v2900
  %v2902 = vmul.f32 %v2844, 1.442695
  %v2903 = vpow.pop %v2902
  %v2904 = vmul.f32 %v2845, 1.442695
  %v2905 = vpow.pop %v2904
  %v2906 = vmul.f32 %v2846, 1.442695
  %v2907 = vpow.pop %v2906
  %v2908 = vmul.f32 %v2847, 1.442695
  %v2909 = vpow.pop %v2908
  %v2910 = vmul.f32 %v2848, 1.442695
  %v2911 = vpow.pop %v2910
  %v2912 = vmul.f32 %v2849, 1.442695
  %v2913 = vpow.pop %v2912
  %v2914 = vsel %vm683, %v2851, 0.0
  %2915 = vadd.xlane.f32.xlu0 %v2914
  %v2916 = vpop.xlane.xlu0 %2915
  %v2917 = vsel %vm683, %v2853, 0.0
  %2918 = vadd.xlane.f32.xlu0 %v2917
  %v2919 = vpop.xlane.xlu0 %2918
  %v2920 = vsel %vm683, %v2855, 0.0
  %2921 = vadd.xlane.f32.xlu0 %v2920
  %v2922 = vpop.xlane.xlu0 %2921
  %v2923 = vsel %vm683, %v2857, 0.0
  %2924 = vadd.xlane.f32.xlu0 %v2923
  %v2925 = vpop.xlane.xlu0 %2924
  %v2926 = vsel %vm683, %v2859, 0.0
  %2927 = vadd.xlane.f32.xlu0 %v2926
  %v2928 = vpop.xlane.xlu0 %2927
  %v2929 = vsel %vm683, %v2861, 0.0
  %2930 = vadd.xlane.f32.xlu0 %v2929
  %v2931 = vpop.xlane.xlu0 %2930
  %v2932 = vsel %vm683, %v2863, 0.0
  %2933 = vadd.xlane.f32.xlu0 %v2932
  %v2934 = vpop.xlane.xlu0 %2933
  %v2935 = vsel %vm683, %v2865, 0.0
  %2936 = vadd.xlane.f32.xlu0 %v2935
  %v2937 = vpop.xlane.xlu0 %2936
  %v2938 = vsel %vm683, %v2867, 0.0
  %2939 = vadd.xlane.f32.xlu0 %v2938
  %v2940 = vpop.xlane.xlu0 %2939
  %v2941 = vsel %vm683, %v2869, 0.0
  %2942 = vadd.xlane.f32.xlu0 %v2941
  %v2943 = vpop.xlane.xlu0 %2942
  %v2944 = vsel %vm683, %v2871, 0.0
  %2945 = vadd.xlane.f32.xlu0 %v2944
  %v2946 = vpop.xlane.xlu0 %2945
  %v2947 = vsel %vm683, %v2873, 0.0
  %2948 = vadd.xlane.f32.xlu0 %v2947
  %v2949 = vpop.xlane.xlu0 %2948
  %v2950 = vsel %vm683, %v2875, 0.0
  %2951 = vadd.xlane.f32.xlu0 %v2950
  %v2952 = vpop.xlane.xlu0 %2951
  %v2953 = vsel %vm683, %v2877, 0.0
  %2954 = vadd.xlane.f32.xlu0 %v2953
  %v2955 = vpop.xlane.xlu0 %2954
  %v2956 = vsel %vm683, %v2879, 0.0
  %2957 = vadd.xlane.f32.xlu0 %v2956
  %v2958 = vpop.xlane.xlu0 %2957
  %v2959 = vsel %vm683, %v2881, 0.0
  %2960 = vadd.xlane.f32.xlu0 %v2959
  %v2961 = vpop.xlane.xlu0 %2960
  %v2962 = vsel %vm683, %v2883, 0.0
  %2963 = vadd.xlane.f32.xlu0 %v2962
  %v2964 = vpop.xlane.xlu0 %2963
  %v2965 = vsel %vm683, %v2885, 0.0
  %2966 = vadd.xlane.f32.xlu0 %v2965
  %v2967 = vpop.xlane.xlu0 %2966
  %v2968 = vsel %vm683, %v2887, 0.0
  %2969 = vadd.xlane.f32.xlu0 %v2968
  %v2970 = vpop.xlane.xlu0 %2969
  %v2971 = vsel %vm683, %v2889, 0.0
  %2972 = vadd.xlane.f32.xlu0 %v2971
  %v2973 = vpop.xlane.xlu0 %2972
  %v2974 = vsel %vm683, %v2891, 0.0
  %2975 = vadd.xlane.f32.xlu0 %v2974
  %v2976 = vpop.xlane.xlu0 %2975
  %v2977 = vsel %vm683, %v2893, 0.0
  %2978 = vadd.xlane.f32.xlu0 %v2977
  %v2979 = vpop.xlane.xlu0 %2978
  %v2980 = vsel %vm683, %v2895, 0.0
  %2981 = vadd.xlane.f32.xlu0 %v2980
  %v2982 = vpop.xlane.xlu0 %2981
  %v2983 = vsel %vm683, %v2897, 0.0
  %2984 = vadd.xlane.f32.xlu0 %v2983
  %v2985 = vpop.xlane.xlu0 %2984
  %v2986 = vsel %vm683, %v2899, 0.0
  %2987 = vadd.xlane.f32.xlu0 %v2986
  %v2988 = vpop.xlane.xlu0 %2987
  %v2989 = vsel %vm683, %v2901, 0.0
  %2990 = vadd.xlane.f32.xlu0 %v2989
  %v2991 = vpop.xlane.xlu0 %2990
  %v2992 = vsel %vm683, %v2903, 0.0
  %2993 = vadd.xlane.f32.xlu0 %v2992
  %v2994 = vpop.xlane.xlu0 %2993
  %v2995 = vsel %vm683, %v2905, 0.0
  %2996 = vadd.xlane.f32.xlu0 %v2995
  %v2997 = vpop.xlane.xlu0 %2996
  %v2998 = vsel %vm683, %v2907, 0.0
  %2999 = vadd.xlane.f32.xlu0 %v2998
  %v3000 = vpop.xlane.xlu0 %2999
  %v3001 = vsel %vm683, %v2909, 0.0
  %3002 = vadd.xlane.f32.xlu0 %v3001
  %v3003 = vpop.xlane.xlu0 %3002
  %v3004 = vsel %vm683, %v2911, 0.0
  %3005 = vadd.xlane.f32.xlu0 %v3004
  %v3006 = vpop.xlane.xlu0 %3005
  %v3007 = vsel %vm683, %v2913, 0.0
  %3008 = vadd.xlane.f32.xlu0 %v3007
  %v3009 = vpop.xlane.xlu0 %3008
  %v3010 = vrcp.pop %v2916
  %v3011 = vrcp.pop %v2919
  %v3012 = vrcp.pop %v2922
  %v3013 = vrcp.pop %v2925
  %v3014 = vrcp.pop %v2928
  %v3015 = vrcp.pop %v2931
  %v3016 = vrcp.pop %v2934
  %v3017 = vrcp.pop %v2937
  %v3018 = vrcp.pop %v2940
  %v3019 = vrcp.pop %v2943
  %v3020 = vrcp.pop %v2946
  %v3021 = vrcp.pop %v2949
  %v3022 = vrcp.pop %v2952
  %v3023 = vrcp.pop %v2955
  %v3024 = vrcp.pop %v2958
  %v3025 = vrcp.pop %v2961
  %v3026 = vrcp.pop %v2964
  %v3027 = vrcp.pop %v2967
  %v3028 = vrcp.pop %v2970
  %v3029 = vrcp.pop %v2973
  %v3030 = vrcp.pop %v2976
  %v3031 = vrcp.pop %v2979
  %v3032 = vrcp.pop %v2982
  %v3033 = vrcp.pop %v2985
  %v3034 = vrcp.pop %v2988
  %v3035 = vrcp.pop %v2991
  %v3036 = vrcp.pop %v2994
  %v3037 = vrcp.pop %v2997
  %v3038 = vrcp.pop %v3000
  %v3039 = vrcp.pop %v3003
  %v3040 = vrcp.pop %v3006
  %v3041 = vrcp.pop %v3009
  %v3042 = vmul.f32 %v2851, %v3010
  %v3043 = vmul.f32 %v2853, %v3011
  %v3044 = vmul.f32 %v2855, %v3012
  %v3045 = vmul.f32 %v2857, %v3013
  %v3046 = vmul.f32 %v2859, %v3014
  %v3047 = vmul.f32 %v2861, %v3015
  %v3048 = vmul.f32 %v2863, %v3016
  %v3049 = vmul.f32 %v2865, %v3017
  %v3050 = vmul.f32 %v2867, %v3018
  %v3051 = vmul.f32 %v2869, %v3019
  %v3052 = vmul.f32 %v2871, %v3020
  %v3053 = vmul.f32 %v2873, %v3021
  %v3054 = vmul.f32 %v2875, %v3022
  %v3055 = vmul.f32 %v2877, %v3023
  %v3056 = vmul.f32 %v2879, %v3024
  %v3057 = vmul.f32 %v2881, %v3025
  %v3058 = vmul.f32 %v2883, %v3026
  %v3059 = vmul.f32 %v2885, %v3027
  %v3060 = vmul.f32 %v2887, %v3028
  %v3061 = vmul.f32 %v2889, %v3029
  %v3062 = vmul.f32 %v2891, %v3030
  %v3063 = vmul.f32 %v2893, %v3031
  %v3064 = vmul.f32 %v2895, %v3032
  %v3065 = vmul.f32 %v2897, %v3033
  %v3066 = vmul.f32 %v2899, %v3034
  %v3067 = vmul.f32 %v2901, %v3035
  %v3068 = vmul.f32 %v2903, %v3036
  %v3069 = vmul.f32 %v2905, %v3037
  %v3070 = vmul.f32 %v2907, %v3038
  %v3071 = vmul.f32 %v2909, %v3039
  %v3072 = vmul.f32 %v2911, %v3040
  %v3073 = vmul.f32 %v2913, %v3041
  %v3074 = vpack.c.bf16 %v3043, %v3042
  %v3075 = vpack.c.bf16 %v3045, %v3044
  %v3076 = vpack.c.bf16 %v3047, %v3046
  %v3077 = vpack.c.bf16 %v3049, %v3048
  %v3078 = vpack.c.bf16 %v3051, %v3050
  %v3079 = vpack.c.bf16 %v3053, %v3052
  %v3080 = vpack.c.bf16 %v3055, %v3054
  %v3081 = vpack.c.bf16 %v3057, %v3056
  %v3082 = vpack.c.bf16 %v3059, %v3058
  %v3083 = vpack.c.bf16 %v3061, %v3060
  %v3084 = vpack.c.bf16 %v3063, %v3062
  %v3085 = vpack.c.bf16 %v3065, %v3064
  %v3086 = vpack.c.bf16 %v3067, %v3066
  %v3087 = vpack.c.bf16 %v3069, %v3068
  %v3088 = vpack.c.bf16 %v3071, %v3070
  %v3089 = vpack.c.bf16 %v3073, %v3072
  %v3091 = vsel %vm683, %v3074, 0
  %v3094 = vsel %vm683, %v3075, 0
  %v3097 = vsel %vm683, %v3076, 0
  %v3100 = vsel %vm683, %v3077, 0
  %v3103 = vsel %vm683, %v3078, 0
  %v3106 = vsel %vm683, %v3079, 0
  %v3109 = vsel %vm683, %v3080, 0
  %v3112 = vsel %vm683, %v3081, 0
  %v3115 = vsel %vm683, %v3082, 0
  %v3118 = vsel %vm683, %v3083, 0
  %v3121 = vsel %vm683, %v3084, 0
  %v3124 = vsel %vm683, %v3085, 0
  %v3127 = vsel %vm683, %v3086, 0
  %v3130 = vsel %vm683, %v3087, 0
  %v3133 = vsel %vm683, %v3088, 0
  %v3136 = vsel %vm683, %v3089, 0
  %3138 = vmatpush.bf16.msra.mxu0 0
  %3139 = vmatpush.bf16.msra.mxu0 0
  %3140 = vmatpush.bf16.msra.mxu0 0
  %3141 = vmatpush.bf16.msra.mxu0 0
  %3142 = vmatpush.bf16.msra.mxu0 %v284
  %3143 = vmatpush.bf16.msra.mxu0 %v283
  %3144 = vmatpush.bf16.msra.mxu0 %v282
  %3145 = vmatpush.bf16.msra.mxu0 %v281
  %3146 = vmatmul.bf16.gmra.mxu0 %v3091
  %v3147 = vpop.f32.mrf.mxu0
  %v3148 = vadd.f32 0.0, %v3147
  %v3149 = vpop.f32.mrf.mxu0
  %v3150 = vadd.f32 0.0, %v3149
  %3151 = vmatmul.bf16.gmra.mxu0 %v3094
  %v3152 = vpop.f32.mrf.mxu0
  %v3153 = vadd.f32 0.0, %v3152
  %v3154 = vpop.f32.mrf.mxu0
  %v3155 = vadd.f32 0.0, %v3154
  %3156 = vmatmul.bf16.gmra.mxu0 %v3097
  %v3157 = vpop.f32.mrf.mxu0
  %v3158 = vadd.f32 0.0, %v3157
  %v3159 = vpop.f32.mrf.mxu0
  %v3160 = vadd.f32 0.0, %v3159
  %3161 = vmatmul.bf16.gmra.mxu0 %v3100
  %v3162 = vpop.f32.mrf.mxu0
  %v3163 = vadd.f32 0.0, %v3162
  %v3164 = vpop.f32.mrf.mxu0
  %v3165 = vadd.f32 0.0, %v3164
  %3166 = vmatmul.bf16.gmra.mxu0 %v3103
  %v3167 = vpop.f32.mrf.mxu0
  %v3168 = vadd.f32 0.0, %v3167
  %v3169 = vpop.f32.mrf.mxu0
  %v3170 = vadd.f32 0.0, %v3169
  %3171 = vmatmul.bf16.gmra.mxu0 %v3106
  %v3172 = vpop.f32.mrf.mxu0
  %v3173 = vadd.f32 0.0, %v3172
  %v3174 = vpop.f32.mrf.mxu0
  %v3175 = vadd.f32 0.0, %v3174
  %3176 = vmatmul.bf16.gmra.mxu0 %v3109
  %v3177 = vpop.f32.mrf.mxu0
  %v3178 = vadd.f32 0.0, %v3177
  %v3179 = vpop.f32.mrf.mxu0
  %v3180 = vadd.f32 0.0, %v3179
  %3181 = vmatmul.bf16.gmra.mxu0 %v3112
  %v3182 = vpop.f32.mrf.mxu0
  %v3183 = vadd.f32 0.0, %v3182
  %v3184 = vpop.f32.mrf.mxu0
  %v3185 = vadd.f32 0.0, %v3184
  %3186 = vmatmul.bf16.gmra.mxu0 %v3115
  %v3187 = vpop.f32.mrf.mxu0
  %v3188 = vadd.f32 0.0, %v3187
  %v3189 = vpop.f32.mrf.mxu0
  %v3190 = vadd.f32 0.0, %v3189
  %3191 = vmatmul.bf16.gmra.mxu0 %v3118
  %v3192 = vpop.f32.mrf.mxu0
  %v3193 = vadd.f32 0.0, %v3192
  %v3194 = vpop.f32.mrf.mxu0
  %v3195 = vadd.f32 0.0, %v3194
  %3196 = vmatmul.bf16.gmra.mxu0 %v3121
  %v3197 = vpop.f32.mrf.mxu0
  %v3198 = vadd.f32 0.0, %v3197
  %v3199 = vpop.f32.mrf.mxu0
  %v3200 = vadd.f32 0.0, %v3199
  %3201 = vmatmul.bf16.gmra.mxu0 %v3124
  %v3202 = vpop.f32.mrf.mxu0
  %v3203 = vadd.f32 0.0, %v3202
  %v3204 = vpop.f32.mrf.mxu0
  %v3205 = vadd.f32 0.0, %v3204
  %3206 = vmatmul.bf16.gmra.mxu0 %v3127
  %v3207 = vpop.f32.mrf.mxu0
  %v3208 = vadd.f32 0.0, %v3207
  %v3209 = vpop.f32.mrf.mxu0
  %v3210 = vadd.f32 0.0, %v3209
  %3211 = vmatmul.bf16.gmra.mxu0 %v3130
  %v3212 = vpop.f32.mrf.mxu0
  %v3213 = vadd.f32 0.0, %v3212
  %v3214 = vpop.f32.mrf.mxu0
  %v3215 = vadd.f32 0.0, %v3214
  %3216 = vmatmul.bf16.gmra.mxu0 %v3133
  %v3217 = vpop.f32.mrf.mxu0
  %v3218 = vadd.f32 0.0, %v3217
  %v3219 = vpop.f32.mrf.mxu0
  %v3220 = vadd.f32 0.0, %v3219
  %3221 = vmatmul.bf16.gmra.mxu0 %v3136
  %v3222 = vpop.f32.mrf.mxu0
  %v3223 = vadd.f32 0.0, %v3222
  %v3224 = vpop.f32.mrf.mxu0
  %v3225 = vadd.f32 0.0, %v3224
  %3226 = vdwg.mxu0
  %3259 = vrot.lane.b32.xlu0 %v1800, 32
  %v3260 = vpop.permute.xlu0 %3259
  %3261 = vrot.lane.b32.xlu0 %v1802, 32
  %v3262 = vpop.permute.xlu0 %3261
  %3263 = vrot.lane.b32.xlu0 %v1805, 32
  %v3264 = vpop.permute.xlu0 %3263
  %3265 = vrot.lane.b32.xlu0 %v1807, 32
  %v3266 = vpop.permute.xlu0 %3265
  %3267 = vrot.lane.b32.xlu0 %v1810, 32
  %v3268 = vpop.permute.xlu0 %3267
  %3269 = vrot.lane.b32.xlu0 %v1812, 32
  %v3270 = vpop.permute.xlu0 %3269
  %3271 = vrot.lane.b32.xlu0 %v1815, 32
  %v3272 = vpop.permute.xlu0 %3271
  %3273 = vrot.lane.b32.xlu0 %v1817, 32
  %v3274 = vpop.permute.xlu0 %3273
  %3275 = vrot.lane.b32.xlu0 %v1820, 32
  %v3276 = vpop.permute.xlu0 %3275
  %3277 = vrot.lane.b32.xlu0 %v1822, 32
  %v3278 = vpop.permute.xlu0 %3277
  %3279 = vrot.lane.b32.xlu0 %v1825, 32
  %v3280 = vpop.permute.xlu0 %3279
  %3281 = vrot.lane.b32.xlu0 %v1827, 32
  %v3282 = vpop.permute.xlu0 %3281
  %3283 = vrot.lane.b32.xlu0 %v1830, 32
  %v3284 = vpop.permute.xlu0 %3283
  %3285 = vrot.lane.b32.xlu0 %v1832, 32
  %v3286 = vpop.permute.xlu0 %3285
  %3287 = vrot.lane.b32.xlu0 %v1835, 32
  %v3288 = vpop.permute.xlu0 %3287
  %3289 = vrot.lane.b32.xlu0 %v1837, 32
  %v3290 = vpop.permute.xlu0 %3289
  %3291 = vrot.lane.b32.xlu0 %v1840, 32
  %v3292 = vpop.permute.xlu0 %3291
  %3293 = vrot.lane.b32.xlu0 %v1842, 32
  %v3294 = vpop.permute.xlu0 %3293
  %3295 = vrot.lane.b32.xlu0 %v1845, 32
  %v3296 = vpop.permute.xlu0 %3295
  %3297 = vrot.lane.b32.xlu0 %v1847, 32
  %v3298 = vpop.permute.xlu0 %3297
  %3299 = vrot.lane.b32.xlu0 %v1850, 32
  %v3300 = vpop.permute.xlu0 %3299
  %3301 = vrot.lane.b32.xlu0 %v1852, 32
  %v3302 = vpop.permute.xlu0 %3301
  %3303 = vrot.lane.b32.xlu0 %v1855, 32
  %v3304 = vpop.permute.xlu0 %3303
  %3305 = vrot.lane.b32.xlu0 %v1857, 32
  %v3306 = vpop.permute.xlu0 %3305
  %3307 = vrot.lane.b32.xlu0 %v1860, 32
  %v3308 = vpop.permute.xlu0 %3307
  %3309 = vrot.lane.b32.xlu0 %v1862, 32
  %v3310 = vpop.permute.xlu0 %3309
  %3311 = vrot.lane.b32.xlu0 %v1865, 32
  %v3312 = vpop.permute.xlu0 %3311
  %3313 = vrot.lane.b32.xlu0 %v1867, 32
  %v3314 = vpop.permute.xlu0 %3313
  %3315 = vrot.lane.b32.xlu0 %v1870, 32
  %v3316 = vpop.permute.xlu0 %3315
  %3317 = vrot.lane.b32.xlu0 %v1872, 32
  %v3318 = vpop.permute.xlu0 %3317
  %3319 = vrot.lane.b32.xlu0 %v1875, 32
  %v3320 = vpop.permute.xlu0 %3319
  %3321 = vrot.lane.b32.xlu0 %v1877, 32
  %v3322 = vpop.permute.xlu0 %3321
  %3387 = vrot.lane.b32.xlu0 %v2474, 64
  %v3388 = vpop.permute.xlu0 %3387
  %3389 = vrot.lane.b32.xlu0 %v2476, 64
  %v3390 = vpop.permute.xlu0 %3389
  %3391 = vrot.lane.b32.xlu0 %v2479, 64
  %v3392 = vpop.permute.xlu0 %3391
  %3393 = vrot.lane.b32.xlu0 %v2481, 64
  %v3394 = vpop.permute.xlu0 %3393
  %3395 = vrot.lane.b32.xlu0 %v2484, 64
  %v3396 = vpop.permute.xlu0 %3395
  %3397 = vrot.lane.b32.xlu0 %v2486, 64
  %v3398 = vpop.permute.xlu0 %3397
  %3399 = vrot.lane.b32.xlu0 %v2489, 64
  %v3400 = vpop.permute.xlu0 %3399
  %3401 = vrot.lane.b32.xlu0 %v2491, 64
  %v3402 = vpop.permute.xlu0 %3401
  %3403 = vrot.lane.b32.xlu0 %v2494, 64
  %v3404 = vpop.permute.xlu0 %3403
  %3405 = vrot.lane.b32.xlu0 %v2496, 64
  %v3406 = vpop.permute.xlu0 %3405
  %3407 = vrot.lane.b32.xlu0 %v2499, 64
  %v3408 = vpop.permute.xlu0 %3407
  %3409 = vrot.lane.b32.xlu0 %v2501, 64
  %v3410 = vpop.permute.xlu0 %3409
  %3411 = vrot.lane.b32.xlu0 %v2504, 64
  %v3412 = vpop.permute.xlu0 %3411
  %3413 = vrot.lane.b32.xlu0 %v2506, 64
  %v3414 = vpop.permute.xlu0 %3413
  %3415 = vrot.lane.b32.xlu0 %v2509, 64
  %v3416 = vpop.permute.xlu0 %3415
  %3417 = vrot.lane.b32.xlu0 %v2511, 64
  %v3418 = vpop.permute.xlu0 %3417
  %3419 = vrot.lane.b32.xlu0 %v2514, 64
  %v3420 = vpop.permute.xlu0 %3419
  %3421 = vrot.lane.b32.xlu0 %v2516, 64
  %v3422 = vpop.permute.xlu0 %3421
  %3423 = vrot.lane.b32.xlu0 %v2519, 64
  %v3424 = vpop.permute.xlu0 %3423
  %3425 = vrot.lane.b32.xlu0 %v2521, 64
  %v3426 = vpop.permute.xlu0 %3425
  %3427 = vrot.lane.b32.xlu0 %v2524, 64
  %v3428 = vpop.permute.xlu0 %3427
  %3429 = vrot.lane.b32.xlu0 %v2526, 64
  %v3430 = vpop.permute.xlu0 %3429
  %3431 = vrot.lane.b32.xlu0 %v2529, 64
  %v3432 = vpop.permute.xlu0 %3431
  %3433 = vrot.lane.b32.xlu0 %v2531, 64
  %v3434 = vpop.permute.xlu0 %3433
  %3435 = vrot.lane.b32.xlu0 %v2534, 64
  %v3436 = vpop.permute.xlu0 %3435
  %3437 = vrot.lane.b32.xlu0 %v2536, 64
  %v3438 = vpop.permute.xlu0 %3437
  %3439 = vrot.lane.b32.xlu0 %v2539, 64
  %v3440 = vpop.permute.xlu0 %3439
  %3441 = vrot.lane.b32.xlu0 %v2541, 64
  %v3442 = vpop.permute.xlu0 %3441
  %3443 = vrot.lane.b32.xlu0 %v2544, 64
  %v3444 = vpop.permute.xlu0 %3443
  %3445 = vrot.lane.b32.xlu0 %v2546, 64
  %v3446 = vpop.permute.xlu0 %3445
  %3447 = vrot.lane.b32.xlu0 %v2549, 64
  %v3448 = vpop.permute.xlu0 %3447
  %3449 = vrot.lane.b32.xlu0 %v2551, 64
  %v3450 = vpop.permute.xlu0 %3449
  %3515 = vrot.lane.b32.xlu0 %v3148, 96
  %v3516 = vpop.permute.xlu0 %3515
  %3517 = vrot.lane.b32.xlu0 %v3150, 96
  %v3518 = vpop.permute.xlu0 %3517
  %3519 = vrot.lane.b32.xlu0 %v3153, 96
  %v3520 = vpop.permute.xlu0 %3519
  %3521 = vrot.lane.b32.xlu0 %v3155, 96
  %v3522 = vpop.permute.xlu0 %3521
  %3523 = vrot.lane.b32.xlu0 %v3158, 96
  %v3524 = vpop.permute.xlu0 %3523
  %3525 = vrot.lane.b32.xlu0 %v3160, 96
  %v3526 = vpop.permute.xlu0 %3525
  %3527 = vrot.lane.b32.xlu0 %v3163, 96
  %v3528 = vpop.permute.xlu0 %3527
  %3529 = vrot.lane.b32.xlu0 %v3165, 96
  %v3530 = vpop.permute.xlu0 %3529
  %3531 = vrot.lane.b32.xlu0 %v3168, 96
  %v3532 = vpop.permute.xlu0 %3531
  %3533 = vrot.lane.b32.xlu0 %v3170, 96
  %v3534 = vpop.permute.xlu0 %3533
  %3535 = vrot.lane.b32.xlu0 %v3173, 96
  %v3536 = vpop.permute.xlu0 %3535
  %3537 = vrot.lane.b32.xlu0 %v3175, 96
  %v3538 = vpop.permute.xlu0 %3537
  %3539 = vrot.lane.b32.xlu0 %v3178, 96
  %v3540 = vpop.permute.xlu0 %3539
  %3541 = vrot.lane.b32.xlu0 %v3180, 96
  %v3542 = vpop.permute.xlu0 %3541
  %3543 = vrot.lane.b32.xlu0 %v3183, 96
  %v3544 = vpop.permute.xlu0 %3543
  %3545 = vrot.lane.b32.xlu0 %v3185, 96
  %v3546 = vpop.permute.xlu0 %3545
  %3547 = vrot.lane.b32.xlu0 %v3188, 96
  %v3548 = vpop.permute.xlu0 %3547
  %3549 = vrot.lane.b32.xlu0 %v3190, 96
  %v3550 = vpop.permute.xlu0 %3549
  %3551 = vrot.lane.b32.xlu0 %v3193, 96
  %v3552 = vpop.permute.xlu0 %3551
  %3553 = vrot.lane.b32.xlu0 %v3195, 96
  %v3554 = vpop.permute.xlu0 %3553
  %3555 = vrot.lane.b32.xlu0 %v3198, 96
  %v3556 = vpop.permute.xlu0 %3555
  %3557 = vrot.lane.b32.xlu0 %v3200, 96
  %v3558 = vpop.permute.xlu0 %3557
  %3559 = vrot.lane.b32.xlu0 %v3203, 96
  %v3560 = vpop.permute.xlu0 %3559
  %3561 = vrot.lane.b32.xlu0 %v3205, 96
  %v3562 = vpop.permute.xlu0 %3561
  %3563 = vrot.lane.b32.xlu0 %v3208, 96
  %v3564 = vpop.permute.xlu0 %3563
  %3565 = vrot.lane.b32.xlu0 %v3210, 96
  %v3566 = vpop.permute.xlu0 %3565
  %3567 = vrot.lane.b32.xlu0 %v3213, 96
  %v3568 = vpop.permute.xlu0 %3567
  %3569 = vrot.lane.b32.xlu0 %v3215, 96
  %v3570 = vpop.permute.xlu0 %3569
  %3571 = vrot.lane.b32.xlu0 %v3218, 96
  %v3572 = vpop.permute.xlu0 %3571
  %3573 = vrot.lane.b32.xlu0 %v3220, 96
  %v3574 = vpop.permute.xlu0 %3573
  %3575 = vrot.lane.b32.xlu0 %v3223, 96
  %v3576 = vpop.permute.xlu0 %3575
  %3577 = vrot.lane.b32.xlu0 %v3225, 96
  %v3578 = vpop.permute.xlu0 %3577
  %v3611 = vsel %vm380, %v1110, %v3260
  %v3612 = vsel %vm380, %v1112, %v3262
  %v3613 = vsel %vm380, %v1115, %v3264
  %v3614 = vsel %vm380, %v1117, %v3266
  %v3615 = vsel %vm380, %v1120, %v3268
  %v3616 = vsel %vm380, %v1122, %v3270
  %v3617 = vsel %vm380, %v1125, %v3272
  %v3618 = vsel %vm380, %v1127, %v3274
  %v3619 = vsel %vm380, %v1130, %v3276
  %v3620 = vsel %vm380, %v1132, %v3278
  %v3621 = vsel %vm380, %v1135, %v3280
  %v3622 = vsel %vm380, %v1137, %v3282
  %v3623 = vsel %vm380, %v1140, %v3284
  %v3624 = vsel %vm380, %v1142, %v3286
  %v3625 = vsel %vm380, %v1145, %v3288
  %v3626 = vsel %vm380, %v1147, %v3290
  %v3627 = vsel %vm380, %v1150, %v3292
  %v3628 = vsel %vm380, %v1152, %v3294
  %v3629 = vsel %vm380, %v1155, %v3296
  %v3630 = vsel %vm380, %v1157, %v3298
  %v3631 = vsel %vm380, %v1160, %v3300
  %v3632 = vsel %vm380, %v1162, %v3302
  %v3633 = vsel %vm380, %v1165, %v3304
  %v3634 = vsel %vm380, %v1167, %v3306
  %v3635 = vsel %vm380, %v1170, %v3308
  %v3636 = vsel %vm380, %v1172, %v3310
  %v3637 = vsel %vm380, %v1175, %v3312
  %v3638 = vsel %vm380, %v1177, %v3314
  %v3639 = vsel %vm380, %v1180, %v3316
  %v3640 = vsel %vm380, %v1182, %v3318
  %v3641 = vsel %vm380, %v1185, %v3320
  %v3642 = vsel %vm380, %v1187, %v3322
  %v3643 = vsel %vm683, %v3611, %v3388
  %v3644 = vsel %vm683, %v3612, %v3390
  %v3645 = vsel %vm683, %v3613, %v3392
  %v3646 = vsel %vm683, %v3614, %v3394
  %v3647 = vsel %vm683, %v3615, %v3396
  %v3648 = vsel %vm683, %v3616, %v3398
  %v3649 = vsel %vm683, %v3617, %v3400
  %v3650 = vsel %vm683, %v3618, %v3402
  %v3651 = vsel %vm683, %v3619, %v3404
  %v3652 = vsel %vm683, %v3620, %v3406
  %v3653 = vsel %vm683, %v3621, %v3408
  %v3654 = vsel %vm683, %v3622, %v3410
  %v3655 = vsel %vm683, %v3623, %v3412
  %v3656 = vsel %vm683, %v3624, %v3414
  %v3657 = vsel %vm683, %v3625, %v3416
  %v3658 = vsel %vm683, %v3626, %v3418
  %v3659 = vsel %vm683, %v3627, %v3420
  %v3660 = vsel %vm683, %v3628, %v3422
  %v3661 = vsel %vm683, %v3629, %v3424
  %v3662 = vsel %vm683, %v3630, %v3426
  %v3663 = vsel %vm683, %v3631, %v3428
  %v3664 = vsel %vm683, %v3632, %v3430
  %v3665 = vsel %vm683, %v3633, %v3432
  %v3666 = vsel %vm683, %v3634, %v3434
  %v3667 = vsel %vm683, %v3635, %v3436
  %v3668 = vsel %vm683, %v3636, %v3438
  %v3669 = vsel %vm683, %v3637, %v3440
  %v3670 = vsel %vm683, %v3638, %v3442
  %v3671 = vsel %vm683, %v3639, %v3444
  %v3672 = vsel %vm683, %v3640, %v3446
  %v3673 = vsel %vm683, %v3641, %v3448
  %v3674 = vsel %vm683, %v3642, %v3450
  %vm3675 = vcmask 785408
  %v3676 = vsel %vm3675, %v3643, %v3516
  %v3677 = vsel %vm3675, %v3644, %v3518
  %v3678 = vsel %vm3675, %v3645, %v3520
  %v3679 = vsel %vm3675, %v3646, %v3522
  %v3680 = vsel %vm3675, %v3647, %v3524
  %v3681 = vsel %vm3675, %v3648, %v3526
  %v3682 = vsel %vm3675, %v3649, %v3528
  %v3683 = vsel %vm3675, %v3650, %v3530
  %v3684 = vsel %vm3675, %v3651, %v3532
  %v3685 = vsel %vm3675, %v3652, %v3534
  %v3686 = vsel %vm3675, %v3653, %v3536
  %v3687 = vsel %vm3675, %v3654, %v3538
  %v3688 = vsel %vm3675, %v3655, %v3540
  %v3689 = vsel %vm3675, %v3656, %v3542
  %v3690 = vsel %vm3675, %v3657, %v3544
  %v3691 = vsel %vm3675, %v3658, %v3546
  %v3692 = vsel %vm3675, %v3659, %v3548
  %v3693 = vsel %vm3675, %v3660, %v3550
  %v3694 = vsel %vm3675, %v3661, %v3552
  %v3695 = vsel %vm3675, %v3662, %v3554
  %v3696 = vsel %vm3675, %v3663, %v3556
  %v3697 = vsel %vm3675, %v3664, %v3558
  %v3698 = vsel %vm3675, %v3665, %v3560
  %v3699 = vsel %vm3675, %v3666, %v3562
  %v3700 = vsel %vm3675, %v3667, %v3564
  %v3701 = vsel %vm3675, %v3668, %v3566
  %v3702 = vsel %vm3675, %v3669, %v3568
  %v3703 = vsel %vm3675, %v3670, %v3570
  %v3704 = vsel %vm3675, %v3671, %v3572
  %v3705 = vsel %vm3675, %v3672, %v3574
  %v3706 = vsel %vm3675, %v3673, %v3576
  %v3707 = vsel %vm3675, %v3674, %v3578
  %v3708 = vpack.c.bf16 %v3677, %v3676
  %v3709 = vpack.c.bf16 %v3679, %v3678
  %v3710 = vpack.c.bf16 %v3681, %v3680
  %v3711 = vpack.c.bf16 %v3683, %v3682
  %v3712 = vpack.c.bf16 %v3685, %v3684
  %v3713 = vpack.c.bf16 %v3687, %v3686
  %v3714 = vpack.c.bf16 %v3689, %v3688
  %v3715 = vpack.c.bf16 %v3691, %v3690
  %v3716 = vpack.c.bf16 %v3693, %v3692
  %v3717 = vpack.c.bf16 %v3695, %v3694
  %v3718 = vpack.c.bf16 %v3697, %v3696
  %v3719 = vpack.c.bf16 %v3699, %v3698
  %v3720 = vpack.c.bf16 %v3701, %v3700
  %v3721 = vpack.c.bf16 %v3703, %v3702
  %v3722 = vpack.c.bf16 %v3705, %v3704
  %v3723 = vpack.c.bf16 %v3707, %v3706
  %v3740 = vunpack.c.l.b16 %v102
  %v3741 = vunpack.c.l.b16 %v103
  %v3742 = vunpack.c.l.b16 %v104
  %v3743 = vunpack.c.l.b16 %v105
  %v3744 = vunpack.c.l.b16 %v106
  %v3745 = vunpack.c.l.b16 %v107
  %v3746 = vunpack.c.l.b16 %v108
  %v3747 = vunpack.c.l.b16 %v109
  %v3748 = vunpack.c.l.b16 %v110
  %v3749 = vunpack.c.l.b16 %v111
  %v3750 = vunpack.c.l.b16 %v112
  %v3751 = vunpack.c.l.b16 %v113
  %v3752 = vunpack.c.l.b16 %v114
  %v3753 = vunpack.c.l.b16 %v115
  %v3754 = vunpack.c.l.b16 %v116
  %v3755 = vunpack.c.l.b16 %v117
  %v3756 = vpack.c.b16 %v3741, %v3740
  %v3757 = vpack.c.b16 %v3743, %v3742
  %v3758 = vpack.c.b16 %v3745, %v3744
  %v3759 = vpack.c.b16 %v3747, %v3746
  %v3760 = vpack.c.b16 %v3749, %v3748
  %v3761 = vpack.c.b16 %v3751, %v3750
  %v3762 = vpack.c.b16 %v3753, %v3752
  %v3763 = vpack.c.b16 %v3755, %v3754
  %3772 = vmatpush.bf16.msra.mxu0 %v3763
  %3773 = vmatpush.bf16.msra.mxu0 %v3762
  %3774 = vmatpush.bf16.msra.mxu0 %v3761
  %3775 = vmatpush.bf16.msra.mxu0 %v3760
  %3776 = vmatpush.bf16.msra.mxu0 %v3759
  %3777 = vmatpush.bf16.msra.mxu0 %v3758
  %3778 = vmatpush.bf16.msra.mxu0 %v3757
  %3779 = vmatpush.bf16.msra.mxu0 %v3756
  %3780 = vmatmul.bf16.gmra.mxu0 %v3708
  %v3781 = vpop.f32.mrf.mxu0
  %v3782 = vadd.f32 0.0, %v3781
  %v3783 = vpop.f32.mrf.mxu0
  %v3784 = vadd.f32 0.0, %v3783
  %3785 = vmatmul.bf16.gmra.mxu0 %v3709
  %v3786 = vpop.f32.mrf.mxu0
  %v3787 = vadd.f32 0.0, %v3786
  %v3788 = vpop.f32.mrf.mxu0
  %v3789 = vadd.f32 0.0, %v3788
  %3790 = vmatmul.bf16.gmra.mxu0 %v3710
  %v3791 = vpop.f32.mrf.mxu0
  %v3792 = vadd.f32 0.0, %v3791
  %v3793 = vpop.f32.mrf.mxu0
  %v3794 = vadd.f32 0.0, %v3793
  %3795 = vmatmul.bf16.gmra.mxu0 %v3711
  %v3796 = vpop.f32.mrf.mxu0
  %v3797 = vadd.f32 0.0, %v3796
  %v3798 = vpop.f32.mrf.mxu0
  %v3799 = vadd.f32 0.0, %v3798
  %3800 = vmatmul.bf16.gmra.mxu0 %v3712
  %v3801 = vpop.f32.mrf.mxu0
  %v3802 = vadd.f32 0.0, %v3801
  %v3803 = vpop.f32.mrf.mxu0
  %v3804 = vadd.f32 0.0, %v3803
  %3805 = vmatmul.bf16.gmra.mxu0 %v3713
  %v3806 = vpop.f32.mrf.mxu0
  %v3807 = vadd.f32 0.0, %v3806
  %v3808 = vpop.f32.mrf.mxu0
  %v3809 = vadd.f32 0.0, %v3808
  %3810 = vmatmul.bf16.gmra.mxu0 %v3714
  %v3811 = vpop.f32.mrf.mxu0
  %v3812 = vadd.f32 0.0, %v3811
  %v3813 = vpop.f32.mrf.mxu0
  %v3814 = vadd.f32 0.0, %v3813
  %3815 = vmatmul.bf16.gmra.mxu0 %v3715
  %v3816 = vpop.f32.mrf.mxu0
  %v3817 = vadd.f32 0.0, %v3816
  %v3818 = vpop.f32.mrf.mxu0
  %v3819 = vadd.f32 0.0, %v3818
  %3820 = vmatmul.bf16.gmra.mxu0 %v3716
  %v3821 = vpop.f32.mrf.mxu0
  %v3822 = vadd.f32 0.0, %v3821
  %v3823 = vpop.f32.mrf.mxu0
  %v3824 = vadd.f32 0.0, %v3823
  %3825 = vmatmul.bf16.gmra.mxu0 %v3717
  %v3826 = vpop.f32.mrf.mxu0
  %v3827 = vadd.f32 0.0, %v3826
  %v3828 = vpop.f32.mrf.mxu0
  %v3829 = vadd.f32 0.0, %v3828
  %3830 = vmatmul.bf16.gmra.mxu0 %v3718
  %v3831 = vpop.f32.mrf.mxu0
  %v3832 = vadd.f32 0.0, %v3831
  %v3833 = vpop.f32.mrf.mxu0
  %v3834 = vadd.f32 0.0, %v3833
  %3835 = vmatmul.bf16.gmra.mxu0 %v3719
  %v3836 = vpop.f32.mrf.mxu0
  %v3837 = vadd.f32 0.0, %v3836
  %v3838 = vpop.f32.mrf.mxu0
  %v3839 = vadd.f32 0.0, %v3838
  %3840 = vmatmul.bf16.gmra.mxu0 %v3720
  %v3841 = vpop.f32.mrf.mxu0
  %v3842 = vadd.f32 0.0, %v3841
  %v3843 = vpop.f32.mrf.mxu0
  %v3844 = vadd.f32 0.0, %v3843
  %3845 = vmatmul.bf16.gmra.mxu0 %v3721
  %v3846 = vpop.f32.mrf.mxu0
  %v3847 = vadd.f32 0.0, %v3846
  %v3848 = vpop.f32.mrf.mxu0
  %v3849 = vadd.f32 0.0, %v3848
  %3850 = vmatmul.bf16.gmra.mxu0 %v3722
  %v3851 = vpop.f32.mrf.mxu0
  %v3852 = vadd.f32 0.0, %v3851
  %v3853 = vpop.f32.mrf.mxu0
  %v3854 = vadd.f32 0.0, %v3853
  %3855 = vmatmul.bf16.gmra.mxu0 %v3723
  %v3856 = vpop.f32.mrf.mxu0
  %v3857 = vadd.f32 0.0, %v3856
  %v3858 = vpop.f32.mrf.mxu0
  %v3859 = vadd.f32 0.0, %v3858
  %3860 = vdwg.mxu0
  %v3861 = vpack.c.bf16 %v3784, %v3782
  %v3862 = vpack.c.bf16 %v3789, %v3787
  %v3863 = vpack.c.bf16 %v3794, %v3792
  %v3864 = vpack.c.bf16 %v3799, %v3797
  %v3865 = vpack.c.bf16 %v3804, %v3802
  %v3866 = vpack.c.bf16 %v3809, %v3807
  %v3867 = vpack.c.bf16 %v3814, %v3812
  %v3868 = vpack.c.bf16 %v3819, %v3817
  %v3869 = vpack.c.bf16 %v3824, %v3822
  %v3870 = vpack.c.bf16 %v3829, %v3827
  %v3871 = vpack.c.bf16 %v3834, %v3832
  %v3872 = vpack.c.bf16 %v3839, %v3837
  %v3873 = vpack.c.bf16 %v3844, %v3842
  %v3874 = vpack.c.bf16 %v3849, %v3847
  %v3875 = vpack.c.bf16 %v3854, %v3852
  %v3876 = vpack.c.bf16 %v3859, %v3857
  %v3893 = vunpack.c.l.b16 %v118
  %v3894 = vunpack.c.l.b16 %v119
  %v3895 = vunpack.c.l.b16 %v120
  %v3896 = vunpack.c.l.b16 %v121
  %v3897 = vunpack.c.l.b16 %v122
  %v3898 = vunpack.c.l.b16 %v123
  %v3899 = vunpack.c.l.b16 %v124
  %v3900 = vunpack.c.l.b16 %v125
  %v3901 = vunpack.c.l.b16 %v126
  %v3902 = vunpack.c.l.b16 %v127
  %v3903 = vunpack.c.l.b16 %v128
  %v3904 = vunpack.c.l.b16 %v129
  %v3905 = vunpack.c.l.b16 %v130
  %v3906 = vunpack.c.l.b16 %v131
  %v3907 = vunpack.c.l.b16 %v132
  %v3908 = vunpack.c.l.b16 %v133
  %v3909 = vpack.c.b16 %v3894, %v3893
  %v3910 = vpack.c.b16 %v3896, %v3895
  %v3911 = vpack.c.b16 %v3898, %v3897
  %v3912 = vpack.c.b16 %v3900, %v3899
  %v3913 = vpack.c.b16 %v3902, %v3901
  %v3914 = vpack.c.b16 %v3904, %v3903
  %v3915 = vpack.c.b16 %v3906, %v3905
  %v3916 = vpack.c.b16 %v3908, %v3907
  %3925 = vmatpush.bf16.msra.mxu0 %v3916
  %3926 = vmatpush.bf16.msra.mxu0 %v3915
  %3927 = vmatpush.bf16.msra.mxu0 %v3914
  %3928 = vmatpush.bf16.msra.mxu0 %v3913
  %3929 = vmatpush.bf16.msra.mxu0 %v3912
  %3930 = vmatpush.bf16.msra.mxu0 %v3911
  %3931 = vmatpush.bf16.msra.mxu0 %v3910
  %3932 = vmatpush.bf16.msra.mxu0 %v3909
  %3933 = vmatmul.bf16.gmra.mxu0 %v3861
  %v3934 = vpop.f32.mrf.mxu0
  %v3935 = vadd.f32 0.0, %v3934
  %v3936 = vpop.f32.mrf.mxu0
  %v3937 = vadd.f32 0.0, %v3936
  %3938 = vmatmul.bf16.gmra.mxu0 %v3862
  %v3939 = vpop.f32.mrf.mxu0
  %v3940 = vadd.f32 0.0, %v3939
  %v3941 = vpop.f32.mrf.mxu0
  %v3942 = vadd.f32 0.0, %v3941
  %3943 = vmatmul.bf16.gmra.mxu0 %v3863
  %v3944 = vpop.f32.mrf.mxu0
  %v3945 = vadd.f32 0.0, %v3944
  %v3946 = vpop.f32.mrf.mxu0
  %v3947 = vadd.f32 0.0, %v3946
  %3948 = vmatmul.bf16.gmra.mxu0 %v3864
  %v3949 = vpop.f32.mrf.mxu0
  %v3950 = vadd.f32 0.0, %v3949
  %v3951 = vpop.f32.mrf.mxu0
  %v3952 = vadd.f32 0.0, %v3951
  %3953 = vmatmul.bf16.gmra.mxu0 %v3865
  %v3954 = vpop.f32.mrf.mxu0
  %v3955 = vadd.f32 0.0, %v3954
  %v3956 = vpop.f32.mrf.mxu0
  %v3957 = vadd.f32 0.0, %v3956
  %3958 = vmatmul.bf16.gmra.mxu0 %v3866
  %v3959 = vpop.f32.mrf.mxu0
  %v3960 = vadd.f32 0.0, %v3959
  %v3961 = vpop.f32.mrf.mxu0
  %v3962 = vadd.f32 0.0, %v3961
  %3963 = vmatmul.bf16.gmra.mxu0 %v3867
  %v3964 = vpop.f32.mrf.mxu0
  %v3965 = vadd.f32 0.0, %v3964
  %v3966 = vpop.f32.mrf.mxu0
  %v3967 = vadd.f32 0.0, %v3966
  %3968 = vmatmul.bf16.gmra.mxu0 %v3868
  %v3969 = vpop.f32.mrf.mxu0
  %v3970 = vadd.f32 0.0, %v3969
  %v3971 = vpop.f32.mrf.mxu0
  %v3972 = vadd.f32 0.0, %v3971
  %3973 = vmatmul.bf16.gmra.mxu0 %v3869
  %v3974 = vpop.f32.mrf.mxu0
  %v3975 = vadd.f32 0.0, %v3974
  %v3976 = vpop.f32.mrf.mxu0
  %v3977 = vadd.f32 0.0, %v3976
  %3978 = vmatmul.bf16.gmra.mxu0 %v3870
  %v3979 = vpop.f32.mrf.mxu0
  %v3980 = vadd.f32 0.0, %v3979
  %v3981 = vpop.f32.mrf.mxu0
  %v3982 = vadd.f32 0.0, %v3981
  %3983 = vmatmul.bf16.gmra.mxu0 %v3871
  %v3984 = vpop.f32.mrf.mxu0
  %v3985 = vadd.f32 0.0, %v3984
  %v3986 = vpop.f32.mrf.mxu0
  %v3987 = vadd.f32 0.0, %v3986
  %3988 = vmatmul.bf16.gmra.mxu0 %v3872
  %v3989 = vpop.f32.mrf.mxu0
  %v3990 = vadd.f32 0.0, %v3989
  %v3991 = vpop.f32.mrf.mxu0
  %v3992 = vadd.f32 0.0, %v3991
  %3993 = vmatmul.bf16.gmra.mxu0 %v3873
  %v3994 = vpop.f32.mrf.mxu0
  %v3995 = vadd.f32 0.0, %v3994
  %v3996 = vpop.f32.mrf.mxu0
  %v3997 = vadd.f32 0.0, %v3996
  %3998 = vmatmul.bf16.gmra.mxu0 %v3874
  %v3999 = vpop.f32.mrf.mxu0
  %v4000 = vadd.f32 0.0, %v3999
  %v4001 = vpop.f32.mrf.mxu0
  %v4002 = vadd.f32 0.0, %v4001
  %4003 = vmatmul.bf16.gmra.mxu0 %v3875
  %v4004 = vpop.f32.mrf.mxu0
  %v4005 = vadd.f32 0.0, %v4004
  %v4006 = vpop.f32.mrf.mxu0
  %v4007 = vadd.f32 0.0, %v4006
  %4008 = vmatmul.bf16.gmra.mxu0 %v3876
  %v4009 = vpop.f32.mrf.mxu0
  %v4010 = vadd.f32 0.0, %v4009
  %v4011 = vpop.f32.mrf.mxu0
  %v4012 = vadd.f32 0.0, %v4011
  %4013 = vdwg.mxu0
  %vm4014 = vcmask 31744
  %v4015 = vsel %vm4014, %v3935, -inf
  %4016 = vmax.xlane.f32.xlu0 %v4015
  %v4017 = vpop.xlane.xlu0 %4016
  %v4018 = vsel %vm4014, %v3937, -inf
  %4019 = vmax.xlane.f32.xlu0 %v4018
  %v4020 = vpop.xlane.xlu0 %4019
  %v4021 = vsel %vm4014, %v3940, -inf
  %4022 = vmax.xlane.f32.xlu0 %v4021
  %v4023 = vpop.xlane.xlu0 %4022
  %v4024 = vsel %vm4014, %v3942, -inf
  %4025 = vmax.xlane.f32.xlu0 %v4024
  %v4026 = vpop.xlane.xlu0 %4025
  %v4027 = vsel %vm4014, %v3945, -inf
  %4028 = vmax.xlane.f32.xlu0 %v4027
  %v4029 = vpop.xlane.xlu0 %4028
  %v4030 = vsel %vm4014, %v3947, -inf
  %4031 = vmax.xlane.f32.xlu0 %v4030
  %v4032 = vpop.xlane.xlu0 %4031
  %v4033 = vsel %vm4014, %v3950, -inf
  %4034 = vmax.xlane.f32.xlu0 %v4033
  %v4035 = vpop.xlane.xlu0 %4034
  %v4036 = vsel %vm4014, %v3952, -inf
  %4037 = vmax.xlane.f32.xlu0 %v4036
  %v4038 = vpop.xlane.xlu0 %4037
  %v4039 = vsel %vm4014, %v3955, -inf
  %4040 = vmax.xlane.f32.xlu0 %v4039
  %v4041 = vpop.xlane.xlu0 %4040
  %v4042 = vsel %vm4014, %v3957, -inf
  %4043 = vmax.xlane.f32.xlu0 %v4042
  %v4044 = vpop.xlane.xlu0 %4043
  %v4045 = vsel %vm4014, %v3960, -inf
  %4046 = vmax.xlane.f32.xlu0 %v4045
  %v4047 = vpop.xlane.xlu0 %4046
  %v4048 = vsel %vm4014, %v3962, -inf
  %4049 = vmax.xlane.f32.xlu0 %v4048
  %v4050 = vpop.xlane.xlu0 %4049
  %v4051 = vsel %vm4014, %v3965, -inf
  %4052 = vmax.xlane.f32.xlu0 %v4051
  %v4053 = vpop.xlane.xlu0 %4052
  %v4054 = vsel %vm4014, %v3967, -inf
  %4055 = vmax.xlane.f32.xlu0 %v4054
  %v4056 = vpop.xlane.xlu0 %4055
  %v4057 = vsel %vm4014, %v3970, -inf
  %4058 = vmax.xlane.f32.xlu0 %v4057
  %v4059 = vpop.xlane.xlu0 %4058
  %v4060 = vsel %vm4014, %v3972, -inf
  %4061 = vmax.xlane.f32.xlu0 %v4060
  %v4062 = vpop.xlane.xlu0 %4061
  %v4063 = vsel %vm4014, %v3975, -inf
  %4064 = vmax.xlane.f32.xlu0 %v4063
  %v4065 = vpop.xlane.xlu0 %4064
  %v4066 = vsel %vm4014, %v3977, -inf
  %4067 = vmax.xlane.f32.xlu0 %v4066
  %v4068 = vpop.xlane.xlu0 %4067
  %v4069 = vsel %vm4014, %v3980, -inf
  %4070 = vmax.xlane.f32.xlu0 %v4069
  %v4071 = vpop.xlane.xlu0 %4070
  %v4072 = vsel %vm4014, %v3982, -inf
  %4073 = vmax.xlane.f32.xlu0 %v4072
  %v4074 = vpop.xlane.xlu0 %4073
  %v4075 = vsel %vm4014, %v3985, -inf
  %4076 = vmax.xlane.f32.xlu0 %v4075
  %v4077 = vpop.xlane.xlu0 %4076
  %v4078 = vsel %vm4014, %v3987, -inf
  %4079 = vmax.xlane.f32.xlu0 %v4078
  %v4080 = vpop.xlane.xlu0 %4079
  %v4081 = vsel %vm4014, %v3990, -inf
  %4082 = vmax.xlane.f32.xlu0 %v4081
  %v4083 = vpop.xlane.xlu0 %4082
  %v4084 = vsel %vm4014, %v3992, -inf
  %4085 = vmax.xlane.f32.xlu0 %v4084
  %v4086 = vpop.xlane.xlu0 %4085
  %v4087 = vsel %vm4014, %v3995, -inf
  %4088 = vmax.xlane.f32.xlu0 %v4087
  %v4089 = vpop.xlane.xlu0 %4088
  %v4090 = vsel %vm4014, %v3997, -inf
  %4091 = vmax.xlane.f32.xlu0 %v4090
  %v4092 = vpop.xlane.xlu0 %4091
  %v4093 = vsel %vm4014, %v4000, -inf
  %4094 = vmax.xlane.f32.xlu0 %v4093
  %v4095 = vpop.xlane.xlu0 %4094
  %v4096 = vsel %vm4014, %v4002, -inf
  %4097 = vmax.xlane.f32.xlu0 %v4096
  %v4098 = vpop.xlane.xlu0 %4097
  %v4099 = vsel %vm4014, %v4005, -inf
  %4100 = vmax.xlane.f32.xlu0 %v4099
  %v4101 = vpop.xlane.xlu0 %4100
  %v4102 = vsel %vm4014, %v4007, -inf
  %4103 = vmax.xlane.f32.xlu0 %v4102
  %v4104 = vpop.xlane.xlu0 %4103
  %v4105 = vsel %vm4014, %v4010, -inf
  %4106 = vmax.xlane.f32.xlu0 %v4105
  %v4107 = vpop.xlane.xlu0 %4106
  %v4108 = vsel %vm4014, %v4012, -inf
  %4109 = vmax.xlane.f32.xlu0 %v4108
  %v4110 = vpop.xlane.xlu0 %4109
  %v4111 = vsub.f32 %v3935, %v4017
  %v4112 = vsub.f32 %v3937, %v4020
  %v4113 = vsub.f32 %v3940, %v4023
  %v4114 = vsub.f32 %v3942, %v4026
  %v4115 = vsub.f32 %v3945, %v4029
  %v4116 = vsub.f32 %v3947, %v4032
  %v4117 = vsub.f32 %v3950, %v4035
  %v4118 = vsub.f32 %v3952, %v4038
  %v4119 = vsub.f32 %v3955, %v4041
  %v4120 = vsub.f32 %v3957, %v4044
  %v4121 = vsub.f32 %v3960, %v4047
  %v4122 = vsub.f32 %v3962, %v4050
  %v4123 = vsub.f32 %v3965, %v4053
  %v4124 = vsub.f32 %v3967, %v4056
  %v4125 = vsub.f32 %v3970, %v4059
  %v4126 = vsub.f32 %v3972, %v4062
  %v4127 = vsub.f32 %v3975, %v4065
  %v4128 = vsub.f32 %v3977, %v4068
  %v4129 = vsub.f32 %v3980, %v4071
  %v4130 = vsub.f32 %v3982, %v4074
  %v4131 = vsub.f32 %v3985, %v4077
  %v4132 = vsub.f32 %v3987, %v4080
  %v4133 = vsub.f32 %v3990, %v4083
  %v4134 = vsub.f32 %v3992, %v4086
  %v4135 = vsub.f32 %v3995, %v4089
  %v4136 = vsub.f32 %v3997, %v4092
  %v4137 = vsub.f32 %v4000, %v4095
  %v4138 = vsub.f32 %v4002, %v4098
  %v4139 = vsub.f32 %v4005, %v4101
  %v4140 = vsub.f32 %v4007, %v4104
  %v4141 = vsub.f32 %v4010, %v4107
  %v4142 = vsub.f32 %v4012, %v4110
  %v4143 = vmul.f32 %v4111, 1.442695
  %v4144 = vpow.pop %v4143
  %v4145 = vmul.f32 %v4112, 1.442695
  %v4146 = vpow.pop %v4145
  %v4147 = vmul.f32 %v4113, 1.442695
  %v4148 = vpow.pop %v4147
  %v4149 = vmul.f32 %v4114, 1.442695
  %v4150 = vpow.pop %v4149
  %v4151 = vmul.f32 %v4115, 1.442695
  %v4152 = vpow.pop %v4151
  %v4153 = vmul.f32 %v4116, 1.442695
  %v4154 = vpow.pop %v4153
  %v4155 = vmul.f32 %v4117, 1.442695
  %v4156 = vpow.pop %v4155
  %v4157 = vmul.f32 %v4118, 1.442695
  %v4158 = vpow.pop %v4157
  %v4159 = vmul.f32 %v4119, 1.442695
  %v4160 = vpow.pop %v4159
  %v4161 = vmul.f32 %v4120, 1.442695
  %v4162 = vpow.pop %v4161
  %v4163 = vmul.f32 %v4121, 1.442695
  %v4164 = vpow.pop %v4163
  %v4165 = vmul.f32 %v4122, 1.442695
  %v4166 = vpow.pop %v4165
  %v4167 = vmul.f32 %v4123, 1.442695
  %v4168 = vpow.pop %v4167
  %v4169 = vmul.f32 %v4124, 1.442695
  %v4170 = vpow.pop %v4169
  %v4171 = vmul.f32 %v4125, 1.442695
  %v4172 = vpow.pop %v4171
  %v4173 = vmul.f32 %v4126, 1.442695
  %v4174 = vpow.pop %v4173
  %v4175 = vmul.f32 %v4127, 1.442695
  %v4176 = vpow.pop %v4175
  %v4177 = vmul.f32 %v4128, 1.442695
  %v4178 = vpow.pop %v4177
  %v4179 = vmul.f32 %v4129, 1.442695
  %v4180 = vpow.pop %v4179
  %v4181 = vmul.f32 %v4130, 1.442695
  %v4182 = vpow.pop %v4181
  %v4183 = vmul.f32 %v4131, 1.442695
  %v4184 = vpow.pop %v4183
  %v4185 = vmul.f32 %v4132, 1.442695
  %v4186 = vpow.pop %v4185
  %v4187 = vmul.f32 %v4133, 1.442695
  %v4188 = vpow.pop %v4187
  %v4189 = vmul.f32 %v4134, 1.442695
  %v4190 = vpow.pop %v4189
  %v4191 = vmul.f32 %v4135, 1.442695
  %v4192 = vpow.pop %v4191
  %v4193 = vmul.f32 %v4136, 1.442695
  %v4194 = vpow.pop %v4193
  %v4195 = vmul.f32 %v4137, 1.442695
  %v4196 = vpow.pop %v4195
  %v4197 = vmul.f32 %v4138, 1.442695
  %v4198 = vpow.pop %v4197
  %v4199 = vmul.f32 %v4139, 1.442695
  %v4200 = vpow.pop %v4199
  %v4201 = vmul.f32 %v4140, 1.442695
  %v4202 = vpow.pop %v4201
  %v4203 = vmul.f32 %v4141, 1.442695
  %v4204 = vpow.pop %v4203
  %v4205 = vmul.f32 %v4142, 1.442695
  %v4206 = vpow.pop %v4205
  %v4207 = vsel %vm4014, %v4144, 0.0
  %4208 = vadd.xlane.f32.xlu0 %v4207
  %v4209 = vpop.xlane.xlu0 %4208
  %v4210 = vsel %vm4014, %v4146, 0.0
  %4211 = vadd.xlane.f32.xlu0 %v4210
  %v4212 = vpop.xlane.xlu0 %4211
  %v4213 = vsel %vm4014, %v4148, 0.0
  %4214 = vadd.xlane.f32.xlu0 %v4213
  %v4215 = vpop.xlane.xlu0 %4214
  %v4216 = vsel %vm4014, %v4150, 0.0
  %4217 = vadd.xlane.f32.xlu0 %v4216
  %v4218 = vpop.xlane.xlu0 %4217
  %v4219 = vsel %vm4014, %v4152, 0.0
  %4220 = vadd.xlane.f32.xlu0 %v4219
  %v4221 = vpop.xlane.xlu0 %4220
  %v4222 = vsel %vm4014, %v4154, 0.0
  %4223 = vadd.xlane.f32.xlu0 %v4222
  %v4224 = vpop.xlane.xlu0 %4223
  %v4225 = vsel %vm4014, %v4156, 0.0
  %4226 = vadd.xlane.f32.xlu0 %v4225
  %v4227 = vpop.xlane.xlu0 %4226
  %v4228 = vsel %vm4014, %v4158, 0.0
  %4229 = vadd.xlane.f32.xlu0 %v4228
  %v4230 = vpop.xlane.xlu0 %4229
  %v4231 = vsel %vm4014, %v4160, 0.0
  %4232 = vadd.xlane.f32.xlu0 %v4231
  %v4233 = vpop.xlane.xlu0 %4232
  %v4234 = vsel %vm4014, %v4162, 0.0
  %4235 = vadd.xlane.f32.xlu0 %v4234
  %v4236 = vpop.xlane.xlu0 %4235
  %v4237 = vsel %vm4014, %v4164, 0.0
  %4238 = vadd.xlane.f32.xlu0 %v4237
  %v4239 = vpop.xlane.xlu0 %4238
  %v4240 = vsel %vm4014, %v4166, 0.0
  %4241 = vadd.xlane.f32.xlu0 %v4240
  %v4242 = vpop.xlane.xlu0 %4241
  %v4243 = vsel %vm4014, %v4168, 0.0
  %4244 = vadd.xlane.f32.xlu0 %v4243
  %v4245 = vpop.xlane.xlu0 %4244
  %v4246 = vsel %vm4014, %v4170, 0.0
  %4247 = vadd.xlane.f32.xlu0 %v4246
  %v4248 = vpop.xlane.xlu0 %4247
  %v4249 = vsel %vm4014, %v4172, 0.0
  %4250 = vadd.xlane.f32.xlu0 %v4249
  %v4251 = vpop.xlane.xlu0 %4250
  %v4252 = vsel %vm4014, %v4174, 0.0
  %4253 = vadd.xlane.f32.xlu0 %v4252
  %v4254 = vpop.xlane.xlu0 %4253
  %v4255 = vsel %vm4014, %v4176, 0.0
  %4256 = vadd.xlane.f32.xlu0 %v4255
  %v4257 = vpop.xlane.xlu0 %4256
  %v4258 = vsel %vm4014, %v4178, 0.0
  %4259 = vadd.xlane.f32.xlu0 %v4258
  %v4260 = vpop.xlane.xlu0 %4259
  %v4261 = vsel %vm4014, %v4180, 0.0
  %4262 = vadd.xlane.f32.xlu0 %v4261
  %v4263 = vpop.xlane.xlu0 %4262
  %v4264 = vsel %vm4014, %v4182, 0.0
  %4265 = vadd.xlane.f32.xlu0 %v4264
  %v4266 = vpop.xlane.xlu0 %4265
  %v4267 = vsel %vm4014, %v4184, 0.0
  %4268 = vadd.xlane.f32.xlu0 %v4267
  %v4269 = vpop.xlane.xlu0 %4268
  %v4270 = vsel %vm4014, %v4186, 0.0
  %4271 = vadd.xlane.f32.xlu0 %v4270
  %v4272 = vpop.xlane.xlu0 %4271
  %v4273 = vsel %vm4014, %v4188, 0.0
  %4274 = vadd.xlane.f32.xlu0 %v4273
  %v4275 = vpop.xlane.xlu0 %4274
  %v4276 = vsel %vm4014, %v4190, 0.0
  %4277 = vadd.xlane.f32.xlu0 %v4276
  %v4278 = vpop.xlane.xlu0 %4277
  %v4279 = vsel %vm4014, %v4192, 0.0
  %4280 = vadd.xlane.f32.xlu0 %v4279
  %v4281 = vpop.xlane.xlu0 %4280
  %v4282 = vsel %vm4014, %v4194, 0.0
  %4283 = vadd.xlane.f32.xlu0 %v4282
  %v4284 = vpop.xlane.xlu0 %4283
  %v4285 = vsel %vm4014, %v4196, 0.0
  %4286 = vadd.xlane.f32.xlu0 %v4285
  %v4287 = vpop.xlane.xlu0 %4286
  %v4288 = vsel %vm4014, %v4198, 0.0
  %4289 = vadd.xlane.f32.xlu0 %v4288
  %v4290 = vpop.xlane.xlu0 %4289
  %v4291 = vsel %vm4014, %v4200, 0.0
  %4292 = vadd.xlane.f32.xlu0 %v4291
  %v4293 = vpop.xlane.xlu0 %4292
  %v4294 = vsel %vm4014, %v4202, 0.0
  %4295 = vadd.xlane.f32.xlu0 %v4294
  %v4296 = vpop.xlane.xlu0 %4295
  %v4297 = vsel %vm4014, %v4204, 0.0
  %4298 = vadd.xlane.f32.xlu0 %v4297
  %v4299 = vpop.xlane.xlu0 %4298
  %v4300 = vsel %vm4014, %v4206, 0.0
  %4301 = vadd.xlane.f32.xlu0 %v4300
  %v4302 = vpop.xlane.xlu0 %4301
  %4304 = vset.pattern.permute.xlu0 0
  %4305 = vperm.xlu0 %4304, %v4144
  %v4306 = vpop.permute.xlu0 %4305
  %4309 = vset.pattern.permute.xlu0 0
  %4310 = vperm.xlu0 %4309, %v4146
  %v4311 = vpop.permute.xlu0 %4310
  %4314 = vset.pattern.permute.xlu0 0
  %4315 = vperm.xlu0 %4314, %v4148
  %v4316 = vpop.permute.xlu0 %4315
  %4319 = vset.pattern.permute.xlu0 0
  %4320 = vperm.xlu0 %4319, %v4150
  %v4321 = vpop.permute.xlu0 %4320
  %4324 = vset.pattern.permute.xlu0 0
  %4325 = vperm.xlu0 %4324, %v4152
  %v4326 = vpop.permute.xlu0 %4325
  %4329 = vset.pattern.permute.xlu0 0
  %4330 = vperm.xlu0 %4329, %v4154
  %v4331 = vpop.permute.xlu0 %4330
  %4334 = vset.pattern.permute.xlu0 0
  %4335 = vperm.xlu0 %4334, %v4156
  %v4336 = vpop.permute.xlu0 %4335
  %4339 = vset.pattern.permute.xlu0 0
  %4340 = vperm.xlu0 %4339, %v4158
  %v4341 = vpop.permute.xlu0 %4340
  %4344 = vset.pattern.permute.xlu0 0
  %4345 = vperm.xlu0 %4344, %v4160
  %v4346 = vpop.permute.xlu0 %4345
  %4349 = vset.pattern.permute.xlu0 0
  %4350 = vperm.xlu0 %4349, %v4162
  %v4351 = vpop.permute.xlu0 %4350
  %4354 = vset.pattern.permute.xlu0 0
  %4355 = vperm.xlu0 %4354, %v4164
  %v4356 = vpop.permute.xlu0 %4355
  %4359 = vset.pattern.permute.xlu0 0
  %4360 = vperm.xlu0 %4359, %v4166
  %v4361 = vpop.permute.xlu0 %4360
  %4364 = vset.pattern.permute.xlu0 0
  %4365 = vperm.xlu0 %4364, %v4168
  %v4366 = vpop.permute.xlu0 %4365
  %4369 = vset.pattern.permute.xlu0 0
  %4370 = vperm.xlu0 %4369, %v4170
  %v4371 = vpop.permute.xlu0 %4370
  %4374 = vset.pattern.permute.xlu0 0
  %4375 = vperm.xlu0 %4374, %v4172
  %v4376 = vpop.permute.xlu0 %4375
  %4379 = vset.pattern.permute.xlu0 0
  %4380 = vperm.xlu0 %4379, %v4174
  %v4381 = vpop.permute.xlu0 %4380
  %4384 = vset.pattern.permute.xlu0 0
  %4385 = vperm.xlu0 %4384, %v4176
  %v4386 = vpop.permute.xlu0 %4385
  %4389 = vset.pattern.permute.xlu0 0
  %4390 = vperm.xlu0 %4389, %v4178
  %v4391 = vpop.permute.xlu0 %4390
  %4394 = vset.pattern.permute.xlu0 0
  %4395 = vperm.xlu0 %4394, %v4180
  %v4396 = vpop.permute.xlu0 %4395
  %4399 = vset.pattern.permute.xlu0 0
  %4400 = vperm.xlu0 %4399, %v4182
  %v4401 = vpop.permute.xlu0 %4400
  %4404 = vset.pattern.permute.xlu0 0
  %4405 = vperm.xlu0 %4404, %v4184
  %v4406 = vpop.permute.xlu0 %4405
  %4409 = vset.pattern.permute.xlu0 0
  %4410 = vperm.xlu0 %4409, %v4186
  %v4411 = vpop.permute.xlu0 %4410
  %4414 = vset.pattern.permute.xlu0 0
  %4415 = vperm.xlu0 %4414, %v4188
  %v4416 = vpop.permute.xlu0 %4415
  %4419 = vset.pattern.permute.xlu0 0
  %4420 = vperm.xlu0 %4419, %v4190
  %v4421 = vpop.permute.xlu0 %4420
  %4424 = vset.pattern.permute.xlu0 0
  %4425 = vperm.xlu0 %4424, %v4192
  %v4426 = vpop.permute.xlu0 %4425
  %4429 = vset.pattern.permute.xlu0 0
  %4430 = vperm.xlu0 %4429, %v4194
  %v4431 = vpop.permute.xlu0 %4430
  %4434 = vset.pattern.permute.xlu0 0
  %4435 = vperm.xlu0 %4434, %v4196
  %v4436 = vpop.permute.xlu0 %4435
  %4439 = vset.pattern.permute.xlu0 0
  %4440 = vperm.xlu0 %4439, %v4198
  %v4441 = vpop.permute.xlu0 %4440
  %4444 = vset.pattern.permute.xlu0 0
  %4445 = vperm.xlu0 %4444, %v4200
  %v4446 = vpop.permute.xlu0 %4445
  %4449 = vset.pattern.permute.xlu0 0
  %4450 = vperm.xlu0 %4449, %v4202
  %v4451 = vpop.permute.xlu0 %4450
  %4454 = vset.pattern.permute.xlu0 0
  %4455 = vperm.xlu0 %4454, %v4204
  %v4456 = vpop.permute.xlu0 %4455
  %4459 = vset.pattern.permute.xlu0 0
  %4460 = vperm.xlu0 %4459, %v4206
  %v4461 = vpop.permute.xlu0 %4460
  %v4463 = vmul.f32 %v4306, %v3782
  %v4464 = vmul.f32 %v4311, %v3784
  %v4465 = vmul.f32 %v4316, %v3787
  %v4466 = vmul.f32 %v4321, %v3789
  %v4467 = vmul.f32 %v4326, %v3792
  %v4468 = vmul.f32 %v4331, %v3794
  %v4469 = vmul.f32 %v4336, %v3797
  %v4470 = vmul.f32 %v4341, %v3799
  %v4471 = vmul.f32 %v4346, %v3802
  %v4472 = vmul.f32 %v4351, %v3804
  %v4473 = vmul.f32 %v4356, %v3807
  %v4474 = vmul.f32 %v4361, %v3809
  %v4475 = vmul.f32 %v4366, %v3812
  %v4476 = vmul.f32 %v4371, %v3814
  %v4477 = vmul.f32 %v4376, %v3817
  %v4478 = vmul.f32 %v4381, %v3819
  %v4479 = vmul.f32 %v4386, %v3822
  %v4480 = vmul.f32 %v4391, %v3824
  %v4481 = vmul.f32 %v4396, %v3827
  %v4482 = vmul.f32 %v4401, %v3829
  %v4483 = vmul.f32 %v4406, %v3832
  %v4484 = vmul.f32 %v4411, %v3834
  %v4485 = vmul.f32 %v4416, %v3837
  %v4486 = vmul.f32 %v4421, %v3839
  %v4487 = vmul.f32 %v4426, %v3842
  %v4488 = vmul.f32 %v4431, %v3844
  %v4489 = vmul.f32 %v4436, %v3847
  %v4490 = vmul.f32 %v4441, %v3849
  %v4491 = vmul.f32 %v4446, %v3852
  %v4492 = vmul.f32 %v4451, %v3854
  %v4493 = vmul.f32 %v4456, %v3857
  %v4494 = vmul.f32 %v4461, %v3859
  %4495 = vset.pattern.permute.xlu0 1
  %4496 = vperm.xlu0 %4495, %v4144
  %v4497 = vpop.permute.xlu0 %4496
  %4499 = vset.pattern.permute.xlu0 1
  %4500 = vperm.xlu0 %4499, %v4146
  %v4501 = vpop.permute.xlu0 %4500
  %4503 = vset.pattern.permute.xlu0 1
  %4504 = vperm.xlu0 %4503, %v4148
  %v4505 = vpop.permute.xlu0 %4504
  %4507 = vset.pattern.permute.xlu0 1
  %4508 = vperm.xlu0 %4507, %v4150
  %v4509 = vpop.permute.xlu0 %4508
  %4511 = vset.pattern.permute.xlu0 1
  %4512 = vperm.xlu0 %4511, %v4152
  %v4513 = vpop.permute.xlu0 %4512
  %4515 = vset.pattern.permute.xlu0 1
  %4516 = vperm.xlu0 %4515, %v4154
  %v4517 = vpop.permute.xlu0 %4516
  %4519 = vset.pattern.permute.xlu0 1
  %4520 = vperm.xlu0 %4519, %v4156
  %v4521 = vpop.permute.xlu0 %4520
  %4523 = vset.pattern.permute.xlu0 1
  %4524 = vperm.xlu0 %4523, %v4158
  %v4525 = vpop.permute.xlu0 %4524
  %4527 = vset.pattern.permute.xlu0 1
  %4528 = vperm.xlu0 %4527, %v4160
  %v4529 = vpop.permute.xlu0 %4528
  %4531 = vset.pattern.permute.xlu0 1
  %4532 = vperm.xlu0 %4531, %v4162
  %v4533 = vpop.permute.xlu0 %4532
  %4535 = vset.pattern.permute.xlu0 1
  %4536 = vperm.xlu0 %4535, %v4164
  %v4537 = vpop.permute.xlu0 %4536
  %4539 = vset.pattern.permute.xlu0 1
  %4540 = vperm.xlu0 %4539, %v4166
  %v4541 = vpop.permute.xlu0 %4540
  %4543 = vset.pattern.permute.xlu0 1
  %4544 = vperm.xlu0 %4543, %v4168
  %v4545 = vpop.permute.xlu0 %4544
  %4547 = vset.pattern.permute.xlu0 1
  %4548 = vperm.xlu0 %4547, %v4170
  %v4549 = vpop.permute.xlu0 %4548
  %4551 = vset.pattern.permute.xlu0 1
  %4552 = vperm.xlu0 %4551, %v4172
  %v4553 = vpop.permute.xlu0 %4552
  %4555 = vset.pattern.permute.xlu0 1
  %4556 = vperm.xlu0 %4555, %v4174
  %v4557 = vpop.permute.xlu0 %4556
  %4559 = vset.pattern.permute.xlu0 1
  %4560 = vperm.xlu0 %4559, %v4176
  %v4561 = vpop.permute.xlu0 %4560
  %4563 = vset.pattern.permute.xlu0 1
  %4564 = vperm.xlu0 %4563, %v4178
  %v4565 = vpop.permute.xlu0 %4564
  %4567 = vset.pattern.permute.xlu0 1
  %4568 = vperm.xlu0 %4567, %v4180
  %v4569 = vpop.permute.xlu0 %4568
  %4571 = vset.pattern.permute.xlu0 1
  %4572 = vperm.xlu0 %4571, %v4182
  %v4573 = vpop.permute.xlu0 %4572
  %4575 = vset.pattern.permute.xlu0 1
  %4576 = vperm.xlu0 %4575, %v4184
  %v4577 = vpop.permute.xlu0 %4576
  %4579 = vset.pattern.permute.xlu0 1
  %4580 = vperm.xlu0 %4579, %v4186
  %v4581 = vpop.permute.xlu0 %4580
  %4583 = vset.pattern.permute.xlu0 1
  %4584 = vperm.xlu0 %4583, %v4188
  %v4585 = vpop.permute.xlu0 %4584
  %4587 = vset.pattern.permute.xlu0 1
  %4588 = vperm.xlu0 %4587, %v4190
  %v4589 = vpop.permute.xlu0 %4588
  %4591 = vset.pattern.permute.xlu0 1
  %4592 = vperm.xlu0 %4591, %v4192
  %v4593 = vpop.permute.xlu0 %4592
  %4595 = vset.pattern.permute.xlu0 1
  %4596 = vperm.xlu0 %4595, %v4194
  %v4597 = vpop.permute.xlu0 %4596
  %4599 = vset.pattern.permute.xlu0 1
  %4600 = vperm.xlu0 %4599, %v4196
  %v4601 = vpop.permute.xlu0 %4600
  %4603 = vset.pattern.permute.xlu0 1
  %4604 = vperm.xlu0 %4603, %v4198
  %v4605 = vpop.permute.xlu0 %4604
  %4607 = vset.pattern.permute.xlu0 1
  %4608 = vperm.xlu0 %4607, %v4200
  %v4609 = vpop.permute.xlu0 %4608
  %4611 = vset.pattern.permute.xlu0 1
  %4612 = vperm.xlu0 %4611, %v4202
  %v4613 = vpop.permute.xlu0 %4612
  %4615 = vset.pattern.permute.xlu0 1
  %4616 = vperm.xlu0 %4615, %v4204
  %v4617 = vpop.permute.xlu0 %4616
  %4619 = vset.pattern.permute.xlu0 1
  %4620 = vperm.xlu0 %4619, %v4206
  %v4621 = vpop.permute.xlu0 %4620
  %v4623 = vmul.f32 %v4497, %v3782
  %v4624 = vmul.f32 %v4501, %v3784
  %v4625 = vmul.f32 %v4505, %v3787
  %v4626 = vmul.f32 %v4509, %v3789
  %v4627 = vmul.f32 %v4513, %v3792
  %v4628 = vmul.f32 %v4517, %v3794
  %v4629 = vmul.f32 %v4521, %v3797
  %v4630 = vmul.f32 %v4525, %v3799
  %v4631 = vmul.f32 %v4529, %v3802
  %v4632 = vmul.f32 %v4533, %v3804
  %v4633 = vmul.f32 %v4537, %v3807
  %v4634 = vmul.f32 %v4541, %v3809
  %v4635 = vmul.f32 %v4545, %v3812
  %v4636 = vmul.f32 %v4549, %v3814
  %v4637 = vmul.f32 %v4553, %v3817
  %v4638 = vmul.f32 %v4557, %v3819
  %v4639 = vmul.f32 %v4561, %v3822
  %v4640 = vmul.f32 %v4565, %v3824
  %v4641 = vmul.f32 %v4569, %v3827
  %v4642 = vmul.f32 %v4573, %v3829
  %v4643 = vmul.f32 %v4577, %v3832
  %v4644 = vmul.f32 %v4581, %v3834
  %v4645 = vmul.f32 %v4585, %v3837
  %v4646 = vmul.f32 %v4589, %v3839
  %v4647 = vmul.f32 %v4593, %v3842
  %v4648 = vmul.f32 %v4597, %v3844
  %v4649 = vmul.f32 %v4601, %v3847
  %v4650 = vmul.f32 %v4605, %v3849
  %v4651 = vmul.f32 %v4609, %v3852
  %v4652 = vmul.f32 %v4613, %v3854
  %v4653 = vmul.f32 %v4617, %v3857
  %v4654 = vmul.f32 %v4621, %v3859
  %4687 = vrot.lane.b32.xlu0 %v4623, 96
  %v4688 = vpop.permute.xlu0 %4687
  %4689 = vrot.lane.b32.xlu0 %v4624, 96
  %v4690 = vpop.permute.xlu0 %4689
  %4691 = vrot.lane.b32.xlu0 %v4625, 96
  %v4692 = vpop.permute.xlu0 %4691
  %4693 = vrot.lane.b32.xlu0 %v4626, 96
  %v4694 = vpop.permute.xlu0 %4693
  %4695 = vrot.lane.b32.xlu0 %v4627, 96
  %v4696 = vpop.permute.xlu0 %4695
  %4697 = vrot.lane.b32.xlu0 %v4628, 96
  %v4698 = vpop.permute.xlu0 %4697
  %4699 = vrot.lane.b32.xlu0 %v4629, 96
  %v4700 = vpop.permute.xlu0 %4699
  %4701 = vrot.lane.b32.xlu0 %v4630, 96
  %v4702 = vpop.permute.xlu0 %4701
  %4703 = vrot.lane.b32.xlu0 %v4631, 96
  %v4704 = vpop.permute.xlu0 %4703
  %4705 = vrot.lane.b32.xlu0 %v4632, 96
  %v4706 = vpop.permute.xlu0 %4705
  %4707 = vrot.lane.b32.xlu0 %v4633, 96
  %v4708 = vpop.permute.xlu0 %4707
  %4709 = vrot.lane.b32.xlu0 %v4634, 96
  %v4710 = vpop.permute.xlu0 %4709
  %4711 = vrot.lane.b32.xlu0 %v4635, 96
  %v4712 = vpop.permute.xlu0 %4711
  %4713 = vrot.lane.b32.xlu0 %v4636, 96
  %v4714 = vpop.permute.xlu0 %4713
  %4715 = vrot.lane.b32.xlu0 %v4637, 96
  %v4716 = vpop.permute.xlu0 %4715
  %4717 = vrot.lane.b32.xlu0 %v4638, 96
  %v4718 = vpop.permute.xlu0 %4717
  %4719 = vrot.lane.b32.xlu0 %v4639, 96
  %v4720 = vpop.permute.xlu0 %4719
  %4721 = vrot.lane.b32.xlu0 %v4640, 96
  %v4722 = vpop.permute.xlu0 %4721
  %4723 = vrot.lane.b32.xlu0 %v4641, 96
  %v4724 = vpop.permute.xlu0 %4723
  %4725 = vrot.lane.b32.xlu0 %v4642, 96
  %v4726 = vpop.permute.xlu0 %4725
  %4727 = vrot.lane.b32.xlu0 %v4643, 96
  %v4728 = vpop.permute.xlu0 %4727
  %4729 = vrot.lane.b32.xlu0 %v4644, 96
  %v4730 = vpop.permute.xlu0 %4729
  %4731 = vrot.lane.b32.xlu0 %v4645, 96
  %v4732 = vpop.permute.xlu0 %4731
  %4733 = vrot.lane.b32.xlu0 %v4646, 96
  %v4734 = vpop.permute.xlu0 %4733
  %4735 = vrot.lane.b32.xlu0 %v4647, 96
  %v4736 = vpop.permute.xlu0 %4735
  %4737 = vrot.lane.b32.xlu0 %v4648, 96
  %v4738 = vpop.permute.xlu0 %4737
  %4739 = vrot.lane.b32.xlu0 %v4649, 96
  %v4740 = vpop.permute.xlu0 %4739
  %4741 = vrot.lane.b32.xlu0 %v4650, 96
  %v4742 = vpop.permute.xlu0 %4741
  %4743 = vrot.lane.b32.xlu0 %v4651, 96
  %v4744 = vpop.permute.xlu0 %4743
  %4745 = vrot.lane.b32.xlu0 %v4652, 96
  %v4746 = vpop.permute.xlu0 %4745
  %4747 = vrot.lane.b32.xlu0 %v4653, 96
  %v4748 = vpop.permute.xlu0 %4747
  %4749 = vrot.lane.b32.xlu0 %v4654, 96
  %v4750 = vpop.permute.xlu0 %4749
  %v4783 = vadd.f32 %v4463, %v4688
  %v4784 = vadd.f32 %v4464, %v4690
  %v4785 = vadd.f32 %v4465, %v4692
  %v4786 = vadd.f32 %v4466, %v4694
  %v4787 = vadd.f32 %v4467, %v4696
  %v4788 = vadd.f32 %v4468, %v4698
  %v4789 = vadd.f32 %v4469, %v4700
  %v4790 = vadd.f32 %v4470, %v4702
  %v4791 = vadd.f32 %v4471, %v4704
  %v4792 = vadd.f32 %v4472, %v4706
  %v4793 = vadd.f32 %v4473, %v4708
  %v4794 = vadd.f32 %v4474, %v4710
  %v4795 = vadd.f32 %v4475, %v4712
  %v4796 = vadd.f32 %v4476, %v4714
  %v4797 = vadd.f32 %v4477, %v4716
  %v4798 = vadd.f32 %v4478, %v4718
  %v4799 = vadd.f32 %v4479, %v4720
  %v4800 = vadd.f32 %v4480, %v4722
  %v4801 = vadd.f32 %v4481, %v4724
  %v4802 = vadd.f32 %v4482, %v4726
  %v4803 = vadd.f32 %v4483, %v4728
  %v4804 = vadd.f32 %v4484, %v4730
  %v4805 = vadd.f32 %v4485, %v4732
  %v4806 = vadd.f32 %v4486, %v4734
  %v4807 = vadd.f32 %v4487, %v4736
  %v4808 = vadd.f32 %v4488, %v4738
  %v4809 = vadd.f32 %v4489, %v4740
  %v4810 = vadd.f32 %v4490, %v4742
  %v4811 = vadd.f32 %v4491, %v4744
  %v4812 = vadd.f32 %v4492, %v4746
  %v4813 = vadd.f32 %v4493, %v4748
  %v4814 = vadd.f32 %v4494, %v4750
  %4815 = vset.pattern.permute.xlu0 2
  %4816 = vperm.xlu0 %4815, %v4144
  %v4817 = vpop.permute.xlu0 %4816
  %4819 = vset.pattern.permute.xlu0 2
  %4820 = vperm.xlu0 %4819, %v4146
  %v4821 = vpop.permute.xlu0 %4820
  %4823 = vset.pattern.permute.xlu0 2
  %4824 = vperm.xlu0 %4823, %v4148
  %v4825 = vpop.permute.xlu0 %4824
  %4827 = vset.pattern.permute.xlu0 2
  %4828 = vperm.xlu0 %4827, %v4150
  %v4829 = vpop.permute.xlu0 %4828
  %4831 = vset.pattern.permute.xlu0 2
  %4832 = vperm.xlu0 %4831, %v4152
  %v4833 = vpop.permute.xlu0 %4832
  %4835 = vset.pattern.permute.xlu0 2
  %4836 = vperm.xlu0 %4835, %v4154
  %v4837 = vpop.permute.xlu0 %4836
  %4839 = vset.pattern.permute.xlu0 2
  %4840 = vperm.xlu0 %4839, %v4156
  %v4841 = vpop.permute.xlu0 %4840
  %4843 = vset.pattern.permute.xlu0 2
  %4844 = vperm.xlu0 %4843, %v4158
  %v4845 = vpop.permute.xlu0 %4844
  %4847 = vset.pattern.permute.xlu0 2
  %4848 = vperm.xlu0 %4847, %v4160
  %v4849 = vpop.permute.xlu0 %4848
  %4851 = vset.pattern.permute.xlu0 2
  %4852 = vperm.xlu0 %4851, %v4162
  %v4853 = vpop.permute.xlu0 %4852
  %4855 = vset.pattern.permute.xlu0 2
  %4856 = vperm.xlu0 %4855, %v4164
  %v4857 = vpop.permute.xlu0 %4856
  %4859 = vset.pattern.permute.xlu0 2
  %4860 = vperm.xlu0 %4859, %v4166
  %v4861 = vpop.permute.xlu0 %4860
  %4863 = vset.pattern.permute.xlu0 2
  %4864 = vperm.xlu0 %4863, %v4168
  %v4865 = vpop.permute.xlu0 %4864
  %4867 = vset.pattern.permute.xlu0 2
  %4868 = vperm.xlu0 %4867, %v4170
  %v4869 = vpop.permute.xlu0 %4868
  %4871 = vset.pattern.permute.xlu0 2
  %4872 = vperm.xlu0 %4871, %v4172
  %v4873 = vpop.permute.xlu0 %4872
  %4875 = vset.pattern.permute.xlu0 2
  %4876 = vperm.xlu0 %4875, %v4174
  %v4877 = vpop.permute.xlu0 %4876
  %4879 = vset.pattern.permute.xlu0 2
  %4880 = vperm.xlu0 %4879, %v4176
  %v4881 = vpop.permute.xlu0 %4880
  %4883 = vset.pattern.permute.xlu0 2
  %4884 = vperm.xlu0 %4883, %v4178
  %v4885 = vpop.permute.xlu0 %4884
  %4887 = vset.pattern.permute.xlu0 2
  %4888 = vperm.xlu0 %4887, %v4180
  %v4889 = vpop.permute.xlu0 %4888
  %4891 = vset.pattern.permute.xlu0 2
  %4892 = vperm.xlu0 %4891, %v4182
  %v4893 = vpop.permute.xlu0 %4892
  %4895 = vset.pattern.permute.xlu0 2
  %4896 = vperm.xlu0 %4895, %v4184
  %v4897 = vpop.permute.xlu0 %4896
  %4899 = vset.pattern.permute.xlu0 2
  %4900 = vperm.xlu0 %4899, %v4186
  %v4901 = vpop.permute.xlu0 %4900
  %4903 = vset.pattern.permute.xlu0 2
  %4904 = vperm.xlu0 %4903, %v4188
  %v4905 = vpop.permute.xlu0 %4904
  %4907 = vset.pattern.permute.xlu0 2
  %4908 = vperm.xlu0 %4907, %v4190
  %v4909 = vpop.permute.xlu0 %4908
  %4911 = vset.pattern.permute.xlu0 2
  %4912 = vperm.xlu0 %4911, %v4192
  %v4913 = vpop.permute.xlu0 %4912
  %4915 = vset.pattern.permute.xlu0 2
  %4916 = vperm.xlu0 %4915, %v4194
  %v4917 = vpop.permute.xlu0 %4916
  %4919 = vset.pattern.permute.xlu0 2
  %4920 = vperm.xlu0 %4919, %v4196
  %v4921 = vpop.permute.xlu0 %4920
  %4923 = vset.pattern.permute.xlu0 2
  %4924 = vperm.xlu0 %4923, %v4198
  %v4925 = vpop.permute.xlu0 %4924
  %4927 = vset.pattern.permute.xlu0 2
  %4928 = vperm.xlu0 %4927, %v4200
  %v4929 = vpop.permute.xlu0 %4928
  %4931 = vset.pattern.permute.xlu0 2
  %4932 = vperm.xlu0 %4931, %v4202
  %v4933 = vpop.permute.xlu0 %4932
  %4935 = vset.pattern.permute.xlu0 2
  %4936 = vperm.xlu0 %4935, %v4204
  %v4937 = vpop.permute.xlu0 %4936
  %4939 = vset.pattern.permute.xlu0 2
  %4940 = vperm.xlu0 %4939, %v4206
  %v4941 = vpop.permute.xlu0 %4940
  %v4943 = vmul.f32 %v4817, %v3782
  %v4944 = vmul.f32 %v4821, %v3784
  %v4945 = vmul.f32 %v4825, %v3787
  %v4946 = vmul.f32 %v4829, %v3789
  %v4947 = vmul.f32 %v4833, %v3792
  %v4948 = vmul.f32 %v4837, %v3794
  %v4949 = vmul.f32 %v4841, %v3797
  %v4950 = vmul.f32 %v4845, %v3799
  %v4951 = vmul.f32 %v4849, %v3802
  %v4952 = vmul.f32 %v4853, %v3804
  %v4953 = vmul.f32 %v4857, %v3807
  %v4954 = vmul.f32 %v4861, %v3809
  %v4955 = vmul.f32 %v4865, %v3812
  %v4956 = vmul.f32 %v4869, %v3814
  %v4957 = vmul.f32 %v4873, %v3817
  %v4958 = vmul.f32 %v4877, %v3819
  %v4959 = vmul.f32 %v4881, %v3822
  %v4960 = vmul.f32 %v4885, %v3824
  %v4961 = vmul.f32 %v4889, %v3827
  %v4962 = vmul.f32 %v4893, %v3829
  %v4963 = vmul.f32 %v4897, %v3832
  %v4964 = vmul.f32 %v4901, %v3834
  %v4965 = vmul.f32 %v4905, %v3837
  %v4966 = vmul.f32 %v4909, %v3839
  %v4967 = vmul.f32 %v4913, %v3842
  %v4968 = vmul.f32 %v4917, %v3844
  %v4969 = vmul.f32 %v4921, %v3847
  %v4970 = vmul.f32 %v4925, %v3849
  %v4971 = vmul.f32 %v4929, %v3852
  %v4972 = vmul.f32 %v4933, %v3854
  %v4973 = vmul.f32 %v4937, %v3857
  %v4974 = vmul.f32 %v4941, %v3859
  %5007 = vrot.lane.b32.xlu0 %v4943, 64
  %v5008 = vpop.permute.xlu0 %5007
  %5009 = vrot.lane.b32.xlu0 %v4944, 64
  %v5010 = vpop.permute.xlu0 %5009
  %5011 = vrot.lane.b32.xlu0 %v4945, 64
  %v5012 = vpop.permute.xlu0 %5011
  %5013 = vrot.lane.b32.xlu0 %v4946, 64
  %v5014 = vpop.permute.xlu0 %5013
  %5015 = vrot.lane.b32.xlu0 %v4947, 64
  %v5016 = vpop.permute.xlu0 %5015
  %5017 = vrot.lane.b32.xlu0 %v4948, 64
  %v5018 = vpop.permute.xlu0 %5017
  %5019 = vrot.lane.b32.xlu0 %v4949, 64
  %v5020 = vpop.permute.xlu0 %5019
  %5021 = vrot.lane.b32.xlu0 %v4950, 64
  %v5022 = vpop.permute.xlu0 %5021
  %5023 = vrot.lane.b32.xlu0 %v4951, 64
  %v5024 = vpop.permute.xlu0 %5023
  %5025 = vrot.lane.b32.xlu0 %v4952, 64
  %v5026 = vpop.permute.xlu0 %5025
  %5027 = vrot.lane.b32.xlu0 %v4953, 64
  %v5028 = vpop.permute.xlu0 %5027
  %5029 = vrot.lane.b32.xlu0 %v4954, 64
  %v5030 = vpop.permute.xlu0 %5029
  %5031 = vrot.lane.b32.xlu0 %v4955, 64
  %v5032 = vpop.permute.xlu0 %5031
  %5033 = vrot.lane.b32.xlu0 %v4956, 64
  %v5034 = vpop.permute.xlu0 %5033
  %5035 = vrot.lane.b32.xlu0 %v4957, 64
  %v5036 = vpop.permute.xlu0 %5035
  %5037 = vrot.lane.b32.xlu0 %v4958, 64
  %v5038 = vpop.permute.xlu0 %5037
  %5039 = vrot.lane.b32.xlu0 %v4959, 64
  %v5040 = vpop.permute.xlu0 %5039
  %5041 = vrot.lane.b32.xlu0 %v4960, 64
  %v5042 = vpop.permute.xlu0 %5041
  %5043 = vrot.lane.b32.xlu0 %v4961, 64
  %v5044 = vpop.permute.xlu0 %5043
  %5045 = vrot.lane.b32.xlu0 %v4962, 64
  %v5046 = vpop.permute.xlu0 %5045
  %5047 = vrot.lane.b32.xlu0 %v4963, 64
  %v5048 = vpop.permute.xlu0 %5047
  %5049 = vrot.lane.b32.xlu0 %v4964, 64
  %v5050 = vpop.permute.xlu0 %5049
  %5051 = vrot.lane.b32.xlu0 %v4965, 64
  %v5052 = vpop.permute.xlu0 %5051
  %5053 = vrot.lane.b32.xlu0 %v4966, 64
  %v5054 = vpop.permute.xlu0 %5053
  %5055 = vrot.lane.b32.xlu0 %v4967, 64
  %v5056 = vpop.permute.xlu0 %5055
  %5057 = vrot.lane.b32.xlu0 %v4968, 64
  %v5058 = vpop.permute.xlu0 %5057
  %5059 = vrot.lane.b32.xlu0 %v4969, 64
  %v5060 = vpop.permute.xlu0 %5059
  %5061 = vrot.lane.b32.xlu0 %v4970, 64
  %v5062 = vpop.permute.xlu0 %5061
  %5063 = vrot.lane.b32.xlu0 %v4971, 64
  %v5064 = vpop.permute.xlu0 %5063
  %5065 = vrot.lane.b32.xlu0 %v4972, 64
  %v5066 = vpop.permute.xlu0 %5065
  %5067 = vrot.lane.b32.xlu0 %v4973, 64
  %v5068 = vpop.permute.xlu0 %5067
  %5069 = vrot.lane.b32.xlu0 %v4974, 64
  %v5070 = vpop.permute.xlu0 %5069
  %v5103 = vadd.f32 %v4783, %v5008
  %v5104 = vadd.f32 %v4784, %v5010
  %v5105 = vadd.f32 %v4785, %v5012
  %v5106 = vadd.f32 %v4786, %v5014
  %v5107 = vadd.f32 %v4787, %v5016
  %v5108 = vadd.f32 %v4788, %v5018
  %v5109 = vadd.f32 %v4789, %v5020
  %v5110 = vadd.f32 %v4790, %v5022
  %v5111 = vadd.f32 %v4791, %v5024
  %v5112 = vadd.f32 %v4792, %v5026
  %v5113 = vadd.f32 %v4793, %v5028
  %v5114 = vadd.f32 %v4794, %v5030
  %v5115 = vadd.f32 %v4795, %v5032
  %v5116 = vadd.f32 %v4796, %v5034
  %v5117 = vadd.f32 %v4797, %v5036
  %v5118 = vadd.f32 %v4798, %v5038
  %v5119 = vadd.f32 %v4799, %v5040
  %v5120 = vadd.f32 %v4800, %v5042
  %v5121 = vadd.f32 %v4801, %v5044
  %v5122 = vadd.f32 %v4802, %v5046
  %v5123 = vadd.f32 %v4803, %v5048
  %v5124 = vadd.f32 %v4804, %v5050
  %v5125 = vadd.f32 %v4805, %v5052
  %v5126 = vadd.f32 %v4806, %v5054
  %v5127 = vadd.f32 %v4807, %v5056
  %v5128 = vadd.f32 %v4808, %v5058
  %v5129 = vadd.f32 %v4809, %v5060
  %v5130 = vadd.f32 %v4810, %v5062
  %v5131 = vadd.f32 %v4811, %v5064
  %v5132 = vadd.f32 %v4812, %v5066
  %v5133 = vadd.f32 %v4813, %v5068
  %v5134 = vadd.f32 %v4814, %v5070
  %5135 = vset.pattern.permute.xlu0 3
  %5136 = vperm.xlu0 %5135, %v4144
  %v5137 = vpop.permute.xlu0 %5136
  %5139 = vset.pattern.permute.xlu0 3
  %5140 = vperm.xlu0 %5139, %v4146
  %v5141 = vpop.permute.xlu0 %5140
  %5143 = vset.pattern.permute.xlu0 3
  %5144 = vperm.xlu0 %5143, %v4148
  %v5145 = vpop.permute.xlu0 %5144
  %5147 = vset.pattern.permute.xlu0 3
  %5148 = vperm.xlu0 %5147, %v4150
  %v5149 = vpop.permute.xlu0 %5148
  %5151 = vset.pattern.permute.xlu0 3
  %5152 = vperm.xlu0 %5151, %v4152
  %v5153 = vpop.permute.xlu0 %5152
  %5155 = vset.pattern.permute.xlu0 3
  %5156 = vperm.xlu0 %5155, %v4154
  %v5157 = vpop.permute.xlu0 %5156
  %5159 = vset.pattern.permute.xlu0 3
  %5160 = vperm.xlu0 %5159, %v4156
  %v5161 = vpop.permute.xlu0 %5160
  %5163 = vset.pattern.permute.xlu0 3
  %5164 = vperm.xlu0 %5163, %v4158
  %v5165 = vpop.permute.xlu0 %5164
  %5167 = vset.pattern.permute.xlu0 3
  %5168 = vperm.xlu0 %5167, %v4160
  %v5169 = vpop.permute.xlu0 %5168
  %5171 = vset.pattern.permute.xlu0 3
  %5172 = vperm.xlu0 %5171, %v4162
  %v5173 = vpop.permute.xlu0 %5172
  %5175 = vset.pattern.permute.xlu0 3
  %5176 = vperm.xlu0 %5175, %v4164
  %v5177 = vpop.permute.xlu0 %5176
  %5179 = vset.pattern.permute.xlu0 3
  %5180 = vperm.xlu0 %5179, %v4166
  %v5181 = vpop.permute.xlu0 %5180
  %5183 = vset.pattern.permute.xlu0 3
  %5184 = vperm.xlu0 %5183, %v4168
  %v5185 = vpop.permute.xlu0 %5184
  %5187 = vset.pattern.permute.xlu0 3
  %5188 = vperm.xlu0 %5187, %v4170
  %v5189 = vpop.permute.xlu0 %5188
  %5191 = vset.pattern.permute.xlu0 3
  %5192 = vperm.xlu0 %5191, %v4172
  %v5193 = vpop.permute.xlu0 %5192
  %5195 = vset.pattern.permute.xlu0 3
  %5196 = vperm.xlu0 %5195, %v4174
  %v5197 = vpop.permute.xlu0 %5196
  %5199 = vset.pattern.permute.xlu0 3
  %5200 = vperm.xlu0 %5199, %v4176
  %v5201 = vpop.permute.xlu0 %5200
  %5203 = vset.pattern.permute.xlu0 3
  %5204 = vperm.xlu0 %5203, %v4178
  %v5205 = vpop.permute.xlu0 %5204
  %5207 = vset.pattern.permute.xlu0 3
  %5208 = vperm.xlu0 %5207, %v4180
  %v5209 = vpop.permute.xlu0 %5208
  %5211 = vset.pattern.permute.xlu0 3
  %5212 = vperm.xlu0 %5211, %v4182
  %v5213 = vpop.permute.xlu0 %5212
  %5215 = vset.pattern.permute.xlu0 3
  %5216 = vperm.xlu0 %5215, %v4184
  %v5217 = vpop.permute.xlu0 %5216
  %5219 = vset.pattern.permute.xlu0 3
  %5220 = vperm.xlu0 %5219, %v4186
  %v5221 = vpop.permute.xlu0 %5220
  %5223 = vset.pattern.permute.xlu0 3
  %5224 = vperm.xlu0 %5223, %v4188
  %v5225 = vpop.permute.xlu0 %5224
  %5227 = vset.pattern.permute.xlu0 3
  %5228 = vperm.xlu0 %5227, %v4190
  %v5229 = vpop.permute.xlu0 %5228
  %5231 = vset.pattern.permute.xlu0 3
  %5232 = vperm.xlu0 %5231, %v4192
  %v5233 = vpop.permute.xlu0 %5232
  %5235 = vset.pattern.permute.xlu0 3
  %5236 = vperm.xlu0 %5235, %v4194
  %v5237 = vpop.permute.xlu0 %5236
  %5239 = vset.pattern.permute.xlu0 3
  %5240 = vperm.xlu0 %5239, %v4196
  %v5241 = vpop.permute.xlu0 %5240
  %5243 = vset.pattern.permute.xlu0 3
  %5244 = vperm.xlu0 %5243, %v4198
  %v5245 = vpop.permute.xlu0 %5244
  %5247 = vset.pattern.permute.xlu0 3
  %5248 = vperm.xlu0 %5247, %v4200
  %v5249 = vpop.permute.xlu0 %5248
  %5251 = vset.pattern.permute.xlu0 3
  %5252 = vperm.xlu0 %5251, %v4202
  %v5253 = vpop.permute.xlu0 %5252
  %5255 = vset.pattern.permute.xlu0 3
  %5256 = vperm.xlu0 %5255, %v4204
  %v5257 = vpop.permute.xlu0 %5256
  %5259 = vset.pattern.permute.xlu0 3
  %5260 = vperm.xlu0 %5259, %v4206
  %v5261 = vpop.permute.xlu0 %5260
  %v5263 = vmul.f32 %v5137, %v3782
  %v5264 = vmul.f32 %v5141, %v3784
  %v5265 = vmul.f32 %v5145, %v3787
  %v5266 = vmul.f32 %v5149, %v3789
  %v5267 = vmul.f32 %v5153, %v3792
  %v5268 = vmul.f32 %v5157, %v3794
  %v5269 = vmul.f32 %v5161, %v3797
  %v5270 = vmul.f32 %v5165, %v3799
  %v5271 = vmul.f32 %v5169, %v3802
  %v5272 = vmul.f32 %v5173, %v3804
  %v5273 = vmul.f32 %v5177, %v3807
  %v5274 = vmul.f32 %v5181, %v3809
  %v5275 = vmul.f32 %v5185, %v3812
  %v5276 = vmul.f32 %v5189, %v3814
  %v5277 = vmul.f32 %v5193, %v3817
  %v5278 = vmul.f32 %v5197, %v3819
  %v5279 = vmul.f32 %v5201, %v3822
  %v5280 = vmul.f32 %v5205, %v3824
  %v5281 = vmul.f32 %v5209, %v3827
  %v5282 = vmul.f32 %v5213, %v3829
  %v5283 = vmul.f32 %v5217, %v3832
  %v5284 = vmul.f32 %v5221, %v3834
  %v5285 = vmul.f32 %v5225, %v3837
  %v5286 = vmul.f32 %v5229, %v3839
  %v5287 = vmul.f32 %v5233, %v3842
  %v5288 = vmul.f32 %v5237, %v3844
  %v5289 = vmul.f32 %v5241, %v3847
  %v5290 = vmul.f32 %v5245, %v3849
  %v5291 = vmul.f32 %v5249, %v3852
  %v5292 = vmul.f32 %v5253, %v3854
  %v5293 = vmul.f32 %v5257, %v3857
  %v5294 = vmul.f32 %v5261, %v3859
  %5327 = vrot.lane.b32.xlu0 %v5263, 32
  %v5328 = vpop.permute.xlu0 %5327
  %5329 = vrot.lane.b32.xlu0 %v5264, 32
  %v5330 = vpop.permute.xlu0 %5329
  %5331 = vrot.lane.b32.xlu0 %v5265, 32
  %v5332 = vpop.permute.xlu0 %5331
  %5333 = vrot.lane.b32.xlu0 %v5266, 32
  %v5334 = vpop.permute.xlu0 %5333
  %5335 = vrot.lane.b32.xlu0 %v5267, 32
  %v5336 = vpop.permute.xlu0 %5335
  %5337 = vrot.lane.b32.xlu0 %v5268, 32
  %v5338 = vpop.permute.xlu0 %5337
  %5339 = vrot.lane.b32.xlu0 %v5269, 32
  %v5340 = vpop.permute.xlu0 %5339
  %5341 = vrot.lane.b32.xlu0 %v5270, 32
  %v5342 = vpop.permute.xlu0 %5341
  %5343 = vrot.lane.b32.xlu0 %v5271, 32
  %v5344 = vpop.permute.xlu0 %5343
  %5345 = vrot.lane.b32.xlu0 %v5272, 32
  %v5346 = vpop.permute.xlu0 %5345
  %5347 = vrot.lane.b32.xlu0 %v5273, 32
  %v5348 = vpop.permute.xlu0 %5347
  %5349 = vrot.lane.b32.xlu0 %v5274, 32
  %v5350 = vpop.permute.xlu0 %5349
  %5351 = vrot.lane.b32.xlu0 %v5275, 32
  %v5352 = vpop.permute.xlu0 %5351
  %5353 = vrot.lane.b32.xlu0 %v5276, 32
  %v5354 = vpop.permute.xlu0 %5353
  %5355 = vrot.lane.b32.xlu0 %v5277, 32
  %v5356 = vpop.permute.xlu0 %5355
  %5357 = vrot.lane.b32.xlu0 %v5278, 32
  %v5358 = vpop.permute.xlu0 %5357
  %5359 = vrot.lane.b32.xlu0 %v5279, 32
  %v5360 = vpop.permute.xlu0 %5359
  %5361 = vrot.lane.b32.xlu0 %v5280, 32
  %v5362 = vpop.permute.xlu0 %5361
  %5363 = vrot.lane.b32.xlu0 %v5281, 32
  %v5364 = vpop.permute.xlu0 %5363
  %5365 = vrot.lane.b32.xlu0 %v5282, 32
  %v5366 = vpop.permute.xlu0 %5365
  %5367 = vrot.lane.b32.xlu0 %v5283, 32
  %v5368 = vpop.permute.xlu0 %5367
  %5369 = vrot.lane.b32.xlu0 %v5284, 32
  %v5370 = vpop.permute.xlu0 %5369
  %5371 = vrot.lane.b32.xlu0 %v5285, 32
  %v5372 = vpop.permute.xlu0 %5371
  %5373 = vrot.lane.b32.xlu0 %v5286, 32
  %v5374 = vpop.permute.xlu0 %5373
  %5375 = vrot.lane.b32.xlu0 %v5287, 32
  %v5376 = vpop.permute.xlu0 %5375
  %5377 = vrot.lane.b32.xlu0 %v5288, 32
  %v5378 = vpop.permute.xlu0 %5377
  %5379 = vrot.lane.b32.xlu0 %v5289, 32
  %v5380 = vpop.permute.xlu0 %5379
  %5381 = vrot.lane.b32.xlu0 %v5290, 32
  %v5382 = vpop.permute.xlu0 %5381
  %5383 = vrot.lane.b32.xlu0 %v5291, 32
  %v5384 = vpop.permute.xlu0 %5383
  %5385 = vrot.lane.b32.xlu0 %v5292, 32
  %v5386 = vpop.permute.xlu0 %5385
  %5387 = vrot.lane.b32.xlu0 %v5293, 32
  %v5388 = vpop.permute.xlu0 %5387
  %5389 = vrot.lane.b32.xlu0 %v5294, 32
  %v5390 = vpop.permute.xlu0 %5389
  %v5423 = vadd.f32 %v5103, %v5328
  %v5424 = vadd.f32 %v5104, %v5330
  %v5425 = vadd.f32 %v5105, %v5332
  %v5426 = vadd.f32 %v5106, %v5334
  %v5427 = vadd.f32 %v5107, %v5336
  %v5428 = vadd.f32 %v5108, %v5338
  %v5429 = vadd.f32 %v5109, %v5340
  %v5430 = vadd.f32 %v5110, %v5342
  %v5431 = vadd.f32 %v5111, %v5344
  %v5432 = vadd.f32 %v5112, %v5346
  %v5433 = vadd.f32 %v5113, %v5348
  %v5434 = vadd.f32 %v5114, %v5350
  %v5435 = vadd.f32 %v5115, %v5352
  %v5436 = vadd.f32 %v5116, %v5354
  %v5437 = vadd.f32 %v5117, %v5356
  %v5438 = vadd.f32 %v5118, %v5358
  %v5439 = vadd.f32 %v5119, %v5360
  %v5440 = vadd.f32 %v5120, %v5362
  %v5441 = vadd.f32 %v5121, %v5364
  %v5442 = vadd.f32 %v5122, %v5366
  %v5443 = vadd.f32 %v5123, %v5368
  %v5444 = vadd.f32 %v5124, %v5370
  %v5445 = vadd.f32 %v5125, %v5372
  %v5446 = vadd.f32 %v5126, %v5374
  %v5447 = vadd.f32 %v5127, %v5376
  %v5448 = vadd.f32 %v5128, %v5378
  %v5449 = vadd.f32 %v5129, %v5380
  %v5450 = vadd.f32 %v5130, %v5382
  %v5451 = vadd.f32 %v5131, %v5384
  %v5452 = vadd.f32 %v5132, %v5386
  %v5453 = vadd.f32 %v5133, %v5388
  %v5454 = vadd.f32 %v5134, %v5390
  %v5455 = vrcp.pop %v4209
  %v5456 = vrcp.pop %v4212
  %v5457 = vrcp.pop %v4215
  %v5458 = vrcp.pop %v4218
  %v5459 = vrcp.pop %v4221
  %v5460 = vrcp.pop %v4224
  %v5461 = vrcp.pop %v4227
  %v5462 = vrcp.pop %v4230
  %v5463 = vrcp.pop %v4233
  %v5464 = vrcp.pop %v4236
  %v5465 = vrcp.pop %v4239
  %v5466 = vrcp.pop %v4242
  %v5467 = vrcp.pop %v4245
  %v5468 = vrcp.pop %v4248
  %v5469 = vrcp.pop %v4251
  %v5470 = vrcp.pop %v4254
  %v5471 = vrcp.pop %v4257
  %v5472 = vrcp.pop %v4260
  %v5473 = vrcp.pop %v4263
  %v5474 = vrcp.pop %v4266
  %v5475 = vrcp.pop %v4269
  %v5476 = vrcp.pop %v4272
  %v5477 = vrcp.pop %v4275
  %v5478 = vrcp.pop %v4278
  %v5479 = vrcp.pop %v4281
  %v5480 = vrcp.pop %v4284
  %v5481 = vrcp.pop %v4287
  %v5482 = vrcp.pop %v4290
  %v5483 = vrcp.pop %v4293
  %v5484 = vrcp.pop %v4296
  %v5485 = vrcp.pop %v4299
  %v5486 = vrcp.pop %v4302
  %v5487 = vmul.f32 %v5423, %v5455
  %v5488 = vmul.f32 %v5424, %v5456
  %v5489 = vmul.f32 %v5425, %v5457
  %v5490 = vmul.f32 %v5426, %v5458
  %v5491 = vmul.f32 %v5427, %v5459
  %v5492 = vmul.f32 %v5428, %v5460
  %v5493 = vmul.f32 %v5429, %v5461
  %v5494 = vmul.f32 %v5430, %v5462
  %v5495 = vmul.f32 %v5431, %v5463
  %v5496 = vmul.f32 %v5432, %v5464
  %v5497 = vmul.f32 %v5433, %v5465
  %v5498 = vmul.f32 %v5434, %v5466
  %v5499 = vmul.f32 %v5435, %v5467
  %v5500 = vmul.f32 %v5436, %v5468
  %v5501 = vmul.f32 %v5437, %v5469
  %v5502 = vmul.f32 %v5438, %v5470
  %v5503 = vmul.f32 %v5439, %v5471
  %v5504 = vmul.f32 %v5440, %v5472
  %v5505 = vmul.f32 %v5441, %v5473
  %v5506 = vmul.f32 %v5442, %v5474
  %v5507 = vmul.f32 %v5443, %v5475
  %v5508 = vmul.f32 %v5444, %v5476
  %v5509 = vmul.f32 %v5445, %v5477
  %v5510 = vmul.f32 %v5446, %v5478
  %v5511 = vmul.f32 %v5447, %v5479
  %v5512 = vmul.f32 %v5448, %v5480
  %v5513 = vmul.f32 %v5449, %v5481
  %v5514 = vmul.f32 %v5450, %v5482
  %v5515 = vmul.f32 %v5451, %v5483
  %v5516 = vmul.f32 %v5452, %v5484
  %v5517 = vmul.f32 %v5453, %v5485
  %v5518 = vmul.f32 %v5454, %v5486
  %v5519 = vpack.c.bf16 %v5488, %v5487
  %v5520 = vpack.c.bf16 %v5490, %v5489
  %v5521 = vpack.c.bf16 %v5492, %v5491
  %v5522 = vpack.c.bf16 %v5494, %v5493
  %v5523 = vpack.c.bf16 %v5496, %v5495
  %v5524 = vpack.c.bf16 %v5498, %v5497
  %v5525 = vpack.c.bf16 %v5500, %v5499
  %v5526 = vpack.c.bf16 %v5502, %v5501
  %v5527 = vpack.c.bf16 %v5504, %v5503
  %v5528 = vpack.c.bf16 %v5506, %v5505
  %v5529 = vpack.c.bf16 %v5508, %v5507
  %v5530 = vpack.c.bf16 %v5510, %v5509
  %v5531 = vpack.c.bf16 %v5512, %v5511
  %v5532 = vpack.c.bf16 %v5514, %v5513
  %v5533 = vpack.c.bf16 %v5516, %v5515
  %v5534 = vpack.c.bf16 %v5518, %v5517
  %v5536 = vperm.slane %v138, 0
  %v5542 = vunpack.c.l.b16 %v134
  %v5543 = vunpack.c.l.b16 %v135
  %v5544 = vunpack.c.l.b16 %v136
  %v5545 = vunpack.c.l.b16 %v137
  %v5546 = vpack.c.b16 %v5543, %v5542
  %v5547 = vpack.c.b16 %v5545, %v5544
  %5550 = vmatpush.bf16.msra.mxu0 0
  %5551 = vmatpush.bf16.msra.mxu0 0
  %5552 = vmatpush.bf16.msra.mxu0 0
  %5553 = vmatpush.bf16.msra.mxu0 0
  %5554 = vmatpush.bf16.msra.mxu0 0
  %5555 = vmatpush.bf16.msra.mxu0 0
  %5556 = vmatpush.bf16.msra.mxu0 %v5547
  %5557 = vmatpush.bf16.msra.mxu0 %v5546
  %5558 = vmatmul.bf16.gmra.mxu0 %v583
  %v5559 = vpop.f32.mrf.mxu0
  %v5560 = vadd.f32 %v5536, %v5559
  %v5561 = vpop.f32.mrf.mxu0
  %v5562 = vadd.f32 %v5536, %v5561
  %5563 = vmatmul.bf16.gmra.mxu0 %v586
  %v5564 = vpop.f32.mrf.mxu0
  %v5565 = vadd.f32 %v5536, %v5564
  %v5566 = vpop.f32.mrf.mxu0
  %v5567 = vadd.f32 %v5536, %v5566
  %5568 = vmatmul.bf16.gmra.mxu0 %v589
  %v5569 = vpop.f32.mrf.mxu0
  %v5570 = vadd.f32 %v5536, %v5569
  %v5571 = vpop.f32.mrf.mxu0
  %v5572 = vadd.f32 %v5536, %v5571
  %5573 = vmatmul.bf16.gmra.mxu0 %v592
  %v5574 = vpop.f32.mrf.mxu0
  %v5575 = vadd.f32 %v5536, %v5574
  %v5576 = vpop.f32.mrf.mxu0
  %v5577 = vadd.f32 %v5536, %v5576
  %5578 = vdwg.mxu0
  %v5579 = vpack.c.bf16 %v5562, %v5560
  %v5580 = vpack.c.bf16 %v5567, %v5565
  %v5581 = vpack.c.bf16 %v5572, %v5570
  %v5582 = vpack.c.bf16 %v5577, %v5575
  %v5584 = vsel %vm380, %v5579, 0
  %v5587 = vsel %vm380, %v5580, 0
  %v5590 = vsel %vm380, %v5581, 0
  %v5593 = vsel %vm380, %v5582, 0
  %v5596 = vsel %vm380, %v5519, 0
  %v5599 = vsel %vm380, %v5520, 0
  %v5602 = vsel %vm380, %v5521, 0
  %v5605 = vsel %vm380, %v5522, 0
  %v5608 = vsel %vm380, %v5523, 0
  %v5611 = vsel %vm380, %v5524, 0
  %v5614 = vsel %vm380, %v5525, 0
  %v5617 = vsel %vm380, %v5526, 0
  %v5620 = vsel %vm380, %v5527, 0
  %v5623 = vsel %vm380, %v5528, 0
  %v5626 = vsel %vm380, %v5529, 0
  %v5629 = vsel %vm380, %v5530, 0
  %v5632 = vsel %vm380, %v5531, 0
  %v5635 = vsel %vm380, %v5532, 0
  %v5638 = vsel %vm380, %v5533, 0
  %v5641 = vsel %vm380, %v5534, 0
  %5643 = vmatpush.bf16.xpose.msra.mxu0 %v5617
  %5644 = vmatpush.bf16.xpose.msra.mxu0 %v5614
  %5645 = vmatpush.bf16.xpose.msra.mxu0 %v5611
  %5646 = vmatpush.bf16.xpose.msra.mxu0 %v5608
  %5647 = vmatpush.bf16.xpose.msra.mxu0 %v5605
  %5648 = vmatpush.bf16.xpose.msra.mxu0 %v5602
  %5649 = vmatpush.bf16.xpose.msra.mxu0 %v5599
  %5650 = vmatpush.bf16.xpose.msra.mxu0 %v5596
  %5651 = vmatmul.bf16.gmra.mxu0 %v5584
  %v5652 = vpop.f32.mrf.mxu0
  %v5653 = vadd.f32 0.0, %v5652
  %v5654 = vpop.f32.mrf.mxu0
  %v5655 = vadd.f32 0.0, %v5654
  %5656 = vmatmul.bf16.gmra.mxu0 %v5587
  %v5657 = vpop.f32.mrf.mxu0
  %v5658 = vadd.f32 0.0, %v5657
  %v5659 = vpop.f32.mrf.mxu0
  %v5660 = vadd.f32 0.0, %v5659
  %5661 = vmatmul.bf16.gmra.mxu0 %v5590
  %v5662 = vpop.f32.mrf.mxu0
  %v5663 = vadd.f32 0.0, %v5662
  %v5664 = vpop.f32.mrf.mxu0
  %v5665 = vadd.f32 0.0, %v5664
  %5666 = vmatmul.bf16.gmra.mxu0 %v5593
  %v5667 = vpop.f32.mrf.mxu0
  %v5668 = vadd.f32 0.0, %v5667
  %v5669 = vpop.f32.mrf.mxu0
  %v5670 = vadd.f32 0.0, %v5669
  %5671 = vdwg.mxu0
  %5672 = vmatpush.bf16.xpose.msra.mxu0 %v5641
  %5673 = vmatpush.bf16.xpose.msra.mxu0 %v5638
  %5674 = vmatpush.bf16.xpose.msra.mxu0 %v5635
  %5675 = vmatpush.bf16.xpose.msra.mxu0 %v5632
  %5676 = vmatpush.bf16.xpose.msra.mxu0 %v5629
  %5677 = vmatpush.bf16.xpose.msra.mxu0 %v5626
  %5678 = vmatpush.bf16.xpose.msra.mxu0 %v5623
  %5679 = vmatpush.bf16.xpose.msra.mxu0 %v5620
  %5680 = vmatmul.bf16.gmra.mxu0 %v5584
  %v5681 = vpop.f32.mrf.mxu0
  %v5682 = vadd.f32 0.0, %v5681
  %v5683 = vpop.f32.mrf.mxu0
  %v5684 = vadd.f32 0.0, %v5683
  %5685 = vmatmul.bf16.gmra.mxu0 %v5587
  %v5686 = vpop.f32.mrf.mxu0
  %v5687 = vadd.f32 0.0, %v5686
  %v5688 = vpop.f32.mrf.mxu0
  %v5689 = vadd.f32 0.0, %v5688
  %5690 = vmatmul.bf16.gmra.mxu0 %v5590
  %v5691 = vpop.f32.mrf.mxu0
  %v5692 = vadd.f32 0.0, %v5691
  %v5693 = vpop.f32.mrf.mxu0
  %v5694 = vadd.f32 0.0, %v5693
  %5695 = vmatmul.bf16.gmra.mxu0 %v5593
  %v5696 = vpop.f32.mrf.mxu0
  %v5697 = vadd.f32 0.0, %v5696
  %v5698 = vpop.f32.mrf.mxu0
  %v5699 = vadd.f32 0.0, %v5698
  %5700 = vdwg.mxu0
  %v5701 = vmax.f32 %v5653, %v5682
  %5702 = vmax.xlane.f32.xlu0 %v5701
  %v5703 = vpop.xlane.xlu0 %5702
  %v5704 = vmax.f32 %v5655, %v5684
  %5705 = vmax.xlane.f32.xlu0 %v5704
  %v5706 = vpop.xlane.xlu0 %5705
  %v5707 = vmax.f32 %v5658, %v5687
  %5708 = vmax.xlane.f32.xlu0 %v5707
  %v5709 = vpop.xlane.xlu0 %5708
  %v5710 = vmax.f32 %v5660, %v5689
  %5711 = vmax.xlane.f32.xlu0 %v5710
  %v5712 = vpop.xlane.xlu0 %5711
  %v5713 = vmax.f32 %v5663, %v5692
  %5714 = vmax.xlane.f32.xlu0 %v5713
  %v5715 = vpop.xlane.xlu0 %5714
  %v5716 = vmax.f32 %v5665, %v5694
  %5717 = vmax.xlane.f32.xlu0 %v5716
  %v5718 = vpop.xlane.xlu0 %5717
  %v5719 = vmax.f32 %v5668, %v5697
  %5720 = vmax.xlane.f32.xlu0 %v5719
  %v5721 = vpop.xlane.xlu0 %5720
  %v5722 = vmax.f32 %v5670, %v5699
  %5723 = vmax.xlane.f32.xlu0 %v5722
  %v5724 = vpop.xlane.xlu0 %5723
  %v5725 = vsub.f32 %v5653, %v5703
  %v5726 = vsub.f32 %v5682, %v5703
  %v5727 = vsub.f32 %v5655, %v5706
  %v5728 = vsub.f32 %v5684, %v5706
  %v5729 = vsub.f32 %v5658, %v5709
  %v5730 = vsub.f32 %v5687, %v5709
  %v5731 = vsub.f32 %v5660, %v5712
  %v5732 = vsub.f32 %v5689, %v5712
  %v5733 = vsub.f32 %v5663, %v5715
  %v5734 = vsub.f32 %v5692, %v5715
  %v5735 = vsub.f32 %v5665, %v5718
  %v5736 = vsub.f32 %v5694, %v5718
  %v5737 = vsub.f32 %v5668, %v5721
  %v5738 = vsub.f32 %v5697, %v5721
  %v5739 = vsub.f32 %v5670, %v5724
  %v5740 = vsub.f32 %v5699, %v5724
  %v5741 = vmul.f32 %v5725, 1.442695
  %v5742 = vpow.pop %v5741
  %v5743 = vmul.f32 %v5726, 1.442695
  %v5744 = vpow.pop %v5743
  %v5745 = vmul.f32 %v5727, 1.442695
  %v5746 = vpow.pop %v5745
  %v5747 = vmul.f32 %v5728, 1.442695
  %v5748 = vpow.pop %v5747
  %v5749 = vmul.f32 %v5729, 1.442695
  %v5750 = vpow.pop %v5749
  %v5751 = vmul.f32 %v5730, 1.442695
  %v5752 = vpow.pop %v5751
  %v5753 = vmul.f32 %v5731, 1.442695
  %v5754 = vpow.pop %v5753
  %v5755 = vmul.f32 %v5732, 1.442695
  %v5756 = vpow.pop %v5755
  %v5757 = vmul.f32 %v5733, 1.442695
  %v5758 = vpow.pop %v5757
  %v5759 = vmul.f32 %v5734, 1.442695
  %v5760 = vpow.pop %v5759
  %v5761 = vmul.f32 %v5735, 1.442695
  %v5762 = vpow.pop %v5761
  %v5763 = vmul.f32 %v5736, 1.442695
  %v5764 = vpow.pop %v5763
  %v5765 = vmul.f32 %v5737, 1.442695
  %v5766 = vpow.pop %v5765
  %v5767 = vmul.f32 %v5738, 1.442695
  %v5768 = vpow.pop %v5767
  %v5769 = vmul.f32 %v5739, 1.442695
  %v5770 = vpow.pop %v5769
  %v5771 = vmul.f32 %v5740, 1.442695
  %v5772 = vpow.pop %v5771
  %v5773 = vadd.f32 %v5742, %v5744
  %5774 = vadd.xlane.f32.xlu0 %v5773
  %v5775 = vpop.xlane.xlu0 %5774
  %v5776 = vadd.f32 %v5746, %v5748
  %5777 = vadd.xlane.f32.xlu0 %v5776
  %v5778 = vpop.xlane.xlu0 %5777
  %v5779 = vadd.f32 %v5750, %v5752
  %5780 = vadd.xlane.f32.xlu0 %v5779
  %v5781 = vpop.xlane.xlu0 %5780
  %v5782 = vadd.f32 %v5754, %v5756
  %5783 = vadd.xlane.f32.xlu0 %v5782
  %v5784 = vpop.xlane.xlu0 %5783
  %v5785 = vadd.f32 %v5758, %v5760
  %5786 = vadd.xlane.f32.xlu0 %v5785
  %v5787 = vpop.xlane.xlu0 %5786
  %v5788 = vadd.f32 %v5762, %v5764
  %5789 = vadd.xlane.f32.xlu0 %v5788
  %v5790 = vpop.xlane.xlu0 %5789
  %v5791 = vadd.f32 %v5766, %v5768
  %5792 = vadd.xlane.f32.xlu0 %v5791
  %v5793 = vpop.xlane.xlu0 %5792
  %v5794 = vadd.f32 %v5770, %v5772
  %5795 = vadd.xlane.f32.xlu0 %v5794
  %v5796 = vpop.xlane.xlu0 %5795
  %v5797 = vrcp.pop %v5775
  %v5798 = vrcp.pop %v5778
  %v5799 = vrcp.pop %v5781
  %v5800 = vrcp.pop %v5784
  %v5801 = vrcp.pop %v5787
  %v5802 = vrcp.pop %v5790
  %v5803 = vrcp.pop %v5793
  %v5804 = vrcp.pop %v5796
  %v5805 = vmul.f32 %v5742, %v5797
  %v5806 = vmul.f32 %v5744, %v5797
  %v5807 = vmul.f32 %v5746, %v5798
  %v5808 = vmul.f32 %v5748, %v5798
  %v5809 = vmul.f32 %v5750, %v5799
  %v5810 = vmul.f32 %v5752, %v5799
  %v5811 = vmul.f32 %v5754, %v5800
  %v5812 = vmul.f32 %v5756, %v5800
  %v5813 = vmul.f32 %v5758, %v5801
  %v5814 = vmul.f32 %v5760, %v5801
  %v5815 = vmul.f32 %v5762, %v5802
  %v5816 = vmul.f32 %v5764, %v5802
  %v5817 = vmul.f32 %v5766, %v5803
  %v5818 = vmul.f32 %v5768, %v5803
  %v5819 = vmul.f32 %v5770, %v5804
  %v5820 = vmul.f32 %v5772, %v5804
  %v5821 = vpack.c.bf16 %v5807, %v5805
  %v5822 = vpack.c.bf16 %v5808, %v5806
  %v5823 = vpack.c.bf16 %v5811, %v5809
  %v5824 = vpack.c.bf16 %v5812, %v5810
  %v5825 = vpack.c.bf16 %v5815, %v5813
  %v5826 = vpack.c.bf16 %v5816, %v5814
  %v5827 = vpack.c.bf16 %v5819, %v5817
  %v5828 = vpack.c.bf16 %v5820, %v5818
  %5829 = vmatpush.bf16.msra.mxu0 %v5526
  %5830 = vmatpush.bf16.msra.mxu0 %v5525
  %5831 = vmatpush.bf16.msra.mxu0 %v5524
  %5832 = vmatpush.bf16.msra.mxu0 %v5523
  %5833 = vmatpush.bf16.msra.mxu0 %v5522
  %5834 = vmatpush.bf16.msra.mxu0 %v5521
  %5835 = vmatpush.bf16.msra.mxu0 %v5520
  %5836 = vmatpush.bf16.msra.mxu0 %v5519
  %5837 = vmatmul.bf16.gmra.mxu0 %v5821
  %v5838 = vpop.f32.mrf.mxu0
  %v5839 = vadd.f32 0.0, %v5838
  %v5840 = vpop.f32.mrf.mxu0
  %v5841 = vadd.f32 0.0, %v5840
  %5842 = vmatmul.bf16.gmra.mxu0 %v5823
  %v5843 = vpop.f32.mrf.mxu0
  %v5844 = vadd.f32 0.0, %v5843
  %v5845 = vpop.f32.mrf.mxu0
  %v5846 = vadd.f32 0.0, %v5845
  %5847 = vmatmul.bf16.gmra.mxu0 %v5825
  %v5848 = vpop.f32.mrf.mxu0
  %v5849 = vadd.f32 0.0, %v5848
  %v5850 = vpop.f32.mrf.mxu0
  %v5851 = vadd.f32 0.0, %v5850
  %5852 = vmatmul.bf16.gmra.mxu0 %v5827
  %v5853 = vpop.f32.mrf.mxu0
  %v5854 = vadd.f32 0.0, %v5853
  %v5855 = vpop.f32.mrf.mxu0
  %v5856 = vadd.f32 0.0, %v5855
  %5857 = vdwg.mxu0
  %5858 = vmatpush.bf16.msra.mxu0 %v5534
  %5859 = vmatpush.bf16.msra.mxu0 %v5533
  %5860 = vmatpush.bf16.msra.mxu0 %v5532
  %5861 = vmatpush.bf16.msra.mxu0 %v5531
  %5862 = vmatpush.bf16.msra.mxu0 %v5530
  %5863 = vmatpush.bf16.msra.mxu0 %v5529
  %5864 = vmatpush.bf16.msra.mxu0 %v5528
  %5865 = vmatpush.bf16.msra.mxu0 %v5527
  %5866 = vmatmul.bf16.gmra.mxu0 %v5822
  %v5867 = vpop.f32.mrf.mxu0
  %v5868 = vadd.f32 %v5839, %v5867
  %v5869 = vpop.f32.mrf.mxu0
  %v5870 = vadd.f32 %v5841, %v5869
  %5871 = vmatmul.bf16.gmra.mxu0 %v5824
  %v5872 = vpop.f32.mrf.mxu0
  %v5873 = vadd.f32 %v5844, %v5872
  %v5874 = vpop.f32.mrf.mxu0
  %v5875 = vadd.f32 %v5846, %v5874
  %5876 = vmatmul.bf16.gmra.mxu0 %v5826
  %v5877 = vpop.f32.mrf.mxu0
  %v5878 = vadd.f32 %v5849, %v5877
  %v5879 = vpop.f32.mrf.mxu0
  %v5880 = vadd.f32 %v5851, %v5879
  %5881 = vmatmul.bf16.gmra.mxu0 %v5828
  %v5882 = vpop.f32.mrf.mxu0
  %v5883 = vadd.f32 %v5854, %v5882
  %v5884 = vpop.f32.mrf.mxu0
  %v5885 = vadd.f32 %v5856, %v5884
  %5886 = vdwg.mxu0
  %5891 = vrot.lane.b32.xlu0 %v5579, 96
  %v5892 = vpop.permute.xlu0 %5891
  %5893 = vrot.lane.b32.xlu0 %v5580, 96
  %v5894 = vpop.permute.xlu0 %5893
  %5895 = vrot.lane.b32.xlu0 %v5581, 96
  %v5896 = vpop.permute.xlu0 %5895
  %5897 = vrot.lane.b32.xlu0 %v5582, 96
  %v5898 = vpop.permute.xlu0 %5897
  %v5900 = vsel %vm380, %v5892, 0
  %v5903 = vsel %vm380, %v5894, 0
  %v5906 = vsel %vm380, %v5896, 0
  %v5909 = vsel %vm380, %v5898, 0
  %5911 = vmatpush.bf16.xpose.msra.mxu0 %v5617
  %5912 = vmatpush.bf16.xpose.msra.mxu0 %v5614
  %5913 = vmatpush.bf16.xpose.msra.mxu0 %v5611
  %5914 = vmatpush.bf16.xpose.msra.mxu0 %v5608
  %5915 = vmatpush.bf16.xpose.msra.mxu0 %v5605
  %5916 = vmatpush.bf16.xpose.msra.mxu0 %v5602
  %5917 = vmatpush.bf16.xpose.msra.mxu0 %v5599
  %5918 = vmatpush.bf16.xpose.msra.mxu0 %v5596
  %5919 = vmatmul.bf16.gmra.mxu0 %v5900
  %v5920 = vpop.f32.mrf.mxu0
  %v5921 = vadd.f32 0.0, %v5920
  %v5922 = vpop.f32.mrf.mxu0
  %v5923 = vadd.f32 0.0, %v5922
  %5924 = vmatmul.bf16.gmra.mxu0 %v5903
  %v5925 = vpop.f32.mrf.mxu0
  %v5926 = vadd.f32 0.0, %v5925
  %v5927 = vpop.f32.mrf.mxu0
  %v5928 = vadd.f32 0.0, %v5927
  %5929 = vmatmul.bf16.gmra.mxu0 %v5906
  %v5930 = vpop.f32.mrf.mxu0
  %v5931 = vadd.f32 0.0, %v5930
  %v5932 = vpop.f32.mrf.mxu0
  %v5933 = vadd.f32 0.0, %v5932
  %5934 = vmatmul.bf16.gmra.mxu0 %v5909
  %v5935 = vpop.f32.mrf.mxu0
  %v5936 = vadd.f32 0.0, %v5935
  %v5937 = vpop.f32.mrf.mxu0
  %v5938 = vadd.f32 0.0, %v5937
  %5939 = vdwg.mxu0
  %5940 = vmatpush.bf16.xpose.msra.mxu0 %v5641
  %5941 = vmatpush.bf16.xpose.msra.mxu0 %v5638
  %5942 = vmatpush.bf16.xpose.msra.mxu0 %v5635
  %5943 = vmatpush.bf16.xpose.msra.mxu0 %v5632
  %5944 = vmatpush.bf16.xpose.msra.mxu0 %v5629
  %5945 = vmatpush.bf16.xpose.msra.mxu0 %v5626
  %5946 = vmatpush.bf16.xpose.msra.mxu0 %v5623
  %5947 = vmatpush.bf16.xpose.msra.mxu0 %v5620
  %5948 = vmatmul.bf16.gmra.mxu0 %v5900
  %v5949 = vpop.f32.mrf.mxu0
  %v5950 = vadd.f32 0.0, %v5949
  %v5951 = vpop.f32.mrf.mxu0
  %v5952 = vadd.f32 0.0, %v5951
  %5953 = vmatmul.bf16.gmra.mxu0 %v5903
  %v5954 = vpop.f32.mrf.mxu0
  %v5955 = vadd.f32 0.0, %v5954
  %v5956 = vpop.f32.mrf.mxu0
  %v5957 = vadd.f32 0.0, %v5956
  %5958 = vmatmul.bf16.gmra.mxu0 %v5906
  %v5959 = vpop.f32.mrf.mxu0
  %v5960 = vadd.f32 0.0, %v5959
  %v5961 = vpop.f32.mrf.mxu0
  %v5962 = vadd.f32 0.0, %v5961
  %5963 = vmatmul.bf16.gmra.mxu0 %v5909
  %v5964 = vpop.f32.mrf.mxu0
  %v5965 = vadd.f32 0.0, %v5964
  %v5966 = vpop.f32.mrf.mxu0
  %v5967 = vadd.f32 0.0, %v5966
  %5968 = vdwg.mxu0
  %v5969 = vmax.f32 %v5921, %v5950
  %5970 = vmax.xlane.f32.xlu0 %v5969
  %v5971 = vpop.xlane.xlu0 %5970
  %v5972 = vmax.f32 %v5923, %v5952
  %5973 = vmax.xlane.f32.xlu0 %v5972
  %v5974 = vpop.xlane.xlu0 %5973
  %v5975 = vmax.f32 %v5926, %v5955
  %5976 = vmax.xlane.f32.xlu0 %v5975
  %v5977 = vpop.xlane.xlu0 %5976
  %v5978 = vmax.f32 %v5928, %v5957
  %5979 = vmax.xlane.f32.xlu0 %v5978
  %v5980 = vpop.xlane.xlu0 %5979
  %v5981 = vmax.f32 %v5931, %v5960
  %5982 = vmax.xlane.f32.xlu0 %v5981
  %v5983 = vpop.xlane.xlu0 %5982
  %v5984 = vmax.f32 %v5933, %v5962
  %5985 = vmax.xlane.f32.xlu0 %v5984
  %v5986 = vpop.xlane.xlu0 %5985
  %v5987 = vmax.f32 %v5936, %v5965
  %5988 = vmax.xlane.f32.xlu0 %v5987
  %v5989 = vpop.xlane.xlu0 %5988
  %v5990 = vmax.f32 %v5938, %v5967
  %5991 = vmax.xlane.f32.xlu0 %v5990
  %v5992 = vpop.xlane.xlu0 %5991
  %v5993 = vsub.f32 %v5921, %v5971
  %v5994 = vsub.f32 %v5950, %v5971
  %v5995 = vsub.f32 %v5923, %v5974
  %v5996 = vsub.f32 %v5952, %v5974
  %v5997 = vsub.f32 %v5926, %v5977
  %v5998 = vsub.f32 %v5955, %v5977
  %v5999 = vsub.f32 %v5928, %v5980
  %v6000 = vsub.f32 %v5957, %v5980
  %v6001 = vsub.f32 %v5931, %v5983
  %v6002 = vsub.f32 %v5960, %v5983
  %v6003 = vsub.f32 %v5933, %v5986
  %v6004 = vsub.f32 %v5962, %v5986
  %v6005 = vsub.f32 %v5936, %v5989
  %v6006 = vsub.f32 %v5965, %v5989
  %v6007 = vsub.f32 %v5938, %v5992
  %v6008 = vsub.f32 %v5967, %v5992
  %v6009 = vmul.f32 %v5993, 1.442695
  %v6010 = vpow.pop %v6009
  %v6011 = vmul.f32 %v5994, 1.442695
  %v6012 = vpow.pop %v6011
  %v6013 = vmul.f32 %v5995, 1.442695
  %v6014 = vpow.pop %v6013
  %v6015 = vmul.f32 %v5996, 1.442695
  %v6016 = vpow.pop %v6015
  %v6017 = vmul.f32 %v5997, 1.442695
  %v6018 = vpow.pop %v6017
  %v6019 = vmul.f32 %v5998, 1.442695
  %v6020 = vpow.pop %v6019
  %v6021 = vmul.f32 %v5999, 1.442695
  %v6022 = vpow.pop %v6021
  %v6023 = vmul.f32 %v6000, 1.442695
  %v6024 = vpow.pop %v6023
  %v6025 = vmul.f32 %v6001, 1.442695
  %v6026 = vpow.pop %v6025
  %v6027 = vmul.f32 %v6002, 1.442695
  %v6028 = vpow.pop %v6027
  %v6029 = vmul.f32 %v6003, 1.442695
  %v6030 = vpow.pop %v6029
  %v6031 = vmul.f32 %v6004, 1.442695
  %v6032 = vpow.pop %v6031
  %v6033 = vmul.f32 %v6005, 1.442695
  %v6034 = vpow.pop %v6033
  %v6035 = vmul.f32 %v6006, 1.442695
  %v6036 = vpow.pop %v6035
  %v6037 = vmul.f32 %v6007, 1.442695
  %v6038 = vpow.pop %v6037
  %v6039 = vmul.f32 %v6008, 1.442695
  %v6040 = vpow.pop %v6039
  %v6041 = vadd.f32 %v6010, %v6012
  %6042 = vadd.xlane.f32.xlu0 %v6041
  %v6043 = vpop.xlane.xlu0 %6042
  %v6044 = vadd.f32 %v6014, %v6016
  %6045 = vadd.xlane.f32.xlu0 %v6044
  %v6046 = vpop.xlane.xlu0 %6045
  %v6047 = vadd.f32 %v6018, %v6020
  %6048 = vadd.xlane.f32.xlu0 %v6047
  %v6049 = vpop.xlane.xlu0 %6048
  %v6050 = vadd.f32 %v6022, %v6024
  %6051 = vadd.xlane.f32.xlu0 %v6050
  %v6052 = vpop.xlane.xlu0 %6051
  %v6053 = vadd.f32 %v6026, %v6028
  %6054 = vadd.xlane.f32.xlu0 %v6053
  %v6055 = vpop.xlane.xlu0 %6054
  %v6056 = vadd.f32 %v6030, %v6032
  %6057 = vadd.xlane.f32.xlu0 %v6056
  %v6058 = vpop.xlane.xlu0 %6057
  %v6059 = vadd.f32 %v6034, %v6036
  %6060 = vadd.xlane.f32.xlu0 %v6059
  %v6061 = vpop.xlane.xlu0 %6060
  %v6062 = vadd.f32 %v6038, %v6040
  %6063 = vadd.xlane.f32.xlu0 %v6062
  %v6064 = vpop.xlane.xlu0 %6063
  %v6065 = vrcp.pop %v6043
  %v6066 = vrcp.pop %v6046
  %v6067 = vrcp.pop %v6049
  %v6068 = vrcp.pop %v6052
  %v6069 = vrcp.pop %v6055
  %v6070 = vrcp.pop %v6058
  %v6071 = vrcp.pop %v6061
  %v6072 = vrcp.pop %v6064
  %v6073 = vmul.f32 %v6010, %v6065
  %v6074 = vmul.f32 %v6012, %v6065
  %v6075 = vmul.f32 %v6014, %v6066
  %v6076 = vmul.f32 %v6016, %v6066
  %v6077 = vmul.f32 %v6018, %v6067
  %v6078 = vmul.f32 %v6020, %v6067
  %v6079 = vmul.f32 %v6022, %v6068
  %v6080 = vmul.f32 %v6024, %v6068
  %v6081 = vmul.f32 %v6026, %v6069
  %v6082 = vmul.f32 %v6028, %v6069
  %v6083 = vmul.f32 %v6030, %v6070
  %v6084 = vmul.f32 %v6032, %v6070
  %v6085 = vmul.f32 %v6034, %v6071
  %v6086 = vmul.f32 %v6036, %v6071
  %v6087 = vmul.f32 %v6038, %v6072
  %v6088 = vmul.f32 %v6040, %v6072
  %v6089 = vpack.c.bf16 %v6075, %v6073
  %v6090 = vpack.c.bf16 %v6076, %v6074
  %v6091 = vpack.c.bf16 %v6079, %v6077
  %v6092 = vpack.c.bf16 %v6080, %v6078
  %v6093 = vpack.c.bf16 %v6083, %v6081
  %v6094 = vpack.c.bf16 %v6084, %v6082
  %v6095 = vpack.c.bf16 %v6087, %v6085
  %v6096 = vpack.c.bf16 %v6088, %v6086
  %6097 = vmatpush.bf16.msra.mxu0 %v5526
  %6098 = vmatpush.bf16.msra.mxu0 %v5525
  %6099 = vmatpush.bf16.msra.mxu0 %v5524
  %6100 = vmatpush.bf16.msra.mxu0 %v5523
  %6101 = vmatpush.bf16.msra.mxu0 %v5522
  %6102 = vmatpush.bf16.msra.mxu0 %v5521
  %6103 = vmatpush.bf16.msra.mxu0 %v5520
  %6104 = vmatpush.bf16.msra.mxu0 %v5519
  %6105 = vmatmul.bf16.gmra.mxu0 %v6089
  %v6106 = vpop.f32.mrf.mxu0
  %v6107 = vadd.f32 0.0, %v6106
  %v6108 = vpop.f32.mrf.mxu0
  %v6109 = vadd.f32 0.0, %v6108
  %6110 = vmatmul.bf16.gmra.mxu0 %v6091
  %v6111 = vpop.f32.mrf.mxu0
  %v6112 = vadd.f32 0.0, %v6111
  %v6113 = vpop.f32.mrf.mxu0
  %v6114 = vadd.f32 0.0, %v6113
  %6115 = vmatmul.bf16.gmra.mxu0 %v6093
  %v6116 = vpop.f32.mrf.mxu0
  %v6117 = vadd.f32 0.0, %v6116
  %v6118 = vpop.f32.mrf.mxu0
  %v6119 = vadd.f32 0.0, %v6118
  %6120 = vmatmul.bf16.gmra.mxu0 %v6095
  %v6121 = vpop.f32.mrf.mxu0
  %v6122 = vadd.f32 0.0, %v6121
  %v6123 = vpop.f32.mrf.mxu0
  %v6124 = vadd.f32 0.0, %v6123
  %6125 = vdwg.mxu0
  %6126 = vmatpush.bf16.msra.mxu0 %v5534
  %6127 = vmatpush.bf16.msra.mxu0 %v5533
  %6128 = vmatpush.bf16.msra.mxu0 %v5532
  %6129 = vmatpush.bf16.msra.mxu0 %v5531
  %6130 = vmatpush.bf16.msra.mxu0 %v5530
  %6131 = vmatpush.bf16.msra.mxu0 %v5529
  %6132 = vmatpush.bf16.msra.mxu0 %v5528
  %6133 = vmatpush.bf16.msra.mxu0 %v5527
  %6134 = vmatmul.bf16.gmra.mxu0 %v6090
  %v6135 = vpop.f32.mrf.mxu0
  %v6136 = vadd.f32 %v6107, %v6135
  %v6137 = vpop.f32.mrf.mxu0
  %v6138 = vadd.f32 %v6109, %v6137
  %6139 = vmatmul.bf16.gmra.mxu0 %v6092
  %v6140 = vpop.f32.mrf.mxu0
  %v6141 = vadd.f32 %v6112, %v6140
  %v6142 = vpop.f32.mrf.mxu0
  %v6143 = vadd.f32 %v6114, %v6142
  %6144 = vmatmul.bf16.gmra.mxu0 %v6094
  %v6145 = vpop.f32.mrf.mxu0
  %v6146 = vadd.f32 %v6117, %v6145
  %v6147 = vpop.f32.mrf.mxu0
  %v6148 = vadd.f32 %v6119, %v6147
  %6149 = vmatmul.bf16.gmra.mxu0 %v6096
  %v6150 = vpop.f32.mrf.mxu0
  %v6151 = vadd.f32 %v6122, %v6150
  %v6152 = vpop.f32.mrf.mxu0
  %v6153 = vadd.f32 %v6124, %v6152
  %6154 = vdwg.mxu0
  %6155 = vrot.lane.b32.xlu0 %v5579, 64
  %v6156 = vpop.permute.xlu0 %6155
  %6157 = vrot.lane.b32.xlu0 %v5580, 64
  %v6158 = vpop.permute.xlu0 %6157
  %6159 = vrot.lane.b32.xlu0 %v5581, 64
  %v6160 = vpop.permute.xlu0 %6159
  %6161 = vrot.lane.b32.xlu0 %v5582, 64
  %v6162 = vpop.permute.xlu0 %6161
  %v6164 = vsel %vm380, %v6156, 0
  %v6167 = vsel %vm380, %v6158, 0
  %v6170 = vsel %vm380, %v6160, 0
  %v6173 = vsel %vm380, %v6162, 0
  %6175 = vmatpush.bf16.xpose.msra.mxu0 %v5617
  %6176 = vmatpush.bf16.xpose.msra.mxu0 %v5614
  %6177 = vmatpush.bf16.xpose.msra.mxu0 %v5611
  %6178 = vmatpush.bf16.xpose.msra.mxu0 %v5608
  %6179 = vmatpush.bf16.xpose.msra.mxu0 %v5605
  %6180 = vmatpush.bf16.xpose.msra.mxu0 %v5602
  %6181 = vmatpush.bf16.xpose.msra.mxu0 %v5599
  %6182 = vmatpush.bf16.xpose.msra.mxu0 %v5596
  %6183 = vmatmul.bf16.gmra.mxu0 %v6164
  %v6184 = vpop.f32.mrf.mxu0
  %v6185 = vadd.f32 0.0, %v6184
  %v6186 = vpop.f32.mrf.mxu0
  %v6187 = vadd.f32 0.0, %v6186
  %6188 = vmatmul.bf16.gmra.mxu0 %v6167
  %v6189 = vpop.f32.mrf.mxu0
  %v6190 = vadd.f32 0.0, %v6189
  %v6191 = vpop.f32.mrf.mxu0
  %v6192 = vadd.f32 0.0, %v6191
  %6193 = vmatmul.bf16.gmra.mxu0 %v6170
  %v6194 = vpop.f32.mrf.mxu0
  %v6195 = vadd.f32 0.0, %v6194
  %v6196 = vpop.f32.mrf.mxu0
  %v6197 = vadd.f32 0.0, %v6196
  %6198 = vmatmul.bf16.gmra.mxu0 %v6173
  %v6199 = vpop.f32.mrf.mxu0
  %v6200 = vadd.f32 0.0, %v6199
  %v6201 = vpop.f32.mrf.mxu0
  %v6202 = vadd.f32 0.0, %v6201
  %6203 = vdwg.mxu0
  %6204 = vmatpush.bf16.xpose.msra.mxu0 %v5641
  %6205 = vmatpush.bf16.xpose.msra.mxu0 %v5638
  %6206 = vmatpush.bf16.xpose.msra.mxu0 %v5635
  %6207 = vmatpush.bf16.xpose.msra.mxu0 %v5632
  %6208 = vmatpush.bf16.xpose.msra.mxu0 %v5629
  %6209 = vmatpush.bf16.xpose.msra.mxu0 %v5626
  %6210 = vmatpush.bf16.xpose.msra.mxu0 %v5623
  %6211 = vmatpush.bf16.xpose.msra.mxu0 %v5620
  %6212 = vmatmul.bf16.gmra.mxu0 %v6164
  %v6213 = vpop.f32.mrf.mxu0
  %v6214 = vadd.f32 0.0, %v6213
  %v6215 = vpop.f32.mrf.mxu0
  %v6216 = vadd.f32 0.0, %v6215
  %6217 = vmatmul.bf16.gmra.mxu0 %v6167
  %v6218 = vpop.f32.mrf.mxu0
  %v6219 = vadd.f32 0.0, %v6218
  %v6220 = vpop.f32.mrf.mxu0
  %v6221 = vadd.f32 0.0, %v6220
  %6222 = vmatmul.bf16.gmra.mxu0 %v6170
  %v6223 = vpop.f32.mrf.mxu0
  %v6224 = vadd.f32 0.0, %v6223
  %v6225 = vpop.f32.mrf.mxu0
  %v6226 = vadd.f32 0.0, %v6225
  %6227 = vmatmul.bf16.gmra.mxu0 %v6173
  %v6228 = vpop.f32.mrf.mxu0
  %v6229 = vadd.f32 0.0, %v6228
  %v6230 = vpop.f32.mrf.mxu0
  %v6231 = vadd.f32 0.0, %v6230
  %6232 = vdwg.mxu0
  %v6233 = vmax.f32 %v6185, %v6214
  %6234 = vmax.xlane.f32.xlu0 %v6233
  %v6235 = vpop.xlane.xlu0 %6234
  %v6236 = vmax.f32 %v6187, %v6216
  %6237 = vmax.xlane.f32.xlu0 %v6236
  %v6238 = vpop.xlane.xlu0 %6237
  %v6239 = vmax.f32 %v6190, %v6219
  %6240 = vmax.xlane.f32.xlu0 %v6239
  %v6241 = vpop.xlane.xlu0 %6240
  %v6242 = vmax.f32 %v6192, %v6221
  %6243 = vmax.xlane.f32.xlu0 %v6242
  %v6244 = vpop.xlane.xlu0 %6243
  %v6245 = vmax.f32 %v6195, %v6224
  %6246 = vmax.xlane.f32.xlu0 %v6245
  %v6247 = vpop.xlane.xlu0 %6246
  %v6248 = vmax.f32 %v6197, %v6226
  %6249 = vmax.xlane.f32.xlu0 %v6248
  %v6250 = vpop.xlane.xlu0 %6249
  %v6251 = vmax.f32 %v6200, %v6229
  %6252 = vmax.xlane.f32.xlu0 %v6251
  %v6253 = vpop.xlane.xlu0 %6252
  %v6254 = vmax.f32 %v6202, %v6231
  %6255 = vmax.xlane.f32.xlu0 %v6254
  %v6256 = vpop.xlane.xlu0 %6255
  %v6257 = vsub.f32 %v6185, %v6235
  %v6258 = vsub.f32 %v6214, %v6235
  %v6259 = vsub.f32 %v6187, %v6238
  %v6260 = vsub.f32 %v6216, %v6238
  %v6261 = vsub.f32 %v6190, %v6241
  %v6262 = vsub.f32 %v6219, %v6241
  %v6263 = vsub.f32 %v6192, %v6244
  %v6264 = vsub.f32 %v6221, %v6244
  %v6265 = vsub.f32 %v6195, %v6247
  %v6266 = vsub.f32 %v6224, %v6247
  %v6267 = vsub.f32 %v6197, %v6250
  %v6268 = vsub.f32 %v6226, %v6250
  %v6269 = vsub.f32 %v6200, %v6253
  %v6270 = vsub.f32 %v6229, %v6253
  %v6271 = vsub.f32 %v6202, %v6256
  %v6272 = vsub.f32 %v6231, %v6256
  %v6273 = vmul.f32 %v6257, 1.442695
  %v6274 = vpow.pop %v6273
  %v6275 = vmul.f32 %v6258, 1.442695
  %v6276 = vpow.pop %v6275
  %v6277 = vmul.f32 %v6259, 1.442695
  %v6278 = vpow.pop %v6277
  %v6279 = vmul.f32 %v6260, 1.442695
  %v6280 = vpow.pop %v6279
  %v6281 = vmul.f32 %v6261, 1.442695
  %v6282 = vpow.pop %v6281
  %v6283 = vmul.f32 %v6262, 1.442695
  %v6284 = vpow.pop %v6283
  %v6285 = vmul.f32 %v6263, 1.442695
  %v6286 = vpow.pop %v6285
  %v6287 = vmul.f32 %v6264, 1.442695
  %v6288 = vpow.pop %v6287
  %v6289 = vmul.f32 %v6265, 1.442695
  %v6290 = vpow.pop %v6289
  %v6291 = vmul.f32 %v6266, 1.442695
  %v6292 = vpow.pop %v6291
  %v6293 = vmul.f32 %v6267, 1.442695
  %v6294 = vpow.pop %v6293
  %v6295 = vmul.f32 %v6268, 1.442695
  %v6296 = vpow.pop %v6295
  %v6297 = vmul.f32 %v6269, 1.442695
  %v6298 = vpow.pop %v6297
  %v6299 = vmul.f32 %v6270, 1.442695
  %v6300 = vpow.pop %v6299
  %v6301 = vmul.f32 %v6271, 1.442695
  %v6302 = vpow.pop %v6301
  %v6303 = vmul.f32 %v6272, 1.442695
  %v6304 = vpow.pop %v6303
  %v6305 = vadd.f32 %v6274, %v6276
  %6306 = vadd.xlane.f32.xlu0 %v6305
  %v6307 = vpop.xlane.xlu0 %6306
  %v6308 = vadd.f32 %v6278, %v6280
  %6309 = vadd.xlane.f32.xlu0 %v6308
  %v6310 = vpop.xlane.xlu0 %6309
  %v6311 = vadd.f32 %v6282, %v6284
  %6312 = vadd.xlane.f32.xlu0 %v6311
  %v6313 = vpop.xlane.xlu0 %6312
  %v6314 = vadd.f32 %v6286, %v6288
  %6315 = vadd.xlane.f32.xlu0 %v6314
  %v6316 = vpop.xlane.xlu0 %6315
  %v6317 = vadd.f32 %v6290, %v6292
  %6318 = vadd.xlane.f32.xlu0 %v6317
  %v6319 = vpop.xlane.xlu0 %6318
  %v6320 = vadd.f32 %v6294, %v6296
  %6321 = vadd.xlane.f32.xlu0 %v6320
  %v6322 = vpop.xlane.xlu0 %6321
  %v6323 = vadd.f32 %v6298, %v6300
  %6324 = vadd.xlane.f32.xlu0 %v6323
  %v6325 = vpop.xlane.xlu0 %6324
  %v6326 = vadd.f32 %v6302, %v6304
  %6327 = vadd.xlane.f32.xlu0 %v6326
  %v6328 = vpop.xlane.xlu0 %6327
  %v6329 = vrcp.pop %v6307
  %v6330 = vrcp.pop %v6310
  %v6331 = vrcp.pop %v6313
  %v6332 = vrcp.pop %v6316
  %v6333 = vrcp.pop %v6319
  %v6334 = vrcp.pop %v6322
  %v6335 = vrcp.pop %v6325
  %v6336 = vrcp.pop %v6328
  %v6337 = vmul.f32 %v6274, %v6329
  %v6338 = vmul.f32 %v6276, %v6329
  %v6339 = vmul.f32 %v6278, %v6330
  %v6340 = vmul.f32 %v6280, %v6330
  %v6341 = vmul.f32 %v6282, %v6331
  %v6342 = vmul.f32 %v6284, %v6331
  %v6343 = vmul.f32 %v6286, %v6332
  %v6344 = vmul.f32 %v6288, %v6332
  %v6345 = vmul.f32 %v6290, %v6333
  %v6346 = vmul.f32 %v6292, %v6333
  %v6347 = vmul.f32 %v6294, %v6334
  %v6348 = vmul.f32 %v6296, %v6334
  %v6349 = vmul.f32 %v6298, %v6335
  %v6350 = vmul.f32 %v6300, %v6335
  %v6351 = vmul.f32 %v6302, %v6336
  %v6352 = vmul.f32 %v6304, %v6336
  %v6353 = vpack.c.bf16 %v6339, %v6337
  %v6354 = vpack.c.bf16 %v6340, %v6338
  %v6355 = vpack.c.bf16 %v6343, %v6341
  %v6356 = vpack.c.bf16 %v6344, %v6342
  %v6357 = vpack.c.bf16 %v6347, %v6345
  %v6358 = vpack.c.bf16 %v6348, %v6346
  %v6359 = vpack.c.bf16 %v6351, %v6349
  %v6360 = vpack.c.bf16 %v6352, %v6350
  %6361 = vmatpush.bf16.msra.mxu0 %v5526
  %6362 = vmatpush.bf16.msra.mxu0 %v5525
  %6363 = vmatpush.bf16.msra.mxu0 %v5524
  %6364 = vmatpush.bf16.msra.mxu0 %v5523
  %6365 = vmatpush.bf16.msra.mxu0 %v5522
  %6366 = vmatpush.bf16.msra.mxu0 %v5521
  %6367 = vmatpush.bf16.msra.mxu0 %v5520
  %6368 = vmatpush.bf16.msra.mxu0 %v5519
  %6369 = vmatmul.bf16.gmra.mxu0 %v6353
  %v6370 = vpop.f32.mrf.mxu0
  %v6371 = vadd.f32 0.0, %v6370
  %v6372 = vpop.f32.mrf.mxu0
  %v6373 = vadd.f32 0.0, %v6372
  %6374 = vmatmul.bf16.gmra.mxu0 %v6355
  %v6375 = vpop.f32.mrf.mxu0
  %v6376 = vadd.f32 0.0, %v6375
  %v6377 = vpop.f32.mrf.mxu0
  %v6378 = vadd.f32 0.0, %v6377
  %6379 = vmatmul.bf16.gmra.mxu0 %v6357
  %v6380 = vpop.f32.mrf.mxu0
  %v6381 = vadd.f32 0.0, %v6380
  %v6382 = vpop.f32.mrf.mxu0
  %v6383 = vadd.f32 0.0, %v6382
  %6384 = vmatmul.bf16.gmra.mxu0 %v6359
  %v6385 = vpop.f32.mrf.mxu0
  %v6386 = vadd.f32 0.0, %v6385
  %v6387 = vpop.f32.mrf.mxu0
  %v6388 = vadd.f32 0.0, %v6387
  %6389 = vdwg.mxu0
  %6390 = vmatpush.bf16.msra.mxu0 %v5534
  %6391 = vmatpush.bf16.msra.mxu0 %v5533
  %6392 = vmatpush.bf16.msra.mxu0 %v5532
  %6393 = vmatpush.bf16.msra.mxu0 %v5531
  %6394 = vmatpush.bf16.msra.mxu0 %v5530
  %6395 = vmatpush.bf16.msra.mxu0 %v5529
  %6396 = vmatpush.bf16.msra.mxu0 %v5528
  %6397 = vmatpush.bf16.msra.mxu0 %v5527
  %6398 = vmatmul.bf16.gmra.mxu0 %v6354
  %v6399 = vpop.f32.mrf.mxu0
  %v6400 = vadd.f32 %v6371, %v6399
  %v6401 = vpop.f32.mrf.mxu0
  %v6402 = vadd.f32 %v6373, %v6401
  %6403 = vmatmul.bf16.gmra.mxu0 %v6356
  %v6404 = vpop.f32.mrf.mxu0
  %v6405 = vadd.f32 %v6376, %v6404
  %v6406 = vpop.f32.mrf.mxu0
  %v6407 = vadd.f32 %v6378, %v6406
  %6408 = vmatmul.bf16.gmra.mxu0 %v6358
  %v6409 = vpop.f32.mrf.mxu0
  %v6410 = vadd.f32 %v6381, %v6409
  %v6411 = vpop.f32.mrf.mxu0
  %v6412 = vadd.f32 %v6383, %v6411
  %6413 = vmatmul.bf16.gmra.mxu0 %v6360
  %v6414 = vpop.f32.mrf.mxu0
  %v6415 = vadd.f32 %v6386, %v6414
  %v6416 = vpop.f32.mrf.mxu0
  %v6417 = vadd.f32 %v6388, %v6416
  %6418 = vdwg.mxu0
  %6419 = vrot.lane.b32.xlu0 %v5579, 32
  %v6420 = vpop.permute.xlu0 %6419
  %6421 = vrot.lane.b32.xlu0 %v5580, 32
  %v6422 = vpop.permute.xlu0 %6421
  %6423 = vrot.lane.b32.xlu0 %v5581, 32
  %v6424 = vpop.permute.xlu0 %6423
  %6425 = vrot.lane.b32.xlu0 %v5582, 32
  %v6426 = vpop.permute.xlu0 %6425
  %v6428 = vsel %vm380, %v6420, 0
  %v6431 = vsel %vm380, %v6422, 0
  %v6434 = vsel %vm380, %v6424, 0
  %v6437 = vsel %vm380, %v6426, 0
  %6439 = vmatpush.bf16.xpose.msra.mxu0 %v5617
  %6440 = vmatpush.bf16.xpose.msra.mxu0 %v5614
  %6441 = vmatpush.bf16.xpose.msra.mxu0 %v5611
  %6442 = vmatpush.bf16.xpose.msra.mxu0 %v5608
  %6443 = vmatpush.bf16.xpose.msra.mxu0 %v5605
  %6444 = vmatpush.bf16.xpose.msra.mxu0 %v5602
  %6445 = vmatpush.bf16.xpose.msra.mxu0 %v5599
  %6446 = vmatpush.bf16.xpose.msra.mxu0 %v5596
  %6447 = vmatmul.bf16.gmra.mxu0 %v6428
  %v6448 = vpop.f32.mrf.mxu0
  %v6449 = vadd.f32 0.0, %v6448
  %v6450 = vpop.f32.mrf.mxu0
  %v6451 = vadd.f32 0.0, %v6450
  %6452 = vmatmul.bf16.gmra.mxu0 %v6431
  %v6453 = vpop.f32.mrf.mxu0
  %v6454 = vadd.f32 0.0, %v6453
  %v6455 = vpop.f32.mrf.mxu0
  %v6456 = vadd.f32 0.0, %v6455
  %6457 = vmatmul.bf16.gmra.mxu0 %v6434
  %v6458 = vpop.f32.mrf.mxu0
  %v6459 = vadd.f32 0.0, %v6458
  %v6460 = vpop.f32.mrf.mxu0
  %v6461 = vadd.f32 0.0, %v6460
  %6462 = vmatmul.bf16.gmra.mxu0 %v6437
  %v6463 = vpop.f32.mrf.mxu0
  %v6464 = vadd.f32 0.0, %v6463
  %v6465 = vpop.f32.mrf.mxu0
  %v6466 = vadd.f32 0.0, %v6465
  %6467 = vdwg.mxu0
  %6468 = vmatpush.bf16.xpose.msra.mxu0 %v5641
  %6469 = vmatpush.bf16.xpose.msra.mxu0 %v5638
  %6470 = vmatpush.bf16.xpose.msra.mxu0 %v5635
  %6471 = vmatpush.bf16.xpose.msra.mxu0 %v5632
  %6472 = vmatpush.bf16.xpose.msra.mxu0 %v5629
  %6473 = vmatpush.bf16.xpose.msra.mxu0 %v5626
  %6474 = vmatpush.bf16.xpose.msra.mxu0 %v5623
  %6475 = vmatpush.bf16.xpose.msra.mxu0 %v5620
  %6476 = vmatmul.bf16.gmra.mxu0 %v6428
  %v6477 = vpop.f32.mrf.mxu0
  %v6478 = vadd.f32 0.0, %v6477
  %v6479 = vpop.f32.mrf.mxu0
  %v6480 = vadd.f32 0.0, %v6479
  %6481 = vmatmul.bf16.gmra.mxu0 %v6431
  %v6482 = vpop.f32.mrf.mxu0
  %v6483 = vadd.f32 0.0, %v6482
  %v6484 = vpop.f32.mrf.mxu0
  %v6485 = vadd.f32 0.0, %v6484
  %6486 = vmatmul.bf16.gmra.mxu0 %v6434
  %v6487 = vpop.f32.mrf.mxu0
  %v6488 = vadd.f32 0.0, %v6487
  %v6489 = vpop.f32.mrf.mxu0
  %v6490 = vadd.f32 0.0, %v6489
  %6491 = vmatmul.bf16.gmra.mxu0 %v6437
  %v6492 = vpop.f32.mrf.mxu0
  %v6493 = vadd.f32 0.0, %v6492
  %v6494 = vpop.f32.mrf.mxu0
  %v6495 = vadd.f32 0.0, %v6494
  %6496 = vdwg.mxu0
  %v6497 = vmax.f32 %v6449, %v6478
  %6498 = vmax.xlane.f32.xlu0 %v6497
  %v6499 = vpop.xlane.xlu0 %6498
  %v6500 = vmax.f32 %v6451, %v6480
  %6501 = vmax.xlane.f32.xlu0 %v6500
  %v6502 = vpop.xlane.xlu0 %6501
  %v6503 = vmax.f32 %v6454, %v6483
  %6504 = vmax.xlane.f32.xlu0 %v6503
  %v6505 = vpop.xlane.xlu0 %6504
  %v6506 = vmax.f32 %v6456, %v6485
  %6507 = vmax.xlane.f32.xlu0 %v6506
  %v6508 = vpop.xlane.xlu0 %6507
  %v6509 = vmax.f32 %v6459, %v6488
  %6510 = vmax.xlane.f32.xlu0 %v6509
  %v6511 = vpop.xlane.xlu0 %6510
  %v6512 = vmax.f32 %v6461, %v6490
  %6513 = vmax.xlane.f32.xlu0 %v6512
  %v6514 = vpop.xlane.xlu0 %6513
  %v6515 = vmax.f32 %v6464, %v6493
  %6516 = vmax.xlane.f32.xlu0 %v6515
  %v6517 = vpop.xlane.xlu0 %6516
  %v6518 = vmax.f32 %v6466, %v6495
  %6519 = vmax.xlane.f32.xlu0 %v6518
  %v6520 = vpop.xlane.xlu0 %6519
  %v6521 = vsub.f32 %v6449, %v6499
  %v6522 = vsub.f32 %v6478, %v6499
  %v6523 = vsub.f32 %v6451, %v6502
  %v6524 = vsub.f32 %v6480, %v6502
  %v6525 = vsub.f32 %v6454, %v6505
  %v6526 = vsub.f32 %v6483, %v6505
  %v6527 = vsub.f32 %v6456, %v6508
  %v6528 = vsub.f32 %v6485, %v6508
  %v6529 = vsub.f32 %v6459, %v6511
  %v6530 = vsub.f32 %v6488, %v6511
  %v6531 = vsub.f32 %v6461, %v6514
  %v6532 = vsub.f32 %v6490, %v6514
  %v6533 = vsub.f32 %v6464, %v6517
  %v6534 = vsub.f32 %v6493, %v6517
  %v6535 = vsub.f32 %v6466, %v6520
  %v6536 = vsub.f32 %v6495, %v6520
  %v6537 = vmul.f32 %v6521, 1.442695
  %v6538 = vpow.pop %v6537
  %v6539 = vmul.f32 %v6522, 1.442695
  %v6540 = vpow.pop %v6539
  %v6541 = vmul.f32 %v6523, 1.442695
  %v6542 = vpow.pop %v6541
  %v6543 = vmul.f32 %v6524, 1.442695
  %v6544 = vpow.pop %v6543
  %v6545 = vmul.f32 %v6525, 1.442695
  %v6546 = vpow.pop %v6545
  %v6547 = vmul.f32 %v6526, 1.442695
  %v6548 = vpow.pop %v6547
  %v6549 = vmul.f32 %v6527, 1.442695
  %v6550 = vpow.pop %v6549
  %v6551 = vmul.f32 %v6528, 1.442695
  %v6552 = vpow.pop %v6551
  %v6553 = vmul.f32 %v6529, 1.442695
  %v6554 = vpow.pop %v6553
  %v6555 = vmul.f32 %v6530, 1.442695
  %v6556 = vpow.pop %v6555
  %v6557 = vmul.f32 %v6531, 1.442695
  %v6558 = vpow.pop %v6557
  %v6559 = vmul.f32 %v6532, 1.442695
  %v6560 = vpow.pop %v6559
  %v6561 = vmul.f32 %v6533, 1.442695
  %v6562 = vpow.pop %v6561
  %v6563 = vmul.f32 %v6534, 1.442695
  %v6564 = vpow.pop %v6563
  %v6565 = vmul.f32 %v6535, 1.442695
  %v6566 = vpow.pop %v6565
  %v6567 = vmul.f32 %v6536, 1.442695
  %v6568 = vpow.pop %v6567
  %v6569 = vadd.f32 %v6538, %v6540
  %6570 = vadd.xlane.f32.xlu0 %v6569
  %v6571 = vpop.xlane.xlu0 %6570
  %v6572 = vadd.f32 %v6542, %v6544
  %6573 = vadd.xlane.f32.xlu0 %v6572
  %v6574 = vpop.xlane.xlu0 %6573
  %v6575 = vadd.f32 %v6546, %v6548
  %6576 = vadd.xlane.f32.xlu0 %v6575
  %v6577 = vpop.xlane.xlu0 %6576
  %v6578 = vadd.f32 %v6550, %v6552
  %6579 = vadd.xlane.f32.xlu0 %v6578
  %v6580 = vpop.xlane.xlu0 %6579
  %v6581 = vadd.f32 %v6554, %v6556
  %6582 = vadd.xlane.f32.xlu0 %v6581
  %v6583 = vpop.xlane.xlu0 %6582
  %v6584 = vadd.f32 %v6558, %v6560
  %6585 = vadd.xlane.f32.xlu0 %v6584
  %v6586 = vpop.xlane.xlu0 %6585
  %v6587 = vadd.f32 %v6562, %v6564
  %6588 = vadd.xlane.f32.xlu0 %v6587
  %v6589 = vpop.xlane.xlu0 %6588
  %v6590 = vadd.f32 %v6566, %v6568
  %6591 = vadd.xlane.f32.xlu0 %v6590
  %v6592 = vpop.xlane.xlu0 %6591
  %v6593 = vrcp.pop %v6571
  %v6594 = vrcp.pop %v6574
  %v6595 = vrcp.pop %v6577
  %v6596 = vrcp.pop %v6580
  %v6597 = vrcp.pop %v6583
  %v6598 = vrcp.pop %v6586
  %v6599 = vrcp.pop %v6589
  %v6600 = vrcp.pop %v6592
  %v6601 = vmul.f32 %v6538, %v6593
  %v6602 = vmul.f32 %v6540, %v6593
  %v6603 = vmul.f32 %v6542, %v6594
  %v6604 = vmul.f32 %v6544, %v6594
  %v6605 = vmul.f32 %v6546, %v6595
  %v6606 = vmul.f32 %v6548, %v6595
  %v6607 = vmul.f32 %v6550, %v6596
  %v6608 = vmul.f32 %v6552, %v6596
  %v6609 = vmul.f32 %v6554, %v6597
  %v6610 = vmul.f32 %v6556, %v6597
  %v6611 = vmul.f32 %v6558, %v6598
  %v6612 = vmul.f32 %v6560, %v6598
  %v6613 = vmul.f32 %v6562, %v6599
  %v6614 = vmul.f32 %v6564, %v6599
  %v6615 = vmul.f32 %v6566, %v6600
  %v6616 = vmul.f32 %v6568, %v6600
  %v6617 = vpack.c.bf16 %v6603, %v6601
  %v6618 = vpack.c.bf16 %v6604, %v6602
  %v6619 = vpack.c.bf16 %v6607, %v6605
  %v6620 = vpack.c.bf16 %v6608, %v6606
  %v6621 = vpack.c.bf16 %v6611, %v6609
  %v6622 = vpack.c.bf16 %v6612, %v6610
  %v6623 = vpack.c.bf16 %v6615, %v6613
  %v6624 = vpack.c.bf16 %v6616, %v6614
  %6625 = vmatpush.bf16.msra.mxu0 %v5526
  %6626 = vmatpush.bf16.msra.mxu0 %v5525
  %6627 = vmatpush.bf16.msra.mxu0 %v5524
  %6628 = vmatpush.bf16.msra.mxu0 %v5523
  %6629 = vmatpush.bf16.msra.mxu0 %v5522
  %6630 = vmatpush.bf16.msra.mxu0 %v5521
  %6631 = vmatpush.bf16.msra.mxu0 %v5520
  %6632 = vmatpush.bf16.msra.mxu0 %v5519
  %6633 = vmatmul.bf16.gmra.mxu0 %v6617
  %v6634 = vpop.f32.mrf.mxu0
  %v6635 = vadd.f32 0.0, %v6634
  %v6636 = vpop.f32.mrf.mxu0
  %v6637 = vadd.f32 0.0, %v6636
  %6638 = vmatmul.bf16.gmra.mxu0 %v6619
  %v6639 = vpop.f32.mrf.mxu0
  %v6640 = vadd.f32 0.0, %v6639
  %v6641 = vpop.f32.mrf.mxu0
  %v6642 = vadd.f32 0.0, %v6641
  %6643 = vmatmul.bf16.gmra.mxu0 %v6621
  %v6644 = vpop.f32.mrf.mxu0
  %v6645 = vadd.f32 0.0, %v6644
  %v6646 = vpop.f32.mrf.mxu0
  %v6647 = vadd.f32 0.0, %v6646
  %6648 = vmatmul.bf16.gmra.mxu0 %v6623
  %v6649 = vpop.f32.mrf.mxu0
  %v6650 = vadd.f32 0.0, %v6649
  %v6651 = vpop.f32.mrf.mxu0
  %v6652 = vadd.f32 0.0, %v6651
  %6653 = vdwg.mxu0
  %6654 = vmatpush.bf16.msra.mxu0 %v5534
  %6655 = vmatpush.bf16.msra.mxu0 %v5533
  %6656 = vmatpush.bf16.msra.mxu0 %v5532
  %6657 = vmatpush.bf16.msra.mxu0 %v5531
  %6658 = vmatpush.bf16.msra.mxu0 %v5530
  %6659 = vmatpush.bf16.msra.mxu0 %v5529
  %6660 = vmatpush.bf16.msra.mxu0 %v5528
  %6661 = vmatpush.bf16.msra.mxu0 %v5527
  %6662 = vmatmul.bf16.gmra.mxu0 %v6618
  %v6663 = vpop.f32.mrf.mxu0
  %v6664 = vadd.f32 %v6635, %v6663
  %v6665 = vpop.f32.mrf.mxu0
  %v6666 = vadd.f32 %v6637, %v6665
  %6667 = vmatmul.bf16.gmra.mxu0 %v6620
  %v6668 = vpop.f32.mrf.mxu0
  %v6669 = vadd.f32 %v6640, %v6668
  %v6670 = vpop.f32.mrf.mxu0
  %v6671 = vadd.f32 %v6642, %v6670
  %6672 = vmatmul.bf16.gmra.mxu0 %v6622
  %v6673 = vpop.f32.mrf.mxu0
  %v6674 = vadd.f32 %v6645, %v6673
  %v6675 = vpop.f32.mrf.mxu0
  %v6676 = vadd.f32 %v6647, %v6675
  %6677 = vmatmul.bf16.gmra.mxu0 %v6624
  %v6678 = vpop.f32.mrf.mxu0
  %v6679 = vadd.f32 %v6650, %v6678
  %v6680 = vpop.f32.mrf.mxu0
  %v6681 = vadd.f32 %v6652, %v6680
  %6682 = vdwg.mxu0
  %6691 = vrot.lane.b32.xlu0 %v6136, 32
  %v6692 = vpop.permute.xlu0 %6691
  %6693 = vrot.lane.b32.xlu0 %v6138, 32
  %v6694 = vpop.permute.xlu0 %6693
  %6695 = vrot.lane.b32.xlu0 %v6141, 32
  %v6696 = vpop.permute.xlu0 %6695
  %6697 = vrot.lane.b32.xlu0 %v6143, 32
  %v6698 = vpop.permute.xlu0 %6697
  %6699 = vrot.lane.b32.xlu0 %v6146, 32
  %v6700 = vpop.permute.xlu0 %6699
  %6701 = vrot.lane.b32.xlu0 %v6148, 32
  %v6702 = vpop.permute.xlu0 %6701
  %6703 = vrot.lane.b32.xlu0 %v6151, 32
  %v6704 = vpop.permute.xlu0 %6703
  %6705 = vrot.lane.b32.xlu0 %v6153, 32
  %v6706 = vpop.permute.xlu0 %6705
  %6723 = vrot.lane.b32.xlu0 %v6400, 64
  %v6724 = vpop.permute.xlu0 %6723
  %6725 = vrot.lane.b32.xlu0 %v6402, 64
  %v6726 = vpop.permute.xlu0 %6725
  %6727 = vrot.lane.b32.xlu0 %v6405, 64
  %v6728 = vpop.permute.xlu0 %6727
  %6729 = vrot.lane.b32.xlu0 %v6407, 64
  %v6730 = vpop.permute.xlu0 %6729
  %6731 = vrot.lane.b32.xlu0 %v6410, 64
  %v6732 = vpop.permute.xlu0 %6731
  %6733 = vrot.lane.b32.xlu0 %v6412, 64
  %v6734 = vpop.permute.xlu0 %6733
  %6735 = vrot.lane.b32.xlu0 %v6415, 64
  %v6736 = vpop.permute.xlu0 %6735
  %6737 = vrot.lane.b32.xlu0 %v6417, 64
  %v6738 = vpop.permute.xlu0 %6737
  %6755 = vrot.lane.b32.xlu0 %v6664, 96
  %v6756 = vpop.permute.xlu0 %6755
  %6757 = vrot.lane.b32.xlu0 %v6666, 96
  %v6758 = vpop.permute.xlu0 %6757
  %6759 = vrot.lane.b32.xlu0 %v6669, 96
  %v6760 = vpop.permute.xlu0 %6759
  %6761 = vrot.lane.b32.xlu0 %v6671, 96
  %v6762 = vpop.permute.xlu0 %6761
  %6763 = vrot.lane.b32.xlu0 %v6674, 96
  %v6764 = vpop.permute.xlu0 %6763
  %6765 = vrot.lane.b32.xlu0 %v6676, 96
  %v6766 = vpop.permute.xlu0 %6765
  %6767 = vrot.lane.b32.xlu0 %v6679, 96
  %v6768 = vpop.permute.xlu0 %6767
  %6769 = vrot.lane.b32.xlu0 %v6681, 96
  %v6770 = vpop.permute.xlu0 %6769
  %v6779 = vsel %vm380, %v5868, %v6692
  %v6780 = vsel %vm380, %v5870, %v6694
  %v6781 = vsel %vm380, %v5873, %v6696
  %v6782 = vsel %vm380, %v5875, %v6698
  %v6783 = vsel %vm380, %v5878, %v6700
  %v6784 = vsel %vm380, %v5880, %v6702
  %v6785 = vsel %vm380, %v5883, %v6704
  %v6786 = vsel %vm380, %v5885, %v6706
  %v6787 = vsel %vm683, %v6779, %v6724
  %v6788 = vsel %vm683, %v6780, %v6726
  %v6789 = vsel %vm683, %v6781, %v6728
  %v6790 = vsel %vm683, %v6782, %v6730
  %v6791 = vsel %vm683, %v6783, %v6732
  %v6792 = vsel %vm683, %v6784, %v6734
  %v6793 = vsel %vm683, %v6785, %v6736
  %v6794 = vsel %vm683, %v6786, %v6738
  %v6795 = vsel %vm3675, %v6787, %v6756
  %v6796 = vsel %vm3675, %v6788, %v6758
  %v6797 = vsel %vm3675, %v6789, %v6760
  %v6798 = vsel %vm3675, %v6790, %v6762
  %v6799 = vsel %vm3675, %v6791, %v6764
  %v6800 = vsel %vm3675, %v6792, %v6766
  %v6801 = vsel %vm3675, %v6793, %v6768
  %v6802 = vsel %vm3675, %v6794, %v6770
  %v6803 = vpack.c.bf16 %v6796, %v6795
  %v6804 = vpack.c.bf16 %v6798, %v6797
  %v6805 = vpack.c.bf16 %v6800, %v6799
  %v6806 = vpack.c.bf16 %v6802, %v6801
  %v6823 = vunpack.c.l.b16 %v139
  %v6824 = vunpack.c.l.b16 %v140
  %v6825 = vunpack.c.l.b16 %v141
  %v6826 = vunpack.c.l.b16 %v142
  %v6827 = vunpack.c.l.b16 %v143
  %v6828 = vunpack.c.l.b16 %v144
  %v6829 = vunpack.c.l.b16 %v145
  %v6830 = vunpack.c.l.b16 %v146
  %v6831 = vunpack.c.l.b16 %v147
  %v6832 = vunpack.c.l.b16 %v148
  %v6833 = vunpack.c.l.b16 %v149
  %v6834 = vunpack.c.l.b16 %v150
  %v6835 = vunpack.c.l.b16 %v151
  %v6836 = vunpack.c.l.b16 %v152
  %v6837 = vunpack.c.l.b16 %v153
  %v6838 = vunpack.c.l.b16 %v154
  %v6839 = vpack.c.b16 %v6824, %v6823
  %v6840 = vpack.c.b16 %v6826, %v6825
  %v6841 = vpack.c.b16 %v6828, %v6827
  %v6842 = vpack.c.b16 %v6830, %v6829
  %v6843 = vpack.c.b16 %v6832, %v6831
  %v6844 = vpack.c.b16 %v6834, %v6833
  %v6845 = vpack.c.b16 %v6836, %v6835
  %v6846 = vpack.c.b16 %v6838, %v6837
  %6855 = vmatpush.bf16.msra.mxu0 %v6846
  %6856 = vmatpush.bf16.msra.mxu0 %v6845
  %6857 = vmatpush.bf16.msra.mxu0 %v6844
  %6858 = vmatpush.bf16.msra.mxu0 %v6843
  %6859 = vmatpush.bf16.msra.mxu0 %v6842
  %6860 = vmatpush.bf16.msra.mxu0 %v6841
  %6861 = vmatpush.bf16.msra.mxu0 %v6840
  %6862 = vmatpush.bf16.msra.mxu0 %v6839
  %6863 = vmatmul.bf16.gmra.mxu0 %v6803
  %v6864 = vpop.f32.mrf.mxu0
  %v6865 = vadd.f32 0.0, %v6864
  %v6866 = vpop.f32.mrf.mxu0
  %v6867 = vadd.f32 0.0, %v6866
  %6868 = vmatmul.bf16.gmra.mxu0 %v6804
  %v6869 = vpop.f32.mrf.mxu0
  %v6870 = vadd.f32 0.0, %v6869
  %v6871 = vpop.f32.mrf.mxu0
  %v6872 = vadd.f32 0.0, %v6871
  %6873 = vmatmul.bf16.gmra.mxu0 %v6805
  %v6874 = vpop.f32.mrf.mxu0
  %v6875 = vadd.f32 0.0, %v6874
  %v6876 = vpop.f32.mrf.mxu0
  %v6877 = vadd.f32 0.0, %v6876
  %6878 = vmatmul.bf16.gmra.mxu0 %v6806
  %v6879 = vpop.f32.mrf.mxu0
  %v6880 = vadd.f32 0.0, %v6879
  %v6881 = vpop.f32.mrf.mxu0
  %v6882 = vadd.f32 0.0, %v6881
  %6883 = vdwg.mxu0
  %v6884 = vpack.c.bf16 %v6867, %v6865
  %v6885 = vpack.c.bf16 %v6872, %v6870
  %v6886 = vpack.c.bf16 %v6877, %v6875
  %v6887 = vpack.c.bf16 %v6882, %v6880
  %v6904 = vunpack.c.l.b16 %v155
  %v6905 = vunpack.c.l.b16 %v156
  %v6906 = vunpack.c.l.b16 %v157
  %v6907 = vunpack.c.l.b16 %v158
  %v6908 = vunpack.c.l.b16 %v159
  %v6909 = vunpack.c.l.b16 %v160
  %v6910 = vunpack.c.l.b16 %v161
  %v6911 = vunpack.c.l.b16 %v162
  %v6912 = vunpack.c.l.b16 %v163
  %v6913 = vunpack.c.l.b16 %v164
  %v6914 = vunpack.c.l.b16 %v165
  %v6915 = vunpack.c.l.b16 %v166
  %v6916 = vunpack.c.l.b16 %v167
  %v6917 = vunpack.c.l.b16 %v168
  %v6918 = vunpack.c.l.b16 %v169
  %v6919 = vunpack.c.l.b16 %v170
  %v6920 = vpack.c.b16 %v6905, %v6904
  %v6921 = vpack.c.b16 %v6907, %v6906
  %v6922 = vpack.c.b16 %v6909, %v6908
  %v6923 = vpack.c.b16 %v6911, %v6910
  %v6924 = vpack.c.b16 %v6913, %v6912
  %v6925 = vpack.c.b16 %v6915, %v6914
  %v6926 = vpack.c.b16 %v6917, %v6916
  %v6927 = vpack.c.b16 %v6919, %v6918
  %6936 = vmatpush.bf16.msra.mxu0 %v6927
  %6937 = vmatpush.bf16.msra.mxu0 %v6926
  %6938 = vmatpush.bf16.msra.mxu0 %v6925
  %6939 = vmatpush.bf16.msra.mxu0 %v6924
  %6940 = vmatpush.bf16.msra.mxu0 %v6923
  %6941 = vmatpush.bf16.msra.mxu0 %v6922
  %6942 = vmatpush.bf16.msra.mxu0 %v6921
  %6943 = vmatpush.bf16.msra.mxu0 %v6920
  %6944 = vmatmul.bf16.gmra.mxu0 %v6884
  %v6945 = vpop.f32.mrf.mxu0
  %v6946 = vadd.f32 0.0, %v6945
  %v6947 = vpop.f32.mrf.mxu0
  %v6948 = vadd.f32 0.0, %v6947
  %6949 = vmatmul.bf16.gmra.mxu0 %v6885
  %v6950 = vpop.f32.mrf.mxu0
  %v6951 = vadd.f32 0.0, %v6950
  %v6952 = vpop.f32.mrf.mxu0
  %v6953 = vadd.f32 0.0, %v6952
  %6954 = vmatmul.bf16.gmra.mxu0 %v6886
  %v6955 = vpop.f32.mrf.mxu0
  %v6956 = vadd.f32 0.0, %v6955
  %v6957 = vpop.f32.mrf.mxu0
  %v6958 = vadd.f32 0.0, %v6957
  %6959 = vmatmul.bf16.gmra.mxu0 %v6887
  %v6960 = vpop.f32.mrf.mxu0
  %v6961 = vadd.f32 0.0, %v6960
  %v6962 = vpop.f32.mrf.mxu0
  %v6963 = vadd.f32 0.0, %v6962
  %6964 = vdwg.mxu0
  %v6965 = vsel %vm4014, %v6946, -inf
  %6966 = vmax.xlane.f32.xlu0 %v6965
  %v6967 = vpop.xlane.xlu0 %6966
  %v6968 = vsel %vm4014, %v6948, -inf
  %6969 = vmax.xlane.f32.xlu0 %v6968
  %v6970 = vpop.xlane.xlu0 %6969
  %v6971 = vsel %vm4014, %v6951, -inf
  %6972 = vmax.xlane.f32.xlu0 %v6971
  %v6973 = vpop.xlane.xlu0 %6972
  %v6974 = vsel %vm4014, %v6953, -inf
  %6975 = vmax.xlane.f32.xlu0 %v6974
  %v6976 = vpop.xlane.xlu0 %6975
  %v6977 = vsel %vm4014, %v6956, -inf
  %6978 = vmax.xlane.f32.xlu0 %v6977
  %v6979 = vpop.xlane.xlu0 %6978
  %v6980 = vsel %vm4014, %v6958, -inf
  %6981 = vmax.xlane.f32.xlu0 %v6980
  %v6982 = vpop.xlane.xlu0 %6981
  %v6983 = vsel %vm4014, %v6961, -inf
  %6984 = vmax.xlane.f32.xlu0 %v6983
  %v6985 = vpop.xlane.xlu0 %6984
  %v6986 = vsel %vm4014, %v6963, -inf
  %6987 = vmax.xlane.f32.xlu0 %v6986
  %v6988 = vpop.xlane.xlu0 %6987
  %v6989 = vsub.f32 %v6946, %v6967
  %v6990 = vsub.f32 %v6948, %v6970
  %v6991 = vsub.f32 %v6951, %v6973
  %v6992 = vsub.f32 %v6953, %v6976
  %v6993 = vsub.f32 %v6956, %v6979
  %v6994 = vsub.f32 %v6958, %v6982
  %v6995 = vsub.f32 %v6961, %v6985
  %v6996 = vsub.f32 %v6963, %v6988
  %v6997 = vmul.f32 %v6989, 1.442695
  %v6998 = vpow.pop %v6997
  %v6999 = vmul.f32 %v6990, 1.442695
  %v7000 = vpow.pop %v6999
  %v7001 = vmul.f32 %v6991, 1.442695
  %v7002 = vpow.pop %v7001
  %v7003 = vmul.f32 %v6992, 1.442695
  %v7004 = vpow.pop %v7003
  %v7005 = vmul.f32 %v6993, 1.442695
  %v7006 = vpow.pop %v7005
  %v7007 = vmul.f32 %v6994, 1.442695
  %v7008 = vpow.pop %v7007
  %v7009 = vmul.f32 %v6995, 1.442695
  %v7010 = vpow.pop %v7009
  %v7011 = vmul.f32 %v6996, 1.442695
  %v7012 = vpow.pop %v7011
  %v7013 = vsel %vm4014, %v6998, 0.0
  %7014 = vadd.xlane.f32.xlu0 %v7013
  %v7015 = vpop.xlane.xlu0 %7014
  %v7016 = vsel %vm4014, %v7000, 0.0
  %7017 = vadd.xlane.f32.xlu0 %v7016
  %v7018 = vpop.xlane.xlu0 %7017
  %v7019 = vsel %vm4014, %v7002, 0.0
  %7020 = vadd.xlane.f32.xlu0 %v7019
  %v7021 = vpop.xlane.xlu0 %7020
  %v7022 = vsel %vm4014, %v7004, 0.0
  %7023 = vadd.xlane.f32.xlu0 %v7022
  %v7024 = vpop.xlane.xlu0 %7023
  %v7025 = vsel %vm4014, %v7006, 0.0
  %7026 = vadd.xlane.f32.xlu0 %v7025
  %v7027 = vpop.xlane.xlu0 %7026
  %v7028 = vsel %vm4014, %v7008, 0.0
  %7029 = vadd.xlane.f32.xlu0 %v7028
  %v7030 = vpop.xlane.xlu0 %7029
  %v7031 = vsel %vm4014, %v7010, 0.0
  %7032 = vadd.xlane.f32.xlu0 %v7031
  %v7033 = vpop.xlane.xlu0 %7032
  %v7034 = vsel %vm4014, %v7012, 0.0
  %7035 = vadd.xlane.f32.xlu0 %v7034
  %v7036 = vpop.xlane.xlu0 %7035
  %7038 = vset.pattern.permute.xlu0 0
  %7039 = vperm.xlu0 %7038, %v6998
  %v7040 = vpop.permute.xlu0 %7039
  %7043 = vset.pattern.permute.xlu0 0
  %7044 = vperm.xlu0 %7043, %v7000
  %v7045 = vpop.permute.xlu0 %7044
  %7048 = vset.pattern.permute.xlu0 0
  %7049 = vperm.xlu0 %7048, %v7002
  %v7050 = vpop.permute.xlu0 %7049
  %7053 = vset.pattern.permute.xlu0 0
  %7054 = vperm.xlu0 %7053, %v7004
  %v7055 = vpop.permute.xlu0 %7054
  %7058 = vset.pattern.permute.xlu0 0
  %7059 = vperm.xlu0 %7058, %v7006
  %v7060 = vpop.permute.xlu0 %7059
  %7063 = vset.pattern.permute.xlu0 0
  %7064 = vperm.xlu0 %7063, %v7008
  %v7065 = vpop.permute.xlu0 %7064
  %7068 = vset.pattern.permute.xlu0 0
  %7069 = vperm.xlu0 %7068, %v7010
  %v7070 = vpop.permute.xlu0 %7069
  %7073 = vset.pattern.permute.xlu0 0
  %7074 = vperm.xlu0 %7073, %v7012
  %v7075 = vpop.permute.xlu0 %7074
  %v7077 = vmul.f32 %v7040, %v6865
  %v7078 = vmul.f32 %v7045, %v6867
  %v7079 = vmul.f32 %v7050, %v6870
  %v7080 = vmul.f32 %v7055, %v6872
  %v7081 = vmul.f32 %v7060, %v6875
  %v7082 = vmul.f32 %v7065, %v6877
  %v7083 = vmul.f32 %v7070, %v6880
  %v7084 = vmul.f32 %v7075, %v6882
  %7085 = vset.pattern.permute.xlu0 1
  %7086 = vperm.xlu0 %7085, %v6998
  %v7087 = vpop.permute.xlu0 %7086
  %7089 = vset.pattern.permute.xlu0 1
  %7090 = vperm.xlu0 %7089, %v7000
  %v7091 = vpop.permute.xlu0 %7090
  %7093 = vset.pattern.permute.xlu0 1
  %7094 = vperm.xlu0 %7093, %v7002
  %v7095 = vpop.permute.xlu0 %7094
  %7097 = vset.pattern.permute.xlu0 1
  %7098 = vperm.xlu0 %7097, %v7004
  %v7099 = vpop.permute.xlu0 %7098
  %7101 = vset.pattern.permute.xlu0 1
  %7102 = vperm.xlu0 %7101, %v7006
  %v7103 = vpop.permute.xlu0 %7102
  %7105 = vset.pattern.permute.xlu0 1
  %7106 = vperm.xlu0 %7105, %v7008
  %v7107 = vpop.permute.xlu0 %7106
  %7109 = vset.pattern.permute.xlu0 1
  %7110 = vperm.xlu0 %7109, %v7010
  %v7111 = vpop.permute.xlu0 %7110
  %7113 = vset.pattern.permute.xlu0 1
  %7114 = vperm.xlu0 %7113, %v7012
  %v7115 = vpop.permute.xlu0 %7114
  %v7117 = vmul.f32 %v7087, %v6865
  %v7118 = vmul.f32 %v7091, %v6867
  %v7119 = vmul.f32 %v7095, %v6870
  %v7120 = vmul.f32 %v7099, %v6872
  %v7121 = vmul.f32 %v7103, %v6875
  %v7122 = vmul.f32 %v7107, %v6877
  %v7123 = vmul.f32 %v7111, %v6880
  %v7124 = vmul.f32 %v7115, %v6882
  %7133 = vrot.lane.b32.xlu0 %v7117, 96
  %v7134 = vpop.permute.xlu0 %7133
  %7135 = vrot.lane.b32.xlu0 %v7118, 96
  %v7136 = vpop.permute.xlu0 %7135
  %7137 = vrot.lane.b32.xlu0 %v7119, 96
  %v7138 = vpop.permute.xlu0 %7137
  %7139 = vrot.lane.b32.xlu0 %v7120, 96
  %v7140 = vpop.permute.xlu0 %7139
  %7141 = vrot.lane.b32.xlu0 %v7121, 96
  %v7142 = vpop.permute.xlu0 %7141
  %7143 = vrot.lane.b32.xlu0 %v7122, 96
  %v7144 = vpop.permute.xlu0 %7143
  %7145 = vrot.lane.b32.xlu0 %v7123, 96
  %v7146 = vpop.permute.xlu0 %7145
  %7147 = vrot.lane.b32.xlu0 %v7124, 96
  %v7148 = vpop.permute.xlu0 %7147
  %v7157 = vadd.f32 %v7077, %v7134
  %v7158 = vadd.f32 %v7078, %v7136
  %v7159 = vadd.f32 %v7079, %v7138
  %v7160 = vadd.f32 %v7080, %v7140
  %v7161 = vadd.f32 %v7081, %v7142
  %v7162 = vadd.f32 %v7082, %v7144
  %v7163 = vadd.f32 %v7083, %v7146
  %v7164 = vadd.f32 %v7084, %v7148
  %7165 = vset.pattern.permute.xlu0 2
  %7166 = vperm.xlu0 %7165, %v6998
  %v7167 = vpop.permute.xlu0 %7166
  %7169 = vset.pattern.permute.xlu0 2
  %7170 = vperm.xlu0 %7169, %v7000
  %v7171 = vpop.permute.xlu0 %7170
  %7173 = vset.pattern.permute.xlu0 2
  %7174 = vperm.xlu0 %7173, %v7002
  %v7175 = vpop.permute.xlu0 %7174
  %7177 = vset.pattern.permute.xlu0 2
  %7178 = vperm.xlu0 %7177, %v7004
  %v7179 = vpop.permute.xlu0 %7178
  %7181 = vset.pattern.permute.xlu0 2
  %7182 = vperm.xlu0 %7181, %v7006
  %v7183 = vpop.permute.xlu0 %7182
  %7185 = vset.pattern.permute.xlu0 2
  %7186 = vperm.xlu0 %7185, %v7008
  %v7187 = vpop.permute.xlu0 %7186
  %7189 = vset.pattern.permute.xlu0 2
  %7190 = vperm.xlu0 %7189, %v7010
  %v7191 = vpop.permute.xlu0 %7190
  %7193 = vset.pattern.permute.xlu0 2
  %7194 = vperm.xlu0 %7193, %v7012
  %v7195 = vpop.permute.xlu0 %7194
  %v7197 = vmul.f32 %v7167, %v6865
  %v7198 = vmul.f32 %v7171, %v6867
  %v7199 = vmul.f32 %v7175, %v6870
  %v7200 = vmul.f32 %v7179, %v6872
  %v7201 = vmul.f32 %v7183, %v6875
  %v7202 = vmul.f32 %v7187, %v6877
  %v7203 = vmul.f32 %v7191, %v6880
  %v7204 = vmul.f32 %v7195, %v6882
  %7213 = vrot.lane.b32.xlu0 %v7197, 64
  %v7214 = vpop.permute.xlu0 %7213
  %7215 = vrot.lane.b32.xlu0 %v7198, 64
  %v7216 = vpop.permute.xlu0 %7215
  %7217 = vrot.lane.b32.xlu0 %v7199, 64
  %v7218 = vpop.permute.xlu0 %7217
  %7219 = vrot.lane.b32.xlu0 %v7200, 64
  %v7220 = vpop.permute.xlu0 %7219
  %7221 = vrot.lane.b32.xlu0 %v7201, 64
  %v7222 = vpop.permute.xlu0 %7221
  %7223 = vrot.lane.b32.xlu0 %v7202, 64
  %v7224 = vpop.permute.xlu0 %7223
  %7225 = vrot.lane.b32.xlu0 %v7203, 64
  %v7226 = vpop.permute.xlu0 %7225
  %7227 = vrot.lane.b32.xlu0 %v7204, 64
  %v7228 = vpop.permute.xlu0 %7227
  %v7237 = vadd.f32 %v7157, %v7214
  %v7238 = vadd.f32 %v7158, %v7216
  %v7239 = vadd.f32 %v7159, %v7218
  %v7240 = vadd.f32 %v7160, %v7220
  %v7241 = vadd.f32 %v7161, %v7222
  %v7242 = vadd.f32 %v7162, %v7224
  %v7243 = vadd.f32 %v7163, %v7226
  %v7244 = vadd.f32 %v7164, %v7228
  %7245 = vset.pattern.permute.xlu0 3
  %7246 = vperm.xlu0 %7245, %v6998
  %v7247 = vpop.permute.xlu0 %7246
  %7249 = vset.pattern.permute.xlu0 3
  %7250 = vperm.xlu0 %7249, %v7000
  %v7251 = vpop.permute.xlu0 %7250
  %7253 = vset.pattern.permute.xlu0 3
  %7254 = vperm.xlu0 %7253, %v7002
  %v7255 = vpop.permute.xlu0 %7254
  %7257 = vset.pattern.permute.xlu0 3
  %7258 = vperm.xlu0 %7257, %v7004
  %v7259 = vpop.permute.xlu0 %7258
  %7261 = vset.pattern.permute.xlu0 3
  %7262 = vperm.xlu0 %7261, %v7006
  %v7263 = vpop.permute.xlu0 %7262
  %7265 = vset.pattern.permute.xlu0 3
  %7266 = vperm.xlu0 %7265, %v7008
  %v7267 = vpop.permute.xlu0 %7266
  %7269 = vset.pattern.permute.xlu0 3
  %7270 = vperm.xlu0 %7269, %v7010
  %v7271 = vpop.permute.xlu0 %7270
  %7273 = vset.pattern.permute.xlu0 3
  %7274 = vperm.xlu0 %7273, %v7012
  %v7275 = vpop.permute.xlu0 %7274
  %v7277 = vmul.f32 %v7247, %v6865
  %v7278 = vmul.f32 %v7251, %v6867
  %v7279 = vmul.f32 %v7255, %v6870
  %v7280 = vmul.f32 %v7259, %v6872
  %v7281 = vmul.f32 %v7263, %v6875
  %v7282 = vmul.f32 %v7267, %v6877
  %v7283 = vmul.f32 %v7271, %v6880
  %v7284 = vmul.f32 %v7275, %v6882
  %7293 = vrot.lane.b32.xlu0 %v7277, 32
  %v7294 = vpop.permute.xlu0 %7293
  %7295 = vrot.lane.b32.xlu0 %v7278, 32
  %v7296 = vpop.permute.xlu0 %7295
  %7297 = vrot.lane.b32.xlu0 %v7279, 32
  %v7298 = vpop.permute.xlu0 %7297
  %7299 = vrot.lane.b32.xlu0 %v7280, 32
  %v7300 = vpop.permute.xlu0 %7299
  %7301 = vrot.lane.b32.xlu0 %v7281, 32
  %v7302 = vpop.permute.xlu0 %7301
  %7303 = vrot.lane.b32.xlu0 %v7282, 32
  %v7304 = vpop.permute.xlu0 %7303
  %7305 = vrot.lane.b32.xlu0 %v7283, 32
  %v7306 = vpop.permute.xlu0 %7305
  %7307 = vrot.lane.b32.xlu0 %v7284, 32
  %v7308 = vpop.permute.xlu0 %7307
  %v7317 = vadd.f32 %v7237, %v7294
  %v7318 = vadd.f32 %v7238, %v7296
  %v7319 = vadd.f32 %v7239, %v7298
  %v7320 = vadd.f32 %v7240, %v7300
  %v7321 = vadd.f32 %v7241, %v7302
  %v7322 = vadd.f32 %v7242, %v7304
  %v7323 = vadd.f32 %v7243, %v7306
  %v7324 = vadd.f32 %v7244, %v7308
  %v7325 = vrcp.pop %v7015
  %v7326 = vrcp.pop %v7018
  %v7327 = vrcp.pop %v7021
  %v7328 = vrcp.pop %v7024
  %v7329 = vrcp.pop %v7027
  %v7330 = vrcp.pop %v7030
  %v7331 = vrcp.pop %v7033
  %v7332 = vrcp.pop %v7036
  %v7333 = vmul.f32 %v7317, %v7325
  %v7334 = vmul.f32 %v7318, %v7326
  %v7335 = vmul.f32 %v7319, %v7327
  %v7336 = vmul.f32 %v7320, %v7328
  %v7337 = vmul.f32 %v7321, %v7329
  %v7338 = vmul.f32 %v7322, %v7330
  %v7339 = vmul.f32 %v7323, %v7331
  %v7340 = vmul.f32 %v7324, %v7332
  %v7341 = vpack.c.bf16 %v7334, %v7333
  %v7342 = vpack.c.bf16 %v7336, %v7335
  %v7343 = vpack.c.bf16 %v7338, %v7337
  %v7344 = vpack.c.bf16 %v7340, %v7339
  %v7349 = vunpack.c.l.b16 %v93
  %v7350 = vunpack.c.l.b16 %v94
  %v7351 = vunpack.c.l.b16 %v95
  %v7352 = vunpack.c.l.b16 %v96
  %v7353 = vpack.c.b16 %v7350, %v7349
  %v7354 = vpack.c.b16 %v7352, %v7351
  %v7356 = vsel %vm380, %v7353, 0
  %v7359 = vsel %vm380, %v7354, 0
  %v7362 = vsel %vm380, %v7341, 0
  %v7365 = vsel %vm380, %v7342, 0
  %v7368 = vsel %vm380, %v7343, 0
  %v7371 = vsel %vm380, %v7344, 0
  %7373 = vmatpush.bf16.xpose.msra.mxu0 0
  %7374 = vmatpush.bf16.xpose.msra.mxu0 0
  %7375 = vmatpush.bf16.xpose.msra.mxu0 0
  %7376 = vmatpush.bf16.xpose.msra.mxu0 0
  %7377 = vmatpush.bf16.xpose.msra.mxu0 %v7371
  %7378 = vmatpush.bf16.xpose.msra.mxu0 %v7368
  %7379 = vmatpush.bf16.xpose.msra.mxu0 %v7365
  %7380 = vmatpush.bf16.xpose.msra.mxu0 %v7362
  %7381 = vmatmul.bf16.gmra.mxu0 %v7356
  %v7382 = vpop.f32.mrf.mxu0
  %v7383 = vadd.f32 0.0, %v7382
  %v7384 = vpop.f32.mrf.mxu0
  %v7385 = vadd.f32 0.0, %v7384
  %7386 = vmatmul.bf16.gmra.mxu0 %v7359
  %v7387 = vpop.f32.mrf.mxu0
  %v7388 = vadd.f32 0.0, %v7387
  %v7389 = vpop.f32.mrf.mxu0
  %v7390 = vadd.f32 0.0, %v7389
  %7391 = vdwg.mxu0
  %v7392 = vpack.c.bf16 %v7385, %v7383
  %v7393 = vpack.c.bf16 %v7390, %v7388
  %v7402 = vunpack.c.l.b16 %v85
  %v7403 = vunpack.c.h.b16 %v85
  %v7404 = vunpack.c.l.b16 %v86
  %v7405 = vunpack.c.h.b16 %v86
  %v7406 = vunpack.c.l.b16 %v87
  %v7407 = vunpack.c.h.b16 %v87
  %v7408 = vunpack.c.l.b16 %v88
  %v7409 = vunpack.c.h.b16 %v88
  %v7410 = vunpack.c.l.b16 %v89
  %v7411 = vunpack.c.h.b16 %v89
  %v7412 = vunpack.c.l.b16 %v90
  %v7413 = vunpack.c.h.b16 %v90
  %v7414 = vunpack.c.l.b16 %v91
  %v7415 = vunpack.c.h.b16 %v91
  %v7416 = vunpack.c.l.b16 %v92
  %v7417 = vunpack.c.h.b16 %v92
  %v7418 = vpack.c.b16 %v7404, %v7402
  %v7419 = vpack.c.b16 %v7405, %v7403
  %v7420 = vpack.c.b16 %v7408, %v7406
  %v7421 = vpack.c.b16 %v7409, %v7407
  %v7422 = vpack.c.b16 %v7412, %v7410
  %v7423 = vpack.c.b16 %v7413, %v7411
  %v7424 = vpack.c.b16 %v7416, %v7414
  %v7425 = vpack.c.b16 %v7417, %v7415
  %v7435 = vsel %vm683, %v7392, 0
  %v7438 = vsel %vm683, %v7393, 0
  %7440 = vmatpush.bf16.msra.mxu0 0
  %7441 = vmatpush.bf16.msra.mxu0 0
  %7442 = vmatpush.bf16.msra.mxu0 0
  %7443 = vmatpush.bf16.msra.mxu0 0
  %7444 = vmatpush.bf16.msra.mxu0 %v7424
  %7445 = vmatpush.bf16.msra.mxu0 %v7422
  %7446 = vmatpush.bf16.msra.mxu0 %v7420
  %7447 = vmatpush.bf16.msra.mxu0 %v7418
  %7448 = vmatmul.bf16.gmra.mxu0 %v7435
  %v7449 = vpop.f32.mrf.mxu0
  %v7450 = vadd.f32 0.0, %v7449
  %v7451 = vpop.f32.mrf.mxu0
  %v7452 = vadd.f32 0.0, %v7451
  %7453 = vmatmul.bf16.gmra.mxu0 %v7438
  %v7454 = vpop.f32.mrf.mxu0
  %v7455 = vadd.f32 0.0, %v7454
  %v7456 = vpop.f32.mrf.mxu0
  %v7457 = vadd.f32 0.0, %v7456
  %7458 = vdwg.mxu0
  %7459 = vmatpush.bf16.msra.mxu0 0
  %7460 = vmatpush.bf16.msra.mxu0 0
  %7461 = vmatpush.bf16.msra.mxu0 0
  %7462 = vmatpush.bf16.msra.mxu0 0
  %7463 = vmatpush.bf16.msra.mxu0 %v7425
  %7464 = vmatpush.bf16.msra.mxu0 %v7423
  %7465 = vmatpush.bf16.msra.mxu0 %v7421
  %7466 = vmatpush.bf16.msra.mxu0 %v7419
  %7467 = vmatmul.bf16.gmra.mxu0 %v7435
  %v7468 = vpop.f32.mrf.mxu0
  %v7469 = vadd.f32 0.0, %v7468
  %v7470 = vpop.f32.mrf.mxu0
  %v7471 = vadd.f32 0.0, %v7470
  %7472 = vmatmul.bf16.gmra.mxu0 %v7438
  %v7473 = vpop.f32.mrf.mxu0
  %v7474 = vadd.f32 0.0, %v7473
  %v7475 = vpop.f32.mrf.mxu0
  %v7476 = vadd.f32 0.0, %v7475
  %7477 = vdwg.mxu0
  %v7478 = vadd.f32 %v171, %v7450
  %v7479 = vadd.f32 %v172, %v7469
  %v7480 = vadd.f32 %v173, %v7452
  %v7481 = vadd.f32 %v174, %v7471
  %v7482 = vadd.f32 %v175, %v7455
  %v7483 = vadd.f32 %v176, %v7474
  %v7484 = vadd.f32 %v177, %v7457
  %v7485 = vadd.f32 %v178, %v7476
  %7486 = vst [vmem:[%s13] sm:$0xff] %v7478
  %7487 = vst [vmem:[%s13 + $0x8] sm:$0xff] %v7479
  %7488 = vst [vmem:[%s13 + $0x10] sm:$0xff] %v7480
  %7489 = vst [vmem:[%s13 + $0x18] sm:$0xff] %v7481
  %7490 = vst [vmem:[%s13 + $0x20] sm:$0xff] %v7482
  %7491 = vst [vmem:[%s13 + $0x28] sm:$0xff] %v7483
  %7492 = vst [vmem:[%s13 + $0x30] sm:$0xff] %v7484
  %7493 = vst [vmem:[%s13 + $0x38] sm:$0xff] %v7485
  %s7494 = scalar_lea.vmem %s0, 64
  %v7495 = vld [vmem:[%s7494] sm:$0xff]
  %v7496 = vld [vmem:[%s7494 + $0x8] sm:$0xff]
  %v7497 = vld [vmem:[%s7494 + $0x10] sm:$0xff]
  %v7498 = vld [vmem:[%s7494 + $0x18] sm:$0xff]
  %v7499 = vld [vmem:[%s7494 + $0x20] sm:$0xff]
  %v7500 = vld [vmem:[%s7494 + $0x28] sm:$0xff]
  %v7501 = vld [vmem:[%s7494 + $0x30] sm:$0xff]
  %v7502 = vld [vmem:[%s7494 + $0x38] sm:$0xff]
  %v7503 = vpack.c.bf16 %v7497, %v7495
  %v7504 = vpack.c.bf16 %v7498, %v7496
  %v7505 = vpack.c.bf16 %v7501, %v7499
  %v7506 = vpack.c.bf16 %v7502, %v7500
  %7507 = vmatpush.bf16.xpose.msra.mxu0 0
  %7508 = vmatpush.bf16.xpose.msra.mxu0 0
  %7509 = vmatpush.bf16.xpose.msra.mxu0 0
  %7510 = vmatpush.bf16.xpose.msra.mxu0 0
  %7511 = vmatpush.bf16.xpose.msra.mxu0 0
  %7512 = vmatpush.bf16.xpose.msra.mxu0 0
  %7513 = vmatpush.bf16.xpose.msra.mxu0 %v7505
  %7514 = vmatpush.bf16.xpose.msra.mxu0 %v7503
  %7515 = vmatmul.bf16.gmra.mxu0 %v207
  %v7516 = vpop.f32.mrf.mxu0
  %v7517 = vadd.f32 0.0, %v7516
  %v7518 = vpop.f32.mrf.mxu0
  %v7519 = vadd.f32 0.0, %v7518
  %7520 = vmatmul.bf16.gmra.mxu0 %v209
  %v7521 = vpop.f32.mrf.mxu0
  %v7522 = vadd.f32 0.0, %v7521
  %v7523 = vpop.f32.mrf.mxu0
  %v7524 = vadd.f32 0.0, %v7523
  %7525 = vmatmul.bf16.gmra.mxu0 %v211
  %v7526 = vpop.f32.mrf.mxu0
  %v7527 = vadd.f32 0.0, %v7526
  %v7528 = vpop.f32.mrf.mxu0
  %v7529 = vadd.f32 0.0, %v7528
  %7530 = vmatmul.bf16.gmra.mxu0 %v213
  %v7531 = vpop.f32.mrf.mxu0
  %v7532 = vadd.f32 0.0, %v7531
  %v7533 = vpop.f32.mrf.mxu0
  %v7534 = vadd.f32 0.0, %v7533
  %7535 = vdwg.mxu0
  %7536 = vmatpush.bf16.xpose.msra.mxu0 0
  %7537 = vmatpush.bf16.xpose.msra.mxu0 0
  %7538 = vmatpush.bf16.xpose.msra.mxu0 0
  %7539 = vmatpush.bf16.xpose.msra.mxu0 0
  %7540 = vmatpush.bf16.xpose.msra.mxu0 0
  %7541 = vmatpush.bf16.xpose.msra.mxu0 0
  %7542 = vmatpush.bf16.xpose.msra.mxu0 %v7506
  %7543 = vmatpush.bf16.xpose.msra.mxu0 %v7504
  %7544 = vmatmul.bf16.gmra.mxu0 %v208
  %v7545 = vpop.f32.mrf.mxu0
  %v7546 = vadd.f32 %v7517, %v7545
  %v7547 = vpop.f32.mrf.mxu0
  %v7548 = vadd.f32 %v7519, %v7547
  %7549 = vmatmul.bf16.gmra.mxu0 %v210
  %v7550 = vpop.f32.mrf.mxu0
  %v7551 = vadd.f32 %v7522, %v7550
  %v7552 = vpop.f32.mrf.mxu0
  %v7553 = vadd.f32 %v7524, %v7552
  %7554 = vmatmul.bf16.gmra.mxu0 %v212
  %v7555 = vpop.f32.mrf.mxu0
  %v7556 = vadd.f32 %v7527, %v7555
  %v7557 = vpop.f32.mrf.mxu0
  %v7558 = vadd.f32 %v7529, %v7557
  %7559 = vmatmul.bf16.gmra.mxu0 %v214
  %v7560 = vpop.f32.mrf.mxu0
  %v7561 = vadd.f32 %v7532, %v7560
  %v7562 = vpop.f32.mrf.mxu0
  %v7563 = vadd.f32 %v7534, %v7562
  %7564 = vdwg.mxu0
  %v7565 = vpack.c.bf16 %v7548, %v7546
  %v7566 = vpack.c.bf16 %v7553, %v7551
  %v7567 = vpack.c.bf16 %v7558, %v7556
  %v7568 = vpack.c.bf16 %v7563, %v7561
  %v7570 = vsel %vm380, %v7565, 0
  %v7573 = vsel %vm380, %v7566, 0
  %v7576 = vsel %vm380, %v7567, 0
  %v7579 = vsel %vm380, %v7568, 0
  %7581 = vmatpush.bf16.xpose.msra.mxu0 0
  %7582 = vmatpush.bf16.xpose.msra.mxu0 0
  %7583 = vmatpush.bf16.xpose.msra.mxu0 0
  %7584 = vmatpush.bf16.xpose.msra.mxu0 0
  %7585 = vmatpush.bf16.xpose.msra.mxu0 %v7579
  %7586 = vmatpush.bf16.xpose.msra.mxu0 %v7576
  %7587 = vmatpush.bf16.xpose.msra.mxu0 %v7573
  %7588 = vmatpush.bf16.xpose.msra.mxu0 %v7570
  %7589 = vmatmul.bf16.gmra.mxu0 %v535
  %v7590 = vpop.f32.mrf.mxu0
  %v7591 = vadd.f32 0.0, %v7590
  %v7592 = vpop.f32.mrf.mxu0
  %v7593 = vadd.f32 0.0, %v7592
  %7594 = vmatmul.bf16.gmra.mxu0 %v538
  %v7595 = vpop.f32.mrf.mxu0
  %v7596 = vadd.f32 0.0, %v7595
  %v7597 = vpop.f32.mrf.mxu0
  %v7598 = vadd.f32 0.0, %v7597
  %7599 = vmatmul.bf16.gmra.mxu0 %v541
  %v7600 = vpop.f32.mrf.mxu0
  %v7601 = vadd.f32 0.0, %v7600
  %v7602 = vpop.f32.mrf.mxu0
  %v7603 = vadd.f32 0.0, %v7602
  %7604 = vmatmul.bf16.gmra.mxu0 %v544
  %v7605 = vpop.f32.mrf.mxu0
  %v7606 = vadd.f32 0.0, %v7605
  %v7607 = vpop.f32.mrf.mxu0
  %v7608 = vadd.f32 0.0, %v7607
  %7609 = vmatmul.bf16.gmra.mxu0 %v547
  %v7610 = vpop.f32.mrf.mxu0
  %v7611 = vadd.f32 0.0, %v7610
  %v7612 = vpop.f32.mrf.mxu0
  %v7613 = vadd.f32 0.0, %v7612
  %7614 = vmatmul.bf16.gmra.mxu0 %v550
  %v7615 = vpop.f32.mrf.mxu0
  %v7616 = vadd.f32 0.0, %v7615
  %v7617 = vpop.f32.mrf.mxu0
  %v7618 = vadd.f32 0.0, %v7617
  %7619 = vmatmul.bf16.gmra.mxu0 %v553
  %v7620 = vpop.f32.mrf.mxu0
  %v7621 = vadd.f32 0.0, %v7620
  %v7622 = vpop.f32.mrf.mxu0
  %v7623 = vadd.f32 0.0, %v7622
  %7624 = vmatmul.bf16.gmra.mxu0 %v556
  %v7625 = vpop.f32.mrf.mxu0
  %v7626 = vadd.f32 0.0, %v7625
  %v7627 = vpop.f32.mrf.mxu0
  %v7628 = vadd.f32 0.0, %v7627
  %7629 = vmatmul.bf16.gmra.mxu0 %v559
  %v7630 = vpop.f32.mrf.mxu0
  %v7631 = vadd.f32 0.0, %v7630
  %v7632 = vpop.f32.mrf.mxu0
  %v7633 = vadd.f32 0.0, %v7632
  %7634 = vmatmul.bf16.gmra.mxu0 %v562
  %v7635 = vpop.f32.mrf.mxu0
  %v7636 = vadd.f32 0.0, %v7635
  %v7637 = vpop.f32.mrf.mxu0
  %v7638 = vadd.f32 0.0, %v7637
  %7639 = vmatmul.bf16.gmra.mxu0 %v565
  %v7640 = vpop.f32.mrf.mxu0
  %v7641 = vadd.f32 0.0, %v7640
  %v7642 = vpop.f32.mrf.mxu0
  %v7643 = vadd.f32 0.0, %v7642
  %7644 = vmatmul.bf16.gmra.mxu0 %v568
  %v7645 = vpop.f32.mrf.mxu0
  %v7646 = vadd.f32 0.0, %v7645
  %v7647 = vpop.f32.mrf.mxu0
  %v7648 = vadd.f32 0.0, %v7647
  %7649 = vmatmul.bf16.gmra.mxu0 %v571
  %v7650 = vpop.f32.mrf.mxu0
  %v7651 = vadd.f32 0.0, %v7650
  %v7652 = vpop.f32.mrf.mxu0
  %v7653 = vadd.f32 0.0, %v7652
  %7654 = vmatmul.bf16.gmra.mxu0 %v574
  %v7655 = vpop.f32.mrf.mxu0
  %v7656 = vadd.f32 0.0, %v7655
  %v7657 = vpop.f32.mrf.mxu0
  %v7658 = vadd.f32 0.0, %v7657
  %7659 = vmatmul.bf16.gmra.mxu0 %v577
  %v7660 = vpop.f32.mrf.mxu0
  %v7661 = vadd.f32 0.0, %v7660
  %v7662 = vpop.f32.mrf.mxu0
  %v7663 = vadd.f32 0.0, %v7662
  %7664 = vmatmul.bf16.gmra.mxu0 %v580
  %v7665 = vpop.f32.mrf.mxu0
  %v7666 = vadd.f32 0.0, %v7665
  %v7667 = vpop.f32.mrf.mxu0
  %v7668 = vadd.f32 0.0, %v7667
  %7669 = vdwg.mxu0
  %v7670 = vsel %vm683, %v7591, -inf
  %7671 = vmax.xlane.f32.xlu0 %v7670
  %v7672 = vpop.xlane.xlu0 %7671
  %v7673 = vsel %vm683, %v7593, -inf
  %7674 = vmax.xlane.f32.xlu0 %v7673
  %v7675 = vpop.xlane.xlu0 %7674
  %v7676 = vsel %vm683, %v7596, -inf
  %7677 = vmax.xlane.f32.xlu0 %v7676
  %v7678 = vpop.xlane.xlu0 %7677
  %v7679 = vsel %vm683, %v7598, -inf
  %7680 = vmax.xlane.f32.xlu0 %v7679
  %v7681 = vpop.xlane.xlu0 %7680
  %v7682 = vsel %vm683, %v7601, -inf
  %7683 = vmax.xlane.f32.xlu0 %v7682
  %v7684 = vpop.xlane.xlu0 %7683
  %v7685 = vsel %vm683, %v7603, -inf
  %7686 = vmax.xlane.f32.xlu0 %v7685
  %v7687 = vpop.xlane.xlu0 %7686
  %v7688 = vsel %vm683, %v7606, -inf
  %7689 = vmax.xlane.f32.xlu0 %v7688
  %v7690 = vpop.xlane.xlu0 %7689
  %v7691 = vsel %vm683, %v7608, -inf
  %7692 = vmax.xlane.f32.xlu0 %v7691
  %v7693 = vpop.xlane.xlu0 %7692
  %v7694 = vsel %vm683, %v7611, -inf
  %7695 = vmax.xlane.f32.xlu0 %v7694
  %v7696 = vpop.xlane.xlu0 %7695
  %v7697 = vsel %vm683, %v7613, -inf
  %7698 = vmax.xlane.f32.xlu0 %v7697
  %v7699 = vpop.xlane.xlu0 %7698
  %v7700 = vsel %vm683, %v7616, -inf
  %7701 = vmax.xlane.f32.xlu0 %v7700
  %v7702 = vpop.xlane.xlu0 %7701
  %v7703 = vsel %vm683, %v7618, -inf
  %7704 = vmax.xlane.f32.xlu0 %v7703
  %v7705 = vpop.xlane.xlu0 %7704
  %v7706 = vsel %vm683, %v7621, -inf
  %7707 = vmax.xlane.f32.xlu0 %v7706
  %v7708 = vpop.xlane.xlu0 %7707
  %v7709 = vsel %vm683, %v7623, -inf
  %7710 = vmax.xlane.f32.xlu0 %v7709
  %v7711 = vpop.xlane.xlu0 %7710
  %v7712 = vsel %vm683, %v7626, -inf
  %7713 = vmax.xlane.f32.xlu0 %v7712
  %v7714 = vpop.xlane.xlu0 %7713
  %v7715 = vsel %vm683, %v7628, -inf
  %7716 = vmax.xlane.f32.xlu0 %v7715
  %v7717 = vpop.xlane.xlu0 %7716
  %v7718 = vsel %vm683, %v7631, -inf
  %7719 = vmax.xlane.f32.xlu0 %v7718
  %v7720 = vpop.xlane.xlu0 %7719
  %v7721 = vsel %vm683, %v7633, -inf
  %7722 = vmax.xlane.f32.xlu0 %v7721
  %v7723 = vpop.xlane.xlu0 %7722
  %v7724 = vsel %vm683, %v7636, -inf
  %7725 = vmax.xlane.f32.xlu0 %v7724
  %v7726 = vpop.xlane.xlu0 %7725
  %v7727 = vsel %vm683, %v7638, -inf
  %7728 = vmax.xlane.f32.xlu0 %v7727
  %v7729 = vpop.xlane.xlu0 %7728
  %v7730 = vsel %vm683, %v7641, -inf
  %7731 = vmax.xlane.f32.xlu0 %v7730
  %v7732 = vpop.xlane.xlu0 %7731
  %v7733 = vsel %vm683, %v7643, -inf
  %7734 = vmax.xlane.f32.xlu0 %v7733
  %v7735 = vpop.xlane.xlu0 %7734
  %v7736 = vsel %vm683, %v7646, -inf
  %7737 = vmax.xlane.f32.xlu0 %v7736
  %v7738 = vpop.xlane.xlu0 %7737
  %v7739 = vsel %vm683, %v7648, -inf
  %7740 = vmax.xlane.f32.xlu0 %v7739
  %v7741 = vpop.xlane.xlu0 %7740
  %v7742 = vsel %vm683, %v7651, -inf
  %7743 = vmax.xlane.f32.xlu0 %v7742
  %v7744 = vpop.xlane.xlu0 %7743
  %v7745 = vsel %vm683, %v7653, -inf
  %7746 = vmax.xlane.f32.xlu0 %v7745
  %v7747 = vpop.xlane.xlu0 %7746
  %v7748 = vsel %vm683, %v7656, -inf
  %7749 = vmax.xlane.f32.xlu0 %v7748
  %v7750 = vpop.xlane.xlu0 %7749
  %v7751 = vsel %vm683, %v7658, -inf
  %7752 = vmax.xlane.f32.xlu0 %v7751
  %v7753 = vpop.xlane.xlu0 %7752
  %v7754 = vsel %vm683, %v7661, -inf
  %7755 = vmax.xlane.f32.xlu0 %v7754
  %v7756 = vpop.xlane.xlu0 %7755
  %v7757 = vsel %vm683, %v7663, -inf
  %7758 = vmax.xlane.f32.xlu0 %v7757
  %v7759 = vpop.xlane.xlu0 %7758
  %v7760 = vsel %vm683, %v7666, -inf
  %7761 = vmax.xlane.f32.xlu0 %v7760
  %v7762 = vpop.xlane.xlu0 %7761
  %v7763 = vsel %vm683, %v7668, -inf
  %7764 = vmax.xlane.f32.xlu0 %v7763
  %v7765 = vpop.xlane.xlu0 %7764
  %v7766 = vsub.f32 %v7591, %v7672
  %v7767 = vsub.f32 %v7593, %v7675
  %v7768 = vsub.f32 %v7596, %v7678
  %v7769 = vsub.f32 %v7598, %v7681
  %v7770 = vsub.f32 %v7601, %v7684
  %v7771 = vsub.f32 %v7603, %v7687
  %v7772 = vsub.f32 %v7606, %v7690
  %v7773 = vsub.f32 %v7608, %v7693
  %v7774 = vsub.f32 %v7611, %v7696
  %v7775 = vsub.f32 %v7613, %v7699
  %v7776 = vsub.f32 %v7616, %v7702
  %v7777 = vsub.f32 %v7618, %v7705
  %v7778 = vsub.f32 %v7621, %v7708
  %v7779 = vsub.f32 %v7623, %v7711
  %v7780 = vsub.f32 %v7626, %v7714
  %v7781 = vsub.f32 %v7628, %v7717
  %v7782 = vsub.f32 %v7631, %v7720
  %v7783 = vsub.f32 %v7633, %v7723
  %v7784 = vsub.f32 %v7636, %v7726
  %v7785 = vsub.f32 %v7638, %v7729
  %v7786 = vsub.f32 %v7641, %v7732
  %v7787 = vsub.f32 %v7643, %v7735
  %v7788 = vsub.f32 %v7646, %v7738
  %v7789 = vsub.f32 %v7648, %v7741
  %v7790 = vsub.f32 %v7651, %v7744
  %v7791 = vsub.f32 %v7653, %v7747
  %v7792 = vsub.f32 %v7656, %v7750
  %v7793 = vsub.f32 %v7658, %v7753
  %v7794 = vsub.f32 %v7661, %v7756
  %v7795 = vsub.f32 %v7663, %v7759
  %v7796 = vsub.f32 %v7666, %v7762
  %v7797 = vsub.f32 %v7668, %v7765
  %v7798 = vmul.f32 %v7766, 1.442695
  %v7799 = vpow.pop %v7798
  %v7800 = vmul.f32 %v7767, 1.442695
  %v7801 = vpow.pop %v7800
  %v7802 = vmul.f32 %v7768, 1.442695
  %v7803 = vpow.pop %v7802
  %v7804 = vmul.f32 %v7769, 1.442695
  %v7805 = vpow.pop %v7804
  %v7806 = vmul.f32 %v7770, 1.442695
  %v7807 = vpow.pop %v7806
  %v7808 = vmul.f32 %v7771, 1.442695
  %v7809 = vpow.pop %v7808
  %v7810 = vmul.f32 %v7772, 1.442695
  %v7811 = vpow.pop %v7810
  %v7812 = vmul.f32 %v7773, 1.442695
  %v7813 = vpow.pop %v7812
  %v7814 = vmul.f32 %v7774, 1.442695
  %v7815 = vpow.pop %v7814
  %v7816 = vmul.f32 %v7775, 1.442695
  %v7817 = vpow.pop %v7816
  %v7818 = vmul.f32 %v7776, 1.442695
  %v7819 = vpow.pop %v7818
  %v7820 = vmul.f32 %v7777, 1.442695
  %v7821 = vpow.pop %v7820
  %v7822 = vmul.f32 %v7778, 1.442695
  %v7823 = vpow.pop %v7822
  %v7824 = vmul.f32 %v7779, 1.442695
  %v7825 = vpow.pop %v7824
  %v7826 = vmul.f32 %v7780, 1.442695
  %v7827 = vpow.pop %v7826
  %v7828 = vmul.f32 %v7781, 1.442695
  %v7829 = vpow.pop %v7828
  %v7830 = vmul.f32 %v7782, 1.442695
  %v7831 = vpow.pop %v7830
  %v7832 = vmul.f32 %v7783, 1.442695
  %v7833 = vpow.pop %v7832
  %v7834 = vmul.f32 %v7784, 1.442695
  %v7835 = vpow.pop %v7834
  %v7836 = vmul.f32 %v7785, 1.442695
  %v7837 = vpow.pop %v7836
  %v7838 = vmul.f32 %v7786, 1.442695
  %v7839 = vpow.pop %v7838
  %v7840 = vmul.f32 %v7787, 1.442695
  %v7841 = vpow.pop %v7840
  %v7842 = vmul.f32 %v7788, 1.442695
  %v7843 = vpow.pop %v7842
  %v7844 = vmul.f32 %v7789, 1.442695
  %v7845 = vpow.pop %v7844
  %v7846 = vmul.f32 %v7790, 1.442695
  %v7847 = vpow.pop %v7846
  %v7848 = vmul.f32 %v7791, 1.442695
  %v7849 = vpow.pop %v7848
  %v7850 = vmul.f32 %v7792, 1.442695
  %v7851 = vpow.pop %v7850
  %v7852 = vmul.f32 %v7793, 1.442695
  %v7853 = vpow.pop %v7852
  %v7854 = vmul.f32 %v7794, 1.442695
  %v7855 = vpow.pop %v7854
  %v7856 = vmul.f32 %v7795, 1.442695
  %v7857 = vpow.pop %v7856
  %v7858 = vmul.f32 %v7796, 1.442695
  %v7859 = vpow.pop %v7858
  %v7860 = vmul.f32 %v7797, 1.442695
  %v7861 = vpow.pop %v7860
  %v7862 = vsel %vm683, %v7799, 0.0
  %7863 = vadd.xlane.f32.xlu0 %v7862
  %v7864 = vpop.xlane.xlu0 %7863
  %v7865 = vsel %vm683, %v7801, 0.0
  %7866 = vadd.xlane.f32.xlu0 %v7865
  %v7867 = vpop.xlane.xlu0 %7866
  %v7868 = vsel %vm683, %v7803, 0.0
  %7869 = vadd.xlane.f32.xlu0 %v7868
  %v7870 = vpop.xlane.xlu0 %7869
  %v7871 = vsel %vm683, %v7805, 0.0
  %7872 = vadd.xlane.f32.xlu0 %v7871
  %v7873 = vpop.xlane.xlu0 %7872
  %v7874 = vsel %vm683, %v7807, 0.0
  %7875 = vadd.xlane.f32.xlu0 %v7874
  %v7876 = vpop.xlane.xlu0 %7875
  %v7877 = vsel %vm683, %v7809, 0.0
  %7878 = vadd.xlane.f32.xlu0 %v7877
  %v7879 = vpop.xlane.xlu0 %7878
  %v7880 = vsel %vm683, %v7811, 0.0
  %7881 = vadd.xlane.f32.xlu0 %v7880
  %v7882 = vpop.xlane.xlu0 %7881
  %v7883 = vsel %vm683, %v7813, 0.0
  %7884 = vadd.xlane.f32.xlu0 %v7883
  %v7885 = vpop.xlane.xlu0 %7884
  %v7886 = vsel %vm683, %v7815, 0.0
  %7887 = vadd.xlane.f32.xlu0 %v7886
  %v7888 = vpop.xlane.xlu0 %7887
  %v7889 = vsel %vm683, %v7817, 0.0
  %7890 = vadd.xlane.f32.xlu0 %v7889
  %v7891 = vpop.xlane.xlu0 %7890
  %v7892 = vsel %vm683, %v7819, 0.0
  %7893 = vadd.xlane.f32.xlu0 %v7892
  %v7894 = vpop.xlane.xlu0 %7893
  %v7895 = vsel %vm683, %v7821, 0.0
  %7896 = vadd.xlane.f32.xlu0 %v7895
  %v7897 = vpop.xlane.xlu0 %7896
  %v7898 = vsel %vm683, %v7823, 0.0
  %7899 = vadd.xlane.f32.xlu0 %v7898
  %v7900 = vpop.xlane.xlu0 %7899
  %v7901 = vsel %vm683, %v7825, 0.0
  %7902 = vadd.xlane.f32.xlu0 %v7901
  %v7903 = vpop.xlane.xlu0 %7902
  %v7904 = vsel %vm683, %v7827, 0.0
  %7905 = vadd.xlane.f32.xlu0 %v7904
  %v7906 = vpop.xlane.xlu0 %7905
  %v7907 = vsel %vm683, %v7829, 0.0
  %7908 = vadd.xlane.f32.xlu0 %v7907
  %v7909 = vpop.xlane.xlu0 %7908
  %v7910 = vsel %vm683, %v7831, 0.0
  %7911 = vadd.xlane.f32.xlu0 %v7910
  %v7912 = vpop.xlane.xlu0 %7911
  %v7913 = vsel %vm683, %v7833, 0.0
  %7914 = vadd.xlane.f32.xlu0 %v7913
  %v7915 = vpop.xlane.xlu0 %7914
  %v7916 = vsel %vm683, %v7835, 0.0
  %7917 = vadd.xlane.f32.xlu0 %v7916
  %v7918 = vpop.xlane.xlu0 %7917
  %v7919 = vsel %vm683, %v7837, 0.0
  %7920 = vadd.xlane.f32.xlu0 %v7919
  %v7921 = vpop.xlane.xlu0 %7920
  %v7922 = vsel %vm683, %v7839, 0.0
  %7923 = vadd.xlane.f32.xlu0 %v7922
  %v7924 = vpop.xlane.xlu0 %7923
  %v7925 = vsel %vm683, %v7841, 0.0
  %7926 = vadd.xlane.f32.xlu0 %v7925
  %v7927 = vpop.xlane.xlu0 %7926
  %v7928 = vsel %vm683, %v7843, 0.0
  %7929 = vadd.xlane.f32.xlu0 %v7928
  %v7930 = vpop.xlane.xlu0 %7929
  %v7931 = vsel %vm683, %v7845, 0.0
  %7932 = vadd.xlane.f32.xlu0 %v7931
  %v7933 = vpop.xlane.xlu0 %7932
  %v7934 = vsel %vm683, %v7847, 0.0
  %7935 = vadd.xlane.f32.xlu0 %v7934
  %v7936 = vpop.xlane.xlu0 %7935
  %v7937 = vsel %vm683, %v7849, 0.0
  %7938 = vadd.xlane.f32.xlu0 %v7937
  %v7939 = vpop.xlane.xlu0 %7938
  %v7940 = vsel %vm683, %v7851, 0.0
  %7941 = vadd.xlane.f32.xlu0 %v7940
  %v7942 = vpop.xlane.xlu0 %7941
  %v7943 = vsel %vm683, %v7853, 0.0
  %7944 = vadd.xlane.f32.xlu0 %v7943
  %v7945 = vpop.xlane.xlu0 %7944
  %v7946 = vsel %vm683, %v7855, 0.0
  %7947 = vadd.xlane.f32.xlu0 %v7946
  %v7948 = vpop.xlane.xlu0 %7947
  %v7949 = vsel %vm683, %v7857, 0.0
  %7950 = vadd.xlane.f32.xlu0 %v7949
  %v7951 = vpop.xlane.xlu0 %7950
  %v7952 = vsel %vm683, %v7859, 0.0
  %7953 = vadd.xlane.f32.xlu0 %v7952
  %v7954 = vpop.xlane.xlu0 %7953
  %v7955 = vsel %vm683, %v7861, 0.0
  %7956 = vadd.xlane.f32.xlu0 %v7955
  %v7957 = vpop.xlane.xlu0 %7956
  %v7958 = vrcp.pop %v7864
  %v7959 = vrcp.pop %v7867
  %v7960 = vrcp.pop %v7870
  %v7961 = vrcp.pop %v7873
  %v7962 = vrcp.pop %v7876
  %v7963 = vrcp.pop %v7879
  %v7964 = vrcp.pop %v7882
  %v7965 = vrcp.pop %v7885
  %v7966 = vrcp.pop %v7888
  %v7967 = vrcp.pop %v7891
  %v7968 = vrcp.pop %v7894
  %v7969 = vrcp.pop %v7897
  %v7970 = vrcp.pop %v7900
  %v7971 = vrcp.pop %v7903
  %v7972 = vrcp.pop %v7906
  %v7973 = vrcp.pop %v7909
  %v7974 = vrcp.pop %v7912
  %v7975 = vrcp.pop %v7915
  %v7976 = vrcp.pop %v7918
  %v7977 = vrcp.pop %v7921
  %v7978 = vrcp.pop %v7924
  %v7979 = vrcp.pop %v7927
  %v7980 = vrcp.pop %v7930
  %v7981 = vrcp.pop %v7933
  %v7982 = vrcp.pop %v7936
  %v7983 = vrcp.pop %v7939
  %v7984 = vrcp.pop %v7942
  %v7985 = vrcp.pop %v7945
  %v7986 = vrcp.pop %v7948
  %v7987 = vrcp.pop %v7951
  %v7988 = vrcp.pop %v7954
  %v7989 = vrcp.pop %v7957
  %v7990 = vmul.f32 %v7799, %v7958
  %v7991 = vmul.f32 %v7801, %v7959
  %v7992 = vmul.f32 %v7803, %v7960
  %v7993 = vmul.f32 %v7805, %v7961
  %v7994 = vmul.f32 %v7807, %v7962
  %v7995 = vmul.f32 %v7809, %v7963
  %v7996 = vmul.f32 %v7811, %v7964
  %v7997 = vmul.f32 %v7813, %v7965
  %v7998 = vmul.f32 %v7815, %v7966
  %v7999 = vmul.f32 %v7817, %v7967
  %v8000 = vmul.f32 %v7819, %v7968
  %v8001 = vmul.f32 %v7821, %v7969
  %v8002 = vmul.f32 %v7823, %v7970
  %v8003 = vmul.f32 %v7825, %v7971
  %v8004 = vmul.f32 %v7827, %v7972
  %v8005 = vmul.f32 %v7829, %v7973
  %v8006 = vmul.f32 %v7831, %v7974
  %v8007 = vmul.f32 %v7833, %v7975
  %v8008 = vmul.f32 %v7835, %v7976
  %v8009 = vmul.f32 %v7837, %v7977
  %v8010 = vmul.f32 %v7839, %v7978
  %v8011 = vmul.f32 %v7841, %v7979
  %v8012 = vmul.f32 %v7843, %v7980
  %v8013 = vmul.f32 %v7845, %v7981
  %v8014 = vmul.f32 %v7847, %v7982
  %v8015 = vmul.f32 %v7849, %v7983
  %v8016 = vmul.f32 %v7851, %v7984
  %v8017 = vmul.f32 %v7853, %v7985
  %v8018 = vmul.f32 %v7855, %v7986
  %v8019 = vmul.f32 %v7857, %v7987
  %v8020 = vmul.f32 %v7859, %v7988
  %v8021 = vmul.f32 %v7861, %v7989
  %v8022 = vpack.c.bf16 %v7991, %v7990
  %v8023 = vpack.c.bf16 %v7993, %v7992
  %v8024 = vpack.c.bf16 %v7995, %v7994
  %v8025 = vpack.c.bf16 %v7997, %v7996
  %v8026 = vpack.c.bf16 %v7999, %v7998
  %v8027 = vpack.c.bf16 %v8001, %v8000
  %v8028 = vpack.c.bf16 %v8003, %v8002
  %v8029 = vpack.c.bf16 %v8005, %v8004
  %v8030 = vpack.c.bf16 %v8007, %v8006
  %v8031 = vpack.c.bf16 %v8009, %v8008
  %v8032 = vpack.c.bf16 %v8011, %v8010
  %v8033 = vpack.c.bf16 %v8013, %v8012
  %v8034 = vpack.c.bf16 %v8015, %v8014
  %v8035 = vpack.c.bf16 %v8017, %v8016
  %v8036 = vpack.c.bf16 %v8019, %v8018
  %v8037 = vpack.c.bf16 %v8021, %v8020
  %v8039 = vsel %vm683, %v8022, 0
  %v8042 = vsel %vm683, %v8023, 0
  %v8045 = vsel %vm683, %v8024, 0
  %v8048 = vsel %vm683, %v8025, 0
  %v8051 = vsel %vm683, %v8026, 0
  %v8054 = vsel %vm683, %v8027, 0
  %v8057 = vsel %vm683, %v8028, 0
  %v8060 = vsel %vm683, %v8029, 0
  %v8063 = vsel %vm683, %v8030, 0
  %v8066 = vsel %vm683, %v8031, 0
  %v8069 = vsel %vm683, %v8032, 0
  %v8072 = vsel %vm683, %v8033, 0
  %v8075 = vsel %vm683, %v8034, 0
  %v8078 = vsel %vm683, %v8035, 0
  %v8081 = vsel %vm683, %v8036, 0
  %v8084 = vsel %vm683, %v8037, 0
  %8086 = vmatpush.bf16.msra.mxu0 0
  %8087 = vmatpush.bf16.msra.mxu0 0
  %8088 = vmatpush.bf16.msra.mxu0 0
  %8089 = vmatpush.bf16.msra.mxu0 0
  %8090 = vmatpush.bf16.msra.mxu0 %v7568
  %8091 = vmatpush.bf16.msra.mxu0 %v7567
  %8092 = vmatpush.bf16.msra.mxu0 %v7566
  %8093 = vmatpush.bf16.msra.mxu0 %v7565
  %8094 = vmatmul.bf16.gmra.mxu0 %v8039
  %v8095 = vpop.f32.mrf.mxu0
  %v8096 = vadd.f32 0.0, %v8095
  %v8097 = vpop.f32.mrf.mxu0
  %v8098 = vadd.f32 0.0, %v8097
  %8099 = vmatmul.bf16.gmra.mxu0 %v8042
  %v8100 = vpop.f32.mrf.mxu0
  %v8101 = vadd.f32 0.0, %v8100
  %v8102 = vpop.f32.mrf.mxu0
  %v8103 = vadd.f32 0.0, %v8102
  %8104 = vmatmul.bf16.gmra.mxu0 %v8045
  %v8105 = vpop.f32.mrf.mxu0
  %v8106 = vadd.f32 0.0, %v8105
  %v8107 = vpop.f32.mrf.mxu0
  %v8108 = vadd.f32 0.0, %v8107
  %8109 = vmatmul.bf16.gmra.mxu0 %v8048
  %v8110 = vpop.f32.mrf.mxu0
  %v8111 = vadd.f32 0.0, %v8110
  %v8112 = vpop.f32.mrf.mxu0
  %v8113 = vadd.f32 0.0, %v8112
  %8114 = vmatmul.bf16.gmra.mxu0 %v8051
  %v8115 = vpop.f32.mrf.mxu0
  %v8116 = vadd.f32 0.0, %v8115
  %v8117 = vpop.f32.mrf.mxu0
  %v8118 = vadd.f32 0.0, %v8117
  %8119 = vmatmul.bf16.gmra.mxu0 %v8054
  %v8120 = vpop.f32.mrf.mxu0
  %v8121 = vadd.f32 0.0, %v8120
  %v8122 = vpop.f32.mrf.mxu0
  %v8123 = vadd.f32 0.0, %v8122
  %8124 = vmatmul.bf16.gmra.mxu0 %v8057
  %v8125 = vpop.f32.mrf.mxu0
  %v8126 = vadd.f32 0.0, %v8125
  %v8127 = vpop.f32.mrf.mxu0
  %v8128 = vadd.f32 0.0, %v8127
  %8129 = vmatmul.bf16.gmra.mxu0 %v8060
  %v8130 = vpop.f32.mrf.mxu0
  %v8131 = vadd.f32 0.0, %v8130
  %v8132 = vpop.f32.mrf.mxu0
  %v8133 = vadd.f32 0.0, %v8132
  %8134 = vmatmul.bf16.gmra.mxu0 %v8063
  %v8135 = vpop.f32.mrf.mxu0
  %v8136 = vadd.f32 0.0, %v8135
  %v8137 = vpop.f32.mrf.mxu0
  %v8138 = vadd.f32 0.0, %v8137
  %8139 = vmatmul.bf16.gmra.mxu0 %v8066
  %v8140 = vpop.f32.mrf.mxu0
  %v8141 = vadd.f32 0.0, %v8140
  %v8142 = vpop.f32.mrf.mxu0
  %v8143 = vadd.f32 0.0, %v8142
  %8144 = vmatmul.bf16.gmra.mxu0 %v8069
  %v8145 = vpop.f32.mrf.mxu0
  %v8146 = vadd.f32 0.0, %v8145
  %v8147 = vpop.f32.mrf.mxu0
  %v8148 = vadd.f32 0.0, %v8147
  %8149 = vmatmul.bf16.gmra.mxu0 %v8072
  %v8150 = vpop.f32.mrf.mxu0
  %v8151 = vadd.f32 0.0, %v8150
  %v8152 = vpop.f32.mrf.mxu0
  %v8153 = vadd.f32 0.0, %v8152
  %8154 = vmatmul.bf16.gmra.mxu0 %v8075
  %v8155 = vpop.f32.mrf.mxu0
  %v8156 = vadd.f32 0.0, %v8155
  %v8157 = vpop.f32.mrf.mxu0
  %v8158 = vadd.f32 0.0, %v8157
  %8159 = vmatmul.bf16.gmra.mxu0 %v8078
  %v8160 = vpop.f32.mrf.mxu0
  %v8161 = vadd.f32 0.0, %v8160
  %v8162 = vpop.f32.mrf.mxu0
  %v8163 = vadd.f32 0.0, %v8162
  %8164 = vmatmul.bf16.gmra.mxu0 %v8081
  %v8165 = vpop.f32.mrf.mxu0
  %v8166 = vadd.f32 0.0, %v8165
  %v8167 = vpop.f32.mrf.mxu0
  %v8168 = vadd.f32 0.0, %v8167
  %8169 = vmatmul.bf16.gmra.mxu0 %v8084
  %v8170 = vpop.f32.mrf.mxu0
  %v8171 = vadd.f32 0.0, %v8170
  %v8172 = vpop.f32.mrf.mxu0
  %v8173 = vadd.f32 0.0, %v8172
  %8174 = vdwg.mxu0
  %8175 = vmatpush.bf16.xpose.msra.mxu0 0
  %8176 = vmatpush.bf16.xpose.msra.mxu0 0
  %8177 = vmatpush.bf16.xpose.msra.mxu0 0
  %8178 = vmatpush.bf16.xpose.msra.mxu0 0
  %8179 = vmatpush.bf16.xpose.msra.mxu0 %v7579
  %8180 = vmatpush.bf16.xpose.msra.mxu0 %v7576
  %8181 = vmatpush.bf16.xpose.msra.mxu0 %v7573
  %8182 = vmatpush.bf16.xpose.msra.mxu0 %v7570
  %8183 = vmatmul.bf16.gmra.mxu0 %v1238
  %v8184 = vpop.f32.mrf.mxu0
  %v8185 = vadd.f32 0.0, %v8184
  %v8186 = vpop.f32.mrf.mxu0
  %v8187 = vadd.f32 0.0, %v8186
  %8188 = vmatmul.bf16.gmra.mxu0 %v1241
  %v8189 = vpop.f32.mrf.mxu0
  %v8190 = vadd.f32 0.0, %v8189
  %v8191 = vpop.f32.mrf.mxu0
  %v8192 = vadd.f32 0.0, %v8191
  %8193 = vmatmul.bf16.gmra.mxu0 %v1244
  %v8194 = vpop.f32.mrf.mxu0
  %v8195 = vadd.f32 0.0, %v8194
  %v8196 = vpop.f32.mrf.mxu0
  %v8197 = vadd.f32 0.0, %v8196
  %8198 = vmatmul.bf16.gmra.mxu0 %v1247
  %v8199 = vpop.f32.mrf.mxu0
  %v8200 = vadd.f32 0.0, %v8199
  %v8201 = vpop.f32.mrf.mxu0
  %v8202 = vadd.f32 0.0, %v8201
  %8203 = vmatmul.bf16.gmra.mxu0 %v1250
  %v8204 = vpop.f32.mrf.mxu0
  %v8205 = vadd.f32 0.0, %v8204
  %v8206 = vpop.f32.mrf.mxu0
  %v8207 = vadd.f32 0.0, %v8206
  %8208 = vmatmul.bf16.gmra.mxu0 %v1253
  %v8209 = vpop.f32.mrf.mxu0
  %v8210 = vadd.f32 0.0, %v8209
  %v8211 = vpop.f32.mrf.mxu0
  %v8212 = vadd.f32 0.0, %v8211
  %8213 = vmatmul.bf16.gmra.mxu0 %v1256
  %v8214 = vpop.f32.mrf.mxu0
  %v8215 = vadd.f32 0.0, %v8214
  %v8216 = vpop.f32.mrf.mxu0
  %v8217 = vadd.f32 0.0, %v8216
  %8218 = vmatmul.bf16.gmra.mxu0 %v1259
  %v8219 = vpop.f32.mrf.mxu0
  %v8220 = vadd.f32 0.0, %v8219
  %v8221 = vpop.f32.mrf.mxu0
  %v8222 = vadd.f32 0.0, %v8221
  %8223 = vmatmul.bf16.gmra.mxu0 %v1262
  %v8224 = vpop.f32.mrf.mxu0
  %v8225 = vadd.f32 0.0, %v8224
  %v8226 = vpop.f32.mrf.mxu0
  %v8227 = vadd.f32 0.0, %v8226
  %8228 = vmatmul.bf16.gmra.mxu0 %v1265
  %v8229 = vpop.f32.mrf.mxu0
  %v8230 = vadd.f32 0.0, %v8229
  %v8231 = vpop.f32.mrf.mxu0
  %v8232 = vadd.f32 0.0, %v8231
  %8233 = vmatmul.bf16.gmra.mxu0 %v1268
  %v8234 = vpop.f32.mrf.mxu0
  %v8235 = vadd.f32 0.0, %v8234
  %v8236 = vpop.f32.mrf.mxu0
  %v8237 = vadd.f32 0.0, %v8236
  %8238 = vmatmul.bf16.gmra.mxu0 %v1271
  %v8239 = vpop.f32.mrf.mxu0
  %v8240 = vadd.f32 0.0, %v8239
  %v8241 = vpop.f32.mrf.mxu0
  %v8242 = vadd.f32 0.0, %v8241
  %8243 = vmatmul.bf16.gmra.mxu0 %v1274
  %v8244 = vpop.f32.mrf.mxu0
  %v8245 = vadd.f32 0.0, %v8244
  %v8246 = vpop.f32.mrf.mxu0
  %v8247 = vadd.f32 0.0, %v8246
  %8248 = vmatmul.bf16.gmra.mxu0 %v1277
  %v8249 = vpop.f32.mrf.mxu0
  %v8250 = vadd.f32 0.0, %v8249
  %v8251 = vpop.f32.mrf.mxu0
  %v8252 = vadd.f32 0.0, %v8251
  %8253 = vmatmul.bf16.gmra.mxu0 %v1280
  %v8254 = vpop.f32.mrf.mxu0
  %v8255 = vadd.f32 0.0, %v8254
  %v8256 = vpop.f32.mrf.mxu0
  %v8257 = vadd.f32 0.0, %v8256
  %8258 = vmatmul.bf16.gmra.mxu0 %v1283
  %v8259 = vpop.f32.mrf.mxu0
  %v8260 = vadd.f32 0.0, %v8259
  %v8261 = vpop.f32.mrf.mxu0
  %v8262 = vadd.f32 0.0, %v8261
  %8263 = vdwg.mxu0
  %v8264 = vsel %vm683, %v8185, -inf
  %8265 = vmax.xlane.f32.xlu0 %v8264
  %v8266 = vpop.xlane.xlu0 %8265
  %v8267 = vsel %vm683, %v8187, -inf
  %8268 = vmax.xlane.f32.xlu0 %v8267
  %v8269 = vpop.xlane.xlu0 %8268
  %v8270 = vsel %vm683, %v8190, -inf
  %8271 = vmax.xlane.f32.xlu0 %v8270
  %v8272 = vpop.xlane.xlu0 %8271
  %v8273 = vsel %vm683, %v8192, -inf
  %8274 = vmax.xlane.f32.xlu0 %v8273
  %v8275 = vpop.xlane.xlu0 %8274
  %v8276 = vsel %vm683, %v8195, -inf
  %8277 = vmax.xlane.f32.xlu0 %v8276
  %v8278 = vpop.xlane.xlu0 %8277
  %v8279 = vsel %vm683, %v8197, -inf
  %8280 = vmax.xlane.f32.xlu0 %v8279
  %v8281 = vpop.xlane.xlu0 %8280
  %v8282 = vsel %vm683, %v8200, -inf
  %8283 = vmax.xlane.f32.xlu0 %v8282
  %v8284 = vpop.xlane.xlu0 %8283
  %v8285 = vsel %vm683, %v8202, -inf
  %8286 = vmax.xlane.f32.xlu0 %v8285
  %v8287 = vpop.xlane.xlu0 %8286
  %v8288 = vsel %vm683, %v8205, -inf
  %8289 = vmax.xlane.f32.xlu0 %v8288
  %v8290 = vpop.xlane.xlu0 %8289
  %v8291 = vsel %vm683, %v8207, -inf
  %8292 = vmax.xlane.f32.xlu0 %v8291
  %v8293 = vpop.xlane.xlu0 %8292
  %v8294 = vsel %vm683, %v8210, -inf
  %8295 = vmax.xlane.f32.xlu0 %v8294
  %v8296 = vpop.xlane.xlu0 %8295
  %v8297 = vsel %vm683, %v8212, -inf
  %8298 = vmax.xlane.f32.xlu0 %v8297
  %v8299 = vpop.xlane.xlu0 %8298
  %v8300 = vsel %vm683, %v8215, -inf
  %8301 = vmax.xlane.f32.xlu0 %v8300
  %v8302 = vpop.xlane.xlu0 %8301
  %v8303 = vsel %vm683, %v8217, -inf
  %8304 = vmax.xlane.f32.xlu0 %v8303
  %v8305 = vpop.xlane.xlu0 %8304
  %v8306 = vsel %vm683, %v8220, -inf
  %8307 = vmax.xlane.f32.xlu0 %v8306
  %v8308 = vpop.xlane.xlu0 %8307
  %v8309 = vsel %vm683, %v8222, -inf
  %8310 = vmax.xlane.f32.xlu0 %v8309
  %v8311 = vpop.xlane.xlu0 %8310
  %v8312 = vsel %vm683, %v8225, -inf
  %8313 = vmax.xlane.f32.xlu0 %v8312
  %v8314 = vpop.xlane.xlu0 %8313
  %v8315 = vsel %vm683, %v8227, -inf
  %8316 = vmax.xlane.f32.xlu0 %v8315
  %v8317 = vpop.xlane.xlu0 %8316
  %v8318 = vsel %vm683, %v8230, -inf
  %8319 = vmax.xlane.f32.xlu0 %v8318
  %v8320 = vpop.xlane.xlu0 %8319
  %v8321 = vsel %vm683, %v8232, -inf
  %8322 = vmax.xlane.f32.xlu0 %v8321
  %v8323 = vpop.xlane.xlu0 %8322
  %v8324 = vsel %vm683, %v8235, -inf
  %8325 = vmax.xlane.f32.xlu0 %v8324
  %v8326 = vpop.xlane.xlu0 %8325
  %v8327 = vsel %vm683, %v8237, -inf
  %8328 = vmax.xlane.f32.xlu0 %v8327
  %v8329 = vpop.xlane.xlu0 %8328
  %v8330 = vsel %vm683, %v8240, -inf
  %8331 = vmax.xlane.f32.xlu0 %v8330
  %v8332 = vpop.xlane.xlu0 %8331
  %v8333 = vsel %vm683, %v8242, -inf
  %8334 = vmax.xlane.f32.xlu0 %v8333
  %v8335 = vpop.xlane.xlu0 %8334
  %v8336 = vsel %vm683, %v8245, -inf
  %8337 = vmax.xlane.f32.xlu0 %v8336
  %v8338 = vpop.xlane.xlu0 %8337
  %v8339 = vsel %vm683, %v8247, -inf
  %8340 = vmax.xlane.f32.xlu0 %v8339
  %v8341 = vpop.xlane.xlu0 %8340
  %v8342 = vsel %vm683, %v8250, -inf
  %8343 = vmax.xlane.f32.xlu0 %v8342
  %v8344 = vpop.xlane.xlu0 %8343
  %v8345 = vsel %vm683, %v8252, -inf
  %8346 = vmax.xlane.f32.xlu0 %v8345
  %v8347 = vpop.xlane.xlu0 %8346
  %v8348 = vsel %vm683, %v8255, -inf
  %8349 = vmax.xlane.f32.xlu0 %v8348
  %v8350 = vpop.xlane.xlu0 %8349
  %v8351 = vsel %vm683, %v8257, -inf
  %8352 = vmax.xlane.f32.xlu0 %v8351
  %v8353 = vpop.xlane.xlu0 %8352
  %v8354 = vsel %vm683, %v8260, -inf
  %8355 = vmax.xlane.f32.xlu0 %v8354
  %v8356 = vpop.xlane.xlu0 %8355
  %v8357 = vsel %vm683, %v8262, -inf
  %8358 = vmax.xlane.f32.xlu0 %v8357
  %v8359 = vpop.xlane.xlu0 %8358
  %v8360 = vsub.f32 %v8185, %v8266
  %v8361 = vsub.f32 %v8187, %v8269
  %v8362 = vsub.f32 %v8190, %v8272
  %v8363 = vsub.f32 %v8192, %v8275
  %v8364 = vsub.f32 %v8195, %v8278
  %v8365 = vsub.f32 %v8197, %v8281
  %v8366 = vsub.f32 %v8200, %v8284
  %v8367 = vsub.f32 %v8202, %v8287
  %v8368 = vsub.f32 %v8205, %v8290
  %v8369 = vsub.f32 %v8207, %v8293
  %v8370 = vsub.f32 %v8210, %v8296
  %v8371 = vsub.f32 %v8212, %v8299
  %v8372 = vsub.f32 %v8215, %v8302
  %v8373 = vsub.f32 %v8217, %v8305
  %v8374 = vsub.f32 %v8220, %v8308
  %v8375 = vsub.f32 %v8222, %v8311
  %v8376 = vsub.f32 %v8225, %v8314
  %v8377 = vsub.f32 %v8227, %v8317
  %v8378 = vsub.f32 %v8230, %v8320
  %v8379 = vsub.f32 %v8232, %v8323
  %v8380 = vsub.f32 %v8235, %v8326
  %v8381 = vsub.f32 %v8237, %v8329
  %v8382 = vsub.f32 %v8240, %v8332
  %v8383 = vsub.f32 %v8242, %v8335
  %v8384 = vsub.f32 %v8245, %v8338
  %v8385 = vsub.f32 %v8247, %v8341
  %v8386 = vsub.f32 %v8250, %v8344
  %v8387 = vsub.f32 %v8252, %v8347
  %v8388 = vsub.f32 %v8255, %v8350
  %v8389 = vsub.f32 %v8257, %v8353
  %v8390 = vsub.f32 %v8260, %v8356
  %v8391 = vsub.f32 %v8262, %v8359
  %v8392 = vmul.f32 %v8360, 1.442695
  %v8393 = vpow.pop %v8392
  %v8394 = vmul.f32 %v8361, 1.442695
  %v8395 = vpow.pop %v8394
  %v8396 = vmul.f32 %v8362, 1.442695
  %v8397 = vpow.pop %v8396
  %v8398 = vmul.f32 %v8363, 1.442695
  %v8399 = vpow.pop %v8398
  %v8400 = vmul.f32 %v8364, 1.442695
  %v8401 = vpow.pop %v8400
  %v8402 = vmul.f32 %v8365, 1.442695
  %v8403 = vpow.pop %v8402
  %v8404 = vmul.f32 %v8366, 1.442695
  %v8405 = vpow.pop %v8404
  %v8406 = vmul.f32 %v8367, 1.442695
  %v8407 = vpow.pop %v8406
  %v8408 = vmul.f32 %v8368, 1.442695
  %v8409 = vpow.pop %v8408
  %v8410 = vmul.f32 %v8369, 1.442695
  %v8411 = vpow.pop %v8410
  %v8412 = vmul.f32 %v8370, 1.442695
  %v8413 = vpow.pop %v8412
  %v8414 = vmul.f32 %v8371, 1.442695
  %v8415 = vpow.pop %v8414
  %v8416 = vmul.f32 %v8372, 1.442695
  %v8417 = vpow.pop %v8416
  %v8418 = vmul.f32 %v8373, 1.442695
  %v8419 = vpow.pop %v8418
  %v8420 = vmul.f32 %v8374, 1.442695
  %v8421 = vpow.pop %v8420
  %v8422 = vmul.f32 %v8375, 1.442695
  %v8423 = vpow.pop %v8422
  %v8424 = vmul.f32 %v8376, 1.442695
  %v8425 = vpow.pop %v8424
  %v8426 = vmul.f32 %v8377, 1.442695
  %v8427 = vpow.pop %v8426
  %v8428 = vmul.f32 %v8378, 1.442695
  %v8429 = vpow.pop %v8428
  %v8430 = vmul.f32 %v8379, 1.442695
  %v8431 = vpow.pop %v8430
  %v8432 = vmul.f32 %v8380, 1.442695
  %v8433 = vpow.pop %v8432
  %v8434 = vmul.f32 %v8381, 1.442695
  %v8435 = vpow.pop %v8434
  %v8436 = vmul.f32 %v8382, 1.442695
  %v8437 = vpow.pop %v8436
  %v8438 = vmul.f32 %v8383, 1.442695
  %v8439 = vpow.pop %v8438
  %v8440 = vmul.f32 %v8384, 1.442695
  %v8441 = vpow.pop %v8440
  %v8442 = vmul.f32 %v8385, 1.442695
  %v8443 = vpow.pop %v8442
  %v8444 = vmul.f32 %v8386, 1.442695
  %v8445 = vpow.pop %v8444
  %v8446 = vmul.f32 %v8387, 1.442695
  %v8447 = vpow.pop %v8446
  %v8448 = vmul.f32 %v8388, 1.442695
  %v8449 = vpow.pop %v8448
  %v8450 = vmul.f32 %v8389, 1.442695
  %v8451 = vpow.pop %v8450
  %v8452 = vmul.f32 %v8390, 1.442695
  %v8453 = vpow.pop %v8452
  %v8454 = vmul.f32 %v8391, 1.442695
  %v8455 = vpow.pop %v8454
  %v8456 = vsel %vm683, %v8393, 0.0
  %8457 = vadd.xlane.f32.xlu0 %v8456
  %v8458 = vpop.xlane.xlu0 %8457
  %v8459 = vsel %vm683, %v8395, 0.0
  %8460 = vadd.xlane.f32.xlu0 %v8459
  %v8461 = vpop.xlane.xlu0 %8460
  %v8462 = vsel %vm683, %v8397, 0.0
  %8463 = vadd.xlane.f32.xlu0 %v8462
  %v8464 = vpop.xlane.xlu0 %8463
  %v8465 = vsel %vm683, %v8399, 0.0
  %8466 = vadd.xlane.f32.xlu0 %v8465
  %v8467 = vpop.xlane.xlu0 %8466
  %v8468 = vsel %vm683, %v8401, 0.0
  %8469 = vadd.xlane.f32.xlu0 %v8468
  %v8470 = vpop.xlane.xlu0 %8469
  %v8471 = vsel %vm683, %v8403, 0.0
  %8472 = vadd.xlane.f32.xlu0 %v8471
  %v8473 = vpop.xlane.xlu0 %8472
  %v8474 = vsel %vm683, %v8405, 0.0
  %8475 = vadd.xlane.f32.xlu0 %v8474
  %v8476 = vpop.xlane.xlu0 %8475
  %v8477 = vsel %vm683, %v8407, 0.0
  %8478 = vadd.xlane.f32.xlu0 %v8477
  %v8479 = vpop.xlane.xlu0 %8478
  %v8480 = vsel %vm683, %v8409, 0.0
  %8481 = vadd.xlane.f32.xlu0 %v8480
  %v8482 = vpop.xlane.xlu0 %8481
  %v8483 = vsel %vm683, %v8411, 0.0
  %8484 = vadd.xlane.f32.xlu0 %v8483
  %v8485 = vpop.xlane.xlu0 %8484
  %v8486 = vsel %vm683, %v8413, 0.0
  %8487 = vadd.xlane.f32.xlu0 %v8486
  %v8488 = vpop.xlane.xlu0 %8487
  %v8489 = vsel %vm683, %v8415, 0.0
  %8490 = vadd.xlane.f32.xlu0 %v8489
  %v8491 = vpop.xlane.xlu0 %8490
  %v8492 = vsel %vm683, %v8417, 0.0
  %8493 = vadd.xlane.f32.xlu0 %v8492
  %v8494 = vpop.xlane.xlu0 %8493
  %v8495 = vsel %vm683, %v8419, 0.0
  %8496 = vadd.xlane.f32.xlu0 %v8495
  %v8497 = vpop.xlane.xlu0 %8496
  %v8498 = vsel %vm683, %v8421, 0.0
  %8499 = vadd.xlane.f32.xlu0 %v8498
  %v8500 = vpop.xlane.xlu0 %8499
  %v8501 = vsel %vm683, %v8423, 0.0
  %8502 = vadd.xlane.f32.xlu0 %v8501
  %v8503 = vpop.xlane.xlu0 %8502
  %v8504 = vsel %vm683, %v8425, 0.0
  %8505 = vadd.xlane.f32.xlu0 %v8504
  %v8506 = vpop.xlane.xlu0 %8505
  %v8507 = vsel %vm683, %v8427, 0.0
  %8508 = vadd.xlane.f32.xlu0 %v8507
  %v8509 = vpop.xlane.xlu0 %8508
  %v8510 = vsel %vm683, %v8429, 0.0
  %8511 = vadd.xlane.f32.xlu0 %v8510
  %v8512 = vpop.xlane.xlu0 %8511
  %v8513 = vsel %vm683, %v8431, 0.0
  %8514 = vadd.xlane.f32.xlu0 %v8513
  %v8515 = vpop.xlane.xlu0 %8514
  %v8516 = vsel %vm683, %v8433, 0.0
  %8517 = vadd.xlane.f32.xlu0 %v8516
  %v8518 = vpop.xlane.xlu0 %8517
  %v8519 = vsel %vm683, %v8435, 0.0
  %8520 = vadd.xlane.f32.xlu0 %v8519
  %v8521 = vpop.xlane.xlu0 %8520
  %v8522 = vsel %vm683, %v8437, 0.0
  %8523 = vadd.xlane.f32.xlu0 %v8522
  %v8524 = vpop.xlane.xlu0 %8523
  %v8525 = vsel %vm683, %v8439, 0.0
  %8526 = vadd.xlane.f32.xlu0 %v8525
  %v8527 = vpop.xlane.xlu0 %8526
  %v8528 = vsel %vm683, %v8441, 0.0
  %8529 = vadd.xlane.f32.xlu0 %v8528
  %v8530 = vpop.xlane.xlu0 %8529
  %v8531 = vsel %vm683, %v8443, 0.0
  %8532 = vadd.xlane.f32.xlu0 %v8531
  %v8533 = vpop.xlane.xlu0 %8532
  %v8534 = vsel %vm683, %v8445, 0.0
  %8535 = vadd.xlane.f32.xlu0 %v8534
  %v8536 = vpop.xlane.xlu0 %8535
  %v8537 = vsel %vm683, %v8447, 0.0
  %8538 = vadd.xlane.f32.xlu0 %v8537
  %v8539 = vpop.xlane.xlu0 %8538
  %v8540 = vsel %vm683, %v8449, 0.0
  %8541 = vadd.xlane.f32.xlu0 %v8540
  %v8542 = vpop.xlane.xlu0 %8541
  %v8543 = vsel %vm683, %v8451, 0.0
  %8544 = vadd.xlane.f32.xlu0 %v8543
  %v8545 = vpop.xlane.xlu0 %8544
  %v8546 = vsel %vm683, %v8453, 0.0
  %8547 = vadd.xlane.f32.xlu0 %v8546
  %v8548 = vpop.xlane.xlu0 %8547
  %v8549 = vsel %vm683, %v8455, 0.0
  %8550 = vadd.xlane.f32.xlu0 %v8549
  %v8551 = vpop.xlane.xlu0 %8550
  %v8552 = vrcp.pop %v8458
  %v8553 = vrcp.pop %v8461
  %v8554 = vrcp.pop %v8464
  %v8555 = vrcp.pop %v8467
  %v8556 = vrcp.pop %v8470
  %v8557 = vrcp.pop %v8473
  %v8558 = vrcp.pop %v8476
  %v8559 = vrcp.pop %v8479
  %v8560 = vrcp.pop %v8482
  %v8561 = vrcp.pop %v8485
  %v8562 = vrcp.pop %v8488
  %v8563 = vrcp.pop %v8491
  %v8564 = vrcp.pop %v8494
  %v8565 = vrcp.pop %v8497
  %v8566 = vrcp.pop %v8500
  %v8567 = vrcp.pop %v8503
  %v8568 = vrcp.pop %v8506
  %v8569 = vrcp.pop %v8509
  %v8570 = vrcp.pop %v8512
  %v8571 = vrcp.pop %v8515
  %v8572 = vrcp.pop %v8518
  %v8573 = vrcp.pop %v8521
  %v8574 = vrcp.pop %v8524
  %v8575 = vrcp.pop %v8527
  %v8576 = vrcp.pop %v8530
  %v8577 = vrcp.pop %v8533
  %v8578 = vrcp.pop %v8536
  %v8579 = vrcp.pop %v8539
  %v8580 = vrcp.pop %v8542
  %v8581 = vrcp.pop %v8545
  %v8582 = vrcp.pop %v8548
  %v8583 = vrcp.pop %v8551
  %v8584 = vmul.f32 %v8393, %v8552
  %v8585 = vmul.f32 %v8395, %v8553
  %v8586 = vmul.f32 %v8397, %v8554
  %v8587 = vmul.f32 %v8399, %v8555
  %v8588 = vmul.f32 %v8401, %v8556
  %v8589 = vmul.f32 %v8403, %v8557
  %v8590 = vmul.f32 %v8405, %v8558
  %v8591 = vmul.f32 %v8407, %v8559
  %v8592 = vmul.f32 %v8409, %v8560
  %v8593 = vmul.f32 %v8411, %v8561
  %v8594 = vmul.f32 %v8413, %v8562
  %v8595 = vmul.f32 %v8415, %v8563
  %v8596 = vmul.f32 %v8417, %v8564
  %v8597 = vmul.f32 %v8419, %v8565
  %v8598 = vmul.f32 %v8421, %v8566
  %v8599 = vmul.f32 %v8423, %v8567
  %v8600 = vmul.f32 %v8425, %v8568
  %v8601 = vmul.f32 %v8427, %v8569
  %v8602 = vmul.f32 %v8429, %v8570
  %v8603 = vmul.f32 %v8431, %v8571
  %v8604 = vmul.f32 %v8433, %v8572
  %v8605 = vmul.f32 %v8435, %v8573
  %v8606 = vmul.f32 %v8437, %v8574
  %v8607 = vmul.f32 %v8439, %v8575
  %v8608 = vmul.f32 %v8441, %v8576
  %v8609 = vmul.f32 %v8443, %v8577
  %v8610 = vmul.f32 %v8445, %v8578
  %v8611 = vmul.f32 %v8447, %v8579
  %v8612 = vmul.f32 %v8449, %v8580
  %v8613 = vmul.f32 %v8451, %v8581
  %v8614 = vmul.f32 %v8453, %v8582
  %v8615 = vmul.f32 %v8455, %v8583
  %v8616 = vpack.c.bf16 %v8585, %v8584
  %v8617 = vpack.c.bf16 %v8587, %v8586
  %v8618 = vpack.c.bf16 %v8589, %v8588
  %v8619 = vpack.c.bf16 %v8591, %v8590
  %v8620 = vpack.c.bf16 %v8593, %v8592
  %v8621 = vpack.c.bf16 %v8595, %v8594
  %v8622 = vpack.c.bf16 %v8597, %v8596
  %v8623 = vpack.c.bf16 %v8599, %v8598
  %v8624 = vpack.c.bf16 %v8601, %v8600
  %v8625 = vpack.c.bf16 %v8603, %v8602
  %v8626 = vpack.c.bf16 %v8605, %v8604
  %v8627 = vpack.c.bf16 %v8607, %v8606
  %v8628 = vpack.c.bf16 %v8609, %v8608
  %v8629 = vpack.c.bf16 %v8611, %v8610
  %v8630 = vpack.c.bf16 %v8613, %v8612
  %v8631 = vpack.c.bf16 %v8615, %v8614
  %v8633 = vsel %vm683, %v8616, 0
  %v8636 = vsel %vm683, %v8617, 0
  %v8639 = vsel %vm683, %v8618, 0
  %v8642 = vsel %vm683, %v8619, 0
  %v8645 = vsel %vm683, %v8620, 0
  %v8648 = vsel %vm683, %v8621, 0
  %v8651 = vsel %vm683, %v8622, 0
  %v8654 = vsel %vm683, %v8623, 0
  %v8657 = vsel %vm683, %v8624, 0
  %v8660 = vsel %vm683, %v8625, 0
  %v8663 = vsel %vm683, %v8626, 0
  %v8666 = vsel %vm683, %v8627, 0
  %v8669 = vsel %vm683, %v8628, 0
  %v8672 = vsel %vm683, %v8629, 0
  %v8675 = vsel %vm683, %v8630, 0
  %v8678 = vsel %vm683, %v8631, 0
  %8680 = vmatpush.bf16.msra.mxu0 0
  %8681 = vmatpush.bf16.msra.mxu0 0
  %8682 = vmatpush.bf16.msra.mxu0 0
  %8683 = vmatpush.bf16.msra.mxu0 0
  %8684 = vmatpush.bf16.msra.mxu0 %v7568
  %8685 = vmatpush.bf16.msra.mxu0 %v7567
  %8686 = vmatpush.bf16.msra.mxu0 %v7566
  %8687 = vmatpush.bf16.msra.mxu0 %v7565
  %8688 = vmatmul.bf16.gmra.mxu0 %v8633
  %v8689 = vpop.f32.mrf.mxu0
  %v8690 = vadd.f32 0.0, %v8689
  %v8691 = vpop.f32.mrf.mxu0
  %v8692 = vadd.f32 0.0, %v8691
  %8693 = vmatmul.bf16.gmra.mxu0 %v8636
  %v8694 = vpop.f32.mrf.mxu0
  %v8695 = vadd.f32 0.0, %v8694
  %v8696 = vpop.f32.mrf.mxu0
  %v8697 = vadd.f32 0.0, %v8696
  %8698 = vmatmul.bf16.gmra.mxu0 %v8639
  %v8699 = vpop.f32.mrf.mxu0
  %v8700 = vadd.f32 0.0, %v8699
  %v8701 = vpop.f32.mrf.mxu0
  %v8702 = vadd.f32 0.0, %v8701
  %8703 = vmatmul.bf16.gmra.mxu0 %v8642
  %v8704 = vpop.f32.mrf.mxu0
  %v8705 = vadd.f32 0.0, %v8704
  %v8706 = vpop.f32.mrf.mxu0
  %v8707 = vadd.f32 0.0, %v8706
  %8708 = vmatmul.bf16.gmra.mxu0 %v8645
  %v8709 = vpop.f32.mrf.mxu0
  %v8710 = vadd.f32 0.0, %v8709
  %v8711 = vpop.f32.mrf.mxu0
  %v8712 = vadd.f32 0.0, %v8711
  %8713 = vmatmul.bf16.gmra.mxu0 %v8648
  %v8714 = vpop.f32.mrf.mxu0
  %v8715 = vadd.f32 0.0, %v8714
  %v8716 = vpop.f32.mrf.mxu0
  %v8717 = vadd.f32 0.0, %v8716
  %8718 = vmatmul.bf16.gmra.mxu0 %v8651
  %v8719 = vpop.f32.mrf.mxu0
  %v8720 = vadd.f32 0.0, %v8719
  %v8721 = vpop.f32.mrf.mxu0
  %v8722 = vadd.f32 0.0, %v8721
  %8723 = vmatmul.bf16.gmra.mxu0 %v8654
  %v8724 = vpop.f32.mrf.mxu0
  %v8725 = vadd.f32 0.0, %v8724
  %v8726 = vpop.f32.mrf.mxu0
  %v8727 = vadd.f32 0.0, %v8726
  %8728 = vmatmul.bf16.gmra.mxu0 %v8657
  %v8729 = vpop.f32.mrf.mxu0
  %v8730 = vadd.f32 0.0, %v8729
  %v8731 = vpop.f32.mrf.mxu0
  %v8732 = vadd.f32 0.0, %v8731
  %8733 = vmatmul.bf16.gmra.mxu0 %v8660
  %v8734 = vpop.f32.mrf.mxu0
  %v8735 = vadd.f32 0.0, %v8734
  %v8736 = vpop.f32.mrf.mxu0
  %v8737 = vadd.f32 0.0, %v8736
  %8738 = vmatmul.bf16.gmra.mxu0 %v8663
  %v8739 = vpop.f32.mrf.mxu0
  %v8740 = vadd.f32 0.0, %v8739
  %v8741 = vpop.f32.mrf.mxu0
  %v8742 = vadd.f32 0.0, %v8741
  %8743 = vmatmul.bf16.gmra.mxu0 %v8666
  %v8744 = vpop.f32.mrf.mxu0
  %v8745 = vadd.f32 0.0, %v8744
  %v8746 = vpop.f32.mrf.mxu0
  %v8747 = vadd.f32 0.0, %v8746
  %8748 = vmatmul.bf16.gmra.mxu0 %v8669
  %v8749 = vpop.f32.mrf.mxu0
  %v8750 = vadd.f32 0.0, %v8749
  %v8751 = vpop.f32.mrf.mxu0
  %v8752 = vadd.f32 0.0, %v8751
  %8753 = vmatmul.bf16.gmra.mxu0 %v8672
  %v8754 = vpop.f32.mrf.mxu0
  %v8755 = vadd.f32 0.0, %v8754
  %v8756 = vpop.f32.mrf.mxu0
  %v8757 = vadd.f32 0.0, %v8756
  %8758 = vmatmul.bf16.gmra.mxu0 %v8675
  %v8759 = vpop.f32.mrf.mxu0
  %v8760 = vadd.f32 0.0, %v8759
  %v8761 = vpop.f32.mrf.mxu0
  %v8762 = vadd.f32 0.0, %v8761
  %8763 = vmatmul.bf16.gmra.mxu0 %v8678
  %v8764 = vpop.f32.mrf.mxu0
  %v8765 = vadd.f32 0.0, %v8764
  %v8766 = vpop.f32.mrf.mxu0
  %v8767 = vadd.f32 0.0, %v8766
  %8768 = vdwg.mxu0
  %8769 = vmatpush.bf16.xpose.msra.mxu0 0
  %8770 = vmatpush.bf16.xpose.msra.mxu0 0
  %8771 = vmatpush.bf16.xpose.msra.mxu0 0
  %8772 = vmatpush.bf16.xpose.msra.mxu0 0
  %8773 = vmatpush.bf16.xpose.msra.mxu0 %v7579
  %8774 = vmatpush.bf16.xpose.msra.mxu0 %v7576
  %8775 = vmatpush.bf16.xpose.msra.mxu0 %v7573
  %8776 = vmatpush.bf16.xpose.msra.mxu0 %v7570
  %8777 = vmatmul.bf16.gmra.mxu0 %v1912
  %v8778 = vpop.f32.mrf.mxu0
  %v8779 = vadd.f32 0.0, %v8778
  %v8780 = vpop.f32.mrf.mxu0
  %v8781 = vadd.f32 0.0, %v8780
  %8782 = vmatmul.bf16.gmra.mxu0 %v1915
  %v8783 = vpop.f32.mrf.mxu0
  %v8784 = vadd.f32 0.0, %v8783
  %v8785 = vpop.f32.mrf.mxu0
  %v8786 = vadd.f32 0.0, %v8785
  %8787 = vmatmul.bf16.gmra.mxu0 %v1918
  %v8788 = vpop.f32.mrf.mxu0
  %v8789 = vadd.f32 0.0, %v8788
  %v8790 = vpop.f32.mrf.mxu0
  %v8791 = vadd.f32 0.0, %v8790
  %8792 = vmatmul.bf16.gmra.mxu0 %v1921
  %v8793 = vpop.f32.mrf.mxu0
  %v8794 = vadd.f32 0.0, %v8793
  %v8795 = vpop.f32.mrf.mxu0
  %v8796 = vadd.f32 0.0, %v8795
  %8797 = vmatmul.bf16.gmra.mxu0 %v1924
  %v8798 = vpop.f32.mrf.mxu0
  %v8799 = vadd.f32 0.0, %v8798
  %v8800 = vpop.f32.mrf.mxu0
  %v8801 = vadd.f32 0.0, %v8800
  %8802 = vmatmul.bf16.gmra.mxu0 %v1927
  %v8803 = vpop.f32.mrf.mxu0
  %v8804 = vadd.f32 0.0, %v8803
  %v8805 = vpop.f32.mrf.mxu0
  %v8806 = vadd.f32 0.0, %v8805
  %8807 = vmatmul.bf16.gmra.mxu0 %v1930
  %v8808 = vpop.f32.mrf.mxu0
  %v8809 = vadd.f32 0.0, %v8808
  %v8810 = vpop.f32.mrf.mxu0
  %v8811 = vadd.f32 0.0, %v8810
  %8812 = vmatmul.bf16.gmra.mxu0 %v1933
  %v8813 = vpop.f32.mrf.mxu0
  %v8814 = vadd.f32 0.0, %v8813
  %v8815 = vpop.f32.mrf.mxu0
  %v8816 = vadd.f32 0.0, %v8815
  %8817 = vmatmul.bf16.gmra.mxu0 %v1936
  %v8818 = vpop.f32.mrf.mxu0
  %v8819 = vadd.f32 0.0, %v8818
  %v8820 = vpop.f32.mrf.mxu0
  %v8821 = vadd.f32 0.0, %v8820
  %8822 = vmatmul.bf16.gmra.mxu0 %v1939
  %v8823 = vpop.f32.mrf.mxu0
  %v8824 = vadd.f32 0.0, %v8823
  %v8825 = vpop.f32.mrf.mxu0
  %v8826 = vadd.f32 0.0, %v8825
  %8827 = vmatmul.bf16.gmra.mxu0 %v1942
  %v8828 = vpop.f32.mrf.mxu0
  %v8829 = vadd.f32 0.0, %v8828
  %v8830 = vpop.f32.mrf.mxu0
  %v8831 = vadd.f32 0.0, %v8830
  %8832 = vmatmul.bf16.gmra.mxu0 %v1945
  %v8833 = vpop.f32.mrf.mxu0
  %v8834 = vadd.f32 0.0, %v8833
  %v8835 = vpop.f32.mrf.mxu0
  %v8836 = vadd.f32 0.0, %v8835
  %8837 = vmatmul.bf16.gmra.mxu0 %v1948
  %v8838 = vpop.f32.mrf.mxu0
  %v8839 = vadd.f32 0.0, %v8838
  %v8840 = vpop.f32.mrf.mxu0
  %v8841 = vadd.f32 0.0, %v8840
  %8842 = vmatmul.bf16.gmra.mxu0 %v1951
  %v8843 = vpop.f32.mrf.mxu0
  %v8844 = vadd.f32 0.0, %v8843
  %v8845 = vpop.f32.mrf.mxu0
  %v8846 = vadd.f32 0.0, %v8845
  %8847 = vmatmul.bf16.gmra.mxu0 %v1954
  %v8848 = vpop.f32.mrf.mxu0
  %v8849 = vadd.f32 0.0, %v8848
  %v8850 = vpop.f32.mrf.mxu0
  %v8851 = vadd.f32 0.0, %v8850
  %8852 = vmatmul.bf16.gmra.mxu0 %v1957
  %v8853 = vpop.f32.mrf.mxu0
  %v8854 = vadd.f32 0.0, %v8853
  %v8855 = vpop.f32.mrf.mxu0
  %v8856 = vadd.f32 0.0, %v8855
  %8857 = vdwg.mxu0
  %v8858 = vsel %vm683, %v8779, -inf
  %8859 = vmax.xlane.f32.xlu0 %v8858
  %v8860 = vpop.xlane.xlu0 %8859
  %v8861 = vsel %vm683, %v8781, -inf
  %8862 = vmax.xlane.f32.xlu0 %v8861
  %v8863 = vpop.xlane.xlu0 %8862
  %v8864 = vsel %vm683, %v8784, -inf
  %8865 = vmax.xlane.f32.xlu0 %v8864
  %v8866 = vpop.xlane.xlu0 %8865
  %v8867 = vsel %vm683, %v8786, -inf
  %8868 = vmax.xlane.f32.xlu0 %v8867
  %v8869 = vpop.xlane.xlu0 %8868
  %v8870 = vsel %vm683, %v8789, -inf
  %8871 = vmax.xlane.f32.xlu0 %v8870
  %v8872 = vpop.xlane.xlu0 %8871
  %v8873 = vsel %vm683, %v8791, -inf
  %8874 = vmax.xlane.f32.xlu0 %v8873
  %v8875 = vpop.xlane.xlu0 %8874
  %v8876 = vsel %vm683, %v8794, -inf
  %8877 = vmax.xlane.f32.xlu0 %v8876
  %v8878 = vpop.xlane.xlu0 %8877
  %v8879 = vsel %vm683, %v8796, -inf
  %8880 = vmax.xlane.f32.xlu0 %v8879
  %v8881 = vpop.xlane.xlu0 %8880
  %v8882 = vsel %vm683, %v8799, -inf
  %8883 = vmax.xlane.f32.xlu0 %v8882
  %v8884 = vpop.xlane.xlu0 %8883
  %v8885 = vsel %vm683, %v8801, -inf
  %8886 = vmax.xlane.f32.xlu0 %v8885
  %v8887 = vpop.xlane.xlu0 %8886
  %v8888 = vsel %vm683, %v8804, -inf
  %8889 = vmax.xlane.f32.xlu0 %v8888
  %v8890 = vpop.xlane.xlu0 %8889
  %v8891 = vsel %vm683, %v8806, -inf
  %8892 = vmax.xlane.f32.xlu0 %v8891
  %v8893 = vpop.xlane.xlu0 %8892
  %v8894 = vsel %vm683, %v8809, -inf
  %8895 = vmax.xlane.f32.xlu0 %v8894
  %v8896 = vpop.xlane.xlu0 %8895
  %v8897 = vsel %vm683, %v8811, -inf
  %8898 = vmax.xlane.f32.xlu0 %v8897
  %v8899 = vpop.xlane.xlu0 %8898
  %v8900 = vsel %vm683, %v8814, -inf
  %8901 = vmax.xlane.f32.xlu0 %v8900
  %v8902 = vpop.xlane.xlu0 %8901
  %v8903 = vsel %vm683, %v8816, -inf
  %8904 = vmax.xlane.f32.xlu0 %v8903
  %v8905 = vpop.xlane.xlu0 %8904
  %v8906 = vsel %vm683, %v8819, -inf
  %8907 = vmax.xlane.f32.xlu0 %v8906
  %v8908 = vpop.xlane.xlu0 %8907
  %v8909 = vsel %vm683, %v8821, -inf
  %8910 = vmax.xlane.f32.xlu0 %v8909
  %v8911 = vpop.xlane.xlu0 %8910
  %v8912 = vsel %vm683, %v8824, -inf
  %8913 = vmax.xlane.f32.xlu0 %v8912
  %v8914 = vpop.xlane.xlu0 %8913
  %v8915 = vsel %vm683, %v8826, -inf
  %8916 = vmax.xlane.f32.xlu0 %v8915
  %v8917 = vpop.xlane.xlu0 %8916
  %v8918 = vsel %vm683, %v8829, -inf
  %8919 = vmax.xlane.f32.xlu0 %v8918
  %v8920 = vpop.xlane.xlu0 %8919
  %v8921 = vsel %vm683, %v8831, -inf
  %8922 = vmax.xlane.f32.xlu0 %v8921
  %v8923 = vpop.xlane.xlu0 %8922
  %v8924 = vsel %vm683, %v8834, -inf
  %8925 = vmax.xlane.f32.xlu0 %v8924
  %v8926 = vpop.xlane.xlu0 %8925
  %v8927 = vsel %vm683, %v8836, -inf
  %8928 = vmax.xlane.f32.xlu0 %v8927
  %v8929 = vpop.xlane.xlu0 %8928
  %v8930 = vsel %vm683, %v8839, -inf
  %8931 = vmax.xlane.f32.xlu0 %v8930
  %v8932 = vpop.xlane.xlu0 %8931
  %v8933 = vsel %vm683, %v8841, -inf
  %8934 = vmax.xlane.f32.xlu0 %v8933
  %v8935 = vpop.xlane.xlu0 %8934
  %v8936 = vsel %vm683, %v8844, -inf
  %8937 = vmax.xlane.f32.xlu0 %v8936
  %v8938 = vpop.xlane.xlu0 %8937
  %v8939 = vsel %vm683, %v8846, -inf
  %8940 = vmax.xlane.f32.xlu0 %v8939
  %v8941 = vpop.xlane.xlu0 %8940
  %v8942 = vsel %vm683, %v8849, -inf
  %8943 = vmax.xlane.f32.xlu0 %v8942
  %v8944 = vpop.xlane.xlu0 %8943
  %v8945 = vsel %vm683, %v8851, -inf
  %8946 = vmax.xlane.f32.xlu0 %v8945
  %v8947 = vpop.xlane.xlu0 %8946
  %v8948 = vsel %vm683, %v8854, -inf
  %8949 = vmax.xlane.f32.xlu0 %v8948
  %v8950 = vpop.xlane.xlu0 %8949
  %v8951 = vsel %vm683, %v8856, -inf
  %8952 = vmax.xlane.f32.xlu0 %v8951
  %v8953 = vpop.xlane.xlu0 %8952
  %v8954 = vsub.f32 %v8779, %v8860
  %v8955 = vsub.f32 %v8781, %v8863
  %v8956 = vsub.f32 %v8784, %v8866
  %v8957 = vsub.f32 %v8786, %v8869
  %v8958 = vsub.f32 %v8789, %v8872
  %v8959 = vsub.f32 %v8791, %v8875
  %v8960 = vsub.f32 %v8794, %v8878
  %v8961 = vsub.f32 %v8796, %v8881
  %v8962 = vsub.f32 %v8799, %v8884
  %v8963 = vsub.f32 %v8801, %v8887
  %v8964 = vsub.f32 %v8804, %v8890
  %v8965 = vsub.f32 %v8806, %v8893
  %v8966 = vsub.f32 %v8809, %v8896
  %v8967 = vsub.f32 %v8811, %v8899
  %v8968 = vsub.f32 %v8814, %v8902
  %v8969 = vsub.f32 %v8816, %v8905
  %v8970 = vsub.f32 %v8819, %v8908
  %v8971 = vsub.f32 %v8821, %v8911
  %v8972 = vsub.f32 %v8824, %v8914
  %v8973 = vsub.f32 %v8826, %v8917
  %v8974 = vsub.f32 %v8829, %v8920
  %v8975 = vsub.f32 %v8831, %v8923
  %v8976 = vsub.f32 %v8834, %v8926
  %v8977 = vsub.f32 %v8836, %v8929
  %v8978 = vsub.f32 %v8839, %v8932
  %v8979 = vsub.f32 %v8841, %v8935
  %v8980 = vsub.f32 %v8844, %v8938
  %v8981 = vsub.f32 %v8846, %v8941
  %v8982 = vsub.f32 %v8849, %v8944
  %v8983 = vsub.f32 %v8851, %v8947
  %v8984 = vsub.f32 %v8854, %v8950
  %v8985 = vsub.f32 %v8856, %v8953
  %v8986 = vmul.f32 %v8954, 1.442695
  %v8987 = vpow.pop %v8986
  %v8988 = vmul.f32 %v8955, 1.442695
  %v8989 = vpow.pop %v8988
  %v8990 = vmul.f32 %v8956, 1.442695
  %v8991 = vpow.pop %v8990
  %v8992 = vmul.f32 %v8957, 1.442695
  %v8993 = vpow.pop %v8992
  %v8994 = vmul.f32 %v8958, 1.442695
  %v8995 = vpow.pop %v8994
  %v8996 = vmul.f32 %v8959, 1.442695
  %v8997 = vpow.pop %v8996
  %v8998 = vmul.f32 %v8960, 1.442695
  %v8999 = vpow.pop %v8998
  %v9000 = vmul.f32 %v8961, 1.442695
  %v9001 = vpow.pop %v9000
  %v9002 = vmul.f32 %v8962, 1.442695
  %v9003 = vpow.pop %v9002
  %v9004 = vmul.f32 %v8963, 1.442695
  %v9005 = vpow.pop %v9004
  %v9006 = vmul.f32 %v8964, 1.442695
  %v9007 = vpow.pop %v9006
  %v9008 = vmul.f32 %v8965, 1.442695
  %v9009 = vpow.pop %v9008
  %v9010 = vmul.f32 %v8966, 1.442695
  %v9011 = vpow.pop %v9010
  %v9012 = vmul.f32 %v8967, 1.442695
  %v9013 = vpow.pop %v9012
  %v9014 = vmul.f32 %v8968, 1.442695
  %v9015 = vpow.pop %v9014
  %v9016 = vmul.f32 %v8969, 1.442695
  %v9017 = vpow.pop %v9016
  %v9018 = vmul.f32 %v8970, 1.442695
  %v9019 = vpow.pop %v9018
  %v9020 = vmul.f32 %v8971, 1.442695
  %v9021 = vpow.pop %v9020
  %v9022 = vmul.f32 %v8972, 1.442695
  %v9023 = vpow.pop %v9022
  %v9024 = vmul.f32 %v8973, 1.442695
  %v9025 = vpow.pop %v9024
  %v9026 = vmul.f32 %v8974, 1.442695
  %v9027 = vpow.pop %v9026
  %v9028 = vmul.f32 %v8975, 1.442695
  %v9029 = vpow.pop %v9028
  %v9030 = vmul.f32 %v8976, 1.442695
  %v9031 = vpow.pop %v9030
  %v9032 = vmul.f32 %v8977, 1.442695
  %v9033 = vpow.pop %v9032
  %v9034 = vmul.f32 %v8978, 1.442695
  %v9035 = vpow.pop %v9034
  %v9036 = vmul.f32 %v8979, 1.442695
  %v9037 = vpow.pop %v9036
  %v9038 = vmul.f32 %v8980, 1.442695
  %v9039 = vpow.pop %v9038
  %v9040 = vmul.f32 %v8981, 1.442695
  %v9041 = vpow.pop %v9040
  %v9042 = vmul.f32 %v8982, 1.442695
  %v9043 = vpow.pop %v9042
  %v9044 = vmul.f32 %v8983, 1.442695
  %v9045 = vpow.pop %v9044
  %v9046 = vmul.f32 %v8984, 1.442695
  %v9047 = vpow.pop %v9046
  %v9048 = vmul.f32 %v8985, 1.442695
  %v9049 = vpow.pop %v9048
  %v9050 = vsel %vm683, %v8987, 0.0
  %9051 = vadd.xlane.f32.xlu0 %v9050
  %v9052 = vpop.xlane.xlu0 %9051
  %v9053 = vsel %vm683, %v8989, 0.0
  %9054 = vadd.xlane.f32.xlu0 %v9053
  %v9055 = vpop.xlane.xlu0 %9054
  %v9056 = vsel %vm683, %v8991, 0.0
  %9057 = vadd.xlane.f32.xlu0 %v9056
  %v9058 = vpop.xlane.xlu0 %9057
  %v9059 = vsel %vm683, %v8993, 0.0
  %9060 = vadd.xlane.f32.xlu0 %v9059
  %v9061 = vpop.xlane.xlu0 %9060
  %v9062 = vsel %vm683, %v8995, 0.0
  %9063 = vadd.xlane.f32.xlu0 %v9062
  %v9064 = vpop.xlane.xlu0 %9063
  %v9065 = vsel %vm683, %v8997, 0.0
  %9066 = vadd.xlane.f32.xlu0 %v9065
  %v9067 = vpop.xlane.xlu0 %9066
  %v9068 = vsel %vm683, %v8999, 0.0
  %9069 = vadd.xlane.f32.xlu0 %v9068
  %v9070 = vpop.xlane.xlu0 %9069
  %v9071 = vsel %vm683, %v9001, 0.0
  %9072 = vadd.xlane.f32.xlu0 %v9071
  %v9073 = vpop.xlane.xlu0 %9072
  %v9074 = vsel %vm683, %v9003, 0.0
  %9075 = vadd.xlane.f32.xlu0 %v9074
  %v9076 = vpop.xlane.xlu0 %9075
  %v9077 = vsel %vm683, %v9005, 0.0
  %9078 = vadd.xlane.f32.xlu0 %v9077
  %v9079 = vpop.xlane.xlu0 %9078
  %v9080 = vsel %vm683, %v9007, 0.0
  %9081 = vadd.xlane.f32.xlu0 %v9080
  %v9082 = vpop.xlane.xlu0 %9081
  %v9083 = vsel %vm683, %v9009, 0.0
  %9084 = vadd.xlane.f32.xlu0 %v9083
  %v9085 = vpop.xlane.xlu0 %9084
  %v9086 = vsel %vm683, %v9011, 0.0
  %9087 = vadd.xlane.f32.xlu0 %v9086
  %v9088 = vpop.xlane.xlu0 %9087
  %v9089 = vsel %vm683, %v9013, 0.0
  %9090 = vadd.xlane.f32.xlu0 %v9089
  %v9091 = vpop.xlane.xlu0 %9090
  %v9092 = vsel %vm683, %v9015, 0.0
  %9093 = vadd.xlane.f32.xlu0 %v9092
  %v9094 = vpop.xlane.xlu0 %9093
  %v9095 = vsel %vm683, %v9017, 0.0
  %9096 = vadd.xlane.f32.xlu0 %v9095
  %v9097 = vpop.xlane.xlu0 %9096
  %v9098 = vsel %vm683, %v9019, 0.0
  %9099 = vadd.xlane.f32.xlu0 %v9098
  %v9100 = vpop.xlane.xlu0 %9099
  %v9101 = vsel %vm683, %v9021, 0.0
  %9102 = vadd.xlane.f32.xlu0 %v9101
  %v9103 = vpop.xlane.xlu0 %9102
  %v9104 = vsel %vm683, %v9023, 0.0
  %9105 = vadd.xlane.f32.xlu0 %v9104
  %v9106 = vpop.xlane.xlu0 %9105
  %v9107 = vsel %vm683, %v9025, 0.0
  %9108 = vadd.xlane.f32.xlu0 %v9107
  %v9109 = vpop.xlane.xlu0 %9108
  %v9110 = vsel %vm683, %v9027, 0.0
  %9111 = vadd.xlane.f32.xlu0 %v9110
  %v9112 = vpop.xlane.xlu0 %9111
  %v9113 = vsel %vm683, %v9029, 0.0
  %9114 = vadd.xlane.f32.xlu0 %v9113
  %v9115 = vpop.xlane.xlu0 %9114
  %v9116 = vsel %vm683, %v9031, 0.0
  %9117 = vadd.xlane.f32.xlu0 %v9116
  %v9118 = vpop.xlane.xlu0 %9117
  %v9119 = vsel %vm683, %v9033, 0.0
  %9120 = vadd.xlane.f32.xlu0 %v9119
  %v9121 = vpop.xlane.xlu0 %9120
  %v9122 = vsel %vm683, %v9035, 0.0
  %9123 = vadd.xlane.f32.xlu0 %v9122
  %v9124 = vpop.xlane.xlu0 %9123
  %v9125 = vsel %vm683, %v9037, 0.0
  %9126 = vadd.xlane.f32.xlu0 %v9125
  %v9127 = vpop.xlane.xlu0 %9126
  %v9128 = vsel %vm683, %v9039, 0.0
  %9129 = vadd.xlane.f32.xlu0 %v9128
  %v9130 = vpop.xlane.xlu0 %9129
  %v9131 = vsel %vm683, %v9041, 0.0
  %9132 = vadd.xlane.f32.xlu0 %v9131
  %v9133 = vpop.xlane.xlu0 %9132
  %v9134 = vsel %vm683, %v9043, 0.0
  %9135 = vadd.xlane.f32.xlu0 %v9134
  %v9136 = vpop.xlane.xlu0 %9135
  %v9137 = vsel %vm683, %v9045, 0.0
  %9138 = vadd.xlane.f32.xlu0 %v9137
  %v9139 = vpop.xlane.xlu0 %9138
  %v9140 = vsel %vm683, %v9047, 0.0
  %9141 = vadd.xlane.f32.xlu0 %v9140
  %v9142 = vpop.xlane.xlu0 %9141
  %v9143 = vsel %vm683, %v9049, 0.0
  %9144 = vadd.xlane.f32.xlu0 %v9143
  %v9145 = vpop.xlane.xlu0 %9144
  %v9146 = vrcp.pop %v9052
  %v9147 = vrcp.pop %v9055
  %v9148 = vrcp.pop %v9058
  %v9149 = vrcp.pop %v9061
  %v9150 = vrcp.pop %v9064
  %v9151 = vrcp.pop %v9067
  %v9152 = vrcp.pop %v9070
  %v9153 = vrcp.pop %v9073
  %v9154 = vrcp.pop %v9076
  %v9155 = vrcp.pop %v9079
  %v9156 = vrcp.pop %v9082
  %v9157 = vrcp.pop %v9085
  %v9158 = vrcp.pop %v9088
  %v9159 = vrcp.pop %v9091
  %v9160 = vrcp.pop %v9094
  %v9161 = vrcp.pop %v9097
  %v9162 = vrcp.pop %v9100
  %v9163 = vrcp.pop %v9103
  %v9164 = vrcp.pop %v9106
  %v9165 = vrcp.pop %v9109
  %v9166 = vrcp.pop %v9112
  %v9167 = vrcp.pop %v9115
  %v9168 = vrcp.pop %v9118
  %v9169 = vrcp.pop %v9121
  %v9170 = vrcp.pop %v9124
  %v9171 = vrcp.pop %v9127
  %v9172 = vrcp.pop %v9130
  %v9173 = vrcp.pop %v9133
  %v9174 = vrcp.pop %v9136
  %v9175 = vrcp.pop %v9139
  %v9176 = vrcp.pop %v9142
  %v9177 = vrcp.pop %v9145
  %v9178 = vmul.f32 %v8987, %v9146
  %v9179 = vmul.f32 %v8989, %v9147
  %v9180 = vmul.f32 %v8991, %v9148
  %v9181 = vmul.f32 %v8993, %v9149
  %v9182 = vmul.f32 %v8995, %v9150
  %v9183 = vmul.f32 %v8997, %v9151
  %v9184 = vmul.f32 %v8999, %v9152
  %v9185 = vmul.f32 %v9001, %v9153
  %v9186 = vmul.f32 %v9003, %v9154
  %v9187 = vmul.f32 %v9005, %v9155
  %v9188 = vmul.f32 %v9007, %v9156
  %v9189 = vmul.f32 %v9009, %v9157
  %v9190 = vmul.f32 %v9011, %v9158
  %v9191 = vmul.f32 %v9013, %v9159
  %v9192 = vmul.f32 %v9015, %v9160
  %v9193 = vmul.f32 %v9017, %v9161
  %v9194 = vmul.f32 %v9019, %v9162
  %v9195 = vmul.f32 %v9021, %v9163
  %v9196 = vmul.f32 %v9023, %v9164
  %v9197 = vmul.f32 %v9025, %v9165
  %v9198 = vmul.f32 %v9027, %v9166
  %v9199 = vmul.f32 %v9029, %v9167
  %v9200 = vmul.f32 %v9031, %v9168
  %v9201 = vmul.f32 %v9033, %v9169
  %v9202 = vmul.f32 %v9035, %v9170
  %v9203 = vmul.f32 %v9037, %v9171
  %v9204 = vmul.f32 %v9039, %v9172
  %v9205 = vmul.f32 %v9041, %v9173
  %v9206 = vmul.f32 %v9043, %v9174
  %v9207 = vmul.f32 %v9045, %v9175
  %v9208 = vmul.f32 %v9047, %v9176
  %v9209 = vmul.f32 %v9049, %v9177
  %v9210 = vpack.c.bf16 %v9179, %v9178
  %v9211 = vpack.c.bf16 %v9181, %v9180
  %v9212 = vpack.c.bf16 %v9183, %v9182
  %v9213 = vpack.c.bf16 %v9185, %v9184
  %v9214 = vpack.c.bf16 %v9187, %v9186
  %v9215 = vpack.c.bf16 %v9189, %v9188
  %v9216 = vpack.c.bf16 %v9191, %v9190
  %v9217 = vpack.c.bf16 %v9193, %v9192
  %v9218 = vpack.c.bf16 %v9195, %v9194
  %v9219 = vpack.c.bf16 %v9197, %v9196
  %v9220 = vpack.c.bf16 %v9199, %v9198
  %v9221 = vpack.c.bf16 %v9201, %v9200
  %v9222 = vpack.c.bf16 %v9203, %v9202
  %v9223 = vpack.c.bf16 %v9205, %v9204
  %v9224 = vpack.c.bf16 %v9207, %v9206
  %v9225 = vpack.c.bf16 %v9209, %v9208
  %v9227 = vsel %vm683, %v9210, 0
  %v9230 = vsel %vm683, %v9211, 0
  %v9233 = vsel %vm683, %v9212, 0
  %v9236 = vsel %vm683, %v9213, 0
  %v9239 = vsel %vm683, %v9214, 0
  %v9242 = vsel %vm683, %v9215, 0
  %v9245 = vsel %vm683, %v9216, 0
  %v9248 = vsel %vm683, %v9217, 0
  %v9251 = vsel %vm683, %v9218, 0
  %v9254 = vsel %vm683, %v9219, 0
  %v9257 = vsel %vm683, %v9220, 0
  %v9260 = vsel %vm683, %v9221, 0
  %v9263 = vsel %vm683, %v9222, 0
  %v9266 = vsel %vm683, %v9223, 0
  %v9269 = vsel %vm683, %v9224, 0
  %v9272 = vsel %vm683, %v9225, 0
  %9274 = vmatpush.bf16.msra.mxu0 0
  %9275 = vmatpush.bf16.msra.mxu0 0
  %9276 = vmatpush.bf16.msra.mxu0 0
  %9277 = vmatpush.bf16.msra.mxu0 0
  %9278 = vmatpush.bf16.msra.mxu0 %v7568
  %9279 = vmatpush.bf16.msra.mxu0 %v7567
  %9280 = vmatpush.bf16.msra.mxu0 %v7566
  %9281 = vmatpush.bf16.msra.mxu0 %v7565
  %9282 = vmatmul.bf16.gmra.mxu0 %v9227
  %v9283 = vpop.f32.mrf.mxu0
  %v9284 = vadd.f32 0.0, %v9283
  %v9285 = vpop.f32.mrf.mxu0
  %v9286 = vadd.f32 0.0, %v9285
  %9287 = vmatmul.bf16.gmra.mxu0 %v9230
  %v9288 = vpop.f32.mrf.mxu0
  %v9289 = vadd.f32 0.0, %v9288
  %v9290 = vpop.f32.mrf.mxu0
  %v9291 = vadd.f32 0.0, %v9290
  %9292 = vmatmul.bf16.gmra.mxu0 %v9233
  %v9293 = vpop.f32.mrf.mxu0
  %v9294 = vadd.f32 0.0, %v9293
  %v9295 = vpop.f32.mrf.mxu0
  %v9296 = vadd.f32 0.0, %v9295
  %9297 = vmatmul.bf16.gmra.mxu0 %v9236
  %v9298 = vpop.f32.mrf.mxu0
  %v9299 = vadd.f32 0.0, %v9298
  %v9300 = vpop.f32.mrf.mxu0
  %v9301 = vadd.f32 0.0, %v9300
  %9302 = vmatmul.bf16.gmra.mxu0 %v9239
  %v9303 = vpop.f32.mrf.mxu0
  %v9304 = vadd.f32 0.0, %v9303
  %v9305 = vpop.f32.mrf.mxu0
  %v9306 = vadd.f32 0.0, %v9305
  %9307 = vmatmul.bf16.gmra.mxu0 %v9242
  %v9308 = vpop.f32.mrf.mxu0
  %v9309 = vadd.f32 0.0, %v9308
  %v9310 = vpop.f32.mrf.mxu0
  %v9311 = vadd.f32 0.0, %v9310
  %9312 = vmatmul.bf16.gmra.mxu0 %v9245
  %v9313 = vpop.f32.mrf.mxu0
  %v9314 = vadd.f32 0.0, %v9313
  %v9315 = vpop.f32.mrf.mxu0
  %v9316 = vadd.f32 0.0, %v9315
  %9317 = vmatmul.bf16.gmra.mxu0 %v9248
  %v9318 = vpop.f32.mrf.mxu0
  %v9319 = vadd.f32 0.0, %v9318
  %v9320 = vpop.f32.mrf.mxu0
  %v9321 = vadd.f32 0.0, %v9320
  %9322 = vmatmul.bf16.gmra.mxu0 %v9251
  %v9323 = vpop.f32.mrf.mxu0
  %v9324 = vadd.f32 0.0, %v9323
  %v9325 = vpop.f32.mrf.mxu0
  %v9326 = vadd.f32 0.0, %v9325
  %9327 = vmatmul.bf16.gmra.mxu0 %v9254
  %v9328 = vpop.f32.mrf.mxu0
  %v9329 = vadd.f32 0.0, %v9328
  %v9330 = vpop.f32.mrf.mxu0
  %v9331 = vadd.f32 0.0, %v9330
  %9332 = vmatmul.bf16.gmra.mxu0 %v9257
  %v9333 = vpop.f32.mrf.mxu0
  %v9334 = vadd.f32 0.0, %v9333
  %v9335 = vpop.f32.mrf.mxu0
  %v9336 = vadd.f32 0.0, %v9335
  %9337 = vmatmul.bf16.gmra.mxu0 %v9260
  %v9338 = vpop.f32.mrf.mxu0
  %v9339 = vadd.f32 0.0, %v9338
  %v9340 = vpop.f32.mrf.mxu0
  %v9341 = vadd.f32 0.0, %v9340
  %9342 = vmatmul.bf16.gmra.mxu0 %v9263
  %v9343 = vpop.f32.mrf.mxu0
  %v9344 = vadd.f32 0.0, %v9343
  %v9345 = vpop.f32.mrf.mxu0
  %v9346 = vadd.f32 0.0, %v9345
  %9347 = vmatmul.bf16.gmra.mxu0 %v9266
  %v9348 = vpop.f32.mrf.mxu0
  %v9349 = vadd.f32 0.0, %v9348
  %v9350 = vpop.f32.mrf.mxu0
  %v9351 = vadd.f32 0.0, %v9350
  %9352 = vmatmul.bf16.gmra.mxu0 %v9269
  %v9353 = vpop.f32.mrf.mxu0
  %v9354 = vadd.f32 0.0, %v9353
  %v9355 = vpop.f32.mrf.mxu0
  %v9356 = vadd.f32 0.0, %v9355
  %9357 = vmatmul.bf16.gmra.mxu0 %v9272
  %v9358 = vpop.f32.mrf.mxu0
  %v9359 = vadd.f32 0.0, %v9358
  %v9360 = vpop.f32.mrf.mxu0
  %v9361 = vadd.f32 0.0, %v9360
  %9362 = vdwg.mxu0
  %9363 = vmatpush.bf16.xpose.msra.mxu0 0
  %9364 = vmatpush.bf16.xpose.msra.mxu0 0
  %9365 = vmatpush.bf16.xpose.msra.mxu0 0
  %9366 = vmatpush.bf16.xpose.msra.mxu0 0
  %9367 = vmatpush.bf16.xpose.msra.mxu0 %v7579
  %9368 = vmatpush.bf16.xpose.msra.mxu0 %v7576
  %9369 = vmatpush.bf16.xpose.msra.mxu0 %v7573
  %9370 = vmatpush.bf16.xpose.msra.mxu0 %v7570
  %9371 = vmatmul.bf16.gmra.mxu0 %v2586
  %v9372 = vpop.f32.mrf.mxu0
  %v9373 = vadd.f32 0.0, %v9372
  %v9374 = vpop.f32.mrf.mxu0
  %v9375 = vadd.f32 0.0, %v9374
  %9376 = vmatmul.bf16.gmra.mxu0 %v2589
  %v9377 = vpop.f32.mrf.mxu0
  %v9378 = vadd.f32 0.0, %v9377
  %v9379 = vpop.f32.mrf.mxu0
  %v9380 = vadd.f32 0.0, %v9379
  %9381 = vmatmul.bf16.gmra.mxu0 %v2592
  %v9382 = vpop.f32.mrf.mxu0
  %v9383 = vadd.f32 0.0, %v9382
  %v9384 = vpop.f32.mrf.mxu0
  %v9385 = vadd.f32 0.0, %v9384
  %9386 = vmatmul.bf16.gmra.mxu0 %v2595
  %v9387 = vpop.f32.mrf.mxu0
  %v9388 = vadd.f32 0.0, %v9387
  %v9389 = vpop.f32.mrf.mxu0
  %v9390 = vadd.f32 0.0, %v9389
  %9391 = vmatmul.bf16.gmra.mxu0 %v2598
  %v9392 = vpop.f32.mrf.mxu0
  %v9393 = vadd.f32 0.0, %v9392
  %v9394 = vpop.f32.mrf.mxu0
  %v9395 = vadd.f32 0.0, %v9394
  %9396 = vmatmul.bf16.gmra.mxu0 %v2601
  %v9397 = vpop.f32.mrf.mxu0
  %v9398 = vadd.f32 0.0, %v9397
  %v9399 = vpop.f32.mrf.mxu0
  %v9400 = vadd.f32 0.0, %v9399
  %9401 = vmatmul.bf16.gmra.mxu0 %v2604
  %v9402 = vpop.f32.mrf.mxu0
  %v9403 = vadd.f32 0.0, %v9402
  %v9404 = vpop.f32.mrf.mxu0
  %v9405 = vadd.f32 0.0, %v9404
  %9406 = vmatmul.bf16.gmra.mxu0 %v2607
  %v9407 = vpop.f32.mrf.mxu0
  %v9408 = vadd.f32 0.0, %v9407
  %v9409 = vpop.f32.mrf.mxu0
  %v9410 = vadd.f32 0.0, %v9409
  %9411 = vmatmul.bf16.gmra.mxu0 %v2610
  %v9412 = vpop.f32.mrf.mxu0
  %v9413 = vadd.f32 0.0, %v9412
  %v9414 = vpop.f32.mrf.mxu0
  %v9415 = vadd.f32 0.0, %v9414
  %9416 = vmatmul.bf16.gmra.mxu0 %v2613
  %v9417 = vpop.f32.mrf.mxu0
  %v9418 = vadd.f32 0.0, %v9417
  %v9419 = vpop.f32.mrf.mxu0
  %v9420 = vadd.f32 0.0, %v9419
  %9421 = vmatmul.bf16.gmra.mxu0 %v2616
  %v9422 = vpop.f32.mrf.mxu0
  %v9423 = vadd.f32 0.0, %v9422
  %v9424 = vpop.f32.mrf.mxu0
  %v9425 = vadd.f32 0.0, %v9424
  %9426 = vmatmul.bf16.gmra.mxu0 %v2619
  %v9427 = vpop.f32.mrf.mxu0
  %v9428 = vadd.f32 0.0, %v9427
  %v9429 = vpop.f32.mrf.mxu0
  %v9430 = vadd.f32 0.0, %v9429
  %9431 = vmatmul.bf16.gmra.mxu0 %v2622
  %v9432 = vpop.f32.mrf.mxu0
  %v9433 = vadd.f32 0.0, %v9432
  %v9434 = vpop.f32.mrf.mxu0
  %v9435 = vadd.f32 0.0, %v9434
  %9436 = vmatmul.bf16.gmra.mxu0 %v2625
  %v9437 = vpop.f32.mrf.mxu0
  %v9438 = vadd.f32 0.0, %v9437
  %v9439 = vpop.f32.mrf.mxu0
  %v9440 = vadd.f32 0.0, %v9439
  %9441 = vmatmul.bf16.gmra.mxu0 %v2628
  %v9442 = vpop.f32.mrf.mxu0
  %v9443 = vadd.f32 0.0, %v9442
  %v9444 = vpop.f32.mrf.mxu0
  %v9445 = vadd.f32 0.0, %v9444
  %9446 = vmatmul.bf16.gmra.mxu0 %v2631
  %v9447 = vpop.f32.mrf.mxu0
  %v9448 = vadd.f32 0.0, %v9447
  %v9449 = vpop.f32.mrf.mxu0
  %v9450 = vadd.f32 0.0, %v9449
  %9451 = vdwg.mxu0
  %v9452 = vsel %vm683, %v9373, -inf
  %9453 = vmax.xlane.f32.xlu0 %v9452
  %v9454 = vpop.xlane.xlu0 %9453
  %v9455 = vsel %vm683, %v9375, -inf
  %9456 = vmax.xlane.f32.xlu0 %v9455
  %v9457 = vpop.xlane.xlu0 %9456
  %v9458 = vsel %vm683, %v9378, -inf
  %9459 = vmax.xlane.f32.xlu0 %v9458
  %v9460 = vpop.xlane.xlu0 %9459
  %v9461 = vsel %vm683, %v9380, -inf
  %9462 = vmax.xlane.f32.xlu0 %v9461
  %v9463 = vpop.xlane.xlu0 %9462
  %v9464 = vsel %vm683, %v9383, -inf
  %9465 = vmax.xlane.f32.xlu0 %v9464
  %v9466 = vpop.xlane.xlu0 %9465
  %v9467 = vsel %vm683, %v9385, -inf
  %9468 = vmax.xlane.f32.xlu0 %v9467
  %v9469 = vpop.xlane.xlu0 %9468
  %v9470 = vsel %vm683, %v9388, -inf
  %9471 = vmax.xlane.f32.xlu0 %v9470
  %v9472 = vpop.xlane.xlu0 %9471
  %v9473 = vsel %vm683, %v9390, -inf
  %9474 = vmax.xlane.f32.xlu0 %v9473
  %v9475 = vpop.xlane.xlu0 %9474
  %v9476 = vsel %vm683, %v9393, -inf
  %9477 = vmax.xlane.f32.xlu0 %v9476
  %v9478 = vpop.xlane.xlu0 %9477
  %v9479 = vsel %vm683, %v9395, -inf
  %9480 = vmax.xlane.f32.xlu0 %v9479
  %v9481 = vpop.xlane.xlu0 %9480
  %v9482 = vsel %vm683, %v9398, -inf
  %9483 = vmax.xlane.f32.xlu0 %v9482
  %v9484 = vpop.xlane.xlu0 %9483
  %v9485 = vsel %vm683, %v9400, -inf
  %9486 = vmax.xlane.f32.xlu0 %v9485
  %v9487 = vpop.xlane.xlu0 %9486
  %v9488 = vsel %vm683, %v9403, -inf
  %9489 = vmax.xlane.f32.xlu0 %v9488
  %v9490 = vpop.xlane.xlu0 %9489
  %v9491 = vsel %vm683, %v9405, -inf
  %9492 = vmax.xlane.f32.xlu0 %v9491
  %v9493 = vpop.xlane.xlu0 %9492
  %v9494 = vsel %vm683, %v9408, -inf
  %9495 = vmax.xlane.f32.xlu0 %v9494
  %v9496 = vpop.xlane.xlu0 %9495
  %v9497 = vsel %vm683, %v9410, -inf
  %9498 = vmax.xlane.f32.xlu0 %v9497
  %v9499 = vpop.xlane.xlu0 %9498
  %v9500 = vsel %vm683, %v9413, -inf
  %9501 = vmax.xlane.f32.xlu0 %v9500
  %v9502 = vpop.xlane.xlu0 %9501
  %v9503 = vsel %vm683, %v9415, -inf
  %9504 = vmax.xlane.f32.xlu0 %v9503
  %v9505 = vpop.xlane.xlu0 %9504
  %v9506 = vsel %vm683, %v9418, -inf
  %9507 = vmax.xlane.f32.xlu0 %v9506
  %v9508 = vpop.xlane.xlu0 %9507
  %v9509 = vsel %vm683, %v9420, -inf
  %9510 = vmax.xlane.f32.xlu0 %v9509
  %v9511 = vpop.xlane.xlu0 %9510
  %v9512 = vsel %vm683, %v9423, -inf
  %9513 = vmax.xlane.f32.xlu0 %v9512
  %v9514 = vpop.xlane.xlu0 %9513
  %v9515 = vsel %vm683, %v9425, -inf
  %9516 = vmax.xlane.f32.xlu0 %v9515
  %v9517 = vpop.xlane.xlu0 %9516
  %v9518 = vsel %vm683, %v9428, -inf
  %9519 = vmax.xlane.f32.xlu0 %v9518
  %v9520 = vpop.xlane.xlu0 %9519
  %v9521 = vsel %vm683, %v9430, -inf
  %9522 = vmax.xlane.f32.xlu0 %v9521
  %v9523 = vpop.xlane.xlu0 %9522
  %v9524 = vsel %vm683, %v9433, -inf
  %9525 = vmax.xlane.f32.xlu0 %v9524
  %v9526 = vpop.xlane.xlu0 %9525
  %v9527 = vsel %vm683, %v9435, -inf
  %9528 = vmax.xlane.f32.xlu0 %v9527
  %v9529 = vpop.xlane.xlu0 %9528
  %v9530 = vsel %vm683, %v9438, -inf
  %9531 = vmax.xlane.f32.xlu0 %v9530
  %v9532 = vpop.xlane.xlu0 %9531
  %v9533 = vsel %vm683, %v9440, -inf
  %9534 = vmax.xlane.f32.xlu0 %v9533
  %v9535 = vpop.xlane.xlu0 %9534
  %v9536 = vsel %vm683, %v9443, -inf
  %9537 = vmax.xlane.f32.xlu0 %v9536
  %v9538 = vpop.xlane.xlu0 %9537
  %v9539 = vsel %vm683, %v9445, -inf
  %9540 = vmax.xlane.f32.xlu0 %v9539
  %v9541 = vpop.xlane.xlu0 %9540
  %v9542 = vsel %vm683, %v9448, -inf
  %9543 = vmax.xlane.f32.xlu0 %v9542
  %v9544 = vpop.xlane.xlu0 %9543
  %v9545 = vsel %vm683, %v9450, -inf
  %9546 = vmax.xlane.f32.xlu0 %v9545
  %v9547 = vpop.xlane.xlu0 %9546
  %v9548 = vsub.f32 %v9373, %v9454
  %v9549 = vsub.f32 %v9375, %v9457
  %v9550 = vsub.f32 %v9378, %v9460
  %v9551 = vsub.f32 %v9380, %v9463
  %v9552 = vsub.f32 %v9383, %v9466
  %v9553 = vsub.f32 %v9385, %v9469
  %v9554 = vsub.f32 %v9388, %v9472
  %v9555 = vsub.f32 %v9390, %v9475
  %v9556 = vsub.f32 %v9393, %v9478
  %v9557 = vsub.f32 %v9395, %v9481
  %v9558 = vsub.f32 %v9398, %v9484
  %v9559 = vsub.f32 %v9400, %v9487
  %v9560 = vsub.f32 %v9403, %v9490
  %v9561 = vsub.f32 %v9405, %v9493
  %v9562 = vsub.f32 %v9408, %v9496
  %v9563 = vsub.f32 %v9410, %v9499
  %v9564 = vsub.f32 %v9413, %v9502
  %v9565 = vsub.f32 %v9415, %v9505
  %v9566 = vsub.f32 %v9418, %v9508
  %v9567 = vsub.f32 %v9420, %v9511
  %v9568 = vsub.f32 %v9423, %v9514
  %v9569 = vsub.f32 %v9425, %v9517
  %v9570 = vsub.f32 %v9428, %v9520
  %v9571 = vsub.f32 %v9430, %v9523
  %v9572 = vsub.f32 %v9433, %v9526
  %v9573 = vsub.f32 %v9435, %v9529
  %v9574 = vsub.f32 %v9438, %v9532
  %v9575 = vsub.f32 %v9440, %v9535
  %v9576 = vsub.f32 %v9443, %v9538
  %v9577 = vsub.f32 %v9445, %v9541
  %v9578 = vsub.f32 %v9448, %v9544
  %v9579 = vsub.f32 %v9450, %v9547
  %v9580 = vmul.f32 %v9548, 1.442695
  %v9581 = vpow.pop %v9580
  %v9582 = vmul.f32 %v9549, 1.442695
  %v9583 = vpow.pop %v9582
  %v9584 = vmul.f32 %v9550, 1.442695
  %v9585 = vpow.pop %v9584
  %v9586 = vmul.f32 %v9551, 1.442695
  %v9587 = vpow.pop %v9586
  %v9588 = vmul.f32 %v9552, 1.442695
  %v9589 = vpow.pop %v9588
  %v9590 = vmul.f32 %v9553, 1.442695
  %v9591 = vpow.pop %v9590
  %v9592 = vmul.f32 %v9554, 1.442695
  %v9593 = vpow.pop %v9592
  %v9594 = vmul.f32 %v9555, 1.442695
  %v9595 = vpow.pop %v9594
  %v9596 = vmul.f32 %v9556, 1.442695
  %v9597 = vpow.pop %v9596
  %v9598 = vmul.f32 %v9557, 1.442695
  %v9599 = vpow.pop %v9598
  %v9600 = vmul.f32 %v9558, 1.442695
  %v9601 = vpow.pop %v9600
  %v9602 = vmul.f32 %v9559, 1.442695
  %v9603 = vpow.pop %v9602
  %v9604 = vmul.f32 %v9560, 1.442695
  %v9605 = vpow.pop %v9604
  %v9606 = vmul.f32 %v9561, 1.442695
  %v9607 = vpow.pop %v9606
  %v9608 = vmul.f32 %v9562, 1.442695
  %v9609 = vpow.pop %v9608
  %v9610 = vmul.f32 %v9563, 1.442695
  %v9611 = vpow.pop %v9610
  %v9612 = vmul.f32 %v9564, 1.442695
  %v9613 = vpow.pop %v9612
  %v9614 = vmul.f32 %v9565, 1.442695
  %v9615 = vpow.pop %v9614
  %v9616 = vmul.f32 %v9566, 1.442695
  %v9617 = vpow.pop %v9616
  %v9618 = vmul.f32 %v9567, 1.442695
  %v9619 = vpow.pop %v9618
  %v9620 = vmul.f32 %v9568, 1.442695
  %v9621 = vpow.pop %v9620
  %v9622 = vmul.f32 %v9569, 1.442695
  %v9623 = vpow.pop %v9622
  %v9624 = vmul.f32 %v9570, 1.442695
  %v9625 = vpow.pop %v9624
  %v9626 = vmul.f32 %v9571, 1.442695
  %v9627 = vpow.pop %v9626
  %v9628 = vmul.f32 %v9572, 1.442695
  %v9629 = vpow.pop %v9628
  %v9630 = vmul.f32 %v9573, 1.442695
  %v9631 = vpow.pop %v9630
  %v9632 = vmul.f32 %v9574, 1.442695
  %v9633 = vpow.pop %v9632
  %v9634 = vmul.f32 %v9575, 1.442695
  %v9635 = vpow.pop %v9634
  %v9636 = vmul.f32 %v9576, 1.442695
  %v9637 = vpow.pop %v9636
  %v9638 = vmul.f32 %v9577, 1.442695
  %v9639 = vpow.pop %v9638
  %v9640 = vmul.f32 %v9578, 1.442695
  %v9641 = vpow.pop %v9640
  %v9642 = vmul.f32 %v9579, 1.442695
  %v9643 = vpow.pop %v9642
  %v9644 = vsel %vm683, %v9581, 0.0
  %9645 = vadd.xlane.f32.xlu0 %v9644
  %v9646 = vpop.xlane.xlu0 %9645
  %v9647 = vsel %vm683, %v9583, 0.0
  %9648 = vadd.xlane.f32.xlu0 %v9647
  %v9649 = vpop.xlane.xlu0 %9648
  %v9650 = vsel %vm683, %v9585, 0.0
  %9651 = vadd.xlane.f32.xlu0 %v9650
  %v9652 = vpop.xlane.xlu0 %9651
  %v9653 = vsel %vm683, %v9587, 0.0
  %9654 = vadd.xlane.f32.xlu0 %v9653
  %v9655 = vpop.xlane.xlu0 %9654
  %v9656 = vsel %vm683, %v9589, 0.0
  %9657 = vadd.xlane.f32.xlu0 %v9656
  %v9658 = vpop.xlane.xlu0 %9657
  %v9659 = vsel %vm683, %v9591, 0.0
  %9660 = vadd.xlane.f32.xlu0 %v9659
  %v9661 = vpop.xlane.xlu0 %9660
  %v9662 = vsel %vm683, %v9593, 0.0
  %9663 = vadd.xlane.f32.xlu0 %v9662
  %v9664 = vpop.xlane.xlu0 %9663
  %v9665 = vsel %vm683, %v9595, 0.0
  %9666 = vadd.xlane.f32.xlu0 %v9665
  %v9667 = vpop.xlane.xlu0 %9666
  %v9668 = vsel %vm683, %v9597, 0.0
  %9669 = vadd.xlane.f32.xlu0 %v9668
  %v9670 = vpop.xlane.xlu0 %9669
  %v9671 = vsel %vm683, %v9599, 0.0
  %9672 = vadd.xlane.f32.xlu0 %v9671
  %v9673 = vpop.xlane.xlu0 %9672
  %v9674 = vsel %vm683, %v9601, 0.0
  %9675 = vadd.xlane.f32.xlu0 %v9674
  %v9676 = vpop.xlane.xlu0 %9675
  %v9677 = vsel %vm683, %v9603, 0.0
  %9678 = vadd.xlane.f32.xlu0 %v9677
  %v9679 = vpop.xlane.xlu0 %9678
  %v9680 = vsel %vm683, %v9605, 0.0
  %9681 = vadd.xlane.f32.xlu0 %v9680
  %v9682 = vpop.xlane.xlu0 %9681
  %v9683 = vsel %vm683, %v9607, 0.0
  %9684 = vadd.xlane.f32.xlu0 %v9683
  %v9685 = vpop.xlane.xlu0 %9684
  %v9686 = vsel %vm683, %v9609, 0.0
  %9687 = vadd.xlane.f32.xlu0 %v9686
  %v9688 = vpop.xlane.xlu0 %9687
  %v9689 = vsel %vm683, %v9611, 0.0
  %9690 = vadd.xlane.f32.xlu0 %v9689
  %v9691 = vpop.xlane.xlu0 %9690
  %v9692 = vsel %vm683, %v9613, 0.0
  %9693 = vadd.xlane.f32.xlu0 %v9692
  %v9694 = vpop.xlane.xlu0 %9693
  %v9695 = vsel %vm683, %v9615, 0.0
  %9696 = vadd.xlane.f32.xlu0 %v9695
  %v9697 = vpop.xlane.xlu0 %9696
  %v9698 = vsel %vm683, %v9617, 0.0
  %9699 = vadd.xlane.f32.xlu0 %v9698
  %v9700 = vpop.xlane.xlu0 %9699
  %v9701 = vsel %vm683, %v9619, 0.0
  %9702 = vadd.xlane.f32.xlu0 %v9701
  %v9703 = vpop.xlane.xlu0 %9702
  %v9704 = vsel %vm683, %v9621, 0.0
  %9705 = vadd.xlane.f32.xlu0 %v9704
  %v9706 = vpop.xlane.xlu0 %9705
  %v9707 = vsel %vm683, %v9623, 0.0
  %9708 = vadd.xlane.f32.xlu0 %v9707
  %v9709 = vpop.xlane.xlu0 %9708
  %v9710 = vsel %vm683, %v9625, 0.0
  %9711 = vadd.xlane.f32.xlu0 %v9710
  %v9712 = vpop.xlane.xlu0 %9711
  %v9713 = vsel %vm683, %v9627, 0.0
  %9714 = vadd.xlane.f32.xlu0 %v9713
  %v9715 = vpop.xlane.xlu0 %9714
  %v9716 = vsel %vm683, %v9629, 0.0
  %9717 = vadd.xlane.f32.xlu0 %v9716
  %v9718 = vpop.xlane.xlu0 %9717
  %v9719 = vsel %vm683, %v9631, 0.0
  %9720 = vadd.xlane.f32.xlu0 %v9719
  %v9721 = vpop.xlane.xlu0 %9720
  %v9722 = vsel %vm683, %v9633, 0.0
  %9723 = vadd.xlane.f32.xlu0 %v9722
  %v9724 = vpop.xlane.xlu0 %9723
  %v9725 = vsel %vm683, %v9635, 0.0
  %9726 = vadd.xlane.f32.xlu0 %v9725
  %v9727 = vpop.xlane.xlu0 %9726
  %v9728 = vsel %vm683, %v9637, 0.0
  %9729 = vadd.xlane.f32.xlu0 %v9728
  %v9730 = vpop.xlane.xlu0 %9729
  %v9731 = vsel %vm683, %v9639, 0.0
  %9732 = vadd.xlane.f32.xlu0 %v9731
  %v9733 = vpop.xlane.xlu0 %9732
  %v9734 = vsel %vm683, %v9641, 0.0
  %9735 = vadd.xlane.f32.xlu0 %v9734
  %v9736 = vpop.xlane.xlu0 %9735
  %v9737 = vsel %vm683, %v9643, 0.0
  %9738 = vadd.xlane.f32.xlu0 %v9737
  %v9739 = vpop.xlane.xlu0 %9738
  %v9740 = vrcp.pop %v9646
  %v9741 = vrcp.pop %v9649
  %v9742 = vrcp.pop %v9652
  %v9743 = vrcp.pop %v9655
  %v9744 = vrcp.pop %v9658
  %v9745 = vrcp.pop %v9661
  %v9746 = vrcp.pop %v9664
  %v9747 = vrcp.pop %v9667
  %v9748 = vrcp.pop %v9670
  %v9749 = vrcp.pop %v9673
  %v9750 = vrcp.pop %v9676
  %v9751 = vrcp.pop %v9679
  %v9752 = vrcp.pop %v9682
  %v9753 = vrcp.pop %v9685
  %v9754 = vrcp.pop %v9688
  %v9755 = vrcp.pop %v9691
  %v9756 = vrcp.pop %v9694
  %v9757 = vrcp.pop %v9697
  %v9758 = vrcp.pop %v9700
  %v9759 = vrcp.pop %v9703
  %v9760 = vrcp.pop %v9706
  %v9761 = vrcp.pop %v9709
  %v9762 = vrcp.pop %v9712
  %v9763 = vrcp.pop %v9715
  %v9764 = vrcp.pop %v9718
  %v9765 = vrcp.pop %v9721
  %v9766 = vrcp.pop %v9724
  %v9767 = vrcp.pop %v9727
  %v9768 = vrcp.pop %v9730
  %v9769 = vrcp.pop %v9733
  %v9770 = vrcp.pop %v9736
  %v9771 = vrcp.pop %v9739
  %v9772 = vmul.f32 %v9581, %v9740
  %v9773 = vmul.f32 %v9583, %v9741
  %v9774 = vmul.f32 %v9585, %v9742
  %v9775 = vmul.f32 %v9587, %v9743
  %v9776 = vmul.f32 %v9589, %v9744
  %v9777 = vmul.f32 %v9591, %v9745
  %v9778 = vmul.f32 %v9593, %v9746
  %v9779 = vmul.f32 %v9595, %v9747
  %v9780 = vmul.f32 %v9597, %v9748
  %v9781 = vmul.f32 %v9599, %v9749
  %v9782 = vmul.f32 %v9601, %v9750
  %v9783 = vmul.f32 %v9603, %v9751
  %v9784 = vmul.f32 %v9605, %v9752
  %v9785 = vmul.f32 %v9607, %v9753
  %v9786 = vmul.f32 %v9609, %v9754
  %v9787 = vmul.f32 %v9611, %v9755
  %v9788 = vmul.f32 %v9613, %v9756
  %v9789 = vmul.f32 %v9615, %v9757
  %v9790 = vmul.f32 %v9617, %v9758
  %v9791 = vmul.f32 %v9619, %v9759
  %v9792 = vmul.f32 %v9621, %v9760
  %v9793 = vmul.f32 %v9623, %v9761
  %v9794 = vmul.f32 %v9625, %v9762
  %v9795 = vmul.f32 %v9627, %v9763
  %v9796 = vmul.f32 %v9629, %v9764
  %v9797 = vmul.f32 %v9631, %v9765
  %v9798 = vmul.f32 %v9633, %v9766
  %v9799 = vmul.f32 %v9635, %v9767
  %v9800 = vmul.f32 %v9637, %v9768
  %v9801 = vmul.f32 %v9639, %v9769
  %v9802 = vmul.f32 %v9641, %v9770
  %v9803 = vmul.f32 %v9643, %v9771
  %v9804 = vpack.c.bf16 %v9773, %v9772
  %v9805 = vpack.c.bf16 %v9775, %v9774
  %v9806 = vpack.c.bf16 %v9777, %v9776
  %v9807 = vpack.c.bf16 %v9779, %v9778
  %v9808 = vpack.c.bf16 %v9781, %v9780
  %v9809 = vpack.c.bf16 %v9783, %v9782
  %v9810 = vpack.c.bf16 %v9785, %v9784
  %v9811 = vpack.c.bf16 %v9787, %v9786
  %v9812 = vpack.c.bf16 %v9789, %v9788
  %v9813 = vpack.c.bf16 %v9791, %v9790
  %v9814 = vpack.c.bf16 %v9793, %v9792
  %v9815 = vpack.c.bf16 %v9795, %v9794
  %v9816 = vpack.c.bf16 %v9797, %v9796
  %v9817 = vpack.c.bf16 %v9799, %v9798
  %v9818 = vpack.c.bf16 %v9801, %v9800
  %v9819 = vpack.c.bf16 %v9803, %v9802
  %v9821 = vsel %vm683, %v9804, 0
  %v9824 = vsel %vm683, %v9805, 0
  %v9827 = vsel %vm683, %v9806, 0
  %v9830 = vsel %vm683, %v9807, 0
  %v9833 = vsel %vm683, %v9808, 0
  %v9836 = vsel %vm683, %v9809, 0
  %v9839 = vsel %vm683, %v9810, 0
  %v9842 = vsel %vm683, %v9811, 0
  %v9845 = vsel %vm683, %v9812, 0
  %v9848 = vsel %vm683, %v9813, 0
  %v9851 = vsel %vm683, %v9814, 0
  %v9854 = vsel %vm683, %v9815, 0
  %v9857 = vsel %vm683, %v9816, 0
  %v9860 = vsel %vm683, %v9817, 0
  %v9863 = vsel %vm683, %v9818, 0
  %v9866 = vsel %vm683, %v9819, 0
  %9868 = vmatpush.bf16.msra.mxu0 0
  %9869 = vmatpush.bf16.msra.mxu0 0
  %9870 = vmatpush.bf16.msra.mxu0 0
  %9871 = vmatpush.bf16.msra.mxu0 0
  %9872 = vmatpush.bf16.msra.mxu0 %v7568
  %9873 = vmatpush.bf16.msra.mxu0 %v7567
  %9874 = vmatpush.bf16.msra.mxu0 %v7566
  %9875 = vmatpush.bf16.msra.mxu0 %v7565
  %9876 = vmatmul.bf16.gmra.mxu0 %v9821
  %v9877 = vpop.f32.mrf.mxu0
  %v9878 = vadd.f32 0.0, %v9877
  %v9879 = vpop.f32.mrf.mxu0
  %v9880 = vadd.f32 0.0, %v9879
  %9881 = vmatmul.bf16.gmra.mxu0 %v9824
  %v9882 = vpop.f32.mrf.mxu0
  %v9883 = vadd.f32 0.0, %v9882
  %v9884 = vpop.f32.mrf.mxu0
  %v9885 = vadd.f32 0.0, %v9884
  %9886 = vmatmul.bf16.gmra.mxu0 %v9827
  %v9887 = vpop.f32.mrf.mxu0
  %v9888 = vadd.f32 0.0, %v9887
  %v9889 = vpop.f32.mrf.mxu0
  %v9890 = vadd.f32 0.0, %v9889
  %9891 = vmatmul.bf16.gmra.mxu0 %v9830
  %v9892 = vpop.f32.mrf.mxu0
  %v9893 = vadd.f32 0.0, %v9892
  %v9894 = vpop.f32.mrf.mxu0
  %v9895 = vadd.f32 0.0, %v9894
  %9896 = vmatmul.bf16.gmra.mxu0 %v9833
  %v9897 = vpop.f32.mrf.mxu0
  %v9898 = vadd.f32 0.0, %v9897
  %v9899 = vpop.f32.mrf.mxu0
  %v9900 = vadd.f32 0.0, %v9899
  %9901 = vmatmul.bf16.gmra.mxu0 %v9836
  %v9902 = vpop.f32.mrf.mxu0
  %v9903 = vadd.f32 0.0, %v9902
  %v9904 = vpop.f32.mrf.mxu0
  %v9905 = vadd.f32 0.0, %v9904
  %9906 = vmatmul.bf16.gmra.mxu0 %v9839
  %v9907 = vpop.f32.mrf.mxu0
  %v9908 = vadd.f32 0.0, %v9907
  %v9909 = vpop.f32.mrf.mxu0
  %v9910 = vadd.f32 0.0, %v9909
  %9911 = vmatmul.bf16.gmra.mxu0 %v9842
  %v9912 = vpop.f32.mrf.mxu0
  %v9913 = vadd.f32 0.0, %v9912
  %v9914 = vpop.f32.mrf.mxu0
  %v9915 = vadd.f32 0.0, %v9914
  %9916 = vmatmul.bf16.gmra.mxu0 %v9845
  %v9917 = vpop.f32.mrf.mxu0
  %v9918 = vadd.f32 0.0, %v9917
  %v9919 = vpop.f32.mrf.mxu0
  %v9920 = vadd.f32 0.0, %v9919
  %9921 = vmatmul.bf16.gmra.mxu0 %v9848
  %v9922 = vpop.f32.mrf.mxu0
  %v9923 = vadd.f32 0.0, %v9922
  %v9924 = vpop.f32.mrf.mxu0
  %v9925 = vadd.f32 0.0, %v9924
  %9926 = vmatmul.bf16.gmra.mxu0 %v9851
  %v9927 = vpop.f32.mrf.mxu0
  %v9928 = vadd.f32 0.0, %v9927
  %v9929 = vpop.f32.mrf.mxu0
  %v9930 = vadd.f32 0.0, %v9929
  %9931 = vmatmul.bf16.gmra.mxu0 %v9854
  %v9932 = vpop.f32.mrf.mxu0
  %v9933 = vadd.f32 0.0, %v9932
  %v9934 = vpop.f32.mrf.mxu0
  %v9935 = vadd.f32 0.0, %v9934
  %9936 = vmatmul.bf16.gmra.mxu0 %v9857
  %v9937 = vpop.f32.mrf.mxu0
  %v9938 = vadd.f32 0.0, %v9937
  %v9939 = vpop.f32.mrf.mxu0
  %v9940 = vadd.f32 0.0, %v9939
  %9941 = vmatmul.bf16.gmra.mxu0 %v9860
  %v9942 = vpop.f32.mrf.mxu0
  %v9943 = vadd.f32 0.0, %v9942
  %v9944 = vpop.f32.mrf.mxu0
  %v9945 = vadd.f32 0.0, %v9944
  %9946 = vmatmul.bf16.gmra.mxu0 %v9863
  %v9947 = vpop.f32.mrf.mxu0
  %v9948 = vadd.f32 0.0, %v9947
  %v9949 = vpop.f32.mrf.mxu0
  %v9950 = vadd.f32 0.0, %v9949
  %9951 = vmatmul.bf16.gmra.mxu0 %v9866
  %v9952 = vpop.f32.mrf.mxu0
  %v9953 = vadd.f32 0.0, %v9952
  %v9954 = vpop.f32.mrf.mxu0
  %v9955 = vadd.f32 0.0, %v9954
  %9956 = vdwg.mxu0
  %9989 = vrot.lane.b32.xlu0 %v8690, 32
  %v9990 = vpop.permute.xlu0 %9989
  %9991 = vrot.lane.b32.xlu0 %v8692, 32
  %v9992 = vpop.permute.xlu0 %9991
  %9993 = vrot.lane.b32.xlu0 %v8695, 32
  %v9994 = vpop.permute.xlu0 %9993
  %9995 = vrot.lane.b32.xlu0 %v8697, 32
  %v9996 = vpop.permute.xlu0 %9995
  %9997 = vrot.lane.b32.xlu0 %v8700, 32
  %v9998 = vpop.permute.xlu0 %9997
  %9999 = vrot.lane.b32.xlu0 %v8702, 32
  %v10000 = vpop.permute.xlu0 %9999
  %10001 = vrot.lane.b32.xlu0 %v8705, 32
  %v10002 = vpop.permute.xlu0 %10001
  %10003 = vrot.lane.b32.xlu0 %v8707, 32
  %v10004 = vpop.permute.xlu0 %10003
  %10005 = vrot.lane.b32.xlu0 %v8710, 32
  %v10006 = vpop.permute.xlu0 %10005
  %10007 = vrot.lane.b32.xlu0 %v8712, 32
  %v10008 = vpop.permute.xlu0 %10007
  %10009 = vrot.lane.b32.xlu0 %v8715, 32
  %v10010 = vpop.permute.xlu0 %10009
  %10011 = vrot.lane.b32.xlu0 %v8717, 32
  %v10012 = vpop.permute.xlu0 %10011
  %10013 = vrot.lane.b32.xlu0 %v8720, 32
  %v10014 = vpop.permute.xlu0 %10013
  %10015 = vrot.lane.b32.xlu0 %v8722, 32
  %v10016 = vpop.permute.xlu0 %10015
  %10017 = vrot.lane.b32.xlu0 %v8725, 32
  %v10018 = vpop.permute.xlu0 %10017
  %10019 = vrot.lane.b32.xlu0 %v8727, 32
  %v10020 = vpop.permute.xlu0 %10019
  %10021 = vrot.lane.b32.xlu0 %v8730, 32
  %v10022 = vpop.permute.xlu0 %10021
  %10023 = vrot.lane.b32.xlu0 %v8732, 32
  %v10024 = vpop.permute.xlu0 %10023
  %10025 = vrot.lane.b32.xlu0 %v8735, 32
  %v10026 = vpop.permute.xlu0 %10025
  %10027 = vrot.lane.b32.xlu0 %v8737, 32
  %v10028 = vpop.permute.xlu0 %10027
  %10029 = vrot.lane.b32.xlu0 %v8740, 32
  %v10030 = vpop.permute.xlu0 %10029
  %10031 = vrot.lane.b32.xlu0 %v8742, 32
  %v10032 = vpop.permute.xlu0 %10031
  %10033 = vrot.lane.b32.xlu0 %v8745, 32
  %v10034 = vpop.permute.xlu0 %10033
  %10035 = vrot.lane.b32.xlu0 %v8747, 32
  %v10036 = vpop.permute.xlu0 %10035
  %10037 = vrot.lane.b32.xlu0 %v8750, 32
  %v10038 = vpop.permute.xlu0 %10037
  %10039 = vrot.lane.b32.xlu0 %v8752, 32
  %v10040 = vpop.permute.xlu0 %10039
  %10041 = vrot.lane.b32.xlu0 %v8755, 32
  %v10042 = vpop.permute.xlu0 %10041
  %10043 = vrot.lane.b32.xlu0 %v8757, 32
  %v10044 = vpop.permute.xlu0 %10043
  %10045 = vrot.lane.b32.xlu0 %v8760, 32
  %v10046 = vpop.permute.xlu0 %10045
  %10047 = vrot.lane.b32.xlu0 %v8762, 32
  %v10048 = vpop.permute.xlu0 %10047
  %10049 = vrot.lane.b32.xlu0 %v8765, 32
  %v10050 = vpop.permute.xlu0 %10049
  %10051 = vrot.lane.b32.xlu0 %v8767, 32
  %v10052 = vpop.permute.xlu0 %10051
  %10117 = vrot.lane.b32.xlu0 %v9284, 64
  %v10118 = vpop.permute.xlu0 %10117
  %10119 = vrot.lane.b32.xlu0 %v9286, 64
  %v10120 = vpop.permute.xlu0 %10119
  %10121 = vrot.lane.b32.xlu0 %v9289, 64
  %v10122 = vpop.permute.xlu0 %10121
  %10123 = vrot.lane.b32.xlu0 %v9291, 64
  %v10124 = vpop.permute.xlu0 %10123
  %10125 = vrot.lane.b32.xlu0 %v9294, 64
  %v10126 = vpop.permute.xlu0 %10125
  %10127 = vrot.lane.b32.xlu0 %v9296, 64
  %v10128 = vpop.permute.xlu0 %10127
  %10129 = vrot.lane.b32.xlu0 %v9299, 64
  %v10130 = vpop.permute.xlu0 %10129
  %10131 = vrot.lane.b32.xlu0 %v9301, 64
  %v10132 = vpop.permute.xlu0 %10131
  %10133 = vrot.lane.b32.xlu0 %v9304, 64
  %v10134 = vpop.permute.xlu0 %10133
  %10135 = vrot.lane.b32.xlu0 %v9306, 64
  %v10136 = vpop.permute.xlu0 %10135
  %10137 = vrot.lane.b32.xlu0 %v9309, 64
  %v10138 = vpop.permute.xlu0 %10137
  %10139 = vrot.lane.b32.xlu0 %v9311, 64
  %v10140 = vpop.permute.xlu0 %10139
  %10141 = vrot.lane.b32.xlu0 %v9314, 64
  %v10142 = vpop.permute.xlu0 %10141
  %10143 = vrot.lane.b32.xlu0 %v9316, 64
  %v10144 = vpop.permute.xlu0 %10143
  %10145 = vrot.lane.b32.xlu0 %v9319, 64
  %v10146 = vpop.permute.xlu0 %10145
  %10147 = vrot.lane.b32.xlu0 %v9321, 64
  %v10148 = vpop.permute.xlu0 %10147
  %10149 = vrot.lane.b32.xlu0 %v9324, 64
  %v10150 = vpop.permute.xlu0 %10149
  %10151 = vrot.lane.b32.xlu0 %v9326, 64
  %v10152 = vpop.permute.xlu0 %10151
  %10153 = vrot.lane.b32.xlu0 %v9329, 64
  %v10154 = vpop.permute.xlu0 %10153
  %10155 = vrot.lane.b32.xlu0 %v9331, 64
  %v10156 = vpop.permute.xlu0 %10155
  %10157 = vrot.lane.b32.xlu0 %v9334, 64
  %v10158 = vpop.permute.xlu0 %10157
  %10159 = vrot.lane.b32.xlu0 %v9336, 64
  %v10160 = vpop.permute.xlu0 %10159
  %10161 = vrot.lane.b32.xlu0 %v9339, 64
  %v10162 = vpop.permute.xlu0 %10161
  %10163 = vrot.lane.b32.xlu0 %v9341, 64
  %v10164 = vpop.permute.xlu0 %10163
  %10165 = vrot.lane.b32.xlu0 %v9344, 64
  %v10166 = vpop.permute.xlu0 %10165
  %10167 = vrot.lane.b32.xlu0 %v9346, 64
  %v10168 = vpop.permute.xlu0 %10167
  %10169 = vrot.lane.b32.xlu0 %v9349, 64
  %v10170 = vpop.permute.xlu0 %10169
  %10171 = vrot.lane.b32.xlu0 %v9351, 64
  %v10172 = vpop.permute.xlu0 %10171
  %10173 = vrot.lane.b32.xlu0 %v9354, 64
  %v10174 = vpop.permute.xlu0 %10173
  %10175 = vrot.lane.b32.xlu0 %v9356, 64
  %v10176 = vpop.permute.xlu0 %10175
  %10177 = vrot.lane.b32.xlu0 %v9359, 64
  %v10178 = vpop.permute.xlu0 %10177
  %10179 = vrot.lane.b32.xlu0 %v9361, 64
  %v10180 = vpop.permute.xlu0 %10179
  %10245 = vrot.lane.b32.xlu0 %v9878, 96
  %v10246 = vpop.permute.xlu0 %10245
  %10247 = vrot.lane.b32.xlu0 %v9880, 96
  %v10248 = vpop.permute.xlu0 %10247
  %10249 = vrot.lane.b32.xlu0 %v9883, 96
  %v10250 = vpop.permute.xlu0 %10249
  %10251 = vrot.lane.b32.xlu0 %v9885, 96
  %v10252 = vpop.permute.xlu0 %10251
  %10253 = vrot.lane.b32.xlu0 %v9888, 96
  %v10254 = vpop.permute.xlu0 %10253
  %10255 = vrot.lane.b32.xlu0 %v9890, 96
  %v10256 = vpop.permute.xlu0 %10255
  %10257 = vrot.lane.b32.xlu0 %v9893, 96
  %v10258 = vpop.permute.xlu0 %10257
  %10259 = vrot.lane.b32.xlu0 %v9895, 96
  %v10260 = vpop.permute.xlu0 %10259
  %10261 = vrot.lane.b32.xlu0 %v9898, 96
  %v10262 = vpop.permute.xlu0 %10261
  %10263 = vrot.lane.b32.xlu0 %v9900, 96
  %v10264 = vpop.permute.xlu0 %10263
  %10265 = vrot.lane.b32.xlu0 %v9903, 96
  %v10266 = vpop.permute.xlu0 %10265
  %10267 = vrot.lane.b32.xlu0 %v9905, 96
  %v10268 = vpop.permute.xlu0 %10267
  %10269 = vrot.lane.b32.xlu0 %v9908, 96
  %v10270 = vpop.permute.xlu0 %10269
  %10271 = vrot.lane.b32.xlu0 %v9910, 96
  %v10272 = vpop.permute.xlu0 %10271
  %10273 = vrot.lane.b32.xlu0 %v9913, 96
  %v10274 = vpop.permute.xlu0 %10273
  %10275 = vrot.lane.b32.xlu0 %v9915, 96
  %v10276 = vpop.permute.xlu0 %10275
  %10277 = vrot.lane.b32.xlu0 %v9918, 96
  %v10278 = vpop.permute.xlu0 %10277
  %10279 = vrot.lane.b32.xlu0 %v9920, 96
  %v10280 = vpop.permute.xlu0 %10279
  %10281 = vrot.lane.b32.xlu0 %v9923, 96
  %v10282 = vpop.permute.xlu0 %10281
  %10283 = vrot.lane.b32.xlu0 %v9925, 96
  %v10284 = vpop.permute.xlu0 %10283
  %10285 = vrot.lane.b32.xlu0 %v9928, 96
  %v10286 = vpop.permute.xlu0 %10285
  %10287 = vrot.lane.b32.xlu0 %v9930, 96
  %v10288 = vpop.permute.xlu0 %10287
  %10289 = vrot.lane.b32.xlu0 %v9933, 96
  %v10290 = vpop.permute.xlu0 %10289
  %10291 = vrot.lane.b32.xlu0 %v9935, 96
  %v10292 = vpop.permute.xlu0 %10291
  %10293 = vrot.lane.b32.xlu0 %v9938, 96
  %v10294 = vpop.permute.xlu0 %10293
  %10295 = vrot.lane.b32.xlu0 %v9940, 96
  %v10296 = vpop.permute.xlu0 %10295
  %10297 = vrot.lane.b32.xlu0 %v9943, 96
  %v10298 = vpop.permute.xlu0 %10297
  %10299 = vrot.lane.b32.xlu0 %v9945, 96
  %v10300 = vpop.permute.xlu0 %10299
  %10301 = vrot.lane.b32.xlu0 %v9948, 96
  %v10302 = vpop.permute.xlu0 %10301
  %10303 = vrot.lane.b32.xlu0 %v9950, 96
  %v10304 = vpop.permute.xlu0 %10303
  %10305 = vrot.lane.b32.xlu0 %v9953, 96
  %v10306 = vpop.permute.xlu0 %10305
  %10307 = vrot.lane.b32.xlu0 %v9955, 96
  %v10308 = vpop.permute.xlu0 %10307
  %v10341 = vsel %vm380, %v8096, %v9990
  %v10342 = vsel %vm380, %v8098, %v9992
  %v10343 = vsel %vm380, %v8101, %v9994
  %v10344 = vsel %vm380, %v8103, %v9996
  %v10345 = vsel %vm380, %v8106, %v9998
  %v10346 = vsel %vm380, %v8108, %v10000
  %v10347 = vsel %vm380, %v8111, %v10002
  %v10348 = vsel %vm380, %v8113, %v10004
  %v10349 = vsel %vm380, %v8116, %v10006
  %v10350 = vsel %vm380, %v8118, %v10008
  %v10351 = vsel %vm380, %v8121, %v10010
  %v10352 = vsel %vm380, %v8123, %v10012
  %v10353 = vsel %vm380, %v8126, %v10014
  %v10354 = vsel %vm380, %v8128, %v10016
  %v10355 = vsel %vm380, %v8131, %v10018
  %v10356 = vsel %vm380, %v8133, %v10020
  %v10357 = vsel %vm380, %v8136, %v10022
  %v10358 = vsel %vm380, %v8138, %v10024
  %v10359 = vsel %vm380, %v8141, %v10026
  %v10360 = vsel %vm380, %v8143, %v10028
  %v10361 = vsel %vm380, %v8146, %v10030
  %v10362 = vsel %vm380, %v8148, %v10032
  %v10363 = vsel %vm380, %v8151, %v10034
  %v10364 = vsel %vm380, %v8153, %v10036
  %v10365 = vsel %vm380, %v8156, %v10038
  %v10366 = vsel %vm380, %v8158, %v10040
  %v10367 = vsel %vm380, %v8161, %v10042
  %v10368 = vsel %vm380, %v8163, %v10044
  %v10369 = vsel %vm380, %v8166, %v10046
  %v10370 = vsel %vm380, %v8168, %v10048
  %v10371 = vsel %vm380, %v8171, %v10050
  %v10372 = vsel %vm380, %v8173, %v10052
  %v10373 = vsel %vm683, %v10341, %v10118
  %v10374 = vsel %vm683, %v10342, %v10120
  %v10375 = vsel %vm683, %v10343, %v10122
  %v10376 = vsel %vm683, %v10344, %v10124
  %v10377 = vsel %vm683, %v10345, %v10126
  %v10378 = vsel %vm683, %v10346, %v10128
  %v10379 = vsel %vm683, %v10347, %v10130
  %v10380 = vsel %vm683, %v10348, %v10132
  %v10381 = vsel %vm683, %v10349, %v10134
  %v10382 = vsel %vm683, %v10350, %v10136
  %v10383 = vsel %vm683, %v10351, %v10138
  %v10384 = vsel %vm683, %v10352, %v10140
  %v10385 = vsel %vm683, %v10353, %v10142
  %v10386 = vsel %vm683, %v10354, %v10144
  %v10387 = vsel %vm683, %v10355, %v10146
  %v10388 = vsel %vm683, %v10356, %v10148
  %v10389 = vsel %vm683, %v10357, %v10150
  %v10390 = vsel %vm683, %v10358, %v10152
  %v10391 = vsel %vm683, %v10359, %v10154
  %v10392 = vsel %vm683, %v10360, %v10156
  %v10393 = vsel %vm683, %v10361, %v10158
  %v10394 = vsel %vm683, %v10362, %v10160
  %v10395 = vsel %vm683, %v10363, %v10162
  %v10396 = vsel %vm683, %v10364, %v10164
  %v10397 = vsel %vm683, %v10365, %v10166
  %v10398 = vsel %vm683, %v10366, %v10168
  %v10399 = vsel %vm683, %v10367, %v10170
  %v10400 = vsel %vm683, %v10368, %v10172
  %v10401 = vsel %vm683, %v10369, %v10174
  %v10402 = vsel %vm683, %v10370, %v10176
  %v10403 = vsel %vm683, %v10371, %v10178
  %v10404 = vsel %vm683, %v10372, %v10180
  %v10405 = vsel %vm3675, %v10373, %v10246
  %v10406 = vsel %vm3675, %v10374, %v10248
  %v10407 = vsel %vm3675, %v10375, %v10250
  %v10408 = vsel %vm3675, %v10376, %v10252
  %v10409 = vsel %vm3675, %v10377, %v10254
  %v10410 = vsel %vm3675, %v10378, %v10256
  %v10411 = vsel %vm3675, %v10379, %v10258
  %v10412 = vsel %vm3675, %v10380, %v10260
  %v10413 = vsel %vm3675, %v10381, %v10262
  %v10414 = vsel %vm3675, %v10382, %v10264
  %v10415 = vsel %vm3675, %v10383, %v10266
  %v10416 = vsel %vm3675, %v10384, %v10268
  %v10417 = vsel %vm3675, %v10385, %v10270
  %v10418 = vsel %vm3675, %v10386, %v10272
  %v10419 = vsel %vm3675, %v10387, %v10274
  %v10420 = vsel %vm3675, %v10388, %v10276
  %v10421 = vsel %vm3675, %v10389, %v10278
  %v10422 = vsel %vm3675, %v10390, %v10280
  %v10423 = vsel %vm3675, %v10391, %v10282
  %v10424 = vsel %vm3675, %v10392, %v10284
  %v10425 = vsel %vm3675, %v10393, %v10286
  %v10426 = vsel %vm3675, %v10394, %v10288
  %v10427 = vsel %vm3675, %v10395, %v10290
  %v10428 = vsel %vm3675, %v10396, %v10292
  %v10429 = vsel %vm3675, %v10397, %v10294
  %v10430 = vsel %vm3675, %v10398, %v10296
  %v10431 = vsel %vm3675, %v10399, %v10298
  %v10432 = vsel %vm3675, %v10400, %v10300
  %v10433 = vsel %vm3675, %v10401, %v10302
  %v10434 = vsel %vm3675, %v10402, %v10304
  %v10435 = vsel %vm3675, %v10403, %v10306
  %v10436 = vsel %vm3675, %v10404, %v10308
  %v10437 = vpack.c.bf16 %v10406, %v10405
  %v10438 = vpack.c.bf16 %v10408, %v10407
  %v10439 = vpack.c.bf16 %v10410, %v10409
  %v10440 = vpack.c.bf16 %v10412, %v10411
  %v10441 = vpack.c.bf16 %v10414, %v10413
  %v10442 = vpack.c.bf16 %v10416, %v10415
  %v10443 = vpack.c.bf16 %v10418, %v10417
  %v10444 = vpack.c.bf16 %v10420, %v10419
  %v10445 = vpack.c.bf16 %v10422, %v10421
  %v10446 = vpack.c.bf16 %v10424, %v10423
  %v10447 = vpack.c.bf16 %v10426, %v10425
  %v10448 = vpack.c.bf16 %v10428, %v10427
  %v10449 = vpack.c.bf16 %v10430, %v10429
  %v10450 = vpack.c.bf16 %v10432, %v10431
  %v10451 = vpack.c.bf16 %v10434, %v10433
  %v10452 = vpack.c.bf16 %v10436, %v10435
  %10453 = vmatpush.bf16.msra.mxu0 %v3763
  %10454 = vmatpush.bf16.msra.mxu0 %v3762
  %10455 = vmatpush.bf16.msra.mxu0 %v3761
  %10456 = vmatpush.bf16.msra.mxu0 %v3760
  %10457 = vmatpush.bf16.msra.mxu0 %v3759
  %10458 = vmatpush.bf16.msra.mxu0 %v3758
  %10459 = vmatpush.bf16.msra.mxu0 %v3757
  %10460 = vmatpush.bf16.msra.mxu0 %v3756
  %10461 = vmatmul.bf16.gmra.mxu0 %v10437
  %v10462 = vpop.f32.mrf.mxu0
  %v10463 = vadd.f32 0.0, %v10462
  %v10464 = vpop.f32.mrf.mxu0
  %v10465 = vadd.f32 0.0, %v10464
  %10466 = vmatmul.bf16.gmra.mxu0 %v10438
  %v10467 = vpop.f32.mrf.mxu0
  %v10468 = vadd.f32 0.0, %v10467
  %v10469 = vpop.f32.mrf.mxu0
  %v10470 = vadd.f32 0.0, %v10469
  %10471 = vmatmul.bf16.gmra.mxu0 %v10439
  %v10472 = vpop.f32.mrf.mxu0
  %v10473 = vadd.f32 0.0, %v10472
  %v10474 = vpop.f32.mrf.mxu0
  %v10475 = vadd.f32 0.0, %v10474
  %10476 = vmatmul.bf16.gmra.mxu0 %v10440
  %v10477 = vpop.f32.mrf.mxu0
  %v10478 = vadd.f32 0.0, %v10477
  %v10479 = vpop.f32.mrf.mxu0
  %v10480 = vadd.f32 0.0, %v10479
  %10481 = vmatmul.bf16.gmra.mxu0 %v10441
  %v10482 = vpop.f32.mrf.mxu0
  %v10483 = vadd.f32 0.0, %v10482
  %v10484 = vpop.f32.mrf.mxu0
  %v10485 = vadd.f32 0.0, %v10484
  %10486 = vmatmul.bf16.gmra.mxu0 %v10442
  %v10487 = vpop.f32.mrf.mxu0
  %v10488 = vadd.f32 0.0, %v10487
  %v10489 = vpop.f32.mrf.mxu0
  %v10490 = vadd.f32 0.0, %v10489
  %10491 = vmatmul.bf16.gmra.mxu0 %v10443
  %v10492 = vpop.f32.mrf.mxu0
  %v10493 = vadd.f32 0.0, %v10492
  %v10494 = vpop.f32.mrf.mxu0
  %v10495 = vadd.f32 0.0, %v10494
  %10496 = vmatmul.bf16.gmra.mxu0 %v10444
  %v10497 = vpop.f32.mrf.mxu0
  %v10498 = vadd.f32 0.0, %v10497
  %v10499 = vpop.f32.mrf.mxu0
  %v10500 = vadd.f32 0.0, %v10499
  %10501 = vmatmul.bf16.gmra.mxu0 %v10445
  %v10502 = vpop.f32.mrf.mxu0
  %v10503 = vadd.f32 0.0, %v10502
  %v10504 = vpop.f32.mrf.mxu0
  %v10505 = vadd.f32 0.0, %v10504
  %10506 = vmatmul.bf16.gmra.mxu0 %v10446
  %v10507 = vpop.f32.mrf.mxu0
  %v10508 = vadd.f32 0.0, %v10507
  %v10509 = vpop.f32.mrf.mxu0
  %v10510 = vadd.f32 0.0, %v10509
  %10511 = vmatmul.bf16.gmra.mxu0 %v10447
  %v10512 = vpop.f32.mrf.mxu0
  %v10513 = vadd.f32 0.0, %v10512
  %v10514 = vpop.f32.mrf.mxu0
  %v10515 = vadd.f32 0.0, %v10514
  %10516 = vmatmul.bf16.gmra.mxu0 %v10448
  %v10517 = vpop.f32.mrf.mxu0
  %v10518 = vadd.f32 0.0, %v10517
  %v10519 = vpop.f32.mrf.mxu0
  %v10520 = vadd.f32 0.0, %v10519
  %10521 = vmatmul.bf16.gmra.mxu0 %v10449
  %v10522 = vpop.f32.mrf.mxu0
  %v10523 = vadd.f32 0.0, %v10522
  %v10524 = vpop.f32.mrf.mxu0
  %v10525 = vadd.f32 0.0, %v10524
  %10526 = vmatmul.bf16.gmra.mxu0 %v10450
  %v10527 = vpop.f32.mrf.mxu0
  %v10528 = vadd.f32 0.0, %v10527
  %v10529 = vpop.f32.mrf.mxu0
  %v10530 = vadd.f32 0.0, %v10529
  %10531 = vmatmul.bf16.gmra.mxu0 %v10451
  %v10532 = vpop.f32.mrf.mxu0
  %v10533 = vadd.f32 0.0, %v10532
  %v10534 = vpop.f32.mrf.mxu0
  %v10535 = vadd.f32 0.0, %v10534
  %10536 = vmatmul.bf16.gmra.mxu0 %v10452
  %v10537 = vpop.f32.mrf.mxu0
  %v10538 = vadd.f32 0.0, %v10537
  %v10539 = vpop.f32.mrf.mxu0
  %v10540 = vadd.f32 0.0, %v10539
  %10541 = vdwg.mxu0
  %v10542 = vpack.c.bf16 %v10465, %v10463
  %v10543 = vpack.c.bf16 %v10470, %v10468
  %v10544 = vpack.c.bf16 %v10475, %v10473
  %v10545 = vpack.c.bf16 %v10480, %v10478
  %v10546 = vpack.c.bf16 %v10485, %v10483
  %v10547 = vpack.c.bf16 %v10490, %v10488
  %v10548 = vpack.c.bf16 %v10495, %v10493
  %v10549 = vpack.c.bf16 %v10500, %v10498
  %v10550 = vpack.c.bf16 %v10505, %v10503
  %v10551 = vpack.c.bf16 %v10510, %v10508
  %v10552 = vpack.c.bf16 %v10515, %v10513
  %v10553 = vpack.c.bf16 %v10520, %v10518
  %v10554 = vpack.c.bf16 %v10525, %v10523
  %v10555 = vpack.c.bf16 %v10530, %v10528
  %v10556 = vpack.c.bf16 %v10535, %v10533
  %v10557 = vpack.c.bf16 %v10540, %v10538
  %10558 = vmatpush.bf16.msra.mxu0 %v3916
  %10559 = vmatpush.bf16.msra.mxu0 %v3915
  %10560 = vmatpush.bf16.msra.mxu0 %v3914
  %10561 = vmatpush.bf16.msra.mxu0 %v3913
  %10562 = vmatpush.bf16.msra.mxu0 %v3912
  %10563 = vmatpush.bf16.msra.mxu0 %v3911
  %10564 = vmatpush.bf16.msra.mxu0 %v3910
  %10565 = vmatpush.bf16.msra.mxu0 %v3909
  %10566 = vmatmul.bf16.gmra.mxu0 %v10542
  %v10567 = vpop.f32.mrf.mxu0
  %v10568 = vadd.f32 0.0, %v10567
  %v10569 = vpop.f32.mrf.mxu0
  %v10570 = vadd.f32 0.0, %v10569
  %10571 = vmatmul.bf16.gmra.mxu0 %v10543
  %v10572 = vpop.f32.mrf.mxu0
  %v10573 = vadd.f32 0.0, %v10572
  %v10574 = vpop.f32.mrf.mxu0
  %v10575 = vadd.f32 0.0, %v10574
  %10576 = vmatmul.bf16.gmra.mxu0 %v10544
  %v10577 = vpop.f32.mrf.mxu0
  %v10578 = vadd.f32 0.0, %v10577
  %v10579 = vpop.f32.mrf.mxu0
  %v10580 = vadd.f32 0.0, %v10579
  %10581 = vmatmul.bf16.gmra.mxu0 %v10545
  %v10582 = vpop.f32.mrf.mxu0
  %v10583 = vadd.f32 0.0, %v10582
  %v10584 = vpop.f32.mrf.mxu0
  %v10585 = vadd.f32 0.0, %v10584
  %10586 = vmatmul.bf16.gmra.mxu0 %v10546
  %v10587 = vpop.f32.mrf.mxu0
  %v10588 = vadd.f32 0.0, %v10587
  %v10589 = vpop.f32.mrf.mxu0
  %v10590 = vadd.f32 0.0, %v10589
  %10591 = vmatmul.bf16.gmra.mxu0 %v10547
  %v10592 = vpop.f32.mrf.mxu0
  %v10593 = vadd.f32 0.0, %v10592
  %v10594 = vpop.f32.mrf.mxu0
  %v10595 = vadd.f32 0.0, %v10594
  %10596 = vmatmul.bf16.gmra.mxu0 %v10548
  %v10597 = vpop.f32.mrf.mxu0
  %v10598 = vadd.f32 0.0, %v10597
  %v10599 = vpop.f32.mrf.mxu0
  %v10600 = vadd.f32 0.0, %v10599
  %10601 = vmatmul.bf16.gmra.mxu0 %v10549
  %v10602 = vpop.f32.mrf.mxu0
  %v10603 = vadd.f32 0.0, %v10602
  %v10604 = vpop.f32.mrf.mxu0
  %v10605 = vadd.f32 0.0, %v10604
  %10606 = vmatmul.bf16.gmra.mxu0 %v10550
  %v10607 = vpop.f32.mrf.mxu0
  %v10608 = vadd.f32 0.0, %v10607
  %v10609 = vpop.f32.mrf.mxu0
  %v10610 = vadd.f32 0.0, %v10609
  %10611 = vmatmul.bf16.gmra.mxu0 %v10551
  %v10612 = vpop.f32.mrf.mxu0
  %v10613 = vadd.f32 0.0, %v10612
  %v10614 = vpop.f32.mrf.mxu0
  %v10615 = vadd.f32 0.0, %v10614
  %10616 = vmatmul.bf16.gmra.mxu0 %v10552
  %v10617 = vpop.f32.mrf.mxu0
  %v10618 = vadd.f32 0.0, %v10617
  %v10619 = vpop.f32.mrf.mxu0
  %v10620 = vadd.f32 0.0, %v10619
  %10621 = vmatmul.bf16.gmra.mxu0 %v10553
  %v10622 = vpop.f32.mrf.mxu0
  %v10623 = vadd.f32 0.0, %v10622
  %v10624 = vpop.f32.mrf.mxu0
  %v10625 = vadd.f32 0.0, %v10624
  %10626 = vmatmul.bf16.gmra.mxu0 %v10554
  %v10627 = vpop.f32.mrf.mxu0
  %v10628 = vadd.f32 0.0, %v10627
  %v10629 = vpop.f32.mrf.mxu0
  %v10630 = vadd.f32 0.0, %v10629
  %10631 = vmatmul.bf16.gmra.mxu0 %v10555
  %v10632 = vpop.f32.mrf.mxu0
  %v10633 = vadd.f32 0.0, %v10632
  %v10634 = vpop.f32.mrf.mxu0
  %v10635 = vadd.f32 0.0, %v10634
  %10636 = vmatmul.bf16.gmra.mxu0 %v10556
  %v10637 = vpop.f32.mrf.mxu0
  %v10638 = vadd.f32 0.0, %v10637
  %v10639 = vpop.f32.mrf.mxu0
  %v10640 = vadd.f32 0.0, %v10639
  %10641 = vmatmul.bf16.gmra.mxu0 %v10557
  %v10642 = vpop.f32.mrf.mxu0
  %v10643 = vadd.f32 0.0, %v10642
  %v10644 = vpop.f32.mrf.mxu0
  %v10645 = vadd.f32 0.0, %v10644
  %10646 = vdwg.mxu0
  %v10647 = vsel %vm4014, %v10568, -inf
  %10648 = vmax.xlane.f32.xlu0 %v10647
  %v10649 = vpop.xlane.xlu0 %10648
  %v10650 = vsel %vm4014, %v10570, -inf
  %10651 = vmax.xlane.f32.xlu0 %v10650
  %v10652 = vpop.xlane.xlu0 %10651
  %v10653 = vsel %vm4014, %v10573, -inf
  %10654 = vmax.xlane.f32.xlu0 %v10653
  %v10655 = vpop.xlane.xlu0 %10654
  %v10656 = vsel %vm4014, %v10575, -inf
  %10657 = vmax.xlane.f32.xlu0 %v10656
  %v10658 = vpop.xlane.xlu0 %10657
  %v10659 = vsel %vm4014, %v10578, -inf
  %10660 = vmax.xlane.f32.xlu0 %v10659
  %v10661 = vpop.xlane.xlu0 %10660
  %v10662 = vsel %vm4014, %v10580, -inf
  %10663 = vmax.xlane.f32.xlu0 %v10662
  %v10664 = vpop.xlane.xlu0 %10663
  %v10665 = vsel %vm4014, %v10583, -inf
  %10666 = vmax.xlane.f32.xlu0 %v10665
  %v10667 = vpop.xlane.xlu0 %10666
  %v10668 = vsel %vm4014, %v10585, -inf
  %10669 = vmax.xlane.f32.xlu0 %v10668
  %v10670 = vpop.xlane.xlu0 %10669
  %v10671 = vsel %vm4014, %v10588, -inf
  %10672 = vmax.xlane.f32.xlu0 %v10671
  %v10673 = vpop.xlane.xlu0 %10672
  %v10674 = vsel %vm4014, %v10590, -inf
  %10675 = vmax.xlane.f32.xlu0 %v10674
  %v10676 = vpop.xlane.xlu0 %10675
  %v10677 = vsel %vm4014, %v10593, -inf
  %10678 = vmax.xlane.f32.xlu0 %v10677
  %v10679 = vpop.xlane.xlu0 %10678
  %v10680 = vsel %vm4014, %v10595, -inf
  %10681 = vmax.xlane.f32.xlu0 %v10680
  %v10682 = vpop.xlane.xlu0 %10681
  %v10683 = vsel %vm4014, %v10598, -inf
  %10684 = vmax.xlane.f32.xlu0 %v10683
  %v10685 = vpop.xlane.xlu0 %10684
  %v10686 = vsel %vm4014, %v10600, -inf
  %10687 = vmax.xlane.f32.xlu0 %v10686
  %v10688 = vpop.xlane.xlu0 %10687
  %v10689 = vsel %vm4014, %v10603, -inf
  %10690 = vmax.xlane.f32.xlu0 %v10689
  %v10691 = vpop.xlane.xlu0 %10690
  %v10692 = vsel %vm4014, %v10605, -inf
  %10693 = vmax.xlane.f32.xlu0 %v10692
  %v10694 = vpop.xlane.xlu0 %10693
  %v10695 = vsel %vm4014, %v10608, -inf
  %10696 = vmax.xlane.f32.xlu0 %v10695
  %v10697 = vpop.xlane.xlu0 %10696
  %v10698 = vsel %vm4014, %v10610, -inf
  %10699 = vmax.xlane.f32.xlu0 %v10698
  %v10700 = vpop.xlane.xlu0 %10699
  %v10701 = vsel %vm4014, %v10613, -inf
  %10702 = vmax.xlane.f32.xlu0 %v10701
  %v10703 = vpop.xlane.xlu0 %10702
  %v10704 = vsel %vm4014, %v10615, -inf
  %10705 = vmax.xlane.f32.xlu0 %v10704
  %v10706 = vpop.xlane.xlu0 %10705
  %v10707 = vsel %vm4014, %v10618, -inf
  %10708 = vmax.xlane.f32.xlu0 %v10707
  %v10709 = vpop.xlane.xlu0 %10708
  %v10710 = vsel %vm4014, %v10620, -inf
  %10711 = vmax.xlane.f32.xlu0 %v10710
  %v10712 = vpop.xlane.xlu0 %10711
  %v10713 = vsel %vm4014, %v10623, -inf
  %10714 = vmax.xlane.f32.xlu0 %v10713
  %v10715 = vpop.xlane.xlu0 %10714
  %v10716 = vsel %vm4014, %v10625, -inf
  %10717 = vmax.xlane.f32.xlu0 %v10716
  %v10718 = vpop.xlane.xlu0 %10717
  %v10719 = vsel %vm4014, %v10628, -inf
  %10720 = vmax.xlane.f32.xlu0 %v10719
  %v10721 = vpop.xlane.xlu0 %10720
  %v10722 = vsel %vm4014, %v10630, -inf
  %10723 = vmax.xlane.f32.xlu0 %v10722
  %v10724 = vpop.xlane.xlu0 %10723
  %v10725 = vsel %vm4014, %v10633, -inf
  %10726 = vmax.xlane.f32.xlu0 %v10725
  %v10727 = vpop.xlane.xlu0 %10726
  %v10728 = vsel %vm4014, %v10635, -inf
  %10729 = vmax.xlane.f32.xlu0 %v10728
  %v10730 = vpop.xlane.xlu0 %10729
  %v10731 = vsel %vm4014, %v10638, -inf
  %10732 = vmax.xlane.f32.xlu0 %v10731
  %v10733 = vpop.xlane.xlu0 %10732
  %v10734 = vsel %vm4014, %v10640, -inf
  %10735 = vmax.xlane.f32.xlu0 %v10734
  %v10736 = vpop.xlane.xlu0 %10735
  %v10737 = vsel %vm4014, %v10643, -inf
  %10738 = vmax.xlane.f32.xlu0 %v10737
  %v10739 = vpop.xlane.xlu0 %10738
  %v10740 = vsel %vm4014, %v10645, -inf
  %10741 = vmax.xlane.f32.xlu0 %v10740
  %v10742 = vpop.xlane.xlu0 %10741
  %v10743 = vsub.f32 %v10568, %v10649
  %v10744 = vsub.f32 %v10570, %v10652
  %v10745 = vsub.f32 %v10573, %v10655
  %v10746 = vsub.f32 %v10575, %v10658
  %v10747 = vsub.f32 %v10578, %v10661
  %v10748 = vsub.f32 %v10580, %v10664
  %v10749 = vsub.f32 %v10583, %v10667
  %v10750 = vsub.f32 %v10585, %v10670
  %v10751 = vsub.f32 %v10588, %v10673
  %v10752 = vsub.f32 %v10590, %v10676
  %v10753 = vsub.f32 %v10593, %v10679
  %v10754 = vsub.f32 %v10595, %v10682
  %v10755 = vsub.f32 %v10598, %v10685
  %v10756 = vsub.f32 %v10600, %v10688
  %v10757 = vsub.f32 %v10603, %v10691
  %v10758 = vsub.f32 %v10605, %v10694
  %v10759 = vsub.f32 %v10608, %v10697
  %v10760 = vsub.f32 %v10610, %v10700
  %v10761 = vsub.f32 %v10613, %v10703
  %v10762 = vsub.f32 %v10615, %v10706
  %v10763 = vsub.f32 %v10618, %v10709
  %v10764 = vsub.f32 %v10620, %v10712
  %v10765 = vsub.f32 %v10623, %v10715
  %v10766 = vsub.f32 %v10625, %v10718
  %v10767 = vsub.f32 %v10628, %v10721
  %v10768 = vsub.f32 %v10630, %v10724
  %v10769 = vsub.f32 %v10633, %v10727
  %v10770 = vsub.f32 %v10635, %v10730
  %v10771 = vsub.f32 %v10638, %v10733
  %v10772 = vsub.f32 %v10640, %v10736
  %v10773 = vsub.f32 %v10643, %v10739
  %v10774 = vsub.f32 %v10645, %v10742
  %v10775 = vmul.f32 %v10743, 1.442695
  %v10776 = vpow.pop %v10775
  %v10777 = vmul.f32 %v10744, 1.442695
  %v10778 = vpow.pop %v10777
  %v10779 = vmul.f32 %v10745, 1.442695
  %v10780 = vpow.pop %v10779
  %v10781 = vmul.f32 %v10746, 1.442695
  %v10782 = vpow.pop %v10781
  %v10783 = vmul.f32 %v10747, 1.442695
  %v10784 = vpow.pop %v10783
  %v10785 = vmul.f32 %v10748, 1.442695
  %v10786 = vpow.pop %v10785
  %v10787 = vmul.f32 %v10749, 1.442695
  %v10788 = vpow.pop %v10787
  %v10789 = vmul.f32 %v10750, 1.442695
  %v10790 = vpow.pop %v10789
  %v10791 = vmul.f32 %v10751, 1.442695
  %v10792 = vpow.pop %v10791
  %v10793 = vmul.f32 %v10752, 1.442695
  %v10794 = vpow.pop %v10793
  %v10795 = vmul.f32 %v10753, 1.442695
  %v10796 = vpow.pop %v10795
  %v10797 = vmul.f32 %v10754, 1.442695
  %v10798 = vpow.pop %v10797
  %v10799 = vmul.f32 %v10755, 1.442695
  %v10800 = vpow.pop %v10799
  %v10801 = vmul.f32 %v10756, 1.442695
  %v10802 = vpow.pop %v10801
  %v10803 = vmul.f32 %v10757, 1.442695
  %v10804 = vpow.pop %v10803
  %v10805 = vmul.f32 %v10758, 1.442695
  %v10806 = vpow.pop %v10805
  %v10807 = vmul.f32 %v10759, 1.442695
  %v10808 = vpow.pop %v10807
  %v10809 = vmul.f32 %v10760, 1.442695
  %v10810 = vpow.pop %v10809
  %v10811 = vmul.f32 %v10761, 1.442695
  %v10812 = vpow.pop %v10811
  %v10813 = vmul.f32 %v10762, 1.442695
  %v10814 = vpow.pop %v10813
  %v10815 = vmul.f32 %v10763, 1.442695
  %v10816 = vpow.pop %v10815
  %v10817 = vmul.f32 %v10764, 1.442695
  %v10818 = vpow.pop %v10817
  %v10819 = vmul.f32 %v10765, 1.442695
  %v10820 = vpow.pop %v10819
  %v10821 = vmul.f32 %v10766, 1.442695
  %v10822 = vpow.pop %v10821
  %v10823 = vmul.f32 %v10767, 1.442695
  %v10824 = vpow.pop %v10823
  %v10825 = vmul.f32 %v10768, 1.442695
  %v10826 = vpow.pop %v10825
  %v10827 = vmul.f32 %v10769, 1.442695
  %v10828 = vpow.pop %v10827
  %v10829 = vmul.f32 %v10770, 1.442695
  %v10830 = vpow.pop %v10829
  %v10831 = vmul.f32 %v10771, 1.442695
  %v10832 = vpow.pop %v10831
  %v10833 = vmul.f32 %v10772, 1.442695
  %v10834 = vpow.pop %v10833
  %v10835 = vmul.f32 %v10773, 1.442695
  %v10836 = vpow.pop %v10835
  %v10837 = vmul.f32 %v10774, 1.442695
  %v10838 = vpow.pop %v10837
  %v10839 = vsel %vm4014, %v10776, 0.0
  %10840 = vadd.xlane.f32.xlu0 %v10839
  %v10841 = vpop.xlane.xlu0 %10840
  %v10842 = vsel %vm4014, %v10778, 0.0
  %10843 = vadd.xlane.f32.xlu0 %v10842
  %v10844 = vpop.xlane.xlu0 %10843
  %v10845 = vsel %vm4014, %v10780, 0.0
  %10846 = vadd.xlane.f32.xlu0 %v10845
  %v10847 = vpop.xlane.xlu0 %10846
  %v10848 = vsel %vm4014, %v10782, 0.0
  %10849 = vadd.xlane.f32.xlu0 %v10848
  %v10850 = vpop.xlane.xlu0 %10849
  %v10851 = vsel %vm4014, %v10784, 0.0
  %10852 = vadd.xlane.f32.xlu0 %v10851
  %v10853 = vpop.xlane.xlu0 %10852
  %v10854 = vsel %vm4014, %v10786, 0.0
  %10855 = vadd.xlane.f32.xlu0 %v10854
  %v10856 = vpop.xlane.xlu0 %10855
  %v10857 = vsel %vm4014, %v10788, 0.0
  %10858 = vadd.xlane.f32.xlu0 %v10857
  %v10859 = vpop.xlane.xlu0 %10858
  %v10860 = vsel %vm4014, %v10790, 0.0
  %10861 = vadd.xlane.f32.xlu0 %v10860
  %v10862 = vpop.xlane.xlu0 %10861
  %v10863 = vsel %vm4014, %v10792, 0.0
  %10864 = vadd.xlane.f32.xlu0 %v10863
  %v10865 = vpop.xlane.xlu0 %10864
  %v10866 = vsel %vm4014, %v10794, 0.0
  %10867 = vadd.xlane.f32.xlu0 %v10866
  %v10868 = vpop.xlane.xlu0 %10867
  %v10869 = vsel %vm4014, %v10796, 0.0
  %10870 = vadd.xlane.f32.xlu0 %v10869
  %v10871 = vpop.xlane.xlu0 %10870
  %v10872 = vsel %vm4014, %v10798, 0.0
  %10873 = vadd.xlane.f32.xlu0 %v10872
  %v10874 = vpop.xlane.xlu0 %10873
  %v10875 = vsel %vm4014, %v10800, 0.0
  %10876 = vadd.xlane.f32.xlu0 %v10875
  %v10877 = vpop.xlane.xlu0 %10876
  %v10878 = vsel %vm4014, %v10802, 0.0
  %10879 = vadd.xlane.f32.xlu0 %v10878
  %v10880 = vpop.xlane.xlu0 %10879
  %v10881 = vsel %vm4014, %v10804, 0.0
  %10882 = vadd.xlane.f32.xlu0 %v10881
  %v10883 = vpop.xlane.xlu0 %10882
  %v10884 = vsel %vm4014, %v10806, 0.0
  %10885 = vadd.xlane.f32.xlu0 %v10884
  %v10886 = vpop.xlane.xlu0 %10885
  %v10887 = vsel %vm4014, %v10808, 0.0
  %10888 = vadd.xlane.f32.xlu0 %v10887
  %v10889 = vpop.xlane.xlu0 %10888
  %v10890 = vsel %vm4014, %v10810, 0.0
  %10891 = vadd.xlane.f32.xlu0 %v10890
  %v10892 = vpop.xlane.xlu0 %10891
  %v10893 = vsel %vm4014, %v10812, 0.0
  %10894 = vadd.xlane.f32.xlu0 %v10893
  %v10895 = vpop.xlane.xlu0 %10894
  %v10896 = vsel %vm4014, %v10814, 0.0
  %10897 = vadd.xlane.f32.xlu0 %v10896
  %v10898 = vpop.xlane.xlu0 %10897
  %v10899 = vsel %vm4014, %v10816, 0.0
  %10900 = vadd.xlane.f32.xlu0 %v10899
  %v10901 = vpop.xlane.xlu0 %10900
  %v10902 = vsel %vm4014, %v10818, 0.0
  %10903 = vadd.xlane.f32.xlu0 %v10902
  %v10904 = vpop.xlane.xlu0 %10903
  %v10905 = vsel %vm4014, %v10820, 0.0
  %10906 = vadd.xlane.f32.xlu0 %v10905
  %v10907 = vpop.xlane.xlu0 %10906
  %v10908 = vsel %vm4014, %v10822, 0.0
  %10909 = vadd.xlane.f32.xlu0 %v10908
  %v10910 = vpop.xlane.xlu0 %10909
  %v10911 = vsel %vm4014, %v10824, 0.0
  %10912 = vadd.xlane.f32.xlu0 %v10911
  %v10913 = vpop.xlane.xlu0 %10912
  %v10914 = vsel %vm4014, %v10826, 0.0
  %10915 = vadd.xlane.f32.xlu0 %v10914
  %v10916 = vpop.xlane.xlu0 %10915
  %v10917 = vsel %vm4014, %v10828, 0.0
  %10918 = vadd.xlane.f32.xlu0 %v10917
  %v10919 = vpop.xlane.xlu0 %10918
  %v10920 = vsel %vm4014, %v10830, 0.0
  %10921 = vadd.xlane.f32.xlu0 %v10920
  %v10922 = vpop.xlane.xlu0 %10921
  %v10923 = vsel %vm4014, %v10832, 0.0
  %10924 = vadd.xlane.f32.xlu0 %v10923
  %v10925 = vpop.xlane.xlu0 %10924
  %v10926 = vsel %vm4014, %v10834, 0.0
  %10927 = vadd.xlane.f32.xlu0 %v10926
  %v10928 = vpop.xlane.xlu0 %10927
  %v10929 = vsel %vm4014, %v10836, 0.0
  %10930 = vadd.xlane.f32.xlu0 %v10929
  %v10931 = vpop.xlane.xlu0 %10930
  %v10932 = vsel %vm4014, %v10838, 0.0
  %10933 = vadd.xlane.f32.xlu0 %v10932
  %v10934 = vpop.xlane.xlu0 %10933
  %10936 = vset.pattern.permute.xlu0 0
  %10937 = vperm.xlu0 %10936, %v10776
  %v10938 = vpop.permute.xlu0 %10937
  %10941 = vset.pattern.permute.xlu0 0
  %10942 = vperm.xlu0 %10941, %v10778
  %v10943 = vpop.permute.xlu0 %10942
  %10946 = vset.pattern.permute.xlu0 0
  %10947 = vperm.xlu0 %10946, %v10780
  %v10948 = vpop.permute.xlu0 %10947
  %10951 = vset.pattern.permute.xlu0 0
  %10952 = vperm.xlu0 %10951, %v10782
  %v10953 = vpop.permute.xlu0 %10952
  %10956 = vset.pattern.permute.xlu0 0
  %10957 = vperm.xlu0 %10956, %v10784
  %v10958 = vpop.permute.xlu0 %10957
  %10961 = vset.pattern.permute.xlu0 0
  %10962 = vperm.xlu0 %10961, %v10786
  %v10963 = vpop.permute.xlu0 %10962
  %10966 = vset.pattern.permute.xlu0 0
  %10967 = vperm.xlu0 %10966, %v10788
  %v10968 = vpop.permute.xlu0 %10967
  %10971 = vset.pattern.permute.xlu0 0
  %10972 = vperm.xlu0 %10971, %v10790
  %v10973 = vpop.permute.xlu0 %10972
  %10976 = vset.pattern.permute.xlu0 0
  %10977 = vperm.xlu0 %10976, %v10792
  %v10978 = vpop.permute.xlu0 %10977
  %10981 = vset.pattern.permute.xlu0 0
  %10982 = vperm.xlu0 %10981, %v10794
  %v10983 = vpop.permute.xlu0 %10982
  %10986 = vset.pattern.permute.xlu0 0
  %10987 = vperm.xlu0 %10986, %v10796
  %v10988 = vpop.permute.xlu0 %10987
  %10991 = vset.pattern.permute.xlu0 0
  %10992 = vperm.xlu0 %10991, %v10798
  %v10993 = vpop.permute.xlu0 %10992
  %10996 = vset.pattern.permute.xlu0 0
  %10997 = vperm.xlu0 %10996, %v10800
  %v10998 = vpop.permute.xlu0 %10997
  %11001 = vset.pattern.permute.xlu0 0
  %11002 = vperm.xlu0 %11001, %v10802
  %v11003 = vpop.permute.xlu0 %11002
  %11006 = vset.pattern.permute.xlu0 0
  %11007 = vperm.xlu0 %11006, %v10804
  %v11008 = vpop.permute.xlu0 %11007
  %11011 = vset.pattern.permute.xlu0 0
  %11012 = vperm.xlu0 %11011, %v10806
  %v11013 = vpop.permute.xlu0 %11012
  %11016 = vset.pattern.permute.xlu0 0
  %11017 = vperm.xlu0 %11016, %v10808
  %v11018 = vpop.permute.xlu0 %11017
  %11021 = vset.pattern.permute.xlu0 0
  %11022 = vperm.xlu0 %11021, %v10810
  %v11023 = vpop.permute.xlu0 %11022
  %11026 = vset.pattern.permute.xlu0 0
  %11027 = vperm.xlu0 %11026, %v10812
  %v11028 = vpop.permute.xlu0 %11027
  %11031 = vset.pattern.permute.xlu0 0
  %11032 = vperm.xlu0 %11031, %v10814
  %v11033 = vpop.permute.xlu0 %11032
  %11036 = vset.pattern.permute.xlu0 0
  %11037 = vperm.xlu0 %11036, %v10816
  %v11038 = vpop.permute.xlu0 %11037
  %11041 = vset.pattern.permute.xlu0 0
  %11042 = vperm.xlu0 %11041, %v10818
  %v11043 = vpop.permute.xlu0 %11042
  %11046 = vset.pattern.permute.xlu0 0
  %11047 = vperm.xlu0 %11046, %v10820
  %v11048 = vpop.permute.xlu0 %11047
  %11051 = vset.pattern.permute.xlu0 0
  %11052 = vperm.xlu0 %11051, %v10822
  %v11053 = vpop.permute.xlu0 %11052
  %11056 = vset.pattern.permute.xlu0 0
  %11057 = vperm.xlu0 %11056, %v10824
  %v11058 = vpop.permute.xlu0 %11057
  %11061 = vset.pattern.permute.xlu0 0
  %11062 = vperm.xlu0 %11061, %v10826
  %v11063 = vpop.permute.xlu0 %11062
  %11066 = vset.pattern.permute.xlu0 0
  %11067 = vperm.xlu0 %11066, %v10828
  %v11068 = vpop.permute.xlu0 %11067
  %11071 = vset.pattern.permute.xlu0 0
  %11072 = vperm.xlu0 %11071, %v10830
  %v11073 = vpop.permute.xlu0 %11072
  %11076 = vset.pattern.permute.xlu0 0
  %11077 = vperm.xlu0 %11076, %v10832
  %v11078 = vpop.permute.xlu0 %11077
  %11081 = vset.pattern.permute.xlu0 0
  %11082 = vperm.xlu0 %11081, %v10834
  %v11083 = vpop.permute.xlu0 %11082
  %11086 = vset.pattern.permute.xlu0 0
  %11087 = vperm.xlu0 %11086, %v10836
  %v11088 = vpop.permute.xlu0 %11087
  %11091 = vset.pattern.permute.xlu0 0
  %11092 = vperm.xlu0 %11091, %v10838
  %v11093 = vpop.permute.xlu0 %11092
  %v11095 = vmul.f32 %v10938, %v10463
  %v11096 = vmul.f32 %v10943, %v10465
  %v11097 = vmul.f32 %v10948, %v10468
  %v11098 = vmul.f32 %v10953, %v10470
  %v11099 = vmul.f32 %v10958, %v10473
  %v11100 = vmul.f32 %v10963, %v10475
  %v11101 = vmul.f32 %v10968, %v10478
  %v11102 = vmul.f32 %v10973, %v10480
  %v11103 = vmul.f32 %v10978, %v10483
  %v11104 = vmul.f32 %v10983, %v10485
  %v11105 = vmul.f32 %v10988, %v10488
  %v11106 = vmul.f32 %v10993, %v10490
  %v11107 = vmul.f32 %v10998, %v10493
  %v11108 = vmul.f32 %v11003, %v10495
  %v11109 = vmul.f32 %v11008, %v10498
  %v11110 = vmul.f32 %v11013, %v10500
  %v11111 = vmul.f32 %v11018, %v10503
  %v11112 = vmul.f32 %v11023, %v10505
  %v11113 = vmul.f32 %v11028, %v10508
  %v11114 = vmul.f32 %v11033, %v10510
  %v11115 = vmul.f32 %v11038, %v10513
  %v11116 = vmul.f32 %v11043, %v10515
  %v11117 = vmul.f32 %v11048, %v10518
  %v11118 = vmul.f32 %v11053, %v10520
  %v11119 = vmul.f32 %v11058, %v10523
  %v11120 = vmul.f32 %v11063, %v10525
  %v11121 = vmul.f32 %v11068, %v10528
  %v11122 = vmul.f32 %v11073, %v10530
  %v11123 = vmul.f32 %v11078, %v10533
  %v11124 = vmul.f32 %v11083, %v10535
  %v11125 = vmul.f32 %v11088, %v10538
  %v11126 = vmul.f32 %v11093, %v10540
  %11127 = vset.pattern.permute.xlu0 1
  %11128 = vperm.xlu0 %11127, %v10776
  %v11129 = vpop.permute.xlu0 %11128
  %11131 = vset.pattern.permute.xlu0 1
  %11132 = vperm.xlu0 %11131, %v10778
  %v11133 = vpop.permute.xlu0 %11132
  %11135 = vset.pattern.permute.xlu0 1
  %11136 = vperm.xlu0 %11135, %v10780
  %v11137 = vpop.permute.xlu0 %11136
  %11139 = vset.pattern.permute.xlu0 1
  %11140 = vperm.xlu0 %11139, %v10782
  %v11141 = vpop.permute.xlu0 %11140
  %11143 = vset.pattern.permute.xlu0 1
  %11144 = vperm.xlu0 %11143, %v10784
  %v11145 = vpop.permute.xlu0 %11144
  %11147 = vset.pattern.permute.xlu0 1
  %11148 = vperm.xlu0 %11147, %v10786
  %v11149 = vpop.permute.xlu0 %11148
  %11151 = vset.pattern.permute.xlu0 1
  %11152 = vperm.xlu0 %11151, %v10788
  %v11153 = vpop.permute.xlu0 %11152
  %11155 = vset.pattern.permute.xlu0 1
  %11156 = vperm.xlu0 %11155, %v10790
  %v11157 = vpop.permute.xlu0 %11156
  %11159 = vset.pattern.permute.xlu0 1
  %11160 = vperm.xlu0 %11159, %v10792
  %v11161 = vpop.permute.xlu0 %11160
  %11163 = vset.pattern.permute.xlu0 1
  %11164 = vperm.xlu0 %11163, %v10794
  %v11165 = vpop.permute.xlu0 %11164
  %11167 = vset.pattern.permute.xlu0 1
  %11168 = vperm.xlu0 %11167, %v10796
  %v11169 = vpop.permute.xlu0 %11168
  %11171 = vset.pattern.permute.xlu0 1
  %11172 = vperm.xlu0 %11171, %v10798
  %v11173 = vpop.permute.xlu0 %11172
  %11175 = vset.pattern.permute.xlu0 1
  %11176 = vperm.xlu0 %11175, %v10800
  %v11177 = vpop.permute.xlu0 %11176
  %11179 = vset.pattern.permute.xlu0 1
  %11180 = vperm.xlu0 %11179, %v10802
  %v11181 = vpop.permute.xlu0 %11180
  %11183 = vset.pattern.permute.xlu0 1
  %11184 = vperm.xlu0 %11183, %v10804
  %v11185 = vpop.permute.xlu0 %11184
  %11187 = vset.pattern.permute.xlu0 1
  %11188 = vperm.xlu0 %11187, %v10806
  %v11189 = vpop.permute.xlu0 %11188
  %11191 = vset.pattern.permute.xlu0 1
  %11192 = vperm.xlu0 %11191, %v10808
  %v11193 = vpop.permute.xlu0 %11192
  %11195 = vset.pattern.permute.xlu0 1
  %11196 = vperm.xlu0 %11195, %v10810
  %v11197 = vpop.permute.xlu0 %11196
  %11199 = vset.pattern.permute.xlu0 1
  %11200 = vperm.xlu0 %11199, %v10812
  %v11201 = vpop.permute.xlu0 %11200
  %11203 = vset.pattern.permute.xlu0 1
  %11204 = vperm.xlu0 %11203, %v10814
  %v11205 = vpop.permute.xlu0 %11204
  %11207 = vset.pattern.permute.xlu0 1
  %11208 = vperm.xlu0 %11207, %v10816
  %v11209 = vpop.permute.xlu0 %11208
  %11211 = vset.pattern.permute.xlu0 1
  %11212 = vperm.xlu0 %11211, %v10818
  %v11213 = vpop.permute.xlu0 %11212
  %11215 = vset.pattern.permute.xlu0 1
  %11216 = vperm.xlu0 %11215, %v10820
  %v11217 = vpop.permute.xlu0 %11216
  %11219 = vset.pattern.permute.xlu0 1
  %11220 = vperm.xlu0 %11219, %v10822
  %v11221 = vpop.permute.xlu0 %11220
  %11223 = vset.pattern.permute.xlu0 1
  %11224 = vperm.xlu0 %11223, %v10824
  %v11225 = vpop.permute.xlu0 %11224
  %11227 = vset.pattern.permute.xlu0 1
  %11228 = vperm.xlu0 %11227, %v10826
  %v11229 = vpop.permute.xlu0 %11228
  %11231 = vset.pattern.permute.xlu0 1
  %11232 = vperm.xlu0 %11231, %v10828
  %v11233 = vpop.permute.xlu0 %11232
  %11235 = vset.pattern.permute.xlu0 1
  %11236 = vperm.xlu0 %11235, %v10830
  %v11237 = vpop.permute.xlu0 %11236
  %11239 = vset.pattern.permute.xlu0 1
  %11240 = vperm.xlu0 %11239, %v10832
  %v11241 = vpop.permute.xlu0 %11240
  %11243 = vset.pattern.permute.xlu0 1
  %11244 = vperm.xlu0 %11243, %v10834
  %v11245 = vpop.permute.xlu0 %11244
  %11247 = vset.pattern.permute.xlu0 1
  %11248 = vperm.xlu0 %11247, %v10836
  %v11249 = vpop.permute.xlu0 %11248
  %11251 = vset.pattern.permute.xlu0 1
  %11252 = vperm.xlu0 %11251, %v10838
  %v11253 = vpop.permute.xlu0 %11252
  %v11255 = vmul.f32 %v11129, %v10463
  %v11256 = vmul.f32 %v11133, %v10465
  %v11257 = vmul.f32 %v11137, %v10468
  %v11258 = vmul.f32 %v11141, %v10470
  %v11259 = vmul.f32 %v11145, %v10473
  %v11260 = vmul.f32 %v11149, %v10475
  %v11261 = vmul.f32 %v11153, %v10478
  %v11262 = vmul.f32 %v11157, %v10480
  %v11263 = vmul.f32 %v11161, %v10483
  %v11264 = vmul.f32 %v11165, %v10485
  %v11265 = vmul.f32 %v11169, %v10488
  %v11266 = vmul.f32 %v11173, %v10490
  %v11267 = vmul.f32 %v11177, %v10493
  %v11268 = vmul.f32 %v11181, %v10495
  %v11269 = vmul.f32 %v11185, %v10498
  %v11270 = vmul.f32 %v11189, %v10500
  %v11271 = vmul.f32 %v11193, %v10503
  %v11272 = vmul.f32 %v11197, %v10505
  %v11273 = vmul.f32 %v11201, %v10508
  %v11274 = vmul.f32 %v11205, %v10510
  %v11275 = vmul.f32 %v11209, %v10513
  %v11276 = vmul.f32 %v11213, %v10515
  %v11277 = vmul.f32 %v11217, %v10518
  %v11278 = vmul.f32 %v11221, %v10520
  %v11279 = vmul.f32 %v11225, %v10523
  %v11280 = vmul.f32 %v11229, %v10525
  %v11281 = vmul.f32 %v11233, %v10528
  %v11282 = vmul.f32 %v11237, %v10530
  %v11283 = vmul.f32 %v11241, %v10533
  %v11284 = vmul.f32 %v11245, %v10535
  %v11285 = vmul.f32 %v11249, %v10538
  %v11286 = vmul.f32 %v11253, %v10540
  %11319 = vrot.lane.b32.xlu0 %v11255, 96
  %v11320 = vpop.permute.xlu0 %11319
  %11321 = vrot.lane.b32.xlu0 %v11256, 96
  %v11322 = vpop.permute.xlu0 %11321
  %11323 = vrot.lane.b32.xlu0 %v11257, 96
  %v11324 = vpop.permute.xlu0 %11323
  %11325 = vrot.lane.b32.xlu0 %v11258, 96
  %v11326 = vpop.permute.xlu0 %11325
  %11327 = vrot.lane.b32.xlu0 %v11259, 96
  %v11328 = vpop.permute.xlu0 %11327
  %11329 = vrot.lane.b32.xlu0 %v11260, 96
  %v11330 = vpop.permute.xlu0 %11329
  %11331 = vrot.lane.b32.xlu0 %v11261, 96
  %v11332 = vpop.permute.xlu0 %11331
  %11333 = vrot.lane.b32.xlu0 %v11262, 96
  %v11334 = vpop.permute.xlu0 %11333
  %11335 = vrot.lane.b32.xlu0 %v11263, 96
  %v11336 = vpop.permute.xlu0 %11335
  %11337 = vrot.lane.b32.xlu0 %v11264, 96
  %v11338 = vpop.permute.xlu0 %11337
  %11339 = vrot.lane.b32.xlu0 %v11265, 96
  %v11340 = vpop.permute.xlu0 %11339
  %11341 = vrot.lane.b32.xlu0 %v11266, 96
  %v11342 = vpop.permute.xlu0 %11341
  %11343 = vrot.lane.b32.xlu0 %v11267, 96
  %v11344 = vpop.permute.xlu0 %11343
  %11345 = vrot.lane.b32.xlu0 %v11268, 96
  %v11346 = vpop.permute.xlu0 %11345
  %11347 = vrot.lane.b32.xlu0 %v11269, 96
  %v11348 = vpop.permute.xlu0 %11347
  %11349 = vrot.lane.b32.xlu0 %v11270, 96
  %v11350 = vpop.permute.xlu0 %11349
  %11351 = vrot.lane.b32.xlu0 %v11271, 96
  %v11352 = vpop.permute.xlu0 %11351
  %11353 = vrot.lane.b32.xlu0 %v11272, 96
  %v11354 = vpop.permute.xlu0 %11353
  %11355 = vrot.lane.b32.xlu0 %v11273, 96
  %v11356 = vpop.permute.xlu0 %11355
  %11357 = vrot.lane.b32.xlu0 %v11274, 96
  %v11358 = vpop.permute.xlu0 %11357
  %11359 = vrot.lane.b32.xlu0 %v11275, 96
  %v11360 = vpop.permute.xlu0 %11359
  %11361 = vrot.lane.b32.xlu0 %v11276, 96
  %v11362 = vpop.permute.xlu0 %11361
  %11363 = vrot.lane.b32.xlu0 %v11277, 96
  %v11364 = vpop.permute.xlu0 %11363
  %11365 = vrot.lane.b32.xlu0 %v11278, 96
  %v11366 = vpop.permute.xlu0 %11365
  %11367 = vrot.lane.b32.xlu0 %v11279, 96
  %v11368 = vpop.permute.xlu0 %11367
  %11369 = vrot.lane.b32.xlu0 %v11280, 96
  %v11370 = vpop.permute.xlu0 %11369
  %11371 = vrot.lane.b32.xlu0 %v11281, 96
  %v11372 = vpop.permute.xlu0 %11371
  %11373 = vrot.lane.b32.xlu0 %v11282, 96
  %v11374 = vpop.permute.xlu0 %11373
  %11375 = vrot.lane.b32.xlu0 %v11283, 96
  %v11376 = vpop.permute.xlu0 %11375
  %11377 = vrot.lane.b32.xlu0 %v11284, 96
  %v11378 = vpop.permute.xlu0 %11377
  %11379 = vrot.lane.b32.xlu0 %v11285, 96
  %v11380 = vpop.permute.xlu0 %11379
  %11381 = vrot.lane.b32.xlu0 %v11286, 96
  %v11382 = vpop.permute.xlu0 %11381
  %v11415 = vadd.f32 %v11095, %v11320
  %v11416 = vadd.f32 %v11096, %v11322
  %v11417 = vadd.f32 %v11097, %v11324
  %v11418 = vadd.f32 %v11098, %v11326
  %v11419 = vadd.f32 %v11099, %v11328
  %v11420 = vadd.f32 %v11100, %v11330
  %v11421 = vadd.f32 %v11101, %v11332
  %v11422 = vadd.f32 %v11102, %v11334
  %v11423 = vadd.f32 %v11103, %v11336
  %v11424 = vadd.f32 %v11104, %v11338
  %v11425 = vadd.f32 %v11105, %v11340
  %v11426 = vadd.f32 %v11106, %v11342
  %v11427 = vadd.f32 %v11107, %v11344
  %v11428 = vadd.f32 %v11108, %v11346
  %v11429 = vadd.f32 %v11109, %v11348
  %v11430 = vadd.f32 %v11110, %v11350
  %v11431 = vadd.f32 %v11111, %v11352
  %v11432 = vadd.f32 %v11112, %v11354
  %v11433 = vadd.f32 %v11113, %v11356
  %v11434 = vadd.f32 %v11114, %v11358
  %v11435 = vadd.f32 %v11115, %v11360
  %v11436 = vadd.f32 %v11116, %v11362
  %v11437 = vadd.f32 %v11117, %v11364
  %v11438 = vadd.f32 %v11118, %v11366
  %v11439 = vadd.f32 %v11119, %v11368
  %v11440 = vadd.f32 %v11120, %v11370
  %v11441 = vadd.f32 %v11121, %v11372
  %v11442 = vadd.f32 %v11122, %v11374
  %v11443 = vadd.f32 %v11123, %v11376
  %v11444 = vadd.f32 %v11124, %v11378
  %v11445 = vadd.f32 %v11125, %v11380
  %v11446 = vadd.f32 %v11126, %v11382
  %11447 = vset.pattern.permute.xlu0 2
  %11448 = vperm.xlu0 %11447, %v10776
  %v11449 = vpop.permute.xlu0 %11448
  %11451 = vset.pattern.permute.xlu0 2
  %11452 = vperm.xlu0 %11451, %v10778
  %v11453 = vpop.permute.xlu0 %11452
  %11455 = vset.pattern.permute.xlu0 2
  %11456 = vperm.xlu0 %11455, %v10780
  %v11457 = vpop.permute.xlu0 %11456
  %11459 = vset.pattern.permute.xlu0 2
  %11460 = vperm.xlu0 %11459, %v10782
  %v11461 = vpop.permute.xlu0 %11460
  %11463 = vset.pattern.permute.xlu0 2
  %11464 = vperm.xlu0 %11463, %v10784
  %v11465 = vpop.permute.xlu0 %11464
  %11467 = vset.pattern.permute.xlu0 2
  %11468 = vperm.xlu0 %11467, %v10786
  %v11469 = vpop.permute.xlu0 %11468
  %11471 = vset.pattern.permute.xlu0 2
  %11472 = vperm.xlu0 %11471, %v10788
  %v11473 = vpop.permute.xlu0 %11472
  %11475 = vset.pattern.permute.xlu0 2
  %11476 = vperm.xlu0 %11475, %v10790
  %v11477 = vpop.permute.xlu0 %11476
  %11479 = vset.pattern.permute.xlu0 2
  %11480 = vperm.xlu0 %11479, %v10792
  %v11481 = vpop.permute.xlu0 %11480
  %11483 = vset.pattern.permute.xlu0 2
  %11484 = vperm.xlu0 %11483, %v10794
  %v11485 = vpop.permute.xlu0 %11484
  %11487 = vset.pattern.permute.xlu0 2
  %11488 = vperm.xlu0 %11487, %v10796
  %v11489 = vpop.permute.xlu0 %11488
  %11491 = vset.pattern.permute.xlu0 2
  %11492 = vperm.xlu0 %11491, %v10798
  %v11493 = vpop.permute.xlu0 %11492
  %11495 = vset.pattern.permute.xlu0 2
  %11496 = vperm.xlu0 %11495, %v10800
  %v11497 = vpop.permute.xlu0 %11496
  %11499 = vset.pattern.permute.xlu0 2
  %11500 = vperm.xlu0 %11499, %v10802
  %v11501 = vpop.permute.xlu0 %11500
  %11503 = vset.pattern.permute.xlu0 2
  %11504 = vperm.xlu0 %11503, %v10804
  %v11505 = vpop.permute.xlu0 %11504
  %11507 = vset.pattern.permute.xlu0 2
  %11508 = vperm.xlu0 %11507, %v10806
  %v11509 = vpop.permute.xlu0 %11508
  %11511 = vset.pattern.permute.xlu0 2
  %11512 = vperm.xlu0 %11511, %v10808
  %v11513 = vpop.permute.xlu0 %11512
  %11515 = vset.pattern.permute.xlu0 2
  %11516 = vperm.xlu0 %11515, %v10810
  %v11517 = vpop.permute.xlu0 %11516
  %11519 = vset.pattern.permute.xlu0 2
  %11520 = vperm.xlu0 %11519, %v10812
  %v11521 = vpop.permute.xlu0 %11520
  %11523 = vset.pattern.permute.xlu0 2
  %11524 = vperm.xlu0 %11523, %v10814
  %v11525 = vpop.permute.xlu0 %11524
  %11527 = vset.pattern.permute.xlu0 2
  %11528 = vperm.xlu0 %11527, %v10816
  %v11529 = vpop.permute.xlu0 %11528
  %11531 = vset.pattern.permute.xlu0 2
  %11532 = vperm.xlu0 %11531, %v10818
  %v11533 = vpop.permute.xlu0 %11532
  %11535 = vset.pattern.permute.xlu0 2
  %11536 = vperm.xlu0 %11535, %v10820
  %v11537 = vpop.permute.xlu0 %11536
  %11539 = vset.pattern.permute.xlu0 2
  %11540 = vperm.xlu0 %11539, %v10822
  %v11541 = vpop.permute.xlu0 %11540
  %11543 = vset.pattern.permute.xlu0 2
  %11544 = vperm.xlu0 %11543, %v10824
  %v11545 = vpop.permute.xlu0 %11544
  %11547 = vset.pattern.permute.xlu0 2
  %11548 = vperm.xlu0 %11547, %v10826
  %v11549 = vpop.permute.xlu0 %11548
  %11551 = vset.pattern.permute.xlu0 2
  %11552 = vperm.xlu0 %11551, %v10828
  %v11553 = vpop.permute.xlu0 %11552
  %11555 = vset.pattern.permute.xlu0 2
  %11556 = vperm.xlu0 %11555, %v10830
  %v11557 = vpop.permute.xlu0 %11556
  %11559 = vset.pattern.permute.xlu0 2
  %11560 = vperm.xlu0 %11559, %v10832
  %v11561 = vpop.permute.xlu0 %11560
  %11563 = vset.pattern.permute.xlu0 2
  %11564 = vperm.xlu0 %11563, %v10834
  %v11565 = vpop.permute.xlu0 %11564
  %11567 = vset.pattern.permute.xlu0 2
  %11568 = vperm.xlu0 %11567, %v10836
  %v11569 = vpop.permute.xlu0 %11568
  %11571 = vset.pattern.permute.xlu0 2
  %11572 = vperm.xlu0 %11571, %v10838
  %v11573 = vpop.permute.xlu0 %11572
  %v11575 = vmul.f32 %v11449, %v10463
  %v11576 = vmul.f32 %v11453, %v10465
  %v11577 = vmul.f32 %v11457, %v10468
  %v11578 = vmul.f32 %v11461, %v10470
  %v11579 = vmul.f32 %v11465, %v10473
  %v11580 = vmul.f32 %v11469, %v10475
  %v11581 = vmul.f32 %v11473, %v10478
  %v11582 = vmul.f32 %v11477, %v10480
  %v11583 = vmul.f32 %v11481, %v10483
  %v11584 = vmul.f32 %v11485, %v10485
  %v11585 = vmul.f32 %v11489, %v10488
  %v11586 = vmul.f32 %v11493, %v10490
  %v11587 = vmul.f32 %v11497, %v10493
  %v11588 = vmul.f32 %v11501, %v10495
  %v11589 = vmul.f32 %v11505, %v10498
  %v11590 = vmul.f32 %v11509, %v10500
  %v11591 = vmul.f32 %v11513, %v10503
  %v11592 = vmul.f32 %v11517, %v10505
  %v11593 = vmul.f32 %v11521, %v10508
  %v11594 = vmul.f32 %v11525, %v10510
  %v11595 = vmul.f32 %v11529, %v10513
  %v11596 = vmul.f32 %v11533, %v10515
  %v11597 = vmul.f32 %v11537, %v10518
  %v11598 = vmul.f32 %v11541, %v10520
  %v11599 = vmul.f32 %v11545, %v10523
  %v11600 = vmul.f32 %v11549, %v10525
  %v11601 = vmul.f32 %v11553, %v10528
  %v11602 = vmul.f32 %v11557, %v10530
  %v11603 = vmul.f32 %v11561, %v10533
  %v11604 = vmul.f32 %v11565, %v10535
  %v11605 = vmul.f32 %v11569, %v10538
  %v11606 = vmul.f32 %v11573, %v10540
  %11639 = vrot.lane.b32.xlu0 %v11575, 64
  %v11640 = vpop.permute.xlu0 %11639
  %11641 = vrot.lane.b32.xlu0 %v11576, 64
  %v11642 = vpop.permute.xlu0 %11641
  %11643 = vrot.lane.b32.xlu0 %v11577, 64
  %v11644 = vpop.permute.xlu0 %11643
  %11645 = vrot.lane.b32.xlu0 %v11578, 64
  %v11646 = vpop.permute.xlu0 %11645
  %11647 = vrot.lane.b32.xlu0 %v11579, 64
  %v11648 = vpop.permute.xlu0 %11647
  %11649 = vrot.lane.b32.xlu0 %v11580, 64
  %v11650 = vpop.permute.xlu0 %11649
  %11651 = vrot.lane.b32.xlu0 %v11581, 64
  %v11652 = vpop.permute.xlu0 %11651
  %11653 = vrot.lane.b32.xlu0 %v11582, 64
  %v11654 = vpop.permute.xlu0 %11653
  %11655 = vrot.lane.b32.xlu0 %v11583, 64
  %v11656 = vpop.permute.xlu0 %11655
  %11657 = vrot.lane.b32.xlu0 %v11584, 64
  %v11658 = vpop.permute.xlu0 %11657
  %11659 = vrot.lane.b32.xlu0 %v11585, 64
  %v11660 = vpop.permute.xlu0 %11659
  %11661 = vrot.lane.b32.xlu0 %v11586, 64
  %v11662 = vpop.permute.xlu0 %11661
  %11663 = vrot.lane.b32.xlu0 %v11587, 64
  %v11664 = vpop.permute.xlu0 %11663
  %11665 = vrot.lane.b32.xlu0 %v11588, 64
  %v11666 = vpop.permute.xlu0 %11665
  %11667 = vrot.lane.b32.xlu0 %v11589, 64
  %v11668 = vpop.permute.xlu0 %11667
  %11669 = vrot.lane.b32.xlu0 %v11590, 64
  %v11670 = vpop.permute.xlu0 %11669
  %11671 = vrot.lane.b32.xlu0 %v11591, 64
  %v11672 = vpop.permute.xlu0 %11671
  %11673 = vrot.lane.b32.xlu0 %v11592, 64
  %v11674 = vpop.permute.xlu0 %11673
  %11675 = vrot.lane.b32.xlu0 %v11593, 64
  %v11676 = vpop.permute.xlu0 %11675
  %11677 = vrot.lane.b32.xlu0 %v11594, 64
  %v11678 = vpop.permute.xlu0 %11677
  %11679 = vrot.lane.b32.xlu0 %v11595, 64
  %v11680 = vpop.permute.xlu0 %11679
  %11681 = vrot.lane.b32.xlu0 %v11596, 64
  %v11682 = vpop.permute.xlu0 %11681
  %11683 = vrot.lane.b32.xlu0 %v11597, 64
  %v11684 = vpop.permute.xlu0 %11683
  %11685 = vrot.lane.b32.xlu0 %v11598, 64
  %v11686 = vpop.permute.xlu0 %11685
  %11687 = vrot.lane.b32.xlu0 %v11599, 64
  %v11688 = vpop.permute.xlu0 %11687
  %11689 = vrot.lane.b32.xlu0 %v11600, 64
  %v11690 = vpop.permute.xlu0 %11689
  %11691 = vrot.lane.b32.xlu0 %v11601, 64
  %v11692 = vpop.permute.xlu0 %11691
  %11693 = vrot.lane.b32.xlu0 %v11602, 64
  %v11694 = vpop.permute.xlu0 %11693
  %11695 = vrot.lane.b32.xlu0 %v11603, 64
  %v11696 = vpop.permute.xlu0 %11695
  %11697 = vrot.lane.b32.xlu0 %v11604, 64
  %v11698 = vpop.permute.xlu0 %11697
  %11699 = vrot.lane.b32.xlu0 %v11605, 64
  %v11700 = vpop.permute.xlu0 %11699
  %11701 = vrot.lane.b32.xlu0 %v11606, 64
  %v11702 = vpop.permute.xlu0 %11701
  %v11735 = vadd.f32 %v11415, %v11640
  %v11736 = vadd.f32 %v11416, %v11642
  %v11737 = vadd.f32 %v11417, %v11644
  %v11738 = vadd.f32 %v11418, %v11646
  %v11739 = vadd.f32 %v11419, %v11648
  %v11740 = vadd.f32 %v11420, %v11650
  %v11741 = vadd.f32 %v11421, %v11652
  %v11742 = vadd.f32 %v11422, %v11654
  %v11743 = vadd.f32 %v11423, %v11656
  %v11744 = vadd.f32 %v11424, %v11658
  %v11745 = vadd.f32 %v11425, %v11660
  %v11746 = vadd.f32 %v11426, %v11662
  %v11747 = vadd.f32 %v11427, %v11664
  %v11748 = vadd.f32 %v11428, %v11666
  %v11749 = vadd.f32 %v11429, %v11668
  %v11750 = vadd.f32 %v11430, %v11670
  %v11751 = vadd.f32 %v11431, %v11672
  %v11752 = vadd.f32 %v11432, %v11674
  %v11753 = vadd.f32 %v11433, %v11676
  %v11754 = vadd.f32 %v11434, %v11678
  %v11755 = vadd.f32 %v11435, %v11680
  %v11756 = vadd.f32 %v11436, %v11682
  %v11757 = vadd.f32 %v11437, %v11684
  %v11758 = vadd.f32 %v11438, %v11686
  %v11759 = vadd.f32 %v11439, %v11688
  %v11760 = vadd.f32 %v11440, %v11690
  %v11761 = vadd.f32 %v11441, %v11692
  %v11762 = vadd.f32 %v11442, %v11694
  %v11763 = vadd.f32 %v11443, %v11696
  %v11764 = vadd.f32 %v11444, %v11698
  %v11765 = vadd.f32 %v11445, %v11700
  %v11766 = vadd.f32 %v11446, %v11702
  %11767 = vset.pattern.permute.xlu0 3
  %11768 = vperm.xlu0 %11767, %v10776
  %v11769 = vpop.permute.xlu0 %11768
  %11771 = vset.pattern.permute.xlu0 3
  %11772 = vperm.xlu0 %11771, %v10778
  %v11773 = vpop.permute.xlu0 %11772
  %11775 = vset.pattern.permute.xlu0 3
  %11776 = vperm.xlu0 %11775, %v10780
  %v11777 = vpop.permute.xlu0 %11776
  %11779 = vset.pattern.permute.xlu0 3
  %11780 = vperm.xlu0 %11779, %v10782
  %v11781 = vpop.permute.xlu0 %11780
  %11783 = vset.pattern.permute.xlu0 3
  %11784 = vperm.xlu0 %11783, %v10784
  %v11785 = vpop.permute.xlu0 %11784
  %11787 = vset.pattern.permute.xlu0 3
  %11788 = vperm.xlu0 %11787, %v10786
  %v11789 = vpop.permute.xlu0 %11788
  %11791 = vset.pattern.permute.xlu0 3
  %11792 = vperm.xlu0 %11791, %v10788
  %v11793 = vpop.permute.xlu0 %11792
  %11795 = vset.pattern.permute.xlu0 3
  %11796 = vperm.xlu0 %11795, %v10790
  %v11797 = vpop.permute.xlu0 %11796
  %11799 = vset.pattern.permute.xlu0 3
  %11800 = vperm.xlu0 %11799, %v10792
  %v11801 = vpop.permute.xlu0 %11800
  %11803 = vset.pattern.permute.xlu0 3
  %11804 = vperm.xlu0 %11803, %v10794
  %v11805 = vpop.permute.xlu0 %11804
  %11807 = vset.pattern.permute.xlu0 3
  %11808 = vperm.xlu0 %11807, %v10796
  %v11809 = vpop.permute.xlu0 %11808
  %11811 = vset.pattern.permute.xlu0 3
  %11812 = vperm.xlu0 %11811, %v10798
  %v11813 = vpop.permute.xlu0 %11812
  %11815 = vset.pattern.permute.xlu0 3
  %11816 = vperm.xlu0 %11815, %v10800
  %v11817 = vpop.permute.xlu0 %11816
  %11819 = vset.pattern.permute.xlu0 3
  %11820 = vperm.xlu0 %11819, %v10802
  %v11821 = vpop.permute.xlu0 %11820
  %11823 = vset.pattern.permute.xlu0 3
  %11824 = vperm.xlu0 %11823, %v10804
  %v11825 = vpop.permute.xlu0 %11824
  %11827 = vset.pattern.permute.xlu0 3
  %11828 = vperm.xlu0 %11827, %v10806
  %v11829 = vpop.permute.xlu0 %11828
  %11831 = vset.pattern.permute.xlu0 3
  %11832 = vperm.xlu0 %11831, %v10808
  %v11833 = vpop.permute.xlu0 %11832
  %11835 = vset.pattern.permute.xlu0 3
  %11836 = vperm.xlu0 %11835, %v10810
  %v11837 = vpop.permute.xlu0 %11836
  %11839 = vset.pattern.permute.xlu0 3
  %11840 = vperm.xlu0 %11839, %v10812
  %v11841 = vpop.permute.xlu0 %11840
  %11843 = vset.pattern.permute.xlu0 3
  %11844 = vperm.xlu0 %11843, %v10814
  %v11845 = vpop.permute.xlu0 %11844
  %11847 = vset.pattern.permute.xlu0 3
  %11848 = vperm.xlu0 %11847, %v10816
  %v11849 = vpop.permute.xlu0 %11848
  %11851 = vset.pattern.permute.xlu0 3
  %11852 = vperm.xlu0 %11851, %v10818
  %v11853 = vpop.permute.xlu0 %11852
  %11855 = vset.pattern.permute.xlu0 3
  %11856 = vperm.xlu0 %11855, %v10820
  %v11857 = vpop.permute.xlu0 %11856
  %11859 = vset.pattern.permute.xlu0 3
  %11860 = vperm.xlu0 %11859, %v10822
  %v11861 = vpop.permute.xlu0 %11860
  %11863 = vset.pattern.permute.xlu0 3
  %11864 = vperm.xlu0 %11863, %v10824
  %v11865 = vpop.permute.xlu0 %11864
  %11867 = vset.pattern.permute.xlu0 3
  %11868 = vperm.xlu0 %11867, %v10826
  %v11869 = vpop.permute.xlu0 %11868
  %11871 = vset.pattern.permute.xlu0 3
  %11872 = vperm.xlu0 %11871, %v10828
  %v11873 = vpop.permute.xlu0 %11872
  %11875 = vset.pattern.permute.xlu0 3
  %11876 = vperm.xlu0 %11875, %v10830
  %v11877 = vpop.permute.xlu0 %11876
  %11879 = vset.pattern.permute.xlu0 3
  %11880 = vperm.xlu0 %11879, %v10832
  %v11881 = vpop.permute.xlu0 %11880
  %11883 = vset.pattern.permute.xlu0 3
  %11884 = vperm.xlu0 %11883, %v10834
  %v11885 = vpop.permute.xlu0 %11884
  %11887 = vset.pattern.permute.xlu0 3
  %11888 = vperm.xlu0 %11887, %v10836
  %v11889 = vpop.permute.xlu0 %11888
  %11891 = vset.pattern.permute.xlu0 3
  %11892 = vperm.xlu0 %11891, %v10838
  %v11893 = vpop.permute.xlu0 %11892
  %v11895 = vmul.f32 %v11769, %v10463
  %v11896 = vmul.f32 %v11773, %v10465
  %v11897 = vmul.f32 %v11777, %v10468
  %v11898 = vmul.f32 %v11781, %v10470
  %v11899 = vmul.f32 %v11785, %v10473
  %v11900 = vmul.f32 %v11789, %v10475
  %v11901 = vmul.f32 %v11793, %v10478
  %v11902 = vmul.f32 %v11797, %v10480
  %v11903 = vmul.f32 %v11801, %v10483
  %v11904 = vmul.f32 %v11805, %v10485
  %v11905 = vmul.f32 %v11809, %v10488
  %v11906 = vmul.f32 %v11813, %v10490
  %v11907 = vmul.f32 %v11817, %v10493
  %v11908 = vmul.f32 %v11821, %v10495
  %v11909 = vmul.f32 %v11825, %v10498
  %v11910 = vmul.f32 %v11829, %v10500
  %v11911 = vmul.f32 %v11833, %v10503
  %v11912 = vmul.f32 %v11837, %v10505
  %v11913 = vmul.f32 %v11841, %v10508
  %v11914 = vmul.f32 %v11845, %v10510
  %v11915 = vmul.f32 %v11849, %v10513
  %v11916 = vmul.f32 %v11853, %v10515
  %v11917 = vmul.f32 %v11857, %v10518
  %v11918 = vmul.f32 %v11861, %v10520
  %v11919 = vmul.f32 %v11865, %v10523
  %v11920 = vmul.f32 %v11869, %v10525
  %v11921 = vmul.f32 %v11873, %v10528
  %v11922 = vmul.f32 %v11877, %v10530
  %v11923 = vmul.f32 %v11881, %v10533
  %v11924 = vmul.f32 %v11885, %v10535
  %v11925 = vmul.f32 %v11889, %v10538
  %v11926 = vmul.f32 %v11893, %v10540
  %11959 = vrot.lane.b32.xlu0 %v11895, 32
  %v11960 = vpop.permute.xlu0 %11959
  %11961 = vrot.lane.b32.xlu0 %v11896, 32
  %v11962 = vpop.permute.xlu0 %11961
  %11963 = vrot.lane.b32.xlu0 %v11897, 32
  %v11964 = vpop.permute.xlu0 %11963
  %11965 = vrot.lane.b32.xlu0 %v11898, 32
  %v11966 = vpop.permute.xlu0 %11965
  %11967 = vrot.lane.b32.xlu0 %v11899, 32
  %v11968 = vpop.permute.xlu0 %11967
  %11969 = vrot.lane.b32.xlu0 %v11900, 32
  %v11970 = vpop.permute.xlu0 %11969
  %11971 = vrot.lane.b32.xlu0 %v11901, 32
  %v11972 = vpop.permute.xlu0 %11971
  %11973 = vrot.lane.b32.xlu0 %v11902, 32
  %v11974 = vpop.permute.xlu0 %11973
  %11975 = vrot.lane.b32.xlu0 %v11903, 32
  %v11976 = vpop.permute.xlu0 %11975
  %11977 = vrot.lane.b32.xlu0 %v11904, 32
  %v11978 = vpop.permute.xlu0 %11977
  %11979 = vrot.lane.b32.xlu0 %v11905, 32
  %v11980 = vpop.permute.xlu0 %11979
  %11981 = vrot.lane.b32.xlu0 %v11906, 32
  %v11982 = vpop.permute.xlu0 %11981
  %11983 = vrot.lane.b32.xlu0 %v11907, 32
  %v11984 = vpop.permute.xlu0 %11983
  %11985 = vrot.lane.b32.xlu0 %v11908, 32
  %v11986 = vpop.permute.xlu0 %11985
  %11987 = vrot.lane.b32.xlu0 %v11909, 32
  %v11988 = vpop.permute.xlu0 %11987
  %11989 = vrot.lane.b32.xlu0 %v11910, 32
  %v11990 = vpop.permute.xlu0 %11989
  %11991 = vrot.lane.b32.xlu0 %v11911, 32
  %v11992 = vpop.permute.xlu0 %11991
  %11993 = vrot.lane.b32.xlu0 %v11912, 32
  %v11994 = vpop.permute.xlu0 %11993
  %11995 = vrot.lane.b32.xlu0 %v11913, 32
  %v11996 = vpop.permute.xlu0 %11995
  %11997 = vrot.lane.b32.xlu0 %v11914, 32
  %v11998 = vpop.permute.xlu0 %11997
  %11999 = vrot.lane.b32.xlu0 %v11915, 32
  %v12000 = vpop.permute.xlu0 %11999
  %12001 = vrot.lane.b32.xlu0 %v11916, 32
  %v12002 = vpop.permute.xlu0 %12001
  %12003 = vrot.lane.b32.xlu0 %v11917, 32
  %v12004 = vpop.permute.xlu0 %12003
  %12005 = vrot.lane.b32.xlu0 %v11918, 32
  %v12006 = vpop.permute.xlu0 %12005
  %12007 = vrot.lane.b32.xlu0 %v11919, 32
  %v12008 = vpop.permute.xlu0 %12007
  %12009 = vrot.lane.b32.xlu0 %v11920, 32
  %v12010 = vpop.permute.xlu0 %12009
  %12011 = vrot.lane.b32.xlu0 %v11921, 32
  %v12012 = vpop.permute.xlu0 %12011
  %12013 = vrot.lane.b32.xlu0 %v11922, 32
  %v12014 = vpop.permute.xlu0 %12013
  %12015 = vrot.lane.b32.xlu0 %v11923, 32
  %v12016 = vpop.permute.xlu0 %12015
  %12017 = vrot.lane.b32.xlu0 %v11924, 32
  %v12018 = vpop.permute.xlu0 %12017
  %12019 = vrot.lane.b32.xlu0 %v11925, 32
  %v12020 = vpop.permute.xlu0 %12019
  %12021 = vrot.lane.b32.xlu0 %v11926, 32
  %v12022 = vpop.permute.xlu0 %12021
  %v12055 = vadd.f32 %v11735, %v11960
  %v12056 = vadd.f32 %v11736, %v11962
  %v12057 = vadd.f32 %v11737, %v11964
  %v12058 = vadd.f32 %v11738, %v11966
  %v12059 = vadd.f32 %v11739, %v11968
  %v12060 = vadd.f32 %v11740, %v11970
  %v12061 = vadd.f32 %v11741, %v11972
  %v12062 = vadd.f32 %v11742, %v11974
  %v12063 = vadd.f32 %v11743, %v11976
  %v12064 = vadd.f32 %v11744, %v11978
  %v12065 = vadd.f32 %v11745, %v11980
  %v12066 = vadd.f32 %v11746, %v11982
  %v12067 = vadd.f32 %v11747, %v11984
  %v12068 = vadd.f32 %v11748, %v11986
  %v12069 = vadd.f32 %v11749, %v11988
  %v12070 = vadd.f32 %v11750, %v11990
  %v12071 = vadd.f32 %v11751, %v11992
  %v12072 = vadd.f32 %v11752, %v11994
  %v12073 = vadd.f32 %v11753, %v11996
  %v12074 = vadd.f32 %v11754, %v11998
  %v12075 = vadd.f32 %v11755, %v12000
  %v12076 = vadd.f32 %v11756, %v12002
  %v12077 = vadd.f32 %v11757, %v12004
  %v12078 = vadd.f32 %v11758, %v12006
  %v12079 = vadd.f32 %v11759, %v12008
  %v12080 = vadd.f32 %v11760, %v12010
  %v12081 = vadd.f32 %v11761, %v12012
  %v12082 = vadd.f32 %v11762, %v12014
  %v12083 = vadd.f32 %v11763, %v12016
  %v12084 = vadd.f32 %v11764, %v12018
  %v12085 = vadd.f32 %v11765, %v12020
  %v12086 = vadd.f32 %v11766, %v12022
  %v12087 = vrcp.pop %v10841
  %v12088 = vrcp.pop %v10844
  %v12089 = vrcp.pop %v10847
  %v12090 = vrcp.pop %v10850
  %v12091 = vrcp.pop %v10853
  %v12092 = vrcp.pop %v10856
  %v12093 = vrcp.pop %v10859
  %v12094 = vrcp.pop %v10862
  %v12095 = vrcp.pop %v10865
  %v12096 = vrcp.pop %v10868
  %v12097 = vrcp.pop %v10871
  %v12098 = vrcp.pop %v10874
  %v12099 = vrcp.pop %v10877
  %v12100 = vrcp.pop %v10880
  %v12101 = vrcp.pop %v10883
  %v12102 = vrcp.pop %v10886
  %v12103 = vrcp.pop %v10889
  %v12104 = vrcp.pop %v10892
  %v12105 = vrcp.pop %v10895
  %v12106 = vrcp.pop %v10898
  %v12107 = vrcp.pop %v10901
  %v12108 = vrcp.pop %v10904
  %v12109 = vrcp.pop %v10907
  %v12110 = vrcp.pop %v10910
  %v12111 = vrcp.pop %v10913
  %v12112 = vrcp.pop %v10916
  %v12113 = vrcp.pop %v10919
  %v12114 = vrcp.pop %v10922
  %v12115 = vrcp.pop %v10925
  %v12116 = vrcp.pop %v10928
  %v12117 = vrcp.pop %v10931
  %v12118 = vrcp.pop %v10934
  %v12119 = vmul.f32 %v12055, %v12087
  %v12120 = vmul.f32 %v12056, %v12088
  %v12121 = vmul.f32 %v12057, %v12089
  %v12122 = vmul.f32 %v12058, %v12090
  %v12123 = vmul.f32 %v12059, %v12091
  %v12124 = vmul.f32 %v12060, %v12092
  %v12125 = vmul.f32 %v12061, %v12093
  %v12126 = vmul.f32 %v12062, %v12094
  %v12127 = vmul.f32 %v12063, %v12095
  %v12128 = vmul.f32 %v12064, %v12096
  %v12129 = vmul.f32 %v12065, %v12097
  %v12130 = vmul.f32 %v12066, %v12098
  %v12131 = vmul.f32 %v12067, %v12099
  %v12132 = vmul.f32 %v12068, %v12100
  %v12133 = vmul.f32 %v12069, %v12101
  %v12134 = vmul.f32 %v12070, %v12102
  %v12135 = vmul.f32 %v12071, %v12103
  %v12136 = vmul.f32 %v12072, %v12104
  %v12137 = vmul.f32 %v12073, %v12105
  %v12138 = vmul.f32 %v12074, %v12106
  %v12139 = vmul.f32 %v12075, %v12107
  %v12140 = vmul.f32 %v12076, %v12108
  %v12141 = vmul.f32 %v12077, %v12109
  %v12142 = vmul.f32 %v12078, %v12110
  %v12143 = vmul.f32 %v12079, %v12111
  %v12144 = vmul.f32 %v12080, %v12112
  %v12145 = vmul.f32 %v12081, %v12113
  %v12146 = vmul.f32 %v12082, %v12114
  %v12147 = vmul.f32 %v12083, %v12115
  %v12148 = vmul.f32 %v12084, %v12116
  %v12149 = vmul.f32 %v12085, %v12117
  %v12150 = vmul.f32 %v12086, %v12118
  %v12151 = vpack.c.bf16 %v12120, %v12119
  %v12152 = vpack.c.bf16 %v12122, %v12121
  %v12153 = vpack.c.bf16 %v12124, %v12123
  %v12154 = vpack.c.bf16 %v12126, %v12125
  %v12155 = vpack.c.bf16 %v12128, %v12127
  %v12156 = vpack.c.bf16 %v12130, %v12129
  %v12157 = vpack.c.bf16 %v12132, %v12131
  %v12158 = vpack.c.bf16 %v12134, %v12133
  %v12159 = vpack.c.bf16 %v12136, %v12135
  %v12160 = vpack.c.bf16 %v12138, %v12137
  %v12161 = vpack.c.bf16 %v12140, %v12139
  %v12162 = vpack.c.bf16 %v12142, %v12141
  %v12163 = vpack.c.bf16 %v12144, %v12143
  %v12164 = vpack.c.bf16 %v12146, %v12145
  %v12165 = vpack.c.bf16 %v12148, %v12147
  %v12166 = vpack.c.bf16 %v12150, %v12149
  %12167 = vmatpush.bf16.msra.mxu0 0
  %12168 = vmatpush.bf16.msra.mxu0 0
  %12169 = vmatpush.bf16.msra.mxu0 0
  %12170 = vmatpush.bf16.msra.mxu0 0
  %12171 = vmatpush.bf16.msra.mxu0 0
  %12172 = vmatpush.bf16.msra.mxu0 0
  %12173 = vmatpush.bf16.msra.mxu0 %v5547
  %12174 = vmatpush.bf16.msra.mxu0 %v5546
  %12175 = vmatmul.bf16.gmra.mxu0 %v7570
  %v12176 = vpop.f32.mrf.mxu0
  %v12177 = vadd.f32 %v5536, %v12176
  %v12178 = vpop.f32.mrf.mxu0
  %v12179 = vadd.f32 %v5536, %v12178
  %12180 = vmatmul.bf16.gmra.mxu0 %v7573
  %v12181 = vpop.f32.mrf.mxu0
  %v12182 = vadd.f32 %v5536, %v12181
  %v12183 = vpop.f32.mrf.mxu0
  %v12184 = vadd.f32 %v5536, %v12183
  %12185 = vmatmul.bf16.gmra.mxu0 %v7576
  %v12186 = vpop.f32.mrf.mxu0
  %v12187 = vadd.f32 %v5536, %v12186
  %v12188 = vpop.f32.mrf.mxu0
  %v12189 = vadd.f32 %v5536, %v12188
  %12190 = vmatmul.bf16.gmra.mxu0 %v7579
  %v12191 = vpop.f32.mrf.mxu0
  %v12192 = vadd.f32 %v5536, %v12191
  %v12193 = vpop.f32.mrf.mxu0
  %v12194 = vadd.f32 %v5536, %v12193
  %12195 = vdwg.mxu0
  %v12196 = vpack.c.bf16 %v12179, %v12177
  %v12197 = vpack.c.bf16 %v12184, %v12182
  %v12198 = vpack.c.bf16 %v12189, %v12187
  %v12199 = vpack.c.bf16 %v12194, %v12192
  %v12201 = vsel %vm380, %v12196, 0
  %v12204 = vsel %vm380, %v12197, 0
  %v12207 = vsel %vm380, %v12198, 0
  %v12210 = vsel %vm380, %v12199, 0
  %v12213 = vsel %vm380, %v12151, 0
  %v12216 = vsel %vm380, %v12152, 0
  %v12219 = vsel %vm380, %v12153, 0
  %v12222 = vsel %vm380, %v12154, 0
  %v12225 = vsel %vm380, %v12155, 0
  %v12228 = vsel %vm380, %v12156, 0
  %v12231 = vsel %vm380, %v12157, 0
  %v12234 = vsel %vm380, %v12158, 0
  %v12237 = vsel %vm380, %v12159, 0
  %v12240 = vsel %vm380, %v12160, 0
  %v12243 = vsel %vm380, %v12161, 0
  %v12246 = vsel %vm380, %v12162, 0
  %v12249 = vsel %vm380, %v12163, 0
  %v12252 = vsel %vm380, %v12164, 0
  %v12255 = vsel %vm380, %v12165, 0
  %v12258 = vsel %vm380, %v12166, 0
  %12260 = vmatpush.bf16.xpose.msra.mxu0 %v12234
  %12261 = vmatpush.bf16.xpose.msra.mxu0 %v12231
  %12262 = vmatpush.bf16.xpose.msra.mxu0 %v12228
  %12263 = vmatpush.bf16.xpose.msra.mxu0 %v12225
  %12264 = vmatpush.bf16.xpose.msra.mxu0 %v12222
  %12265 = vmatpush.bf16.xpose.msra.mxu0 %v12219
  %12266 = vmatpush.bf16.xpose.msra.mxu0 %v12216
  %12267 = vmatpush.bf16.xpose.msra.mxu0 %v12213
  %12268 = vmatmul.bf16.gmra.mxu0 %v12201
  %v12269 = vpop.f32.mrf.mxu0
  %v12270 = vadd.f32 0.0, %v12269
  %v12271 = vpop.f32.mrf.mxu0
  %v12272 = vadd.f32 0.0, %v12271
  %12273 = vmatmul.bf16.gmra.mxu0 %v12204
  %v12274 = vpop.f32.mrf.mxu0
  %v12275 = vadd.f32 0.0, %v12274
  %v12276 = vpop.f32.mrf.mxu0
  %v12277 = vadd.f32 0.0, %v12276
  %12278 = vmatmul.bf16.gmra.mxu0 %v12207
  %v12279 = vpop.f32.mrf.mxu0
  %v12280 = vadd.f32 0.0, %v12279
  %v12281 = vpop.f32.mrf.mxu0
  %v12282 = vadd.f32 0.0, %v12281
  %12283 = vmatmul.bf16.gmra.mxu0 %v12210
  %v12284 = vpop.f32.mrf.mxu0
  %v12285 = vadd.f32 0.0, %v12284
  %v12286 = vpop.f32.mrf.mxu0
  %v12287 = vadd.f32 0.0, %v12286
  %12288 = vdwg.mxu0
  %12289 = vmatpush.bf16.xpose.msra.mxu0 %v12258
  %12290 = vmatpush.bf16.xpose.msra.mxu0 %v12255
  %12291 = vmatpush.bf16.xpose.msra.mxu0 %v12252
  %12292 = vmatpush.bf16.xpose.msra.mxu0 %v12249
  %12293 = vmatpush.bf16.xpose.msra.mxu0 %v12246
  %12294 = vmatpush.bf16.xpose.msra.mxu0 %v12243
  %12295 = vmatpush.bf16.xpose.msra.mxu0 %v12240
  %12296 = vmatpush.bf16.xpose.msra.mxu0 %v12237
  %12297 = vmatmul.bf16.gmra.mxu0 %v12201
  %v12298 = vpop.f32.mrf.mxu0
  %v12299 = vadd.f32 0.0, %v12298
  %v12300 = vpop.f32.mrf.mxu0
  %v12301 = vadd.f32 0.0, %v12300
  %12302 = vmatmul.bf16.gmra.mxu0 %v12204
  %v12303 = vpop.f32.mrf.mxu0
  %v12304 = vadd.f32 0.0, %v12303
  %v12305 = vpop.f32.mrf.mxu0
  %v12306 = vadd.f32 0.0, %v12305
  %12307 = vmatmul.bf16.gmra.mxu0 %v12207
  %v12308 = vpop.f32.mrf.mxu0
  %v12309 = vadd.f32 0.0, %v12308
  %v12310 = vpop.f32.mrf.mxu0
  %v12311 = vadd.f32 0.0, %v12310
  %12312 = vmatmul.bf16.gmra.mxu0 %v12210
  %v12313 = vpop.f32.mrf.mxu0
  %v12314 = vadd.f32 0.0, %v12313
  %v12315 = vpop.f32.mrf.mxu0
  %v12316 = vadd.f32 0.0, %v12315
  %12317 = vdwg.mxu0
  %v12318 = vmax.f32 %v12270, %v12299
  %12319 = vmax.xlane.f32.xlu0 %v12318
  %v12320 = vpop.xlane.xlu0 %12319
  %v12321 = vmax.f32 %v12272, %v12301
  %12322 = vmax.xlane.f32.xlu0 %v12321
  %v12323 = vpop.xlane.xlu0 %12322
  %v12324 = vmax.f32 %v12275, %v12304
  %12325 = vmax.xlane.f32.xlu0 %v12324
  %v12326 = vpop.xlane.xlu0 %12325
  %v12327 = vmax.f32 %v12277, %v12306
  %12328 = vmax.xlane.f32.xlu0 %v12327
  %v12329 = vpop.xlane.xlu0 %12328
  %v12330 = vmax.f32 %v12280, %v12309
  %12331 = vmax.xlane.f32.xlu0 %v12330
  %v12332 = vpop.xlane.xlu0 %12331
  %v12333 = vmax.f32 %v12282, %v12311
  %12334 = vmax.xlane.f32.xlu0 %v12333
  %v12335 = vpop.xlane.xlu0 %12334
  %v12336 = vmax.f32 %v12285, %v12314
  %12337 = vmax.xlane.f32.xlu0 %v12336
  %v12338 = vpop.xlane.xlu0 %12337
  %v12339 = vmax.f32 %v12287, %v12316
  %12340 = vmax.xlane.f32.xlu0 %v12339
  %v12341 = vpop.xlane.xlu0 %12340
  %v12342 = vsub.f32 %v12270, %v12320
  %v12343 = vsub.f32 %v12299, %v12320
  %v12344 = vsub.f32 %v12272, %v12323
  %v12345 = vsub.f32 %v12301, %v12323
  %v12346 = vsub.f32 %v12275, %v12326
  %v12347 = vsub.f32 %v12304, %v12326
  %v12348 = vsub.f32 %v12277, %v12329
  %v12349 = vsub.f32 %v12306, %v12329
  %v12350 = vsub.f32 %v12280, %v12332
  %v12351 = vsub.f32 %v12309, %v12332
  %v12352 = vsub.f32 %v12282, %v12335
  %v12353 = vsub.f32 %v12311, %v12335
  %v12354 = vsub.f32 %v12285, %v12338
  %v12355 = vsub.f32 %v12314, %v12338
  %v12356 = vsub.f32 %v12287, %v12341
  %v12357 = vsub.f32 %v12316, %v12341
  %v12358 = vmul.f32 %v12342, 1.442695
  %v12359 = vpow.pop %v12358
  %v12360 = vmul.f32 %v12343, 1.442695
  %v12361 = vpow.pop %v12360
  %v12362 = vmul.f32 %v12344, 1.442695
  %v12363 = vpow.pop %v12362
  %v12364 = vmul.f32 %v12345, 1.442695
  %v12365 = vpow.pop %v12364
  %v12366 = vmul.f32 %v12346, 1.442695
  %v12367 = vpow.pop %v12366
  %v12368 = vmul.f32 %v12347, 1.442695
  %v12369 = vpow.pop %v12368
  %v12370 = vmul.f32 %v12348, 1.442695
  %v12371 = vpow.pop %v12370
  %v12372 = vmul.f32 %v12349, 1.442695
  %v12373 = vpow.pop %v12372
  %v12374 = vmul.f32 %v12350, 1.442695
  %v12375 = vpow.pop %v12374
  %v12376 = vmul.f32 %v12351, 1.442695
  %v12377 = vpow.pop %v12376
  %v12378 = vmul.f32 %v12352, 1.442695
  %v12379 = vpow.pop %v12378
  %v12380 = vmul.f32 %v12353, 1.442695
  %v12381 = vpow.pop %v12380
  %v12382 = vmul.f32 %v12354, 1.442695
  %v12383 = vpow.pop %v12382
  %v12384 = vmul.f32 %v12355, 1.442695
  %v12385 = vpow.pop %v12384
  %v12386 = vmul.f32 %v12356, 1.442695
  %v12387 = vpow.pop %v12386
  %v12388 = vmul.f32 %v12357, 1.442695
  %v12389 = vpow.pop %v12388
  %v12390 = vadd.f32 %v12359, %v12361
  %12391 = vadd.xlane.f32.xlu0 %v12390
  %v12392 = vpop.xlane.xlu0 %12391
  %v12393 = vadd.f32 %v12363, %v12365
  %12394 = vadd.xlane.f32.xlu0 %v12393
  %v12395 = vpop.xlane.xlu0 %12394
  %v12396 = vadd.f32 %v12367, %v12369
  %12397 = vadd.xlane.f32.xlu0 %v12396
  %v12398 = vpop.xlane.xlu0 %12397
  %v12399 = vadd.f32 %v12371, %v12373
  %12400 = vadd.xlane.f32.xlu0 %v12399
  %v12401 = vpop.xlane.xlu0 %12400
  %v12402 = vadd.f32 %v12375, %v12377
  %12403 = vadd.xlane.f32.xlu0 %v12402
  %v12404 = vpop.xlane.xlu0 %12403
  %v12405 = vadd.f32 %v12379, %v12381
  %12406 = vadd.xlane.f32.xlu0 %v12405
  %v12407 = vpop.xlane.xlu0 %12406
  %v12408 = vadd.f32 %v12383, %v12385
  %12409 = vadd.xlane.f32.xlu0 %v12408
  %v12410 = vpop.xlane.xlu0 %12409
  %v12411 = vadd.f32 %v12387, %v12389
  %12412 = vadd.xlane.f32.xlu0 %v12411
  %v12413 = vpop.xlane.xlu0 %12412
  %v12414 = vrcp.pop %v12392
  %v12415 = vrcp.pop %v12395
  %v12416 = vrcp.pop %v12398
  %v12417 = vrcp.pop %v12401
  %v12418 = vrcp.pop %v12404
  %v12419 = vrcp.pop %v12407
  %v12420 = vrcp.pop %v12410
  %v12421 = vrcp.pop %v12413
  %v12422 = vmul.f32 %v12359, %v12414
  %v12423 = vmul.f32 %v12361, %v12414
  %v12424 = vmul.f32 %v12363, %v12415
  %v12425 = vmul.f32 %v12365, %v12415
  %v12426 = vmul.f32 %v12367, %v12416
  %v12427 = vmul.f32 %v12369, %v12416
  %v12428 = vmul.f32 %v12371, %v12417
  %v12429 = vmul.f32 %v12373, %v12417
  %v12430 = vmul.f32 %v12375, %v12418
  %v12431 = vmul.f32 %v12377, %v12418
  %v12432 = vmul.f32 %v12379, %v12419
  %v12433 = vmul.f32 %v12381, %v12419
  %v12434 = vmul.f32 %v12383, %v12420
  %v12435 = vmul.f32 %v12385, %v12420
  %v12436 = vmul.f32 %v12387, %v12421
  %v12437 = vmul.f32 %v12389, %v12421
  %v12438 = vpack.c.bf16 %v12424, %v12422
  %v12439 = vpack.c.bf16 %v12425, %v12423
  %v12440 = vpack.c.bf16 %v12428, %v12426
  %v12441 = vpack.c.bf16 %v12429, %v12427
  %v12442 = vpack.c.bf16 %v12432, %v12430
  %v12443 = vpack.c.bf16 %v12433, %v12431
  %v12444 = vpack.c.bf16 %v12436, %v12434
  %v12445 = vpack.c.bf16 %v12437, %v12435
  %12446 = vmatpush.bf16.msra.mxu0 %v12158
  %12447 = vmatpush.bf16.msra.mxu0 %v12157
  %12448 = vmatpush.bf16.msra.mxu0 %v12156
  %12449 = vmatpush.bf16.msra.mxu0 %v12155
  %12450 = vmatpush.bf16.msra.mxu0 %v12154
  %12451 = vmatpush.bf16.msra.mxu0 %v12153
  %12452 = vmatpush.bf16.msra.mxu0 %v12152
  %12453 = vmatpush.bf16.msra.mxu0 %v12151
  %12454 = vmatmul.bf16.gmra.mxu0 %v12438
  %v12455 = vpop.f32.mrf.mxu0
  %v12456 = vadd.f32 0.0, %v12455
  %v12457 = vpop.f32.mrf.mxu0
  %v12458 = vadd.f32 0.0, %v12457
  %12459 = vmatmul.bf16.gmra.mxu0 %v12440
  %v12460 = vpop.f32.mrf.mxu0
  %v12461 = vadd.f32 0.0, %v12460
  %v12462 = vpop.f32.mrf.mxu0
  %v12463 = vadd.f32 0.0, %v12462
  %12464 = vmatmul.bf16.gmra.mxu0 %v12442
  %v12465 = vpop.f32.mrf.mxu0
  %v12466 = vadd.f32 0.0, %v12465
  %v12467 = vpop.f32.mrf.mxu0
  %v12468 = vadd.f32 0.0, %v12467
  %12469 = vmatmul.bf16.gmra.mxu0 %v12444
  %v12470 = vpop.f32.mrf.mxu0
  %v12471 = vadd.f32 0.0, %v12470
  %v12472 = vpop.f32.mrf.mxu0
  %v12473 = vadd.f32 0.0, %v12472
  %12474 = vdwg.mxu0
  %12475 = vmatpush.bf16.msra.mxu0 %v12166
  %12476 = vmatpush.bf16.msra.mxu0 %v12165
  %12477 = vmatpush.bf16.msra.mxu0 %v12164
  %12478 = vmatpush.bf16.msra.mxu0 %v12163
  %12479 = vmatpush.bf16.msra.mxu0 %v12162
  %12480 = vmatpush.bf16.msra.mxu0 %v12161
  %12481 = vmatpush.bf16.msra.mxu0 %v12160
  %12482 = vmatpush.bf16.msra.mxu0 %v12159
  %12483 = vmatmul.bf16.gmra.mxu0 %v12439
  %v12484 = vpop.f32.mrf.mxu0
  %v12485 = vadd.f32 %v12456, %v12484
  %v12486 = vpop.f32.mrf.mxu0
  %v12487 = vadd.f32 %v12458, %v12486
  %12488 = vmatmul.bf16.gmra.mxu0 %v12441
  %v12489 = vpop.f32.mrf.mxu0
  %v12490 = vadd.f32 %v12461, %v12489
  %v12491 = vpop.f32.mrf.mxu0
  %v12492 = vadd.f32 %v12463, %v12491
  %12493 = vmatmul.bf16.gmra.mxu0 %v12443
  %v12494 = vpop.f32.mrf.mxu0
  %v12495 = vadd.f32 %v12466, %v12494
  %v12496 = vpop.f32.mrf.mxu0
  %v12497 = vadd.f32 %v12468, %v12496
  %12498 = vmatmul.bf16.gmra.mxu0 %v12445
  %v12499 = vpop.f32.mrf.mxu0
  %v12500 = vadd.f32 %v12471, %v12499
  %v12501 = vpop.f32.mrf.mxu0
  %v12502 = vadd.f32 %v12473, %v12501
  %12503 = vdwg.mxu0
  %12508 = vrot.lane.b32.xlu0 %v12196, 96
  %v12509 = vpop.permute.xlu0 %12508
  %12510 = vrot.lane.b32.xlu0 %v12197, 96
  %v12511 = vpop.permute.xlu0 %12510
  %12512 = vrot.lane.b32.xlu0 %v12198, 96
  %v12513 = vpop.permute.xlu0 %12512
  %12514 = vrot.lane.b32.xlu0 %v12199, 96
  %v12515 = vpop.permute.xlu0 %12514
  %v12517 = vsel %vm380, %v12509, 0
  %v12520 = vsel %vm380, %v12511, 0
  %v12523 = vsel %vm380, %v12513, 0
  %v12526 = vsel %vm380, %v12515, 0
  %12528 = vmatpush.bf16.xpose.msra.mxu0 %v12234
  %12529 = vmatpush.bf16.xpose.msra.mxu0 %v12231
  %12530 = vmatpush.bf16.xpose.msra.mxu0 %v12228
  %12531 = vmatpush.bf16.xpose.msra.mxu0 %v12225
  %12532 = vmatpush.bf16.xpose.msra.mxu0 %v12222
  %12533 = vmatpush.bf16.xpose.msra.mxu0 %v12219
  %12534 = vmatpush.bf16.xpose.msra.mxu0 %v12216
  %12535 = vmatpush.bf16.xpose.msra.mxu0 %v12213
  %12536 = vmatmul.bf16.gmra.mxu0 %v12517
  %v12537 = vpop.f32.mrf.mxu0
  %v12538 = vadd.f32 0.0, %v12537
  %v12539 = vpop.f32.mrf.mxu0
  %v12540 = vadd.f32 0.0, %v12539
  %12541 = vmatmul.bf16.gmra.mxu0 %v12520
  %v12542 = vpop.f32.mrf.mxu0
  %v12543 = vadd.f32 0.0, %v12542
  %v12544 = vpop.f32.mrf.mxu0
  %v12545 = vadd.f32 0.0, %v12544
  %12546 = vmatmul.bf16.gmra.mxu0 %v12523
  %v12547 = vpop.f32.mrf.mxu0
  %v12548 = vadd.f32 0.0, %v12547
  %v12549 = vpop.f32.mrf.mxu0
  %v12550 = vadd.f32 0.0, %v12549
  %12551 = vmatmul.bf16.gmra.mxu0 %v12526
  %v12552 = vpop.f32.mrf.mxu0
  %v12553 = vadd.f32 0.0, %v12552
  %v12554 = vpop.f32.mrf.mxu0
  %v12555 = vadd.f32 0.0, %v12554
  %12556 = vdwg.mxu0
  %12557 = vmatpush.bf16.xpose.msra.mxu0 %v12258
  %12558 = vmatpush.bf16.xpose.msra.mxu0 %v12255
  %12559 = vmatpush.bf16.xpose.msra.mxu0 %v12252
  %12560 = vmatpush.bf16.xpose.msra.mxu0 %v12249
  %12561 = vmatpush.bf16.xpose.msra.mxu0 %v12246
  %12562 = vmatpush.bf16.xpose.msra.mxu0 %v12243
  %12563 = vmatpush.bf16.xpose.msra.mxu0 %v12240
  %12564 = vmatpush.bf16.xpose.msra.mxu0 %v12237
  %12565 = vmatmul.bf16.gmra.mxu0 %v12517
  %v12566 = vpop.f32.mrf.mxu0
  %v12567 = vadd.f32 0.0, %v12566
  %v12568 = vpop.f32.mrf.mxu0
  %v12569 = vadd.f32 0.0, %v12568
  %12570 = vmatmul.bf16.gmra.mxu0 %v12520
  %v12571 = vpop.f32.mrf.mxu0
  %v12572 = vadd.f32 0.0, %v12571
  %v12573 = vpop.f32.mrf.mxu0
  %v12574 = vadd.f32 0.0, %v12573
  %12575 = vmatmul.bf16.gmra.mxu0 %v12523
  %v12576 = vpop.f32.mrf.mxu0
  %v12577 = vadd.f32 0.0, %v12576
  %v12578 = vpop.f32.mrf.mxu0
  %v12579 = vadd.f32 0.0, %v12578
  %12580 = vmatmul.bf16.gmra.mxu0 %v12526
  %v12581 = vpop.f32.mrf.mxu0
  %v12582 = vadd.f32 0.0, %v12581
  %v12583 = vpop.f32.mrf.mxu0
  %v12584 = vadd.f32 0.0, %v12583
  %12585 = vdwg.mxu0
  %v12586 = vmax.f32 %v12538, %v12567
  %12587 = vmax.xlane.f32.xlu0 %v12586
  %v12588 = vpop.xlane.xlu0 %12587
  %v12589 = vmax.f32 %v12540, %v12569
  %12590 = vmax.xlane.f32.xlu0 %v12589
  %v12591 = vpop.xlane.xlu0 %12590
  %v12592 = vmax.f32 %v12543, %v12572
  %12593 = vmax.xlane.f32.xlu0 %v12592
  %v12594 = vpop.xlane.xlu0 %12593
  %v12595 = vmax.f32 %v12545, %v12574
  %12596 = vmax.xlane.f32.xlu0 %v12595
  %v12597 = vpop.xlane.xlu0 %12596
  %v12598 = vmax.f32 %v12548, %v12577
  %12599 = vmax.xlane.f32.xlu0 %v12598
  %v12600 = vpop.xlane.xlu0 %12599
  %v12601 = vmax.f32 %v12550, %v12579
  %12602 = vmax.xlane.f32.xlu0 %v12601
  %v12603 = vpop.xlane.xlu0 %12602
  %v12604 = vmax.f32 %v12553, %v12582
  %12605 = vmax.xlane.f32.xlu0 %v12604
  %v12606 = vpop.xlane.xlu0 %12605
  %v12607 = vmax.f32 %v12555, %v12584
  %12608 = vmax.xlane.f32.xlu0 %v12607
  %v12609 = vpop.xlane.xlu0 %12608
  %v12610 = vsub.f32 %v12538, %v12588
  %v12611 = vsub.f32 %v12567, %v12588
  %v12612 = vsub.f32 %v12540, %v12591
  %v12613 = vsub.f32 %v12569, %v12591
  %v12614 = vsub.f32 %v12543, %v12594
  %v12615 = vsub.f32 %v12572, %v12594
  %v12616 = vsub.f32 %v12545, %v12597
  %v12617 = vsub.f32 %v12574, %v12597
  %v12618 = vsub.f32 %v12548, %v12600
  %v12619 = vsub.f32 %v12577, %v12600
  %v12620 = vsub.f32 %v12550, %v12603
  %v12621 = vsub.f32 %v12579, %v12603
  %v12622 = vsub.f32 %v12553, %v12606
  %v12623 = vsub.f32 %v12582, %v12606
  %v12624 = vsub.f32 %v12555, %v12609
  %v12625 = vsub.f32 %v12584, %v12609
  %v12626 = vmul.f32 %v12610, 1.442695
  %v12627 = vpow.pop %v12626
  %v12628 = vmul.f32 %v12611, 1.442695
  %v12629 = vpow.pop %v12628
  %v12630 = vmul.f32 %v12612, 1.442695
  %v12631 = vpow.pop %v12630
  %v12632 = vmul.f32 %v12613, 1.442695
  %v12633 = vpow.pop %v12632
  %v12634 = vmul.f32 %v12614, 1.442695
  %v12635 = vpow.pop %v12634
  %v12636 = vmul.f32 %v12615, 1.442695
  %v12637 = vpow.pop %v12636
  %v12638 = vmul.f32 %v12616, 1.442695
  %v12639 = vpow.pop %v12638
  %v12640 = vmul.f32 %v12617, 1.442695
  %v12641 = vpow.pop %v12640
  %v12642 = vmul.f32 %v12618, 1.442695
  %v12643 = vpow.pop %v12642
  %v12644 = vmul.f32 %v12619, 1.442695
  %v12645 = vpow.pop %v12644
  %v12646 = vmul.f32 %v12620, 1.442695
  %v12647 = vpow.pop %v12646
  %v12648 = vmul.f32 %v12621, 1.442695
  %v12649 = vpow.pop %v12648
  %v12650 = vmul.f32 %v12622, 1.442695
  %v12651 = vpow.pop %v12650
  %v12652 = vmul.f32 %v12623, 1.442695
  %v12653 = vpow.pop %v12652
  %v12654 = vmul.f32 %v12624, 1.442695
  %v12655 = vpow.pop %v12654
  %v12656 = vmul.f32 %v12625, 1.442695
  %v12657 = vpow.pop %v12656
  %v12658 = vadd.f32 %v12627, %v12629
  %12659 = vadd.xlane.f32.xlu0 %v12658
  %v12660 = vpop.xlane.xlu0 %12659
  %v12661 = vadd.f32 %v12631, %v12633
  %12662 = vadd.xlane.f32.xlu0 %v12661
  %v12663 = vpop.xlane.xlu0 %12662
  %v12664 = vadd.f32 %v12635, %v12637
  %12665 = vadd.xlane.f32.xlu0 %v12664
  %v12666 = vpop.xlane.xlu0 %12665
  %v12667 = vadd.f32 %v12639, %v12641
  %12668 = vadd.xlane.f32.xlu0 %v12667
  %v12669 = vpop.xlane.xlu0 %12668
  %v12670 = vadd.f32 %v12643, %v12645
  %12671 = vadd.xlane.f32.xlu0 %v12670
  %v12672 = vpop.xlane.xlu0 %12671
  %v12673 = vadd.f32 %v12647, %v12649
  %12674 = vadd.xlane.f32.xlu0 %v12673
  %v12675 = vpop.xlane.xlu0 %12674
  %v12676 = vadd.f32 %v12651, %v12653
  %12677 = vadd.xlane.f32.xlu0 %v12676
  %v12678 = vpop.xlane.xlu0 %12677
  %v12679 = vadd.f32 %v12655, %v12657
  %12680 = vadd.xlane.f32.xlu0 %v12679
  %v12681 = vpop.xlane.xlu0 %12680
  %v12682 = vrcp.pop %v12660
  %v12683 = vrcp.pop %v12663
  %v12684 = vrcp.pop %v12666
  %v12685 = vrcp.pop %v12669
  %v12686 = vrcp.pop %v12672
  %v12687 = vrcp.pop %v12675
  %v12688 = vrcp.pop %v12678
  %v12689 = vrcp.pop %v12681
  %v12690 = vmul.f32 %v12627, %v12682
  %v12691 = vmul.f32 %v12629, %v12682
  %v12692 = vmul.f32 %v12631, %v12683
  %v12693 = vmul.f32 %v12633, %v12683
  %v12694 = vmul.f32 %v12635, %v12684
  %v12695 = vmul.f32 %v12637, %v12684
  %v12696 = vmul.f32 %v12639, %v12685
  %v12697 = vmul.f32 %v12641, %v12685
  %v12698 = vmul.f32 %v12643, %v12686
  %v12699 = vmul.f32 %v12645, %v12686
  %v12700 = vmul.f32 %v12647, %v12687
  %v12701 = vmul.f32 %v12649, %v12687
  %v12702 = vmul.f32 %v12651, %v12688
  %v12703 = vmul.f32 %v12653, %v12688
  %v12704 = vmul.f32 %v12655, %v12689
  %v12705 = vmul.f32 %v12657, %v12689
  %v12706 = vpack.c.bf16 %v12692, %v12690
  %v12707 = vpack.c.bf16 %v12693, %v12691
  %v12708 = vpack.c.bf16 %v12696, %v12694
  %v12709 = vpack.c.bf16 %v12697, %v12695
  %v12710 = vpack.c.bf16 %v12700, %v12698
  %v12711 = vpack.c.bf16 %v12701, %v12699
  %v12712 = vpack.c.bf16 %v12704, %v12702
  %v12713 = vpack.c.bf16 %v12705, %v12703
  %12714 = vmatpush.bf16.msra.mxu0 %v12158
  %12715 = vmatpush.bf16.msra.mxu0 %v12157
  %12716 = vmatpush.bf16.msra.mxu0 %v12156
  %12717 = vmatpush.bf16.msra.mxu0 %v12155
  %12718 = vmatpush.bf16.msra.mxu0 %v12154
  %12719 = vmatpush.bf16.msra.mxu0 %v12153
  %12720 = vmatpush.bf16.msra.mxu0 %v12152
  %12721 = vmatpush.bf16.msra.mxu0 %v12151
  %12722 = vmatmul.bf16.gmra.mxu0 %v12706
  %v12723 = vpop.f32.mrf.mxu0
  %v12724 = vadd.f32 0.0, %v12723
  %v12725 = vpop.f32.mrf.mxu0
  %v12726 = vadd.f32 0.0, %v12725
  %12727 = vmatmul.bf16.gmra.mxu0 %v12708
  %v12728 = vpop.f32.mrf.mxu0
  %v12729 = vadd.f32 0.0, %v12728
  %v12730 = vpop.f32.mrf.mxu0
  %v12731 = vadd.f32 0.0, %v12730
  %12732 = vmatmul.bf16.gmra.mxu0 %v12710
  %v12733 = vpop.f32.mrf.mxu0
  %v12734 = vadd.f32 0.0, %v12733
  %v12735 = vpop.f32.mrf.mxu0
  %v12736 = vadd.f32 0.0, %v12735
  %12737 = vmatmul.bf16.gmra.mxu0 %v12712
  %v12738 = vpop.f32.mrf.mxu0
  %v12739 = vadd.f32 0.0, %v12738
  %v12740 = vpop.f32.mrf.mxu0
  %v12741 = vadd.f32 0.0, %v12740
  %12742 = vdwg.mxu0
  %12743 = vmatpush.bf16.msra.mxu0 %v12166
  %12744 = vmatpush.bf16.msra.mxu0 %v12165
  %12745 = vmatpush.bf16.msra.mxu0 %v12164
  %12746 = vmatpush.bf16.msra.mxu0 %v12163
  %12747 = vmatpush.bf16.msra.mxu0 %v12162
  %12748 = vmatpush.bf16.msra.mxu0 %v12161
  %12749 = vmatpush.bf16.msra.mxu0 %v12160
  %12750 = vmatpush.bf16.msra.mxu0 %v12159
  %12751 = vmatmul.bf16.gmra.mxu0 %v12707
  %v12752 = vpop.f32.mrf.mxu0
  %v12753 = vadd.f32 %v12724, %v12752
  %v12754 = vpop.f32.mrf.mxu0
  %v12755 = vadd.f32 %v12726, %v12754
  %12756 = vmatmul.bf16.gmra.mxu0 %v12709
  %v12757 = vpop.f32.mrf.mxu0
  %v12758 = vadd.f32 %v12729, %v12757
  %v12759 = vpop.f32.mrf.mxu0
  %v12760 = vadd.f32 %v12731, %v12759
  %12761 = vmatmul.bf16.gmra.mxu0 %v12711
  %v12762 = vpop.f32.mrf.mxu0
  %v12763 = vadd.f32 %v12734, %v12762
  %v12764 = vpop.f32.mrf.mxu0
  %v12765 = vadd.f32 %v12736, %v12764
  %12766 = vmatmul.bf16.gmra.mxu0 %v12713
  %v12767 = vpop.f32.mrf.mxu0
  %v12768 = vadd.f32 %v12739, %v12767
  %v12769 = vpop.f32.mrf.mxu0
  %v12770 = vadd.f32 %v12741, %v12769
  %12771 = vdwg.mxu0
  %12772 = vrot.lane.b32.xlu0 %v12196, 64
  %v12773 = vpop.permute.xlu0 %12772
  %12774 = vrot.lane.b32.xlu0 %v12197, 64
  %v12775 = vpop.permute.xlu0 %12774
  %12776 = vrot.lane.b32.xlu0 %v12198, 64
  %v12777 = vpop.permute.xlu0 %12776
  %12778 = vrot.lane.b32.xlu0 %v12199, 64
  %v12779 = vpop.permute.xlu0 %12778
  %v12781 = vsel %vm380, %v12773, 0
  %v12784 = vsel %vm380, %v12775, 0
  %v12787 = vsel %vm380, %v12777, 0
  %v12790 = vsel %vm380, %v12779, 0
  %12792 = vmatpush.bf16.xpose.msra.mxu0 %v12234
  %12793 = vmatpush.bf16.xpose.msra.mxu0 %v12231
  %12794 = vmatpush.bf16.xpose.msra.mxu0 %v12228
  %12795 = vmatpush.bf16.xpose.msra.mxu0 %v12225
  %12796 = vmatpush.bf16.xpose.msra.mxu0 %v12222
  %12797 = vmatpush.bf16.xpose.msra.mxu0 %v12219
  %12798 = vmatpush.bf16.xpose.msra.mxu0 %v12216
  %12799 = vmatpush.bf16.xpose.msra.mxu0 %v12213
  %12800 = vmatmul.bf16.gmra.mxu0 %v12781
  %v12801 = vpop.f32.mrf.mxu0
  %v12802 = vadd.f32 0.0, %v12801
  %v12803 = vpop.f32.mrf.mxu0
  %v12804 = vadd.f32 0.0, %v12803
  %12805 = vmatmul.bf16.gmra.mxu0 %v12784
  %v12806 = vpop.f32.mrf.mxu0
  %v12807 = vadd.f32 0.0, %v12806
  %v12808 = vpop.f32.mrf.mxu0
  %v12809 = vadd.f32 0.0, %v12808
  %12810 = vmatmul.bf16.gmra.mxu0 %v12787
  %v12811 = vpop.f32.mrf.mxu0
  %v12812 = vadd.f32 0.0, %v12811
  %v12813 = vpop.f32.mrf.mxu0
  %v12814 = vadd.f32 0.0, %v12813
  %12815 = vmatmul.bf16.gmra.mxu0 %v12790
  %v12816 = vpop.f32.mrf.mxu0
  %v12817 = vadd.f32 0.0, %v12816
  %v12818 = vpop.f32.mrf.mxu0
  %v12819 = vadd.f32 0.0, %v12818
  %12820 = vdwg.mxu0
  %12821 = vmatpush.bf16.xpose.msra.mxu0 %v12258
  %12822 = vmatpush.bf16.xpose.msra.mxu0 %v12255
  %12823 = vmatpush.bf16.xpose.msra.mxu0 %v12252
  %12824 = vmatpush.bf16.xpose.msra.mxu0 %v12249
  %12825 = vmatpush.bf16.xpose.msra.mxu0 %v12246
  %12826 = vmatpush.bf16.xpose.msra.mxu0 %v12243
  %12827 = vmatpush.bf16.xpose.msra.mxu0 %v12240
  %12828 = vmatpush.bf16.xpose.msra.mxu0 %v12237
  %12829 = vmatmul.bf16.gmra.mxu0 %v12781
  %v12830 = vpop.f32.mrf.mxu0
  %v12831 = vadd.f32 0.0, %v12830
  %v12832 = vpop.f32.mrf.mxu0
  %v12833 = vadd.f32 0.0, %v12832
  %12834 = vmatmul.bf16.gmra.mxu0 %v12784
  %v12835 = vpop.f32.mrf.mxu0
  %v12836 = vadd.f32 0.0, %v12835
  %v12837 = vpop.f32.mrf.mxu0
  %v12838 = vadd.f32 0.0, %v12837
  %12839 = vmatmul.bf16.gmra.mxu0 %v12787
  %v12840 = vpop.f32.mrf.mxu0
  %v12841 = vadd.f32 0.0, %v12840
  %v12842 = vpop.f32.mrf.mxu0
  %v12843 = vadd.f32 0.0, %v12842
  %12844 = vmatmul.bf16.gmra.mxu0 %v12790
  %v12845 = vpop.f32.mrf.mxu0
  %v12846 = vadd.f32 0.0, %v12845
  %v12847 = vpop.f32.mrf.mxu0
  %v12848 = vadd.f32 0.0, %v12847
  %12849 = vdwg.mxu0
  %v12850 = vmax.f32 %v12802, %v12831
  %12851 = vmax.xlane.f32.xlu0 %v12850
  %v12852 = vpop.xlane.xlu0 %12851
  %v12853 = vmax.f32 %v12804, %v12833
  %12854 = vmax.xlane.f32.xlu0 %v12853
  %v12855 = vpop.xlane.xlu0 %12854
  %v12856 = vmax.f32 %v12807, %v12836
  %12857 = vmax.xlane.f32.xlu0 %v12856
  %v12858 = vpop.xlane.xlu0 %12857
  %v12859 = vmax.f32 %v12809, %v12838
  %12860 = vmax.xlane.f32.xlu0 %v12859
  %v12861 = vpop.xlane.xlu0 %12860
  %v12862 = vmax.f32 %v12812, %v12841
  %12863 = vmax.xlane.f32.xlu0 %v12862
  %v12864 = vpop.xlane.xlu0 %12863
  %v12865 = vmax.f32 %v12814, %v12843
  %12866 = vmax.xlane.f32.xlu0 %v12865
  %v12867 = vpop.xlane.xlu0 %12866
  %v12868 = vmax.f32 %v12817, %v12846
  %12869 = vmax.xlane.f32.xlu0 %v12868
  %v12870 = vpop.xlane.xlu0 %12869
  %v12871 = vmax.f32 %v12819, %v12848
  %12872 = vmax.xlane.f32.xlu0 %v12871
  %v12873 = vpop.xlane.xlu0 %12872
  %v12874 = vsub.f32 %v12802, %v12852
  %v12875 = vsub.f32 %v12831, %v12852
  %v12876 = vsub.f32 %v12804, %v12855
  %v12877 = vsub.f32 %v12833, %v12855
  %v12878 = vsub.f32 %v12807, %v12858
  %v12879 = vsub.f32 %v12836, %v12858
  %v12880 = vsub.f32 %v12809, %v12861
  %v12881 = vsub.f32 %v12838, %v12861
  %v12882 = vsub.f32 %v12812, %v12864
  %v12883 = vsub.f32 %v12841, %v12864
  %v12884 = vsub.f32 %v12814, %v12867
  %v12885 = vsub.f32 %v12843, %v12867
  %v12886 = vsub.f32 %v12817, %v12870
  %v12887 = vsub.f32 %v12846, %v12870
  %v12888 = vsub.f32 %v12819, %v12873
  %v12889 = vsub.f32 %v12848, %v12873
  %v12890 = vmul.f32 %v12874, 1.442695
  %v12891 = vpow.pop %v12890
  %v12892 = vmul.f32 %v12875, 1.442695
  %v12893 = vpow.pop %v12892
  %v12894 = vmul.f32 %v12876, 1.442695
  %v12895 = vpow.pop %v12894
  %v12896 = vmul.f32 %v12877, 1.442695
  %v12897 = vpow.pop %v12896
  %v12898 = vmul.f32 %v12878, 1.442695
  %v12899 = vpow.pop %v12898
  %v12900 = vmul.f32 %v12879, 1.442695
  %v12901 = vpow.pop %v12900
  %v12902 = vmul.f32 %v12880, 1.442695
  %v12903 = vpow.pop %v12902
  %v12904 = vmul.f32 %v12881, 1.442695
  %v12905 = vpow.pop %v12904
  %v12906 = vmul.f32 %v12882, 1.442695
  %v12907 = vpow.pop %v12906
  %v12908 = vmul.f32 %v12883, 1.442695
  %v12909 = vpow.pop %v12908
  %v12910 = vmul.f32 %v12884, 1.442695
  %v12911 = vpow.pop %v12910
  %v12912 = vmul.f32 %v12885, 1.442695
  %v12913 = vpow.pop %v12912
  %v12914 = vmul.f32 %v12886, 1.442695
  %v12915 = vpow.pop %v12914
  %v12916 = vmul.f32 %v12887, 1.442695
  %v12917 = vpow.pop %v12916
  %v12918 = vmul.f32 %v12888, 1.442695
  %v12919 = vpow.pop %v12918
  %v12920 = vmul.f32 %v12889, 1.442695
  %v12921 = vpow.pop %v12920
  %v12922 = vadd.f32 %v12891, %v12893
  %12923 = vadd.xlane.f32.xlu0 %v12922
  %v12924 = vpop.xlane.xlu0 %12923
  %v12925 = vadd.f32 %v12895, %v12897
  %12926 = vadd.xlane.f32.xlu0 %v12925
  %v12927 = vpop.xlane.xlu0 %12926
  %v12928 = vadd.f32 %v12899, %v12901
  %12929 = vadd.xlane.f32.xlu0 %v12928
  %v12930 = vpop.xlane.xlu0 %12929
  %v12931 = vadd.f32 %v12903, %v12905
  %12932 = vadd.xlane.f32.xlu0 %v12931
  %v12933 = vpop.xlane.xlu0 %12932
  %v12934 = vadd.f32 %v12907, %v12909
  %12935 = vadd.xlane.f32.xlu0 %v12934
  %v12936 = vpop.xlane.xlu0 %12935
  %v12937 = vadd.f32 %v12911, %v12913
  %12938 = vadd.xlane.f32.xlu0 %v12937
  %v12939 = vpop.xlane.xlu0 %12938
  %v12940 = vadd.f32 %v12915, %v12917
  %12941 = vadd.xlane.f32.xlu0 %v12940
  %v12942 = vpop.xlane.xlu0 %12941
  %v12943 = vadd.f32 %v12919, %v12921
  %12944 = vadd.xlane.f32.xlu0 %v12943
  %v12945 = vpop.xlane.xlu0 %12944
  %v12946 = vrcp.pop %v12924
  %v12947 = vrcp.pop %v12927
  %v12948 = vrcp.pop %v12930
  %v12949 = vrcp.pop %v12933
  %v12950 = vrcp.pop %v12936
  %v12951 = vrcp.pop %v12939
  %v12952 = vrcp.pop %v12942
  %v12953 = vrcp.pop %v12945
  %v12954 = vmul.f32 %v12891, %v12946
  %v12955 = vmul.f32 %v12893, %v12946
  %v12956 = vmul.f32 %v12895, %v12947
  %v12957 = vmul.f32 %v12897, %v12947
  %v12958 = vmul.f32 %v12899, %v12948
  %v12959 = vmul.f32 %v12901, %v12948
  %v12960 = vmul.f32 %v12903, %v12949
  %v12961 = vmul.f32 %v12905, %v12949
  %v12962 = vmul.f32 %v12907, %v12950
  %v12963 = vmul.f32 %v12909, %v12950
  %v12964 = vmul.f32 %v12911, %v12951
  %v12965 = vmul.f32 %v12913, %v12951
  %v12966 = vmul.f32 %v12915, %v12952
  %v12967 = vmul.f32 %v12917, %v12952
  %v12968 = vmul.f32 %v12919, %v12953
  %v12969 = vmul.f32 %v12921, %v12953
  %v12970 = vpack.c.bf16 %v12956, %v12954
  %v12971 = vpack.c.bf16 %v12957, %v12955
  %v12972 = vpack.c.bf16 %v12960, %v12958
  %v12973 = vpack.c.bf16 %v12961, %v12959
  %v12974 = vpack.c.bf16 %v12964, %v12962
  %v12975 = vpack.c.bf16 %v12965, %v12963
  %v12976 = vpack.c.bf16 %v12968, %v12966
  %v12977 = vpack.c.bf16 %v12969, %v12967
  %12978 = vmatpush.bf16.msra.mxu0 %v12158
  %12979 = vmatpush.bf16.msra.mxu0 %v12157
  %12980 = vmatpush.bf16.msra.mxu0 %v12156
  %12981 = vmatpush.bf16.msra.mxu0 %v12155
  %12982 = vmatpush.bf16.msra.mxu0 %v12154
  %12983 = vmatpush.bf16.msra.mxu0 %v12153
  %12984 = vmatpush.bf16.msra.mxu0 %v12152
  %12985 = vmatpush.bf16.msra.mxu0 %v12151
  %12986 = vmatmul.bf16.gmra.mxu0 %v12970
  %v12987 = vpop.f32.mrf.mxu0
  %v12988 = vadd.f32 0.0, %v12987
  %v12989 = vpop.f32.mrf.mxu0
  %v12990 = vadd.f32 0.0, %v12989
  %12991 = vmatmul.bf16.gmra.mxu0 %v12972
  %v12992 = vpop.f32.mrf.mxu0
  %v12993 = vadd.f32 0.0, %v12992
  %v12994 = vpop.f32.mrf.mxu0
  %v12995 = vadd.f32 0.0, %v12994
  %12996 = vmatmul.bf16.gmra.mxu0 %v12974
  %v12997 = vpop.f32.mrf.mxu0
  %v12998 = vadd.f32 0.0, %v12997
  %v12999 = vpop.f32.mrf.mxu0
  %v13000 = vadd.f32 0.0, %v12999
  %13001 = vmatmul.bf16.gmra.mxu0 %v12976
  %v13002 = vpop.f32.mrf.mxu0
  %v13003 = vadd.f32 0.0, %v13002
  %v13004 = vpop.f32.mrf.mxu0
  %v13005 = vadd.f32 0.0, %v13004
  %13006 = vdwg.mxu0
  %13007 = vmatpush.bf16.msra.mxu0 %v12166
  %13008 = vmatpush.bf16.msra.mxu0 %v12165
  %13009 = vmatpush.bf16.msra.mxu0 %v12164
  %13010 = vmatpush.bf16.msra.mxu0 %v12163
  %13011 = vmatpush.bf16.msra.mxu0 %v12162
  %13012 = vmatpush.bf16.msra.mxu0 %v12161
  %13013 = vmatpush.bf16.msra.mxu0 %v12160
  %13014 = vmatpush.bf16.msra.mxu0 %v12159
  %13015 = vmatmul.bf16.gmra.mxu0 %v12971
  %v13016 = vpop.f32.mrf.mxu0
  %v13017 = vadd.f32 %v12988, %v13016
  %v13018 = vpop.f32.mrf.mxu0
  %v13019 = vadd.f32 %v12990, %v13018
  %13020 = vmatmul.bf16.gmra.mxu0 %v12973
  %v13021 = vpop.f32.mrf.mxu0
  %v13022 = vadd.f32 %v12993, %v13021
  %v13023 = vpop.f32.mrf.mxu0
  %v13024 = vadd.f32 %v12995, %v13023
  %13025 = vmatmul.bf16.gmra.mxu0 %v12975
  %v13026 = vpop.f32.mrf.mxu0
  %v13027 = vadd.f32 %v12998, %v13026
  %v13028 = vpop.f32.mrf.mxu0
  %v13029 = vadd.f32 %v13000, %v13028
  %13030 = vmatmul.bf16.gmra.mxu0 %v12977
  %v13031 = vpop.f32.mrf.mxu0
  %v13032 = vadd.f32 %v13003, %v13031
  %v13033 = vpop.f32.mrf.mxu0
  %v13034 = vadd.f32 %v13005, %v13033
  %13035 = vdwg.mxu0
  %13036 = vrot.lane.b32.xlu0 %v12196, 32
  %v13037 = vpop.permute.xlu0 %13036
  %13038 = vrot.lane.b32.xlu0 %v12197, 32
  %v13039 = vpop.permute.xlu0 %13038
  %13040 = vrot.lane.b32.xlu0 %v12198, 32
  %v13041 = vpop.permute.xlu0 %13040
  %13042 = vrot.lane.b32.xlu0 %v12199, 32
  %v13043 = vpop.permute.xlu0 %13042
  %v13045 = vsel %vm380, %v13037, 0
  %v13048 = vsel %vm380, %v13039, 0
  %v13051 = vsel %vm380, %v13041, 0
  %v13054 = vsel %vm380, %v13043, 0
  %13056 = vmatpush.bf16.xpose.msra.mxu0 %v12234
  %13057 = vmatpush.bf16.xpose.msra.mxu0 %v12231
  %13058 = vmatpush.bf16.xpose.msra.mxu0 %v12228
  %13059 = vmatpush.bf16.xpose.msra.mxu0 %v12225
  %13060 = vmatpush.bf16.xpose.msra.mxu0 %v12222
  %13061 = vmatpush.bf16.xpose.msra.mxu0 %v12219
  %13062 = vmatpush.bf16.xpose.msra.mxu0 %v12216
  %13063 = vmatpush.bf16.xpose.msra.mxu0 %v12213
  %13064 = vmatmul.bf16.gmra.mxu0 %v13045
  %v13065 = vpop.f32.mrf.mxu0
  %v13066 = vadd.f32 0.0, %v13065
  %v13067 = vpop.f32.mrf.mxu0
  %v13068 = vadd.f32 0.0, %v13067
  %13069 = vmatmul.bf16.gmra.mxu0 %v13048
  %v13070 = vpop.f32.mrf.mxu0
  %v13071 = vadd.f32 0.0, %v13070
  %v13072 = vpop.f32.mrf.mxu0
  %v13073 = vadd.f32 0.0, %v13072
  %13074 = vmatmul.bf16.gmra.mxu0 %v13051
  %v13075 = vpop.f32.mrf.mxu0
  %v13076 = vadd.f32 0.0, %v13075
  %v13077 = vpop.f32.mrf.mxu0
  %v13078 = vadd.f32 0.0, %v13077
  %13079 = vmatmul.bf16.gmra.mxu0 %v13054
  %v13080 = vpop.f32.mrf.mxu0
  %v13081 = vadd.f32 0.0, %v13080
  %v13082 = vpop.f32.mrf.mxu0
  %v13083 = vadd.f32 0.0, %v13082
  %13084 = vdwg.mxu0
  %13085 = vmatpush.bf16.xpose.msra.mxu0 %v12258
  %13086 = vmatpush.bf16.xpose.msra.mxu0 %v12255
  %13087 = vmatpush.bf16.xpose.msra.mxu0 %v12252
  %13088 = vmatpush.bf16.xpose.msra.mxu0 %v12249
  %13089 = vmatpush.bf16.xpose.msra.mxu0 %v12246
  %13090 = vmatpush.bf16.xpose.msra.mxu0 %v12243
  %13091 = vmatpush.bf16.xpose.msra.mxu0 %v12240
  %13092 = vmatpush.bf16.xpose.msra.mxu0 %v12237
  %13093 = vmatmul.bf16.gmra.mxu0 %v13045
  %v13094 = vpop.f32.mrf.mxu0
  %v13095 = vadd.f32 0.0, %v13094
  %v13096 = vpop.f32.mrf.mxu0
  %v13097 = vadd.f32 0.0, %v13096
  %13098 = vmatmul.bf16.gmra.mxu0 %v13048
  %v13099 = vpop.f32.mrf.mxu0
  %v13100 = vadd.f32 0.0, %v13099
  %v13101 = vpop.f32.mrf.mxu0
  %v13102 = vadd.f32 0.0, %v13101
  %13103 = vmatmul.bf16.gmra.mxu0 %v13051
  %v13104 = vpop.f32.mrf.mxu0
  %v13105 = vadd.f32 0.0, %v13104
  %v13106 = vpop.f32.mrf.mxu0
  %v13107 = vadd.f32 0.0, %v13106
  %13108 = vmatmul.bf16.gmra.mxu0 %v13054
  %v13109 = vpop.f32.mrf.mxu0
  %v13110 = vadd.f32 0.0, %v13109
  %v13111 = vpop.f32.mrf.mxu0
  %v13112 = vadd.f32 0.0, %v13111
  %13113 = vdwg.mxu0
  %v13114 = vmax.f32 %v13066, %v13095
  %13115 = vmax.xlane.f32.xlu0 %v13114
  %v13116 = vpop.xlane.xlu0 %13115
  %v13117 = vmax.f32 %v13068, %v13097
  %13118 = vmax.xlane.f32.xlu0 %v13117
  %v13119 = vpop.xlane.xlu0 %13118
  %v13120 = vmax.f32 %v13071, %v13100
  %13121 = vmax.xlane.f32.xlu0 %v13120
  %v13122 = vpop.xlane.xlu0 %13121
  %v13123 = vmax.f32 %v13073, %v13102
  %13124 = vmax.xlane.f32.xlu0 %v13123
  %v13125 = vpop.xlane.xlu0 %13124
  %v13126 = vmax.f32 %v13076, %v13105
  %13127 = vmax.xlane.f32.xlu0 %v13126
  %v13128 = vpop.xlane.xlu0 %13127
  %v13129 = vmax.f32 %v13078, %v13107
  %13130 = vmax.xlane.f32.xlu0 %v13129
  %v13131 = vpop.xlane.xlu0 %13130
  %v13132 = vmax.f32 %v13081, %v13110
  %13133 = vmax.xlane.f32.xlu0 %v13132
  %v13134 = vpop.xlane.xlu0 %13133
  %v13135 = vmax.f32 %v13083, %v13112
  %13136 = vmax.xlane.f32.xlu0 %v13135
  %v13137 = vpop.xlane.xlu0 %13136
  %v13138 = vsub.f32 %v13066, %v13116
  %v13139 = vsub.f32 %v13095, %v13116
  %v13140 = vsub.f32 %v13068, %v13119
  %v13141 = vsub.f32 %v13097, %v13119
  %v13142 = vsub.f32 %v13071, %v13122
  %v13143 = vsub.f32 %v13100, %v13122
  %v13144 = vsub.f32 %v13073, %v13125
  %v13145 = vsub.f32 %v13102, %v13125
  %v13146 = vsub.f32 %v13076, %v13128
  %v13147 = vsub.f32 %v13105, %v13128
  %v13148 = vsub.f32 %v13078, %v13131
  %v13149 = vsub.f32 %v13107, %v13131
  %v13150 = vsub.f32 %v13081, %v13134
  %v13151 = vsub.f32 %v13110, %v13134
  %v13152 = vsub.f32 %v13083, %v13137
  %v13153 = vsub.f32 %v13112, %v13137
  %v13154 = vmul.f32 %v13138, 1.442695
  %v13155 = vpow.pop %v13154
  %v13156 = vmul.f32 %v13139, 1.442695
  %v13157 = vpow.pop %v13156
  %v13158 = vmul.f32 %v13140, 1.442695
  %v13159 = vpow.pop %v13158
  %v13160 = vmul.f32 %v13141, 1.442695
  %v13161 = vpow.pop %v13160
  %v13162 = vmul.f32 %v13142, 1.442695
  %v13163 = vpow.pop %v13162
  %v13164 = vmul.f32 %v13143, 1.442695
  %v13165 = vpow.pop %v13164
  %v13166 = vmul.f32 %v13144, 1.442695
  %v13167 = vpow.pop %v13166
  %v13168 = vmul.f32 %v13145, 1.442695
  %v13169 = vpow.pop %v13168
  %v13170 = vmul.f32 %v13146, 1.442695
  %v13171 = vpow.pop %v13170
  %v13172 = vmul.f32 %v13147, 1.442695
  %v13173 = vpow.pop %v13172
  %v13174 = vmul.f32 %v13148, 1.442695
  %v13175 = vpow.pop %v13174
  %v13176 = vmul.f32 %v13149, 1.442695
  %v13177 = vpow.pop %v13176
  %v13178 = vmul.f32 %v13150, 1.442695
  %v13179 = vpow.pop %v13178
  %v13180 = vmul.f32 %v13151, 1.442695
  %v13181 = vpow.pop %v13180
  %v13182 = vmul.f32 %v13152, 1.442695
  %v13183 = vpow.pop %v13182
  %v13184 = vmul.f32 %v13153, 1.442695
  %v13185 = vpow.pop %v13184
  %v13186 = vadd.f32 %v13155, %v13157
  %13187 = vadd.xlane.f32.xlu0 %v13186
  %v13188 = vpop.xlane.xlu0 %13187
  %v13189 = vadd.f32 %v13159, %v13161
  %13190 = vadd.xlane.f32.xlu0 %v13189
  %v13191 = vpop.xlane.xlu0 %13190
  %v13192 = vadd.f32 %v13163, %v13165
  %13193 = vadd.xlane.f32.xlu0 %v13192
  %v13194 = vpop.xlane.xlu0 %13193
  %v13195 = vadd.f32 %v13167, %v13169
  %13196 = vadd.xlane.f32.xlu0 %v13195
  %v13197 = vpop.xlane.xlu0 %13196
  %v13198 = vadd.f32 %v13171, %v13173
  %13199 = vadd.xlane.f32.xlu0 %v13198
  %v13200 = vpop.xlane.xlu0 %13199
  %v13201 = vadd.f32 %v13175, %v13177
  %13202 = vadd.xlane.f32.xlu0 %v13201
  %v13203 = vpop.xlane.xlu0 %13202
  %v13204 = vadd.f32 %v13179, %v13181
  %13205 = vadd.xlane.f32.xlu0 %v13204
  %v13206 = vpop.xlane.xlu0 %13205
  %v13207 = vadd.f32 %v13183, %v13185
  %13208 = vadd.xlane.f32.xlu0 %v13207
  %v13209 = vpop.xlane.xlu0 %13208
  %v13210 = vrcp.pop %v13188
  %v13211 = vrcp.pop %v13191
  %v13212 = vrcp.pop %v13194
  %v13213 = vrcp.pop %v13197
  %v13214 = vrcp.pop %v13200
  %v13215 = vrcp.pop %v13203
  %v13216 = vrcp.pop %v13206
  %v13217 = vrcp.pop %v13209
  %v13218 = vmul.f32 %v13155, %v13210
  %v13219 = vmul.f32 %v13157, %v13210
  %v13220 = vmul.f32 %v13159, %v13211
  %v13221 = vmul.f32 %v13161, %v13211
  %v13222 = vmul.f32 %v13163, %v13212
  %v13223 = vmul.f32 %v13165, %v13212
  %v13224 = vmul.f32 %v13167, %v13213
  %v13225 = vmul.f32 %v13169, %v13213
  %v13226 = vmul.f32 %v13171, %v13214
  %v13227 = vmul.f32 %v13173, %v13214
  %v13228 = vmul.f32 %v13175, %v13215
  %v13229 = vmul.f32 %v13177, %v13215
  %v13230 = vmul.f32 %v13179, %v13216
  %v13231 = vmul.f32 %v13181, %v13216
  %v13232 = vmul.f32 %v13183, %v13217
  %v13233 = vmul.f32 %v13185, %v13217
  %v13234 = vpack.c.bf16 %v13220, %v13218
  %v13235 = vpack.c.bf16 %v13221, %v13219
  %v13236 = vpack.c.bf16 %v13224, %v13222
  %v13237 = vpack.c.bf16 %v13225, %v13223
  %v13238 = vpack.c.bf16 %v13228, %v13226
  %v13239 = vpack.c.bf16 %v13229, %v13227
  %v13240 = vpack.c.bf16 %v13232, %v13230
  %v13241 = vpack.c.bf16 %v13233, %v13231
  %13242 = vmatpush.bf16.msra.mxu0 %v12158
  %13243 = vmatpush.bf16.msra.mxu0 %v12157
  %13244 = vmatpush.bf16.msra.mxu0 %v12156
  %13245 = vmatpush.bf16.msra.mxu0 %v12155
  %13246 = vmatpush.bf16.msra.mxu0 %v12154
  %13247 = vmatpush.bf16.msra.mxu0 %v12153
  %13248 = vmatpush.bf16.msra.mxu0 %v12152
  %13249 = vmatpush.bf16.msra.mxu0 %v12151
  %13250 = vmatmul.bf16.gmra.mxu0 %v13234
  %v13251 = vpop.f32.mrf.mxu0
  %v13252 = vadd.f32 0.0, %v13251
  %v13253 = vpop.f32.mrf.mxu0
  %v13254 = vadd.f32 0.0, %v13253
  %13255 = vmatmul.bf16.gmra.mxu0 %v13236
  %v13256 = vpop.f32.mrf.mxu0
  %v13257 = vadd.f32 0.0, %v13256
  %v13258 = vpop.f32.mrf.mxu0
  %v13259 = vadd.f32 0.0, %v13258
  %13260 = vmatmul.bf16.gmra.mxu0 %v13238
  %v13261 = vpop.f32.mrf.mxu0
  %v13262 = vadd.f32 0.0, %v13261
  %v13263 = vpop.f32.mrf.mxu0
  %v13264 = vadd.f32 0.0, %v13263
  %13265 = vmatmul.bf16.gmra.mxu0 %v13240
  %v13266 = vpop.f32.mrf.mxu0
  %v13267 = vadd.f32 0.0, %v13266
  %v13268 = vpop.f32.mrf.mxu0
  %v13269 = vadd.f32 0.0, %v13268
  %13270 = vdwg.mxu0
  %13271 = vmatpush.bf16.msra.mxu0 %v12166
  %13272 = vmatpush.bf16.msra.mxu0 %v12165
  %13273 = vmatpush.bf16.msra.mxu0 %v12164
  %13274 = vmatpush.bf16.msra.mxu0 %v12163
  %13275 = vmatpush.bf16.msra.mxu0 %v12162
  %13276 = vmatpush.bf16.msra.mxu0 %v12161
  %13277 = vmatpush.bf16.msra.mxu0 %v12160
  %13278 = vmatpush.bf16.msra.mxu0 %v12159
  %13279 = vmatmul.bf16.gmra.mxu0 %v13235
  %v13280 = vpop.f32.mrf.mxu0
  %v13281 = vadd.f32 %v13252, %v13280
  %v13282 = vpop.f32.mrf.mxu0
  %v13283 = vadd.f32 %v13254, %v13282
  %13284 = vmatmul.bf16.gmra.mxu0 %v13237
  %v13285 = vpop.f32.mrf.mxu0
  %v13286 = vadd.f32 %v13257, %v13285
  %v13287 = vpop.f32.mrf.mxu0
  %v13288 = vadd.f32 %v13259, %v13287
  %13289 = vmatmul.bf16.gmra.mxu0 %v13239
  %v13290 = vpop.f32.mrf.mxu0
  %v13291 = vadd.f32 %v13262, %v13290
  %v13292 = vpop.f32.mrf.mxu0
  %v13293 = vadd.f32 %v13264, %v13292
  %13294 = vmatmul.bf16.gmra.mxu0 %v13241
  %v13295 = vpop.f32.mrf.mxu0
  %v13296 = vadd.f32 %v13267, %v13295
  %v13297 = vpop.f32.mrf.mxu0
  %v13298 = vadd.f32 %v13269, %v13297
  %13299 = vdwg.mxu0
  %13308 = vrot.lane.b32.xlu0 %v12753, 32
  %v13309 = vpop.permute.xlu0 %13308
  %13310 = vrot.lane.b32.xlu0 %v12755, 32
  %v13311 = vpop.permute.xlu0 %13310
  %13312 = vrot.lane.b32.xlu0 %v12758, 32
  %v13313 = vpop.permute.xlu0 %13312
  %13314 = vrot.lane.b32.xlu0 %v12760, 32
  %v13315 = vpop.permute.xlu0 %13314
  %13316 = vrot.lane.b32.xlu0 %v12763, 32
  %v13317 = vpop.permute.xlu0 %13316
  %13318 = vrot.lane.b32.xlu0 %v12765, 32
  %v13319 = vpop.permute.xlu0 %13318
  %13320 = vrot.lane.b32.xlu0 %v12768, 32
  %v13321 = vpop.permute.xlu0 %13320
  %13322 = vrot.lane.b32.xlu0 %v12770, 32
  %v13323 = vpop.permute.xlu0 %13322
  %13340 = vrot.lane.b32.xlu0 %v13017, 64
  %v13341 = vpop.permute.xlu0 %13340
  %13342 = vrot.lane.b32.xlu0 %v13019, 64
  %v13343 = vpop.permute.xlu0 %13342
  %13344 = vrot.lane.b32.xlu0 %v13022, 64
  %v13345 = vpop.permute.xlu0 %13344
  %13346 = vrot.lane.b32.xlu0 %v13024, 64
  %v13347 = vpop.permute.xlu0 %13346
  %13348 = vrot.lane.b32.xlu0 %v13027, 64
  %v13349 = vpop.permute.xlu0 %13348
  %13350 = vrot.lane.b32.xlu0 %v13029, 64
  %v13351 = vpop.permute.xlu0 %13350
  %13352 = vrot.lane.b32.xlu0 %v13032, 64
  %v13353 = vpop.permute.xlu0 %13352
  %13354 = vrot.lane.b32.xlu0 %v13034, 64
  %v13355 = vpop.permute.xlu0 %13354
  %13372 = vrot.lane.b32.xlu0 %v13281, 96
  %v13373 = vpop.permute.xlu0 %13372
  %13374 = vrot.lane.b32.xlu0 %v13283, 96
  %v13375 = vpop.permute.xlu0 %13374
  %13376 = vrot.lane.b32.xlu0 %v13286, 96
  %v13377 = vpop.permute.xlu0 %13376
  %13378 = vrot.lane.b32.xlu0 %v13288, 96
  %v13379 = vpop.permute.xlu0 %13378
  %13380 = vrot.lane.b32.xlu0 %v13291, 96
  %v13381 = vpop.permute.xlu0 %13380
  %13382 = vrot.lane.b32.xlu0 %v13293, 96
  %v13383 = vpop.permute.xlu0 %13382
  %13384 = vrot.lane.b32.xlu0 %v13296, 96
  %v13385 = vpop.permute.xlu0 %13384
  %13386 = vrot.lane.b32.xlu0 %v13298, 96
  %v13387 = vpop.permute.xlu0 %13386
  %v13396 = vsel %vm380, %v12485, %v13309
  %v13397 = vsel %vm380, %v12487, %v13311
  %v13398 = vsel %vm380, %v12490, %v13313
  %v13399 = vsel %vm380, %v12492, %v13315
  %v13400 = vsel %vm380, %v12495, %v13317
  %v13401 = vsel %vm380, %v12497, %v13319
  %v13402 = vsel %vm380, %v12500, %v13321
  %v13403 = vsel %vm380, %v12502, %v13323
  %v13404 = vsel %vm683, %v13396, %v13341
  %v13405 = vsel %vm683, %v13397, %v13343
  %v13406 = vsel %vm683, %v13398, %v13345
  %v13407 = vsel %vm683, %v13399, %v13347
  %v13408 = vsel %vm683, %v13400, %v13349
  %v13409 = vsel %vm683, %v13401, %v13351
  %v13410 = vsel %vm683, %v13402, %v13353
  %v13411 = vsel %vm683, %v13403, %v13355
  %v13412 = vsel %vm3675, %v13404, %v13373
  %v13413 = vsel %vm3675, %v13405, %v13375
  %v13414 = vsel %vm3675, %v13406, %v13377
  %v13415 = vsel %vm3675, %v13407, %v13379
  %v13416 = vsel %vm3675, %v13408, %v13381
  %v13417 = vsel %vm3675, %v13409, %v13383
  %v13418 = vsel %vm3675, %v13410, %v13385
  %v13419 = vsel %vm3675, %v13411, %v13387
  %v13420 = vpack.c.bf16 %v13413, %v13412
  %v13421 = vpack.c.bf16 %v13415, %v13414
  %v13422 = vpack.c.bf16 %v13417, %v13416
  %v13423 = vpack.c.bf16 %v13419, %v13418
  %13424 = vmatpush.bf16.msra.mxu0 %v6846
  %13425 = vmatpush.bf16.msra.mxu0 %v6845
  %13426 = vmatpush.bf16.msra.mxu0 %v6844
  %13427 = vmatpush.bf16.msra.mxu0 %v6843
  %13428 = vmatpush.bf16.msra.mxu0 %v6842
  %13429 = vmatpush.bf16.msra.mxu0 %v6841
  %13430 = vmatpush.bf16.msra.mxu0 %v6840
  %13431 = vmatpush.bf16.msra.mxu0 %v6839
  %13432 = vmatmul.bf16.gmra.mxu0 %v13420
  %v13433 = vpop.f32.mrf.mxu0
  %v13434 = vadd.f32 0.0, %v13433
  %v13435 = vpop.f32.mrf.mxu0
  %v13436 = vadd.f32 0.0, %v13435
  %13437 = vmatmul.bf16.gmra.mxu0 %v13421
  %v13438 = vpop.f32.mrf.mxu0
  %v13439 = vadd.f32 0.0, %v13438
  %v13440 = vpop.f32.mrf.mxu0
  %v13441 = vadd.f32 0.0, %v13440
  %13442 = vmatmul.bf16.gmra.mxu0 %v13422
  %v13443 = vpop.f32.mrf.mxu0
  %v13444 = vadd.f32 0.0, %v13443
  %v13445 = vpop.f32.mrf.mxu0
  %v13446 = vadd.f32 0.0, %v13445
  %13447 = vmatmul.bf16.gmra.mxu0 %v13423
  %v13448 = vpop.f32.mrf.mxu0
  %v13449 = vadd.f32 0.0, %v13448
  %v13450 = vpop.f32.mrf.mxu0
  %v13451 = vadd.f32 0.0, %v13450
  %13452 = vdwg.mxu0
  %v13453 = vpack.c.bf16 %v13436, %v13434
  %v13454 = vpack.c.bf16 %v13441, %v13439
  %v13455 = vpack.c.bf16 %v13446, %v13444
  %v13456 = vpack.c.bf16 %v13451, %v13449
  %13457 = vmatpush.bf16.msra.mxu0 %v6927
  %13458 = vmatpush.bf16.msra.mxu0 %v6926
  %13459 = vmatpush.bf16.msra.mxu0 %v6925
  %13460 = vmatpush.bf16.msra.mxu0 %v6924
  %13461 = vmatpush.bf16.msra.mxu0 %v6923
  %13462 = vmatpush.bf16.msra.mxu0 %v6922
  %13463 = vmatpush.bf16.msra.mxu0 %v6921
  %13464 = vmatpush.bf16.msra.mxu0 %v6920
  %13465 = vmatmul.bf16.gmra.mxu0 %v13453
  %v13466 = vpop.f32.mrf.mxu0
  %v13467 = vadd.f32 0.0, %v13466
  %v13468 = vpop.f32.mrf.mxu0
  %v13469 = vadd.f32 0.0, %v13468
  %13470 = vmatmul.bf16.gmra.mxu0 %v13454
  %v13471 = vpop.f32.mrf.mxu0
  %v13472 = vadd.f32 0.0, %v13471
  %v13473 = vpop.f32.mrf.mxu0
  %v13474 = vadd.f32 0.0, %v13473
  %13475 = vmatmul.bf16.gmra.mxu0 %v13455
  %v13476 = vpop.f32.mrf.mxu0
  %v13477 = vadd.f32 0.0, %v13476
  %v13478 = vpop.f32.mrf.mxu0
  %v13479 = vadd.f32 0.0, %v13478
  %13480 = vmatmul.bf16.gmra.mxu0 %v13456
  %v13481 = vpop.f32.mrf.mxu0
  %v13482 = vadd.f32 0.0, %v13481
  %v13483 = vpop.f32.mrf.mxu0
  %v13484 = vadd.f32 0.0, %v13483
  %13485 = vdwg.mxu0
  %v13486 = vsel %vm4014, %v13467, -inf
  %13487 = vmax.xlane.f32.xlu0 %v13486
  %v13488 = vpop.xlane.xlu0 %13487
  %v13489 = vsel %vm4014, %v13469, -inf
  %13490 = vmax.xlane.f32.xlu0 %v13489
  %v13491 = vpop.xlane.xlu0 %13490
  %v13492 = vsel %vm4014, %v13472, -inf
  %13493 = vmax.xlane.f32.xlu0 %v13492
  %v13494 = vpop.xlane.xlu0 %13493
  %v13495 = vsel %vm4014, %v13474, -inf
  %13496 = vmax.xlane.f32.xlu0 %v13495
  %v13497 = vpop.xlane.xlu0 %13496
  %v13498 = vsel %vm4014, %v13477, -inf
  %13499 = vmax.xlane.f32.xlu0 %v13498
  %v13500 = vpop.xlane.xlu0 %13499
  %v13501 = vsel %vm4014, %v13479, -inf
  %13502 = vmax.xlane.f32.xlu0 %v13501
  %v13503 = vpop.xlane.xlu0 %13502
  %v13504 = vsel %vm4014, %v13482, -inf
  %13505 = vmax.xlane.f32.xlu0 %v13504
  %v13506 = vpop.xlane.xlu0 %13505
  %v13507 = vsel %vm4014, %v13484, -inf
  %13508 = vmax.xlane.f32.xlu0 %v13507
  %v13509 = vpop.xlane.xlu0 %13508
  %v13510 = vsub.f32 %v13467, %v13488
  %v13511 = vsub.f32 %v13469, %v13491
  %v13512 = vsub.f32 %v13472, %v13494
  %v13513 = vsub.f32 %v13474, %v13497
  %v13514 = vsub.f32 %v13477, %v13500
  %v13515 = vsub.f32 %v13479, %v13503
  %v13516 = vsub.f32 %v13482, %v13506
  %v13517 = vsub.f32 %v13484, %v13509
  %v13518 = vmul.f32 %v13510, 1.442695
  %v13519 = vpow.pop %v13518
  %v13520 = vmul.f32 %v13511, 1.442695
  %v13521 = vpow.pop %v13520
  %v13522 = vmul.f32 %v13512, 1.442695
  %v13523 = vpow.pop %v13522
  %v13524 = vmul.f32 %v13513, 1.442695
  %v13525 = vpow.pop %v13524
  %v13526 = vmul.f32 %v13514, 1.442695
  %v13527 = vpow.pop %v13526
  %v13528 = vmul.f32 %v13515, 1.442695
  %v13529 = vpow.pop %v13528
  %v13530 = vmul.f32 %v13516, 1.442695
  %v13531 = vpow.pop %v13530
  %v13532 = vmul.f32 %v13517, 1.442695
  %v13533 = vpow.pop %v13532
  %v13534 = vsel %vm4014, %v13519, 0.0
  %13535 = vadd.xlane.f32.xlu0 %v13534
  %v13536 = vpop.xlane.xlu0 %13535
  %v13537 = vsel %vm4014, %v13521, 0.0
  %13538 = vadd.xlane.f32.xlu0 %v13537
  %v13539 = vpop.xlane.xlu0 %13538
  %v13540 = vsel %vm4014, %v13523, 0.0
  %13541 = vadd.xlane.f32.xlu0 %v13540
  %v13542 = vpop.xlane.xlu0 %13541
  %v13543 = vsel %vm4014, %v13525, 0.0
  %13544 = vadd.xlane.f32.xlu0 %v13543
  %v13545 = vpop.xlane.xlu0 %13544
  %v13546 = vsel %vm4014, %v13527, 0.0
  %13547 = vadd.xlane.f32.xlu0 %v13546
  %v13548 = vpop.xlane.xlu0 %13547
  %v13549 = vsel %vm4014, %v13529, 0.0
  %13550 = vadd.xlane.f32.xlu0 %v13549
  %v13551 = vpop.xlane.xlu0 %13550
  %v13552 = vsel %vm4014, %v13531, 0.0
  %13553 = vadd.xlane.f32.xlu0 %v13552
  %v13554 = vpop.xlane.xlu0 %13553
  %v13555 = vsel %vm4014, %v13533, 0.0
  %13556 = vadd.xlane.f32.xlu0 %v13555
  %v13557 = vpop.xlane.xlu0 %13556
  %13559 = vset.pattern.permute.xlu0 0
  %13560 = vperm.xlu0 %13559, %v13519
  %v13561 = vpop.permute.xlu0 %13560
  %13564 = vset.pattern.permute.xlu0 0
  %13565 = vperm.xlu0 %13564, %v13521
  %v13566 = vpop.permute.xlu0 %13565
  %13569 = vset.pattern.permute.xlu0 0
  %13570 = vperm.xlu0 %13569, %v13523
  %v13571 = vpop.permute.xlu0 %13570
  %13574 = vset.pattern.permute.xlu0 0
  %13575 = vperm.xlu0 %13574, %v13525
  %v13576 = vpop.permute.xlu0 %13575
  %13579 = vset.pattern.permute.xlu0 0
  %13580 = vperm.xlu0 %13579, %v13527
  %v13581 = vpop.permute.xlu0 %13580
  %13584 = vset.pattern.permute.xlu0 0
  %13585 = vperm.xlu0 %13584, %v13529
  %v13586 = vpop.permute.xlu0 %13585
  %13589 = vset.pattern.permute.xlu0 0
  %13590 = vperm.xlu0 %13589, %v13531
  %v13591 = vpop.permute.xlu0 %13590
  %13594 = vset.pattern.permute.xlu0 0
  %13595 = vperm.xlu0 %13594, %v13533
  %v13596 = vpop.permute.xlu0 %13595
  %v13598 = vmul.f32 %v13561, %v13434
  %v13599 = vmul.f32 %v13566, %v13436
  %v13600 = vmul.f32 %v13571, %v13439
  %v13601 = vmul.f32 %v13576, %v13441
  %v13602 = vmul.f32 %v13581, %v13444
  %v13603 = vmul.f32 %v13586, %v13446
  %v13604 = vmul.f32 %v13591, %v13449
  %v13605 = vmul.f32 %v13596, %v13451
  %13606 = vset.pattern.permute.xlu0 1
  %13607 = vperm.xlu0 %13606, %v13519
  %v13608 = vpop.permute.xlu0 %13607
  %13610 = vset.pattern.permute.xlu0 1
  %13611 = vperm.xlu0 %13610, %v13521
  %v13612 = vpop.permute.xlu0 %13611
  %13614 = vset.pattern.permute.xlu0 1
  %13615 = vperm.xlu0 %13614, %v13523
  %v13616 = vpop.permute.xlu0 %13615
  %13618 = vset.pattern.permute.xlu0 1
  %13619 = vperm.xlu0 %13618, %v13525
  %v13620 = vpop.permute.xlu0 %13619
  %13622 = vset.pattern.permute.xlu0 1
  %13623 = vperm.xlu0 %13622, %v13527
  %v13624 = vpop.permute.xlu0 %13623
  %13626 = vset.pattern.permute.xlu0 1
  %13627 = vperm.xlu0 %13626, %v13529
  %v13628 = vpop.permute.xlu0 %13627
  %13630 = vset.pattern.permute.xlu0 1
  %13631 = vperm.xlu0 %13630, %v13531
  %v13632 = vpop.permute.xlu0 %13631
  %13634 = vset.pattern.permute.xlu0 1
  %13635 = vperm.xlu0 %13634, %v13533
  %v13636 = vpop.permute.xlu0 %13635
  %v13638 = vmul.f32 %v13608, %v13434
  %v13639 = vmul.f32 %v13612, %v13436
  %v13640 = vmul.f32 %v13616, %v13439
  %v13641 = vmul.f32 %v13620, %v13441
  %v13642 = vmul.f32 %v13624, %v13444
  %v13643 = vmul.f32 %v13628, %v13446
  %v13644 = vmul.f32 %v13632, %v13449
  %v13645 = vmul.f32 %v13636, %v13451
  %13654 = vrot.lane.b32.xlu0 %v13638, 96
  %v13655 = vpop.permute.xlu0 %13654
  %13656 = vrot.lane.b32.xlu0 %v13639, 96
  %v13657 = vpop.permute.xlu0 %13656
  %13658 = vrot.lane.b32.xlu0 %v13640, 96
  %v13659 = vpop.permute.xlu0 %13658
  %13660 = vrot.lane.b32.xlu0 %v13641, 96
  %v13661 = vpop.permute.xlu0 %13660
  %13662 = vrot.lane.b32.xlu0 %v13642, 96
  %v13663 = vpop.permute.xlu0 %13662
  %13664 = vrot.lane.b32.xlu0 %v13643, 96
  %v13665 = vpop.permute.xlu0 %13664
  %13666 = vrot.lane.b32.xlu0 %v13644, 96
  %v13667 = vpop.permute.xlu0 %13666
  %13668 = vrot.lane.b32.xlu0 %v13645, 96
  %v13669 = vpop.permute.xlu0 %13668
  %v13678 = vadd.f32 %v13598, %v13655
  %v13679 = vadd.f32 %v13599, %v13657
  %v13680 = vadd.f32 %v13600, %v13659
  %v13681 = vadd.f32 %v13601, %v13661
  %v13682 = vadd.f32 %v13602, %v13663
  %v13683 = vadd.f32 %v13603, %v13665
  %v13684 = vadd.f32 %v13604, %v13667
  %v13685 = vadd.f32 %v13605, %v13669
  %13686 = vset.pattern.permute.xlu0 2
  %13687 = vperm.xlu0 %13686, %v13519
  %v13688 = vpop.permute.xlu0 %13687
  %13690 = vset.pattern.permute.xlu0 2
  %13691 = vperm.xlu0 %13690, %v13521
  %v13692 = vpop.permute.xlu0 %13691
  %13694 = vset.pattern.permute.xlu0 2
  %13695 = vperm.xlu0 %13694, %v13523
  %v13696 = vpop.permute.xlu0 %13695
  %13698 = vset.pattern.permute.xlu0 2
  %13699 = vperm.xlu0 %13698, %v13525
  %v13700 = vpop.permute.xlu0 %13699
  %13702 = vset.pattern.permute.xlu0 2
  %13703 = vperm.xlu0 %13702, %v13527
  %v13704 = vpop.permute.xlu0 %13703
  %13706 = vset.pattern.permute.xlu0 2
  %13707 = vperm.xlu0 %13706, %v13529
  %v13708 = vpop.permute.xlu0 %13707
  %13710 = vset.pattern.permute.xlu0 2
  %13711 = vperm.xlu0 %13710, %v13531
  %v13712 = vpop.permute.xlu0 %13711
  %13714 = vset.pattern.permute.xlu0 2
  %13715 = vperm.xlu0 %13714, %v13533
  %v13716 = vpop.permute.xlu0 %13715
  %v13718 = vmul.f32 %v13688, %v13434
  %v13719 = vmul.f32 %v13692, %v13436
  %v13720 = vmul.f32 %v13696, %v13439
  %v13721 = vmul.f32 %v13700, %v13441
  %v13722 = vmul.f32 %v13704, %v13444
  %v13723 = vmul.f32 %v13708, %v13446
  %v13724 = vmul.f32 %v13712, %v13449
  %v13725 = vmul.f32 %v13716, %v13451
  %13734 = vrot.lane.b32.xlu0 %v13718, 64
  %v13735 = vpop.permute.xlu0 %13734
  %13736 = vrot.lane.b32.xlu0 %v13719, 64
  %v13737 = vpop.permute.xlu0 %13736
  %13738 = vrot.lane.b32.xlu0 %v13720, 64
  %v13739 = vpop.permute.xlu0 %13738
  %13740 = vrot.lane.b32.xlu0 %v13721, 64
  %v13741 = vpop.permute.xlu0 %13740
  %13742 = vrot.lane.b32.xlu0 %v13722, 64
  %v13743 = vpop.permute.xlu0 %13742
  %13744 = vrot.lane.b32.xlu0 %v13723, 64
  %v13745 = vpop.permute.xlu0 %13744
  %13746 = vrot.lane.b32.xlu0 %v13724, 64
  %v13747 = vpop.permute.xlu0 %13746
  %13748 = vrot.lane.b32.xlu0 %v13725, 64
  %v13749 = vpop.permute.xlu0 %13748
  %v13758 = vadd.f32 %v13678, %v13735
  %v13759 = vadd.f32 %v13679, %v13737
  %v13760 = vadd.f32 %v13680, %v13739
  %v13761 = vadd.f32 %v13681, %v13741
  %v13762 = vadd.f32 %v13682, %v13743
  %v13763 = vadd.f32 %v13683, %v13745
  %v13764 = vadd.f32 %v13684, %v13747
  %v13765 = vadd.f32 %v13685, %v13749
  %13766 = vset.pattern.permute.xlu0 3
  %13767 = vperm.xlu0 %13766, %v13519
  %v13768 = vpop.permute.xlu0 %13767
  %13770 = vset.pattern.permute.xlu0 3
  %13771 = vperm.xlu0 %13770, %v13521
  %v13772 = vpop.permute.xlu0 %13771
  %13774 = vset.pattern.permute.xlu0 3
  %13775 = vperm.xlu0 %13774, %v13523
  %v13776 = vpop.permute.xlu0 %13775
  %13778 = vset.pattern.permute.xlu0 3
  %13779 = vperm.xlu0 %13778, %v13525
  %v13780 = vpop.permute.xlu0 %13779
  %13782 = vset.pattern.permute.xlu0 3
  %13783 = vperm.xlu0 %13782, %v13527
  %v13784 = vpop.permute.xlu0 %13783
  %13786 = vset.pattern.permute.xlu0 3
  %13787 = vperm.xlu0 %13786, %v13529
  %v13788 = vpop.permute.xlu0 %13787
  %13790 = vset.pattern.permute.xlu0 3
  %13791 = vperm.xlu0 %13790, %v13531
  %v13792 = vpop.permute.xlu0 %13791
  %13794 = vset.pattern.permute.xlu0 3
  %13795 = vperm.xlu0 %13794, %v13533
  %v13796 = vpop.permute.xlu0 %13795
  %v13798 = vmul.f32 %v13768, %v13434
  %v13799 = vmul.f32 %v13772, %v13436
  %v13800 = vmul.f32 %v13776, %v13439
  %v13801 = vmul.f32 %v13780, %v13441
  %v13802 = vmul.f32 %v13784, %v13444
  %v13803 = vmul.f32 %v13788, %v13446
  %v13804 = vmul.f32 %v13792, %v13449
  %v13805 = vmul.f32 %v13796, %v13451
  %13814 = vrot.lane.b32.xlu0 %v13798, 32
  %v13815 = vpop.permute.xlu0 %13814
  %13816 = vrot.lane.b32.xlu0 %v13799, 32
  %v13817 = vpop.permute.xlu0 %13816
  %13818 = vrot.lane.b32.xlu0 %v13800, 32
  %v13819 = vpop.permute.xlu0 %13818
  %13820 = vrot.lane.b32.xlu0 %v13801, 32
  %v13821 = vpop.permute.xlu0 %13820
  %13822 = vrot.lane.b32.xlu0 %v13802, 32
  %v13823 = vpop.permute.xlu0 %13822
  %13824 = vrot.lane.b32.xlu0 %v13803, 32
  %v13825 = vpop.permute.xlu0 %13824
  %13826 = vrot.lane.b32.xlu0 %v13804, 32
  %v13827 = vpop.permute.xlu0 %13826
  %13828 = vrot.lane.b32.xlu0 %v13805, 32
  %v13829 = vpop.permute.xlu0 %13828
  %v13838 = vadd.f32 %v13758, %v13815
  %v13839 = vadd.f32 %v13759, %v13817
  %v13840 = vadd.f32 %v13760, %v13819
  %v13841 = vadd.f32 %v13761, %v13821
  %v13842 = vadd.f32 %v13762, %v13823
  %v13843 = vadd.f32 %v13763, %v13825
  %v13844 = vadd.f32 %v13764, %v13827
  %v13845 = vadd.f32 %v13765, %v13829
  %v13846 = vrcp.pop %v13536
  %v13847 = vrcp.pop %v13539
  %v13848 = vrcp.pop %v13542
  %v13849 = vrcp.pop %v13545
  %v13850 = vrcp.pop %v13548
  %v13851 = vrcp.pop %v13551
  %v13852 = vrcp.pop %v13554
  %v13853 = vrcp.pop %v13557
  %v13854 = vmul.f32 %v13838, %v13846
  %v13855 = vmul.f32 %v13839, %v13847
  %v13856 = vmul.f32 %v13840, %v13848
  %v13857 = vmul.f32 %v13841, %v13849
  %v13858 = vmul.f32 %v13842, %v13850
  %v13859 = vmul.f32 %v13843, %v13851
  %v13860 = vmul.f32 %v13844, %v13852
  %v13861 = vmul.f32 %v13845, %v13853
  %v13862 = vpack.c.bf16 %v13855, %v13854
  %v13863 = vpack.c.bf16 %v13857, %v13856
  %v13864 = vpack.c.bf16 %v13859, %v13858
  %v13865 = vpack.c.bf16 %v13861, %v13860
  %v13867 = vsel %vm380, %v13862, 0
  %v13870 = vsel %vm380, %v13863, 0
  %v13873 = vsel %vm380, %v13864, 0
  %v13876 = vsel %vm380, %v13865, 0
  %13878 = vmatpush.bf16.xpose.msra.mxu0 0
  %13879 = vmatpush.bf16.xpose.msra.mxu0 0
  %13880 = vmatpush.bf16.xpose.msra.mxu0 0
  %13881 = vmatpush.bf16.xpose.msra.mxu0 0
  %13882 = vmatpush.bf16.xpose.msra.mxu0 %v13876
  %13883 = vmatpush.bf16.xpose.msra.mxu0 %v13873
  %13884 = vmatpush.bf16.xpose.msra.mxu0 %v13870
  %13885 = vmatpush.bf16.xpose.msra.mxu0 %v13867
  %13886 = vmatmul.bf16.gmra.mxu0 %v7356
  %v13887 = vpop.f32.mrf.mxu0
  %v13888 = vadd.f32 0.0, %v13887
  %v13889 = vpop.f32.mrf.mxu0
  %v13890 = vadd.f32 0.0, %v13889
  %13891 = vmatmul.bf16.gmra.mxu0 %v7359
  %v13892 = vpop.f32.mrf.mxu0
  %v13893 = vadd.f32 0.0, %v13892
  %v13894 = vpop.f32.mrf.mxu0
  %v13895 = vadd.f32 0.0, %v13894
  %13896 = vdwg.mxu0
  %v13897 = vpack.c.bf16 %v13890, %v13888
  %v13898 = vpack.c.bf16 %v13895, %v13893
  %v13900 = vsel %vm683, %v13897, 0
  %v13903 = vsel %vm683, %v13898, 0
  %13905 = vmatpush.bf16.msra.mxu0 0
  %13906 = vmatpush.bf16.msra.mxu0 0
  %13907 = vmatpush.bf16.msra.mxu0 0
  %13908 = vmatpush.bf16.msra.mxu0 0
  %13909 = vmatpush.bf16.msra.mxu0 %v7424
  %13910 = vmatpush.bf16.msra.mxu0 %v7422
  %13911 = vmatpush.bf16.msra.mxu0 %v7420
  %13912 = vmatpush.bf16.msra.mxu0 %v7418
  %13913 = vmatmul.bf16.gmra.mxu0 %v13900
  %v13914 = vpop.f32.mrf.mxu0
  %v13915 = vadd.f32 0.0, %v13914
  %v13916 = vpop.f32.mrf.mxu0
  %v13917 = vadd.f32 0.0, %v13916
  %13918 = vmatmul.bf16.gmra.mxu0 %v13903
  %v13919 = vpop.f32.mrf.mxu0
  %v13920 = vadd.f32 0.0, %v13919
  %v13921 = vpop.f32.mrf.mxu0
  %v13922 = vadd.f32 0.0, %v13921
  %13923 = vdwg.mxu0
  %13924 = vmatpush.bf16.msra.mxu0 0
  %13925 = vmatpush.bf16.msra.mxu0 0
  %13926 = vmatpush.bf16.msra.mxu0 0
  %13927 = vmatpush.bf16.msra.mxu0 0
  %13928 = vmatpush.bf16.msra.mxu0 %v7425
  %13929 = vmatpush.bf16.msra.mxu0 %v7423
  %13930 = vmatpush.bf16.msra.mxu0 %v7421
  %13931 = vmatpush.bf16.msra.mxu0 %v7419
  %13932 = vmatmul.bf16.gmra.mxu0 %v13900
  %v13933 = vpop.f32.mrf.mxu0
  %v13934 = vadd.f32 0.0, %v13933
  %v13935 = vpop.f32.mrf.mxu0
  %v13936 = vadd.f32 0.0, %v13935
  %13937 = vmatmul.bf16.gmra.mxu0 %v13903
  %v13938 = vpop.f32.mrf.mxu0
  %v13939 = vadd.f32 0.0, %v13938
  %v13940 = vpop.f32.mrf.mxu0
  %v13941 = vadd.f32 0.0, %v13940
  %13942 = vdwg.mxu0
  %v13943 = vadd.f32 %v7495, %v13915
  %v13944 = vadd.f32 %v7496, %v13934
  %v13945 = vadd.f32 %v7497, %v13917
  %v13946 = vadd.f32 %v7498, %v13936
  %v13947 = vadd.f32 %v7499, %v13920
  %v13948 = vadd.f32 %v7500, %v13939
  %v13949 = vadd.f32 %v7501, %v13922
  %v13950 = vadd.f32 %v7502, %v13941
  %s13951 = scalar_lea.vmem %s13, 64
  %13952 = vst [vmem:[%s13951] sm:$0xff] %v13943
  %13953 = vst [vmem:[%s13951 + $0x8] sm:$0xff] %v13944
  %13954 = vst [vmem:[%s13951 + $0x10] sm:$0xff] %v13945
  %13955 = vst [vmem:[%s13951 + $0x18] sm:$0xff] %v13946
  %13956 = vst [vmem:[%s13951 + $0x20] sm:$0xff] %v13947
  %13957 = vst [vmem:[%s13951 + $0x28] sm:$0xff] %v13948
  %13958 = vst [vmem:[%s13951 + $0x30] sm:$0xff] %v13949
  %13959 = vst [vmem:[%s13951 + $0x38] sm:$0xff] %v13950
  // Predicated region
  $region54: #{polyformer_forward.1} parent=0 // pred_check
    _
  $region55: #{polyformer_forward.1} parent=0 // pred_check_branch
    %13961 = sbr.rel (0) target = $region57
  $region56: #{polyformer_forward.1} parent=0 // pred_region
    _
  $region57: #{polyformer_forward.1} parent=0 // pred_fallthru
    _
  // Predicated region
  $region58: #{polyformer_forward.1} parent=0 // pred_check
    _
  $region59: #{polyformer_forward.1} parent=0 // pred_check_branch
    %13963 = sbr.rel (0) target = $region61
  $region60: #{polyformer_forward.1} parent=0 // pred_region
    _
  $region61: #{polyformer_forward.1} parent=0 // pred_fallthru
    _

</llo_original>
